<compile_context>
chip_gen: v7x
topology: tpu7x:2x2x1
jax: 0.10.0
libtpu: 0.0.40
codegen_flags: <defaults>
</compile_context>

<pallas_src>
import math

import jax
import jax.numpy as jnp
from jax.experimental import pallas as pl
from jax.experimental.pallas import tpu as pltpu

# ----------------------------- small config ---------------------------------
EMBED_DIM    = 32
N_HEADS      = 4
N_ENCODERS   = 2
N_DECODERS   = 2
MLP_RATIO    = 4.0
IMG_CHANNELS = 3
IMG_DIM      = 64
PATCH_DIM    = 16
BATCH        = 2                                  # per siamese input

HEAD_DIM   = EMBED_DIM // N_HEADS
HIDDEN     = int(EMBED_DIM * MLP_RATIO)           # 128 (lane-full)
N_PATCHES  = (IMG_DIM // PATCH_DIM) ** 2          # 16 tokens / image
PATCH_FEAT = IMG_CHANNELS * PATCH_DIM * PATCH_DIM  # 768 (multiple of 128)
N_LAYERS   = N_ENCODERS + N_DECODERS
LN_EPS     = 1e-5

TOTAL_IMAGES  = 2 * BATCH                         # siamese pair batched together
N_GRID        = 2                                 # parallel halves (feeds 2 TCs on v7x)
IMGS_PER_STEP = TOTAL_IMAGES // N_GRID            # 2
ROWS_PER_STEP = IMGS_PER_STEP * N_PATCHES         # 32 rows (full sublanes)
TOTAL_ROWS    = TOTAL_IMAGES * N_PATCHES          # 64

_PARAM_ORDER = (
    "patch_w", "patch_b", "pos",
    "ln1_g", "ln1_b", "wqkv", "bqkv", "wo", "bo",
    "ln2_g", "ln2_b", "w1", "b1", "w2", "b2",
    "tr_w", "tr_b",
)


# ----------------------------- fused Pallas kernel ---------------------------
def fused_vit_ae_kernel(x_ref,
                        pw_ref, pb_ref, pos_ref,
                        ln1g_ref, ln1b_ref, wqkv_ref, bqkv_ref, wo_ref, bo_ref,
                        ln2g_ref, ln2b_ref, w1_ref, b1_ref, w2_ref, b2_ref,
                        trw_ref, trb_ref,
                        z_ref, rec_ref):
    """One grid step processes IMGS_PER_STEP images end-to-end (embed->enc->dec->recon)."""

    def layernorm(v, g, b):                      # all f32 (v5e has no bf16 VPU)
        mu = jnp.mean(v, axis=-1, keepdims=True)
        var = jnp.mean((v - mu) ** 2, axis=-1, keepdims=True)
        return (v - mu) * jax.lax.rsqrt(var + LN_EPS) * g + b

    scale = 1.0 / math.sqrt(HEAD_DIM)

    # ---- patch embedding: (R, C*P*P) @ (C*P*P, E) + bias + positional enc ----
    x = x_ref[...]                                               # (R, 768) f32
    emb = jnp.dot(x.astype(jnp.bfloat16), pw_ref[...],
                  preferred_element_type=jnp.float32) + pb_ref[...]
    emb = (emb.reshape(IMGS_PER_STEP, N_PATCHES, EMBED_DIM)
           + pos_ref[...][None, :, :]).reshape(ROWS_PER_STEP, EMBED_DIM)

    def transformer_block(h, l):
        # ---- MHSA (pre-norm), fused QKV matmul ----
        xn = layernorm(h, ln1g_ref[l], ln1b_ref[l])
        qkv = jnp.dot(xn.astype(jnp.bfloat16), wqkv_ref[l],
                      preferred_element_type=jnp.float32) + bqkv_ref[l]   # (R, 3E)
        q = qkv[:, 0 * EMBED_DIM:1 * EMBED_DIM].reshape(IMGS_PER_STEP, N_PATCHES, EMBED_DIM)
        k = qkv[:, 1 * EMBED_DIM:2 * EMBED_DIM].reshape(IMGS_PER_STEP, N_PATCHES, EMBED_DIM)
        v = qkv[:, 2 * EMBED_DIM:3 * EMBED_DIM].reshape(IMGS_PER_STEP, N_PATCHES, EMBED_DIM)

        # attention batched over the images in this step (single-batch-dim einsums);
        # per-head loop kept static (H=4) for robust Mosaic lowering.
        ctx_heads = []
        for hh in range(N_HEADS):
            sl = slice(hh * HEAD_DIM, (hh + 1) * HEAD_DIM)
            qh = q[:, :, sl].astype(jnp.bfloat16)
            kh = k[:, :, sl].astype(jnp.bfloat16)
            vh = v[:, :, sl].astype(jnp.bfloat16)
            s = jnp.einsum('bqd,bkd->bqk', qh, kh,
                           preferred_element_type=jnp.float32) * scale
            s = s - jnp.max(s, axis=-1, keepdims=True)
            p = jnp.exp(s)
            p = p * pl.reciprocal(jnp.sum(p, axis=-1, keepdims=True), approx=True)
            ctx_heads.append(
                jnp.einsum('bqk,bkd->bqd', p.astype(jnp.bfloat16), vh,
                           preferred_element_type=jnp.float32))
        ctx = jnp.concatenate(ctx_heads, axis=-1).reshape(ROWS_PER_STEP, EMBED_DIM)
        attn = jnp.dot(ctx.astype(jnp.bfloat16), wo_ref[l],
                       preferred_element_type=jnp.float32) + bo_ref[l]
        h = h + attn

        # ---- MLP (pre-norm) ----
        xn2 = layernorm(h, ln2g_ref[l], ln2b_ref[l])
        h1 = jnp.dot(xn2.astype(jnp.bfloat16), w1_ref[l],
                     preferred_element_type=jnp.float32) + b1_ref[l]
        h1 = jax.nn.gelu(h1, approximate=True)   # TODO(synk): exact erf GELU
        h2 = jnp.dot(h1.astype(jnp.bfloat16), w2_ref[l],
                     preferred_element_type=jnp.float32) + b2_ref[l]
        return h + h2

    h = emb
    for l in range(N_ENCODERS):
        h = transformer_block(h, l)
    z_ref[...] = h                                               # latent (R, E)

    for l in range(N_ENCODERS, N_LAYERS):
        h = transformer_block(h, l)

    # ---- patch transpose: (R, E) @ (E, C*P*P) + bias  (lane-dense 768 store) ----
    rec_ref[...] = jnp.dot(h.astype(jnp.bfloat16), trw_ref[...],
                           preferred_element_type=jnp.float32) + trb_ref[...]


def fused_forward_call(x_flat, params):
    weights = [params[name] for name in _PARAM_ORDER]

    in_specs = [pl.BlockSpec((ROWS_PER_STEP, PATCH_FEAT), lambda g: (g, 0))]
    for w in weights:
        nd = w.ndim
        # full-array blocks with constant block index -> DMA'd once, reused per step
        in_specs.append(pl.BlockSpec(w.shape, lambda g, _nd=nd: (0,) * _nd))

    out_specs = (
        pl.BlockSpec((ROWS_PER_STEP, EMBED_DIM), lambda g: (g, 0)),
        pl.BlockSpec((ROWS_PER_STEP, PATCH_FEAT), lambda g: (g, 0)),
    )
    out_shape = (
        jax.ShapeDtypeStruct((TOTAL_ROWS, EMBED_DIM), jnp.float32),
        jax.ShapeDtypeStruct((TOTAL_ROWS, PATCH_FEAT), jnp.float32),
    )

    return pl.pallas_call(
        fused_vit_ae_kernel,
        grid=(N_GRID,),
        out_shape=out_shape,
        in_specs=in_specs,
        out_specs=out_specs,
        compiler_params=pltpu.CompilerParams(
            dimension_semantics=("parallel",),     # shards halves across v7x's 2 TCs
            vmem_limit_bytes=32 * 1024 * 1024,
        ),
    )(x_flat, *weights)


# ----------------------------- glue (plain JAX) -------------------------------
def extract_patches(x):
    # x: (B, C, H, W) -> (B, N, C*P*P), patch flattened in (C, ph, pw) order
    B, C, H, W = x.shape
    P = PATCH_DIM
    x = x.reshape(B, C, H // P, P, W // P, P)
    x = x.transpose(0, 2, 4, 1, 3, 5)           # (B, Hp, Wp, C, P, P)
    return x.reshape(B, (H // P) * (W // P), C * P * P)


def assemble_image(tokens):
    # tokens: (B, N, C*P*P) -> (B, C, H, W)
    B = tokens.shape[0]
    Hp = Wp = IMG_DIM // PATCH_DIM
    x = tokens.reshape(B, Hp, Wp, IMG_CHANNELS, PATCH_DIM, PATCH_DIM)
    x = x.transpose(0, 3, 1, 4, 2, 5)
    return x.reshape(B, IMG_CHANNELS, IMG_DIM, IMG_DIM)


def sinusoidal_pos_enc(n, d):
    pos = jnp.arange(n, dtype=jnp.float32)[:, None]
    i = jnp.arange(d // 2, dtype=jnp.float32)[None, :]
    angle = pos / jnp.power(10000.0, 2.0 * i / d)
    pe = jnp.zeros((n, d), dtype=jnp.float32)
    pe = pe.at[:, 0::2].set(jnp.sin(angle))
    pe = pe.at[:, 1::2].set(jnp.cos(angle))
    return pe


# ----------------------------- parameter init ---------------------------------
def _init_block(key):
    ks = jax.random.split(key, 4)
    s = 0.02
    return {
        "ln1_g": jnp.ones((1, EMBED_DIM), jnp.float32),
        "ln1_b": jnp.zeros((1, EMBED_DIM), jnp.float32),
        # fused Wq|Wk|Wv — bf16 MXU operands, f32 accumulation in-kernel
        "wqkv": (s * jax.random.normal(ks[0], (EMBED_DIM, 3 * EMBED_DIM),
                                       jnp.float32)).astype(jnp.bfloat16),
        "bqkv": jnp.zeros((1, 3 * EMBED_DIM), jnp.float32),
        "wo": (s * jax.random.normal(ks[1], (EMBED_DIM, EMBED_DIM),
                                     jnp.float32)).astype(jnp.bfloat16),
        "bo": jnp.zeros((1, EMBED_DIM), jnp.float32),
        "ln2_g": jnp.ones((1, EMBED_DIM), jnp.float32),
        "ln2_b": jnp.zeros((1, EMBED_DIM), jnp.float32),
        "w1": (s * jax.random.normal(ks[2], (EMBED_DIM, HIDDEN),
                                     jnp.float32)).astype(jnp.bfloat16),
        "b1": jnp.zeros((1, HIDDEN), jnp.float32),
        "w2": (s * jax.random.normal(ks[3], (HIDDEN, EMBED_DIM),
                                     jnp.float32)).astype(jnp.bfloat16),
        "b2": jnp.zeros((1, EMBED_DIM), jnp.float32),
    }


def init_params(key):
    k_pe, k_pt, k_blk = jax.random.split(key, 3)
    s = 0.02
    blocks = [_init_block(k) for k in jax.random.split(k_blk, N_LAYERS)]
    params = {
        # PatchEmbedding: Conv2d(C, E, k=P, s=P) as (C*P*P, E) matmul weight
        "patch_w": (s * jax.random.normal(k_pe, (PATCH_FEAT, EMBED_DIM),
                                          jnp.float32)).astype(jnp.bfloat16),
        "patch_b": jnp.zeros((1, EMBED_DIM), jnp.float32),
        "pos": sinusoidal_pos_enc(N_PATCHES, EMBED_DIM),
        # PatchTranspose: ConvTranspose2d(E, C, k=P, s=P) as (E, C*P*P) matmul weight
        # (flatten order must stay (C, P, P)-major to match assemble_image)
        "tr_w": (s * jax.random.normal(k_pt, (EMBED_DIM, PATCH_FEAT),
                                       jnp.float32)).astype(jnp.bfloat16),
        "tr_b": jnp.zeros((1, PATCH_FEAT), jnp.float32),
    }
    # stack the transformer blocks (encoders then decoders) along a leading axis
    for name in blocks[0]:
        params[name] = jnp.stack([b[name] for b in blocks], axis=0)
    return params


# ----------------------------- model forward ----------------------------------
@jax.jit
def siamese_vit_autoencoder_forward(x1, x2, params):
    # batch the siamese pair so one fused kernel chain serves both inputs
    x = jnp.concatenate([x1, x2], axis=0)                 # (2B, C, H, W)
    tokens = extract_patches(x)                           # (2B, N, C*P*P)
    flat = tokens.reshape(TOTAL_ROWS, PATCH_FEAT)

    z_flat, rec_flat = fused_forward_call(flat, params)

    z = z_flat.reshape(TOTAL_IMAGES, N_PATCHES, EMBED_DIM)
    rec = assemble_image(rec_flat.reshape(TOTAL_IMAGES, N_PATCHES, PATCH_FEAT))

    z1, z2 = z[:BATCH], z[BATCH:]
    x1_rec, x2_rec = rec[:BATCH], rec[BATCH:]
    return z1, z2, x1_rec, x2_rec


# ----------------------------------- main --------------------------------------
if __name__ == "__main__":
    key = jax.random.PRNGKey(0)
    k_p, k1, k2 = jax.random.split(key, 3)
    params = init_params(k_p)

    x1 = jax.random.normal(k1, (BATCH, IMG_CHANNELS, IMG_DIM, IMG_DIM), jnp.float32)
    x2 = jax.random.normal(k2, (BATCH, IMG_CHANNELS, IMG_DIM, IMG_DIM), jnp.float32)

    z1, z2, r1, r2 = siamese_vit_autoencoder_forward(x1, x2, params)
    jax.block_until_ready((z1, z2, r1, r2))

    assert z1.shape == (BATCH, N_PATCHES, EMBED_DIM)
    assert z2.shape == (BATCH, N_PATCHES, EMBED_DIM)
    assert r1.shape == (BATCH, IMG_CHANNELS, IMG_DIM, IMG_DIM)
    assert r2.shape == (BATCH, IMG_CHANNELS, IMG_DIM, IMG_DIM)
    assert bool(jnp.all(jnp.isfinite(r1))) and bool(jnp.all(jnp.isfinite(r2)))
    print("KERNEL_OK")
</pallas_src>

<mosaic_0001>
module attributes {stable_mosaic.version = 11 : i64} {
  func.func @fused_vit_ae_kernel(%arg0: i32, %arg1: memref<32x768xf32, #tpu.memory_space<vmem>>, %arg2: memref<768x32xbf16, #tpu.memory_space<vmem>>, %arg3: memref<1x32xf32, #tpu.memory_space<vmem>>, %arg4: memref<16x32xf32, #tpu.memory_space<vmem>>, %arg5: memref<4x1x32xf32, #tpu.memory_space<vmem>>, %arg6: memref<4x1x32xf32, #tpu.memory_space<vmem>>, %arg7: memref<4x32x96xbf16, #tpu.memory_space<vmem>>, %arg8: memref<4x1x96xf32, #tpu.memory_space<vmem>>, %arg9: memref<4x32x32xbf16, #tpu.memory_space<vmem>>, %arg10: memref<4x1x32xf32, #tpu.memory_space<vmem>>, %arg11: memref<4x1x32xf32, #tpu.memory_space<vmem>>, %arg12: memref<4x1x32xf32, #tpu.memory_space<vmem>>, %arg13: memref<4x32x128xbf16, #tpu.memory_space<vmem>>, %arg14: memref<4x1x128xf32, #tpu.memory_space<vmem>>, %arg15: memref<4x128x32xbf16, #tpu.memory_space<vmem>>, %arg16: memref<4x1x32xf32, #tpu.memory_space<vmem>>, %arg17: memref<32x768xbf16, #tpu.memory_space<vmem>>, %arg18: memref<1x768xf32, #tpu.memory_space<vmem>>, %arg19: memref<32x32xf32, #tpu.memory_space<vmem>>, %arg20: memref<32x768xf32, #tpu.memory_space<vmem>>) attributes {dimension_semantics = [#tpu.dimension_semantics<parallel>], iteration_bounds = array<i64: 2>, scalar_prefetch = 0 : i64, scratch_operands = 0 : i64, tpu.core_type = #tpu.core_type<tc>, window_params = [{transform_indices = @transform_0, window_bounds = array<i64: 32, 768>}, {pipeline_mode = #tpu.pipeline_mode<synchronous>, transform_indices = @transform_1, window_bounds = array<i64: 768, 32>}, {pipeline_mode = #tpu.pipeline_mode<synchronous>, transform_indices = @transform_2, window_bounds = array<i64: 1, 32>}, {pipeline_mode = #tpu.pipeline_mode<synchronous>, transform_indices = @transform_3, window_bounds = array<i64: 16, 32>}, {pipeline_mode = #tpu.pipeline_mode<synchronous>, transform_indices = @transform_4, window_bounds = array<i64: 4, 1, 32>}, {pipeline_mode = #tpu.pipeline_mode<synchronous>, transform_indices = @transform_5, window_bounds = array<i64: 4, 1, 32>}, {pipeline_mode = #tpu.pipeline_mode<synchronous>, transform_indices = @transform_6, window_bounds = array<i64: 4, 32, 96>}, {pipeline_mode = #tpu.pipeline_mode<synchronous>, transform_indices = @transform_7, window_bounds = array<i64: 4, 1, 96>}, {pipeline_mode = #tpu.pipeline_mode<synchronous>, transform_indices = @transform_8, window_bounds = array<i64: 4, 32, 32>}, {pipeline_mode = #tpu.pipeline_mode<synchronous>, transform_indices = @transform_9, window_bounds = array<i64: 4, 1, 32>}, {pipeline_mode = #tpu.pipeline_mode<synchronous>, transform_indices = @transform_10, window_bounds = array<i64: 4, 1, 32>}, {pipeline_mode = #tpu.pipeline_mode<synchronous>, transform_indices = @transform_11, window_bounds = array<i64: 4, 1, 32>}, {pipeline_mode = #tpu.pipeline_mode<synchronous>, transform_indices = @transform_12, window_bounds = array<i64: 4, 32, 128>}, {pipeline_mode = #tpu.pipeline_mode<synchronous>, transform_indices = @transform_13, window_bounds = array<i64: 4, 1, 128>}, {pipeline_mode = #tpu.pipeline_mode<synchronous>, transform_indices = @transform_14, window_bounds = array<i64: 4, 128, 32>}, {pipeline_mode = #tpu.pipeline_mode<synchronous>, transform_indices = @transform_15, window_bounds = array<i64: 4, 1, 32>}, {pipeline_mode = #tpu.pipeline_mode<synchronous>, transform_indices = @transform_16, window_bounds = array<i64: 32, 768>}, {pipeline_mode = #tpu.pipeline_mode<synchronous>, transform_indices = @transform_17, window_bounds = array<i64: 1, 768>}, {transform_indices = @transform_18, window_bounds = array<i64: 32, 32>}, {transform_indices = @transform_19, window_bounds = array<i64: 32, 768>}]} {
    %c0 = arith.constant 0 : index
    %c0_0 = arith.constant 0 : index
    %0 = vector.load %arg1[%c0, %c0_0] : memref<32x768xf32, #tpu.memory_space<vmem>>, vector<32x768xf32>
    %1 = arith.truncf %0 : vector<32x768xf32> to vector<32x768xbf16>
    %c0_1 = arith.constant 0 : index
    %c0_2 = arith.constant 0 : index
    %2 = vector.load %arg2[%c0_1, %c0_2] : memref<768x32xbf16, #tpu.memory_space<vmem>>, vector<768x32xbf16>
    %cst = arith.constant dense<0.000000e+00> : vector<32x32xf32>
    %3 = tpu.matmul %1, %2, %cst {dimension_numbers = #tpu.dot_dimension_numbers<[1], [0], [0], [1], [0, 0, 1, 1], [], []>} : vector<32x768xbf16>, vector<768x32xbf16>, vector<32x32xf32> -> vector<32x32xf32>
    %c0_3 = arith.constant 0 : index
    %c0_4 = arith.constant 0 : index
    %4 = vector.load %arg3[%c0_3, %c0_4] : memref<1x32xf32, #tpu.memory_space<vmem>>, vector<1x32xf32>
    %5 = vector.broadcast %4 : vector<1x32xf32> to vector<32x32xf32>
    %6 = arith.addf %3, %5 : vector<32x32xf32>
    %7 = vector.shape_cast %6 : vector<32x32xf32> to vector<2x16x32xf32>
    %c0_5 = arith.constant 0 : index
    %c0_6 = arith.constant 0 : index
    %8 = vector.load %arg4[%c0_5, %c0_6] : memref<16x32xf32, #tpu.memory_space<vmem>>, vector<16x32xf32>
    %9 = vector.shape_cast %8 : vector<16x32xf32> to vector<1x16x32xf32>
    %10 = vector.broadcast %9 : vector<1x16x32xf32> to vector<2x16x32xf32>
    %11 = arith.addf %7, %10 : vector<2x16x32xf32>
    %12 = vector.shape_cast %11 : vector<2x16x32xf32> to vector<32x32xf32>
    %c0_7 = arith.constant 0 : index
    %c0_8 = arith.constant 0 : index
    %c0_9 = arith.constant 0 : index
    %13 = vector.load %arg5[%c0_7, %c0_8, %c0_9] : memref<4x1x32xf32, #tpu.memory_space<vmem>>, vector<1x1x32xf32>
    %14 = vector.shape_cast %13 : vector<1x1x32xf32> to vector<1x32xf32>
    %c0_10 = arith.constant 0 : index
    %c0_11 = arith.constant 0 : index
    %c0_12 = arith.constant 0 : index
    %15 = vector.load %arg6[%c0_10, %c0_11, %c0_12] : memref<4x1x32xf32, #tpu.memory_space<vmem>>, vector<1x1x32xf32>
    %16 = vector.shape_cast %15 : vector<1x1x32xf32> to vector<1x32xf32>
    %cst_13 = arith.constant dense<0.000000e+00> : vector<32xf32>
    %17 = vector.multi_reduction <add>, %12, %cst_13 [1] : vector<32x32xf32> to vector<32xf32>
    %18 = vector.shape_cast %17 : vector<32xf32> to vector<32x1xf32>
    %cst_14 = arith.constant 3.200000e+01 : f32
    %19 = vector.broadcast %cst_14 : f32 to vector<32x1xf32>
    %20 = arith.divf %18, %19 : vector<32x1xf32>
    %21 = vector.broadcast %20 : vector<32x1xf32> to vector<32x32xf32>
    %22 = arith.subf %12, %21 : vector<32x32xf32>
    %23 = arith.mulf %22, %22 : vector<32x32xf32>
    %cst_15 = arith.constant dense<0.000000e+00> : vector<32xf32>
    %24 = vector.multi_reduction <add>, %23, %cst_15 [1] : vector<32x32xf32> to vector<32xf32>
    %25 = vector.shape_cast %24 : vector<32xf32> to vector<32x1xf32>
    %cst_16 = arith.constant 3.200000e+01 : f32
    %26 = vector.broadcast %cst_16 : f32 to vector<32x1xf32>
    %27 = arith.divf %25, %26 : vector<32x1xf32>
    %28 = vector.broadcast %20 : vector<32x1xf32> to vector<32x32xf32>
    %29 = arith.subf %12, %28 : vector<32x32xf32>
    %cst_17 = arith.constant 9.99999974E-6 : f32
    %30 = vector.broadcast %cst_17 : f32 to vector<32x1xf32>
    %31 = arith.addf %27, %30 : vector<32x1xf32>
    %32 = math.rsqrt %31 : vector<32x1xf32>
    %33 = vector.broadcast %32 : vector<32x1xf32> to vector<32x32xf32>
    %34 = arith.mulf %29, %33 : vector<32x32xf32>
    %35 = vector.broadcast %14 : vector<1x32xf32> to vector<32x32xf32>
    %36 = arith.mulf %34, %35 : vector<32x32xf32>
    %37 = vector.broadcast %16 : vector<1x32xf32> to vector<32x32xf32>
    %38 = arith.addf %36, %37 : vector<32x32xf32>
    %39 = arith.truncf %38 : vector<32x32xf32> to vector<32x32xbf16>
    %c0_18 = arith.constant 0 : index
    %c0_19 = arith.constant 0 : index
    %c0_20 = arith.constant 0 : index
    %40 = vector.load %arg7[%c0_18, %c0_19, %c0_20] : memref<4x32x96xbf16, #tpu.memory_space<vmem>>, vector<1x32x96xbf16>
    %41 = vector.shape_cast %40 : vector<1x32x96xbf16> to vector<32x96xbf16>
    %cst_21 = arith.constant dense<0.000000e+00> : vector<32x96xf32>
    %42 = tpu.matmul %39, %41, %cst_21 {dimension_numbers = #tpu.dot_dimension_numbers<[1], [0], [0], [1], [0, 0, 1, 1], [], []>} : vector<32x32xbf16>, vector<32x96xbf16>, vector<32x96xf32> -> vector<32x96xf32>
    %c0_22 = arith.constant 0 : index
    %c0_23 = arith.constant 0 : index
    %c0_24 = arith.constant 0 : index
    %43 = vector.load %arg8[%c0_22, %c0_23, %c0_24] : memref<4x1x96xf32, #tpu.memory_space<vmem>>, vector<1x1x96xf32>
    %44 = vector.shape_cast %43 : vector<1x1x96xf32> to vector<1x96xf32>
    %45 = vector.broadcast %44 : vector<1x96xf32> to vector<32x96xf32>
    %46 = arith.addf %42, %45 : vector<32x96xf32>
    %47 = vector.extract_strided_slice %46 {offsets = [0, 0], sizes = [32, 32], strides = [1, 1]} : vector<32x96xf32> to vector<32x32xf32>
    %48 = vector.shape_cast %47 : vector<32x32xf32> to vector<2x16x32xf32>
    %49 = vector.extract_strided_slice %46 {offsets = [0, 32], sizes = [32, 32], strides = [1, 1]} : vector<32x96xf32> to vector<32x32xf32>
    %50 = vector.shape_cast %49 : vector<32x32xf32> to vector<2x16x32xf32>
    %51 = vector.extract_strided_slice %46 {offsets = [0, 64], sizes = [32, 32], strides = [1, 1]} : vector<32x96xf32> to vector<32x32xf32>
    %52 = vector.shape_cast %51 : vector<32x32xf32> to vector<2x16x32xf32>
    %53 = vector.extract_strided_slice %48 {offsets = [0, 0, 0], sizes = [2, 16, 8], strides = [1, 1, 1]} : vector<2x16x32xf32> to vector<2x16x8xf32>
    %54 = arith.truncf %53 : vector<2x16x8xf32> to vector<2x16x8xbf16>
    %55 = vector.extract_strided_slice %50 {offsets = [0, 0, 0], sizes = [2, 16, 8], strides = [1, 1, 1]} : vector<2x16x32xf32> to vector<2x16x8xf32>
    %56 = arith.truncf %55 : vector<2x16x8xf32> to vector<2x16x8xbf16>
    %57 = vector.extract_strided_slice %52 {offsets = [0, 0, 0], sizes = [2, 16, 8], strides = [1, 1, 1]} : vector<2x16x32xf32> to vector<2x16x8xf32>
    %58 = arith.truncf %57 : vector<2x16x8xf32> to vector<2x16x8xbf16>
    "tpu.trace_start"() <{level = 10 : i32, message = "bqd,bkd->bqk"}> : () -> ()
    %cst_25 = arith.constant dense<0.000000e+00> : vector<2x16x16xf32>
    %59 = tpu.matmul %54, %56, %cst_25 {dimension_numbers = #tpu.dot_dimension_numbers<[2], [2], [1], [1], [0, 0, 0, 1, 1, 1], [0], [0]>} : vector<2x16x8xbf16>, vector<2x16x8xbf16>, vector<2x16x16xf32> -> vector<2x16x16xf32>
    "tpu.trace_stop"() : () -> ()
    %cst_26 = arith.constant 0.353553385 : f32
    %60 = vector.broadcast %cst_26 : f32 to vector<2x16x16xf32>
    %61 = arith.mulf %59, %60 : vector<2x16x16xf32>
    %cst_27 = arith.constant dense<0xFF800000> : vector<2x16xf32>
    %62 = vector.multi_reduction <maximumf>, %61, %cst_27 [2] : vector<2x16x16xf32> to vector<2x16xf32>
    %63 = vector.shape_cast %62 : vector<2x16xf32> to vector<2x16x1xf32>
    %64 = vector.broadcast %63 : vector<2x16x1xf32> to vector<2x16x16xf32>
    %65 = arith.subf %61, %64 : vector<2x16x16xf32>
    %66 = math.exp %65 : vector<2x16x16xf32>
    %cst_28 = arith.constant dense<0.000000e+00> : vector<2x16xf32>
    %67 = vector.multi_reduction <add>, %66, %cst_28 [2] : vector<2x16x16xf32> to vector<2x16xf32>
    %68 = vector.shape_cast %67 : vector<2x16xf32> to vector<2x16x1xf32>
    %69 = tpu.reciprocal %68 {approx = true} : vector<2x16x1xf32> -> vector<2x16x1xf32>
    %70 = vector.broadcast %69 : vector<2x16x1xf32> to vector<2x16x16xf32>
    %71 = arith.mulf %66, %70 : vector<2x16x16xf32>
    %72 = arith.truncf %71 : vector<2x16x16xf32> to vector<2x16x16xbf16>
    "tpu.trace_start"() <{level = 10 : i32, message = "bqk,bkd->bqd"}> : () -> ()
    %cst_29 = arith.constant dense<0.000000e+00> : vector<2x16x8xf32>
    %73 = tpu.matmul %72, %58, %cst_29 {dimension_numbers = #tpu.dot_dimension_numbers<[2], [1], [1], [2], [0, 0, 0, 1, 1, 2], [0], [0]>} : vector<2x16x16xbf16>, vector<2x16x8xbf16>, vector<2x16x8xf32> -> vector<2x16x8xf32>
    "tpu.trace_stop"() : () -> ()
    %74 = vector.extract_strided_slice %48 {offsets = [0, 0, 8], sizes = [2, 16, 8], strides = [1, 1, 1]} : vector<2x16x32xf32> to vector<2x16x8xf32>
    %75 = arith.truncf %74 : vector<2x16x8xf32> to vector<2x16x8xbf16>
    %76 = vector.extract_strided_slice %50 {offsets = [0, 0, 8], sizes = [2, 16, 8], strides = [1, 1, 1]} : vector<2x16x32xf32> to vector<2x16x8xf32>
    %77 = arith.truncf %76 : vector<2x16x8xf32> to vector<2x16x8xbf16>
    %78 = vector.extract_strided_slice %52 {offsets = [0, 0, 8], sizes = [2, 16, 8], strides = [1, 1, 1]} : vector<2x16x32xf32> to vector<2x16x8xf32>
    %79 = arith.truncf %78 : vector<2x16x8xf32> to vector<2x16x8xbf16>
    "tpu.trace_start"() <{level = 10 : i32, message = "bqd,bkd->bqk"}> : () -> ()
    %cst_30 = arith.constant dense<0.000000e+00> : vector<2x16x16xf32>
    %80 = tpu.matmul %75, %77, %cst_30 {dimension_numbers = #tpu.dot_dimension_numbers<[2], [2], [1], [1], [0, 0, 0, 1, 1, 1], [0], [0]>} : vector<2x16x8xbf16>, vector<2x16x8xbf16>, vector<2x16x16xf32> -> vector<2x16x16xf32>
    "tpu.trace_stop"() : () -> ()
    %cst_31 = arith.constant 0.353553385 : f32
    %81 = vector.broadcast %cst_31 : f32 to vector<2x16x16xf32>
    %82 = arith.mulf %80, %81 : vector<2x16x16xf32>
    %cst_32 = arith.constant dense<0xFF800000> : vector<2x16xf32>
    %83 = vector.multi_reduction <maximumf>, %82, %cst_32 [2] : vector<2x16x16xf32> to vector<2x16xf32>
    %84 = vector.shape_cast %83 : vector<2x16xf32> to vector<2x16x1xf32>
    %85 = vector.broadcast %84 : vector<2x16x1xf32> to vector<2x16x16xf32>
    %86 = arith.subf %82, %85 : vector<2x16x16xf32>
    %87 = math.exp %86 : vector<2x16x16xf32>
    %cst_33 = arith.constant dense<0.000000e+00> : vector<2x16xf32>
    %88 = vector.multi_reduction <add>, %87, %cst_33 [2] : vector<2x16x16xf32> to vector<2x16xf32>
    %89 = vector.shape_cast %88 : vector<2x16xf32> to vector<2x16x1xf32>
    %90 = tpu.reciprocal %89 {approx = true} : vector<2x16x1xf32> -> vector<2x16x1xf32>
    %91 = vector.broadcast %90 : vector<2x16x1xf32> to vector<2x16x16xf32>
    %92 = arith.mulf %87, %91 : vector<2x16x16xf32>
    %93 = arith.truncf %92 : vector<2x16x16xf32> to vector<2x16x16xbf16>
    "tpu.trace_start"() <{level = 10 : i32, message = "bqk,bkd->bqd"}> : () -> ()
    %cst_34 = arith.constant dense<0.000000e+00> : vector<2x16x8xf32>
    %94 = tpu.matmul %93, %79, %cst_34 {dimension_numbers = #tpu.dot_dimension_numbers<[2], [1], [1], [2], [0, 0, 0, 1, 1, 2], [0], [0]>} : vector<2x16x16xbf16>, vector<2x16x8xbf16>, vector<2x16x8xf32> -> vector<2x16x8xf32>
    "tpu.trace_stop"() : () -> ()
    %95 = vector.extract_strided_slice %48 {offsets = [0, 0, 16], sizes = [2, 16, 8], strides = [1, 1, 1]} : vector<2x16x32xf32> to vector<2x16x8xf32>
    %96 = arith.truncf %95 : vector<2x16x8xf32> to vector<2x16x8xbf16>
    %97 = vector.extract_strided_slice %50 {offsets = [0, 0, 16], sizes = [2, 16, 8], strides = [1, 1, 1]} : vector<2x16x32xf32> to vector<2x16x8xf32>
    %98 = arith.truncf %97 : vector<2x16x8xf32> to vector<2x16x8xbf16>
    %99 = vector.extract_strided_slice %52 {offsets = [0, 0, 16], sizes = [2, 16, 8], strides = [1, 1, 1]} : vector<2x16x32xf32> to vector<2x16x8xf32>
    %100 = arith.truncf %99 : vector<2x16x8xf32> to vector<2x16x8xbf16>
    "tpu.trace_start"() <{level = 10 : i32, message = "bqd,bkd->bqk"}> : () -> ()
    %cst_35 = arith.constant dense<0.000000e+00> : vector<2x16x16xf32>
    %101 = tpu.matmul %96, %98, %cst_35 {dimension_numbers = #tpu.dot_dimension_numbers<[2], [2], [1], [1], [0, 0, 0, 1, 1, 1], [0], [0]>} : vector<2x16x8xbf16>, vector<2x16x8xbf16>, vector<2x16x16xf32> -> vector<2x16x16xf32>
    "tpu.trace_stop"() : () -> ()
    %cst_36 = arith.constant 0.353553385 : f32
    %102 = vector.broadcast %cst_36 : f32 to vector<2x16x16xf32>
    %103 = arith.mulf %101, %102 : vector<2x16x16xf32>
    %cst_37 = arith.constant dense<0xFF800000> : vector<2x16xf32>
    %104 = vector.multi_reduction <maximumf>, %103, %cst_37 [2] : vector<2x16x16xf32> to vector<2x16xf32>
    %105 = vector.shape_cast %104 : vector<2x16xf32> to vector<2x16x1xf32>
    %106 = vector.broadcast %105 : vector<2x16x1xf32> to vector<2x16x16xf32>
    %107 = arith.subf %103, %106 : vector<2x16x16xf32>
    %108 = math.exp %107 : vector<2x16x16xf32>
    %cst_38 = arith.constant dense<0.000000e+00> : vector<2x16xf32>
    %109 = vector.multi_reduction <add>, %108, %cst_38 [2] : vector<2x16x16xf32> to vector<2x16xf32>
    %110 = vector.shape_cast %109 : vector<2x16xf32> to vector<2x16x1xf32>
    %111 = tpu.reciprocal %110 {approx = true} : vector<2x16x1xf32> -> vector<2x16x1xf32>
    %112 = vector.broadcast %111 : vector<2x16x1xf32> to vector<2x16x16xf32>
    %113 = arith.mulf %108, %112 : vector<2x16x16xf32>
    %114 = arith.truncf %113 : vector<2x16x16xf32> to vector<2x16x16xbf16>
    "tpu.trace_start"() <{level = 10 : i32, message = "bqk,bkd->bqd"}> : () -> ()
    %cst_39 = arith.constant dense<0.000000e+00> : vector<2x16x8xf32>
    %115 = tpu.matmul %114, %100, %cst_39 {dimension_numbers = #tpu.dot_dimension_numbers<[2], [1], [1], [2], [0, 0, 0, 1, 1, 2], [0], [0]>} : vector<2x16x16xbf16>, vector<2x16x8xbf16>, vector<2x16x8xf32> -> vector<2x16x8xf32>
    "tpu.trace_stop"() : () -> ()
    %116 = vector.extract_strided_slice %48 {offsets = [0, 0, 24], sizes = [2, 16, 8], strides = [1, 1, 1]} : vector<2x16x32xf32> to vector<2x16x8xf32>
    %117 = arith.truncf %116 : vector<2x16x8xf32> to vector<2x16x8xbf16>
    %118 = vector.extract_strided_slice %50 {offsets = [0, 0, 24], sizes = [2, 16, 8], strides = [1, 1, 1]} : vector<2x16x32xf32> to vector<2x16x8xf32>
    %119 = arith.truncf %118 : vector<2x16x8xf32> to vector<2x16x8xbf16>
    %120 = vector.extract_strided_slice %52 {offsets = [0, 0, 24], sizes = [2, 16, 8], strides = [1, 1, 1]} : vector<2x16x32xf32> to vector<2x16x8xf32>
    %121 = arith.truncf %120 : vector<2x16x8xf32> to vector<2x16x8xbf16>
    "tpu.trace_start"() <{level = 10 : i32, message = "bqd,bkd->bqk"}> : () -> ()
    %cst_40 = arith.constant dense<0.000000e+00> : vector<2x16x16xf32>
    %122 = tpu.matmul %117, %119, %cst_40 {dimension_numbers = #tpu.dot_dimension_numbers<[2], [2], [1], [1], [0, 0, 0, 1, 1, 1], [0], [0]>} : vector<2x16x8xbf16>, vector<2x16x8xbf16>, vector<2x16x16xf32> -> vector<2x16x16xf32>
    "tpu.trace_stop"() : () -> ()
    %cst_41 = arith.constant 0.353553385 : f32
    %123 = vector.broadcast %cst_41 : f32 to vector<2x16x16xf32>
    %124 = arith.mulf %122, %123 : vector<2x16x16xf32>
    %cst_42 = arith.constant dense<0xFF800000> : vector<2x16xf32>
    %125 = vector.multi_reduction <maximumf>, %124, %cst_42 [2] : vector<2x16x16xf32> to vector<2x16xf32>
    %126 = vector.shape_cast %125 : vector<2x16xf32> to vector<2x16x1xf32>
    %127 = vector.broadcast %126 : vector<2x16x1xf32> to vector<2x16x16xf32>
    %128 = arith.subf %124, %127 : vector<2x16x16xf32>
    %129 = math.exp %128 : vector<2x16x16xf32>
    %cst_43 = arith.constant dense<0.000000e+00> : vector<2x16xf32>
    %130 = vector.multi_reduction <add>, %129, %cst_43 [2] : vector<2x16x16xf32> to vector<2x16xf32>
    %131 = vector.shape_cast %130 : vector<2x16xf32> to vector<2x16x1xf32>
    %132 = tpu.reciprocal %131 {approx = true} : vector<2x16x1xf32> -> vector<2x16x1xf32>
    %133 = vector.broadcast %132 : vector<2x16x1xf32> to vector<2x16x16xf32>
    %134 = arith.mulf %129, %133 : vector<2x16x16xf32>
    %135 = arith.truncf %134 : vector<2x16x16xf32> to vector<2x16x16xbf16>
    "tpu.trace_start"() <{level = 10 : i32, message = "bqk,bkd->bqd"}> : () -> ()
    %cst_44 = arith.constant dense<0.000000e+00> : vector<2x16x8xf32>
    %136 = tpu.matmul %135, %121, %cst_44 {dimension_numbers = #tpu.dot_dimension_numbers<[2], [1], [1], [2], [0, 0, 0, 1, 1, 2], [0], [0]>} : vector<2x16x16xbf16>, vector<2x16x8xbf16>, vector<2x16x8xf32> -> vector<2x16x8xf32>
    "tpu.trace_stop"() : () -> ()
    %137 = tpu.concatenate %73, %94, %115, %136 in 2 : vector<2x16x8xf32>, vector<2x16x8xf32>, vector<2x16x8xf32>, vector<2x16x8xf32> -> vector<2x16x32xf32>
    %138 = vector.shape_cast %137 : vector<2x16x32xf32> to vector<32x32xf32>
    %139 = arith.truncf %138 : vector<32x32xf32> to vector<32x32xbf16>
    %c0_45 = arith.constant 0 : index
    %c0_46 = arith.constant 0 : index
    %c0_47 = arith.constant 0 : index
    %140 = vector.load %arg9[%c0_45, %c0_46, %c0_47] : memref<4x32x32xbf16, #tpu.memory_space<vmem>>, vector<1x32x32xbf16>
    %141 = vector.shape_cast %140 : vector<1x32x32xbf16> to vector<32x32xbf16>
    %cst_48 = arith.constant dense<0.000000e+00> : vector<32x32xf32>
    %142 = tpu.matmul %139, %141, %cst_48 {dimension_numbers = #tpu.dot_dimension_numbers<[1], [0], [0], [1], [0, 0, 1, 1], [], []>} : vector<32x32xbf16>, vector<32x32xbf16>, vector<32x32xf32> -> vector<32x32xf32>
    %c0_49 = arith.constant 0 : index
    %c0_50 = arith.constant 0 : index
    %c0_51 = arith.constant 0 : index
    %143 = vector.load %arg10[%c0_49, %c0_50, %c0_51] : memref<4x1x32xf32, #tpu.memory_space<vmem>>, vector<1x1x32xf32>
    %144 = vector.shape_cast %143 : vector<1x1x32xf32> to vector<1x32xf32>
    %145 = vector.broadcast %144 : vector<1x32xf32> to vector<32x32xf32>
    %146 = arith.addf %142, %145 : vector<32x32xf32>
    %147 = arith.addf %12, %146 : vector<32x32xf32>
    %c0_52 = arith.constant 0 : index
    %c0_53 = arith.constant 0 : index
    %c0_54 = arith.constant 0 : index
    %148 = vector.load %arg11[%c0_52, %c0_53, %c0_54] : memref<4x1x32xf32, #tpu.memory_space<vmem>>, vector<1x1x32xf32>
    %149 = vector.shape_cast %148 : vector<1x1x32xf32> to vector<1x32xf32>
    %c0_55 = arith.constant 0 : index
    %c0_56 = arith.constant 0 : index
    %c0_57 = arith.constant 0 : index
    %150 = vector.load %arg12[%c0_55, %c0_56, %c0_57] : memref<4x1x32xf32, #tpu.memory_space<vmem>>, vector<1x1x32xf32>
    %151 = vector.shape_cast %150 : vector<1x1x32xf32> to vector<1x32xf32>
    %cst_58 = arith.constant dense<0.000000e+00> : vector<32xf32>
    %152 = vector.multi_reduction <add>, %147, %cst_58 [1] : vector<32x32xf32> to vector<32xf32>
    %153 = vector.shape_cast %152 : vector<32xf32> to vector<32x1xf32>
    %cst_59 = arith.constant 3.200000e+01 : f32
    %154 = vector.broadcast %cst_59 : f32 to vector<32x1xf32>
    %155 = arith.divf %153, %154 : vector<32x1xf32>
    %156 = vector.broadcast %155 : vector<32x1xf32> to vector<32x32xf32>
    %157 = arith.subf %147, %156 : vector<32x32xf32>
    %158 = arith.mulf %157, %157 : vector<32x32xf32>
    %cst_60 = arith.constant dense<0.000000e+00> : vector<32xf32>
    %159 = vector.multi_reduction <add>, %158, %cst_60 [1] : vector<32x32xf32> to vector<32xf32>
    %160 = vector.shape_cast %159 : vector<32xf32> to vector<32x1xf32>
    %cst_61 = arith.constant 3.200000e+01 : f32
    %161 = vector.broadcast %cst_61 : f32 to vector<32x1xf32>
    %162 = arith.divf %160, %161 : vector<32x1xf32>
    %163 = vector.broadcast %155 : vector<32x1xf32> to vector<32x32xf32>
    %164 = arith.subf %147, %163 : vector<32x32xf32>
    %cst_62 = arith.constant 9.99999974E-6 : f32
    %165 = vector.broadcast %cst_62 : f32 to vector<32x1xf32>
    %166 = arith.addf %162, %165 : vector<32x1xf32>
    %167 = math.rsqrt %166 : vector<32x1xf32>
    %168 = vector.broadcast %167 : vector<32x1xf32> to vector<32x32xf32>
    %169 = arith.mulf %164, %168 : vector<32x32xf32>
    %170 = vector.broadcast %149 : vector<1x32xf32> to vector<32x32xf32>
    %171 = arith.mulf %169, %170 : vector<32x32xf32>
    %172 = vector.broadcast %151 : vector<1x32xf32> to vector<32x32xf32>
    %173 = arith.addf %171, %172 : vector<32x32xf32>
    %174 = arith.truncf %173 : vector<32x32xf32> to vector<32x32xbf16>
    %c0_63 = arith.constant 0 : index
    %c0_64 = arith.constant 0 : index
    %c0_65 = arith.constant 0 : index
    %175 = vector.load %arg13[%c0_63, %c0_64, %c0_65] : memref<4x32x128xbf16, #tpu.memory_space<vmem>>, vector<1x32x128xbf16>
    %176 = vector.shape_cast %175 : vector<1x32x128xbf16> to vector<32x128xbf16>
    %cst_66 = arith.constant dense<0.000000e+00> : vector<32x128xf32>
    %177 = tpu.matmul %174, %176, %cst_66 {dimension_numbers = #tpu.dot_dimension_numbers<[1], [0], [0], [1], [0, 0, 1, 1], [], []>} : vector<32x32xbf16>, vector<32x128xbf16>, vector<32x128xf32> -> vector<32x128xf32>
    %c0_67 = arith.constant 0 : index
    %c0_68 = arith.constant 0 : index
    %c0_69 = arith.constant 0 : index
    %178 = vector.load %arg14[%c0_67, %c0_68, %c0_69] : memref<4x1x128xf32, #tpu.memory_space<vmem>>, vector<1x1x128xf32>
    %179 = vector.shape_cast %178 : vector<1x1x128xf32> to vector<1x128xf32>
    %180 = vector.broadcast %179 : vector<1x128xf32> to vector<32x128xf32>
    %181 = arith.addf %177, %180 : vector<32x128xf32>
    %182 = arith.mulf %181, %181 : vector<32x128xf32>
    %183 = arith.mulf %181, %182 : vector<32x128xf32>
    %cst_70 = arith.constant 4.471500e-02 : f32
    %184 = vector.broadcast %cst_70 : f32 to vector<32x128xf32>
    %185 = arith.mulf %184, %183 : vector<32x128xf32>
    %186 = arith.addf %181, %185 : vector<32x128xf32>
    %cst_71 = arith.constant 0.797884583 : f32
    %187 = vector.broadcast %cst_71 : f32 to vector<32x128xf32>
    %188 = arith.mulf %187, %186 : vector<32x128xf32>
    %189 = math.tanh %188 : vector<32x128xf32>
    %cst_72 = arith.constant 1.000000e+00 : f32
    %190 = vector.broadcast %cst_72 : f32 to vector<32x128xf32>
    %191 = arith.addf %190, %189 : vector<32x128xf32>
    %cst_73 = arith.constant 5.000000e-01 : f32
    %192 = vector.broadcast %cst_73 : f32 to vector<32x128xf32>
    %193 = arith.mulf %192, %191 : vector<32x128xf32>
    %194 = arith.mulf %181, %193 : vector<32x128xf32>
    %195 = arith.truncf %194 : vector<32x128xf32> to vector<32x128xbf16>
    %c0_74 = arith.constant 0 : index
    %c0_75 = arith.constant 0 : index
    %c0_76 = arith.constant 0 : index
    %196 = vector.load %arg15[%c0_74, %c0_75, %c0_76] : memref<4x128x32xbf16, #tpu.memory_space<vmem>>, vector<1x128x32xbf16>
    %197 = vector.shape_cast %196 : vector<1x128x32xbf16> to vector<128x32xbf16>
    %cst_77 = arith.constant dense<0.000000e+00> : vector<32x32xf32>
    %198 = tpu.matmul %195, %197, %cst_77 {dimension_numbers = #tpu.dot_dimension_numbers<[1], [0], [0], [1], [0, 0, 1, 1], [], []>} : vector<32x128xbf16>, vector<128x32xbf16>, vector<32x32xf32> -> vector<32x32xf32>
    %c0_78 = arith.constant 0 : index
    %c0_79 = arith.constant 0 : index
    %c0_80 = arith.constant 0 : index
    %199 = vector.load %arg16[%c0_78, %c0_79, %c0_80] : memref<4x1x32xf32, #tpu.memory_space<vmem>>, vector<1x1x32xf32>
    %200 = vector.shape_cast %199 : vector<1x1x32xf32> to vector<1x32xf32>
    %201 = vector.broadcast %200 : vector<1x32xf32> to vector<32x32xf32>
    %202 = arith.addf %198, %201 : vector<32x32xf32>
    %203 = arith.addf %147, %202 : vector<32x32xf32>
    %c1 = arith.constant 1 : index
    %c0_81 = arith.constant 0 : index
    %c0_82 = arith.constant 0 : index
    %204 = vector.load %arg5[%c1, %c0_81, %c0_82] : memref<4x1x32xf32, #tpu.memory_space<vmem>>, vector<1x1x32xf32>
    %205 = vector.shape_cast %204 : vector<1x1x32xf32> to vector<1x32xf32>
    %c1_83 = arith.constant 1 : index
    %c0_84 = arith.constant 0 : index
    %c0_85 = arith.constant 0 : index
    %206 = vector.load %arg6[%c1_83, %c0_84, %c0_85] : memref<4x1x32xf32, #tpu.memory_space<vmem>>, vector<1x1x32xf32>
    %207 = vector.shape_cast %206 : vector<1x1x32xf32> to vector<1x32xf32>
    %cst_86 = arith.constant dense<0.000000e+00> : vector<32xf32>
    %208 = vector.multi_reduction <add>, %203, %cst_86 [1] : vector<32x32xf32> to vector<32xf32>
    %209 = vector.shape_cast %208 : vector<32xf32> to vector<32x1xf32>
    %cst_87 = arith.constant 3.200000e+01 : f32
    %210 = vector.broadcast %cst_87 : f32 to vector<32x1xf32>
    %211 = arith.divf %209, %210 : vector<32x1xf32>
    %212 = vector.broadcast %211 : vector<32x1xf32> to vector<32x32xf32>
    %213 = arith.subf %203, %212 : vector<32x32xf32>
    %214 = arith.mulf %213, %213 : vector<32x32xf32>
    %cst_88 = arith.constant dense<0.000000e+00> : vector<32xf32>
    %215 = vector.multi_reduction <add>, %214, %cst_88 [1] : vector<32x32xf32> to vector<32xf32>
    %216 = vector.shape_cast %215 : vector<32xf32> to vector<32x1xf32>
    %cst_89 = arith.constant 3.200000e+01 : f32
    %217 = vector.broadcast %cst_89 : f32 to vector<32x1xf32>
    %218 = arith.divf %216, %217 : vector<32x1xf32>
    %219 = vector.broadcast %211 : vector<32x1xf32> to vector<32x32xf32>
    %220 = arith.subf %203, %219 : vector<32x32xf32>
    %cst_90 = arith.constant 9.99999974E-6 : f32
    %221 = vector.broadcast %cst_90 : f32 to vector<32x1xf32>
    %222 = arith.addf %218, %221 : vector<32x1xf32>
    %223 = math.rsqrt %222 : vector<32x1xf32>
    %224 = vector.broadcast %223 : vector<32x1xf32> to vector<32x32xf32>
    %225 = arith.mulf %220, %224 : vector<32x32xf32>
    %226 = vector.broadcast %205 : vector<1x32xf32> to vector<32x32xf32>
    %227 = arith.mulf %225, %226 : vector<32x32xf32>
    %228 = vector.broadcast %207 : vector<1x32xf32> to vector<32x32xf32>
    %229 = arith.addf %227, %228 : vector<32x32xf32>
    %230 = arith.truncf %229 : vector<32x32xf32> to vector<32x32xbf16>
    %c1_91 = arith.constant 1 : index
    %c0_92 = arith.constant 0 : index
    %c0_93 = arith.constant 0 : index
    %231 = vector.load %arg7[%c1_91, %c0_92, %c0_93] : memref<4x32x96xbf16, #tpu.memory_space<vmem>>, vector<1x32x96xbf16>
    %232 = vector.shape_cast %231 : vector<1x32x96xbf16> to vector<32x96xbf16>
    %cst_94 = arith.constant dense<0.000000e+00> : vector<32x96xf32>
    %233 = tpu.matmul %230, %232, %cst_94 {dimension_numbers = #tpu.dot_dimension_numbers<[1], [0], [0], [1], [0, 0, 1, 1], [], []>} : vector<32x32xbf16>, vector<32x96xbf16>, vector<32x96xf32> -> vector<32x96xf32>
    %c1_95 = arith.constant 1 : index
    %c0_96 = arith.constant 0 : index
    %c0_97 = arith.constant 0 : index
    %234 = vector.load %arg8[%c1_95, %c0_96, %c0_97] : memref<4x1x96xf32, #tpu.memory_space<vmem>>, vector<1x1x96xf32>
    %235 = vector.shape_cast %234 : vector<1x1x96xf32> to vector<1x96xf32>
    %236 = vector.broadcast %235 : vector<1x96xf32> to vector<32x96xf32>
    %237 = arith.addf %233, %236 : vector<32x96xf32>
    %238 = vector.extract_strided_slice %237 {offsets = [0, 0], sizes = [32, 32], strides = [1, 1]} : vector<32x96xf32> to vector<32x32xf32>
    %239 = vector.shape_cast %238 : vector<32x32xf32> to vector<2x16x32xf32>
    %240 = vector.extract_strided_slice %237 {offsets = [0, 32], sizes = [32, 32], strides = [1, 1]} : vector<32x96xf32> to vector<32x32xf32>
    %241 = vector.shape_cast %240 : vector<32x32xf32> to vector<2x16x32xf32>
    %242 = vector.extract_strided_slice %237 {offsets = [0, 64], sizes = [32, 32], strides = [1, 1]} : vector<32x96xf32> to vector<32x32xf32>
    %243 = vector.shape_cast %242 : vector<32x32xf32> to vector<2x16x32xf32>
    %244 = vector.extract_strided_slice %239 {offsets = [0, 0, 0], sizes = [2, 16, 8], strides = [1, 1, 1]} : vector<2x16x32xf32> to vector<2x16x8xf32>
    %245 = arith.truncf %244 : vector<2x16x8xf32> to vector<2x16x8xbf16>
    %246 = vector.extract_strided_slice %241 {offsets = [0, 0, 0], sizes = [2, 16, 8], strides = [1, 1, 1]} : vector<2x16x32xf32> to vector<2x16x8xf32>
    %247 = arith.truncf %246 : vector<2x16x8xf32> to vector<2x16x8xbf16>
    %248 = vector.extract_strided_slice %243 {offsets = [0, 0, 0], sizes = [2, 16, 8], strides = [1, 1, 1]} : vector<2x16x32xf32> to vector<2x16x8xf32>
    %249 = arith.truncf %248 : vector<2x16x8xf32> to vector<2x16x8xbf16>
    "tpu.trace_start"() <{level = 10 : i32, message = "bqd,bkd->bqk"}> : () -> ()
    %cst_98 = arith.constant dense<0.000000e+00> : vector<2x16x16xf32>
    %250 = tpu.matmul %245, %247, %cst_98 {dimension_numbers = #tpu.dot_dimension_numbers<[2], [2], [1], [1], [0, 0, 0, 1, 1, 1], [0], [0]>} : vector<2x16x8xbf16>, vector<2x16x8xbf16>, vector<2x16x16xf32> -> vector<2x16x16xf32>
    "tpu.trace_stop"() : () -> ()
    %cst_99 = arith.constant 0.353553385 : f32
    %251 = vector.broadcast %cst_99 : f32 to vector<2x16x16xf32>
    %252 = arith.mulf %250, %251 : vector<2x16x16xf32>
    %cst_100 = arith.constant dense<0xFF800000> : vector<2x16xf32>
    %253 = vector.multi_reduction <maximumf>, %252, %cst_100 [2] : vector<2x16x16xf32> to vector<2x16xf32>
    %254 = vector.shape_cast %253 : vector<2x16xf32> to vector<2x16x1xf32>
    %255 = vector.broadcast %254 : vector<2x16x1xf32> to vector<2x16x16xf32>
    %256 = arith.subf %252, %255 : vector<2x16x16xf32>
    %257 = math.exp %256 : vector<2x16x16xf32>
    %cst_101 = arith.constant dense<0.000000e+00> : vector<2x16xf32>
    %258 = vector.multi_reduction <add>, %257, %cst_101 [2] : vector<2x16x16xf32> to vector<2x16xf32>
    %259 = vector.shape_cast %258 : vector<2x16xf32> to vector<2x16x1xf32>
    %260 = tpu.reciprocal %259 {approx = true} : vector<2x16x1xf32> -> vector<2x16x1xf32>
    %261 = vector.broadcast %260 : vector<2x16x1xf32> to vector<2x16x16xf32>
    %262 = arith.mulf %257, %261 : vector<2x16x16xf32>
    %263 = arith.truncf %262 : vector<2x16x16xf32> to vector<2x16x16xbf16>
    "tpu.trace_start"() <{level = 10 : i32, message = "bqk,bkd->bqd"}> : () -> ()
    %cst_102 = arith.constant dense<0.000000e+00> : vector<2x16x8xf32>
    %264 = tpu.matmul %263, %249, %cst_102 {dimension_numbers = #tpu.dot_dimension_numbers<[2], [1], [1], [2], [0, 0, 0, 1, 1, 2], [0], [0]>} : vector<2x16x16xbf16>, vector<2x16x8xbf16>, vector<2x16x8xf32> -> vector<2x16x8xf32>
    "tpu.trace_stop"() : () -> ()
    %265 = vector.extract_strided_slice %239 {offsets = [0, 0, 8], sizes = [2, 16, 8], strides = [1, 1, 1]} : vector<2x16x32xf32> to vector<2x16x8xf32>
    %266 = arith.truncf %265 : vector<2x16x8xf32> to vector<2x16x8xbf16>
    %267 = vector.extract_strided_slice %241 {offsets = [0, 0, 8], sizes = [2, 16, 8], strides = [1, 1, 1]} : vector<2x16x32xf32> to vector<2x16x8xf32>
    %268 = arith.truncf %267 : vector<2x16x8xf32> to vector<2x16x8xbf16>
    %269 = vector.extract_strided_slice %243 {offsets = [0, 0, 8], sizes = [2, 16, 8], strides = [1, 1, 1]} : vector<2x16x32xf32> to vector<2x16x8xf32>
    %270 = arith.truncf %269 : vector<2x16x8xf32> to vector<2x16x8xbf16>
    "tpu.trace_start"() <{level = 10 : i32, message = "bqd,bkd->bqk"}> : () -> ()
    %cst_103 = arith.constant dense<0.000000e+00> : vector<2x16x16xf32>
    %271 = tpu.matmul %266, %268, %cst_103 {dimension_numbers = #tpu.dot_dimension_numbers<[2], [2], [1], [1], [0, 0, 0, 1, 1, 1], [0], [0]>} : vector<2x16x8xbf16>, vector<2x16x8xbf16>, vector<2x16x16xf32> -> vector<2x16x16xf32>
    "tpu.trace_stop"() : () -> ()
    %cst_104 = arith.constant 0.353553385 : f32
    %272 = vector.broadcast %cst_104 : f32 to vector<2x16x16xf32>
    %273 = arith.mulf %271, %272 : vector<2x16x16xf32>
    %cst_105 = arith.constant dense<0xFF800000> : vector<2x16xf32>
    %274 = vector.multi_reduction <maximumf>, %273, %cst_105 [2] : vector<2x16x16xf32> to vector<2x16xf32>
    %275 = vector.shape_cast %274 : vector<2x16xf32> to vector<2x16x1xf32>
    %276 = vector.broadcast %275 : vector<2x16x1xf32> to vector<2x16x16xf32>
    %277 = arith.subf %273, %276 : vector<2x16x16xf32>
    %278 = math.exp %277 : vector<2x16x16xf32>
    %cst_106 = arith.constant dense<0.000000e+00> : vector<2x16xf32>
    %279 = vector.multi_reduction <add>, %278, %cst_106 [2] : vector<2x16x16xf32> to vector<2x16xf32>
    %280 = vector.shape_cast %279 : vector<2x16xf32> to vector<2x16x1xf32>
    %281 = tpu.reciprocal %280 {approx = true} : vector<2x16x1xf32> -> vector<2x16x1xf32>
    %282 = vector.broadcast %281 : vector<2x16x1xf32> to vector<2x16x16xf32>
    %283 = arith.mulf %278, %282 : vector<2x16x16xf32>
    %284 = arith.truncf %283 : vector<2x16x16xf32> to vector<2x16x16xbf16>
    "tpu.trace_start"() <{level = 10 : i32, message = "bqk,bkd->bqd"}> : () -> ()
    %cst_107 = arith.constant dense<0.000000e+00> : vector<2x16x8xf32>
    %285 = tpu.matmul %284, %270, %cst_107 {dimension_numbers = #tpu.dot_dimension_numbers<[2], [1], [1], [2], [0, 0, 0, 1, 1, 2], [0], [0]>} : vector<2x16x16xbf16>, vector<2x16x8xbf16>, vector<2x16x8xf32> -> vector<2x16x8xf32>
    "tpu.trace_stop"() : () -> ()
    %286 = vector.extract_strided_slice %239 {offsets = [0, 0, 16], sizes = [2, 16, 8], strides = [1, 1, 1]} : vector<2x16x32xf32> to vector<2x16x8xf32>
    %287 = arith.truncf %286 : vector<2x16x8xf32> to vector<2x16x8xbf16>
    %288 = vector.extract_strided_slice %241 {offsets = [0, 0, 16], sizes = [2, 16, 8], strides = [1, 1, 1]} : vector<2x16x32xf32> to vector<2x16x8xf32>
    %289 = arith.truncf %288 : vector<2x16x8xf32> to vector<2x16x8xbf16>
    %290 = vector.extract_strided_slice %243 {offsets = [0, 0, 16], sizes = [2, 16, 8], strides = [1, 1, 1]} : vector<2x16x32xf32> to vector<2x16x8xf32>
    %291 = arith.truncf %290 : vector<2x16x8xf32> to vector<2x16x8xbf16>
    "tpu.trace_start"() <{level = 10 : i32, message = "bqd,bkd->bqk"}> : () -> ()
    %cst_108 = arith.constant dense<0.000000e+00> : vector<2x16x16xf32>
    %292 = tpu.matmul %287, %289, %cst_108 {dimension_numbers = #tpu.dot_dimension_numbers<[2], [2], [1], [1], [0, 0, 0, 1, 1, 1], [0], [0]>} : vector<2x16x8xbf16>, vector<2x16x8xbf16>, vector<2x16x16xf32> -> vector<2x16x16xf32>
    "tpu.trace_stop"() : () -> ()
    %cst_109 = arith.constant 0.353553385 : f32
    %293 = vector.broadcast %cst_109 : f32 to vector<2x16x16xf32>
    %294 = arith.mulf %292, %293 : vector<2x16x16xf32>
    %cst_110 = arith.constant dense<0xFF800000> : vector<2x16xf32>
    %295 = vector.multi_reduction <maximumf>, %294, %cst_110 [2] : vector<2x16x16xf32> to vector<2x16xf32>
    %296 = vector.shape_cast %295 : vector<2x16xf32> to vector<2x16x1xf32>
    %297 = vector.broadcast %296 : vector<2x16x1xf32> to vector<2x16x16xf32>
    %298 = arith.subf %294, %297 : vector<2x16x16xf32>
    %299 = math.exp %298 : vector<2x16x16xf32>
    %cst_111 = arith.constant dense<0.000000e+00> : vector<2x16xf32>
    %300 = vector.multi_reduction <add>, %299, %cst_111 [2] : vector<2x16x16xf32> to vector<2x16xf32>
    %301 = vector.shape_cast %300 : vector<2x16xf32> to vector<2x16x1xf32>
    %302 = tpu.reciprocal %301 {approx = true} : vector<2x16x1xf32> -> vector<2x16x1xf32>
    %303 = vector.broadcast %302 : vector<2x16x1xf32> to vector<2x16x16xf32>
    %304 = arith.mulf %299, %303 : vector<2x16x16xf32>
    %305 = arith.truncf %304 : vector<2x16x16xf32> to vector<2x16x16xbf16>
    "tpu.trace_start"() <{level = 10 : i32, message = "bqk,bkd->bqd"}> : () -> ()
    %cst_112 = arith.constant dense<0.000000e+00> : vector<2x16x8xf32>
    %306 = tpu.matmul %305, %291, %cst_112 {dimension_numbers = #tpu.dot_dimension_numbers<[2], [1], [1], [2], [0, 0, 0, 1, 1, 2], [0], [0]>} : vector<2x16x16xbf16>, vector<2x16x8xbf16>, vector<2x16x8xf32> -> vector<2x16x8xf32>
    "tpu.trace_stop"() : () -> ()
    %307 = vector.extract_strided_slice %239 {offsets = [0, 0, 24], sizes = [2, 16, 8], strides = [1, 1, 1]} : vector<2x16x32xf32> to vector<2x16x8xf32>
    %308 = arith.truncf %307 : vector<2x16x8xf32> to vector<2x16x8xbf16>
    %309 = vector.extract_strided_slice %241 {offsets = [0, 0, 24], sizes = [2, 16, 8], strides = [1, 1, 1]} : vector<2x16x32xf32> to vector<2x16x8xf32>
    %310 = arith.truncf %309 : vector<2x16x8xf32> to vector<2x16x8xbf16>
    %311 = vector.extract_strided_slice %243 {offsets = [0, 0, 24], sizes = [2, 16, 8], strides = [1, 1, 1]} : vector<2x16x32xf32> to vector<2x16x8xf32>
    %312 = arith.truncf %311 : vector<2x16x8xf32> to vector<2x16x8xbf16>
    "tpu.trace_start"() <{level = 10 : i32, message = "bqd,bkd->bqk"}> : () -> ()
    %cst_113 = arith.constant dense<0.000000e+00> : vector<2x16x16xf32>
    %313 = tpu.matmul %308, %310, %cst_113 {dimension_numbers = #tpu.dot_dimension_numbers<[2], [2], [1], [1], [0, 0, 0, 1, 1, 1], [0], [0]>} : vector<2x16x8xbf16>, vector<2x16x8xbf16>, vector<2x16x16xf32> -> vector<2x16x16xf32>
    "tpu.trace_stop"() : () -> ()
    %cst_114 = arith.constant 0.353553385 : f32
    %314 = vector.broadcast %cst_114 : f32 to vector<2x16x16xf32>
    %315 = arith.mulf %313, %314 : vector<2x16x16xf32>
    %cst_115 = arith.constant dense<0xFF800000> : vector<2x16xf32>
    %316 = vector.multi_reduction <maximumf>, %315, %cst_115 [2] : vector<2x16x16xf32> to vector<2x16xf32>
    %317 = vector.shape_cast %316 : vector<2x16xf32> to vector<2x16x1xf32>
    %318 = vector.broadcast %317 : vector<2x16x1xf32> to vector<2x16x16xf32>
    %319 = arith.subf %315, %318 : vector<2x16x16xf32>
    %320 = math.exp %319 : vector<2x16x16xf32>
    %cst_116 = arith.constant dense<0.000000e+00> : vector<2x16xf32>
    %321 = vector.multi_reduction <add>, %320, %cst_116 [2] : vector<2x16x16xf32> to vector<2x16xf32>
    %322 = vector.shape_cast %321 : vector<2x16xf32> to vector<2x16x1xf32>
    %323 = tpu.reciprocal %322 {approx = true} : vector<2x16x1xf32> -> vector<2x16x1xf32>
    %324 = vector.broadcast %323 : vector<2x16x1xf32> to vector<2x16x16xf32>
    %325 = arith.mulf %320, %324 : vector<2x16x16xf32>
    %326 = arith.truncf %325 : vector<2x16x16xf32> to vector<2x16x16xbf16>
    "tpu.trace_start"() <{level = 10 : i32, message = "bqk,bkd->bqd"}> : () -> ()
    %cst_117 = arith.constant dense<0.000000e+00> : vector<2x16x8xf32>
    %327 = tpu.matmul %326, %312, %cst_117 {dimension_numbers = #tpu.dot_dimension_numbers<[2], [1], [1], [2], [0, 0, 0, 1, 1, 2], [0], [0]>} : vector<2x16x16xbf16>, vector<2x16x8xbf16>, vector<2x16x8xf32> -> vector<2x16x8xf32>
    "tpu.trace_stop"() : () -> ()
    %328 = tpu.concatenate %264, %285, %306, %327 in 2 : vector<2x16x8xf32>, vector<2x16x8xf32>, vector<2x16x8xf32>, vector<2x16x8xf32> -> vector<2x16x32xf32>
    %329 = vector.shape_cast %328 : vector<2x16x32xf32> to vector<32x32xf32>
    %330 = arith.truncf %329 : vector<32x32xf32> to vector<32x32xbf16>
    %c1_118 = arith.constant 1 : index
    %c0_119 = arith.constant 0 : index
    %c0_120 = arith.constant 0 : index
    %331 = vector.load %arg9[%c1_118, %c0_119, %c0_120] : memref<4x32x32xbf16, #tpu.memory_space<vmem>>, vector<1x32x32xbf16>
    %332 = vector.shape_cast %331 : vector<1x32x32xbf16> to vector<32x32xbf16>
    %cst_121 = arith.constant dense<0.000000e+00> : vector<32x32xf32>
    %333 = tpu.matmul %330, %332, %cst_121 {dimension_numbers = #tpu.dot_dimension_numbers<[1], [0], [0], [1], [0, 0, 1, 1], [], []>} : vector<32x32xbf16>, vector<32x32xbf16>, vector<32x32xf32> -> vector<32x32xf32>
    %c1_122 = arith.constant 1 : index
    %c0_123 = arith.constant 0 : index
    %c0_124 = arith.constant 0 : index
    %334 = vector.load %arg10[%c1_122, %c0_123, %c0_124] : memref<4x1x32xf32, #tpu.memory_space<vmem>>, vector<1x1x32xf32>
    %335 = vector.shape_cast %334 : vector<1x1x32xf32> to vector<1x32xf32>
    %336 = vector.broadcast %335 : vector<1x32xf32> to vector<32x32xf32>
    %337 = arith.addf %333, %336 : vector<32x32xf32>
    %338 = arith.addf %203, %337 : vector<32x32xf32>
    %c1_125 = arith.constant 1 : index
    %c0_126 = arith.constant 0 : index
    %c0_127 = arith.constant 0 : index
    %339 = vector.load %arg11[%c1_125, %c0_126, %c0_127] : memref<4x1x32xf32, #tpu.memory_space<vmem>>, vector<1x1x32xf32>
    %340 = vector.shape_cast %339 : vector<1x1x32xf32> to vector<1x32xf32>
    %c1_128 = arith.constant 1 : index
    %c0_129 = arith.constant 0 : index
    %c0_130 = arith.constant 0 : index
    %341 = vector.load %arg12[%c1_128, %c0_129, %c0_130] : memref<4x1x32xf32, #tpu.memory_space<vmem>>, vector<1x1x32xf32>
    %342 = vector.shape_cast %341 : vector<1x1x32xf32> to vector<1x32xf32>
    %cst_131 = arith.constant dense<0.000000e+00> : vector<32xf32>
    %343 = vector.multi_reduction <add>, %338, %cst_131 [1] : vector<32x32xf32> to vector<32xf32>
    %344 = vector.shape_cast %343 : vector<32xf32> to vector<32x1xf32>
    %cst_132 = arith.constant 3.200000e+01 : f32
    %345 = vector.broadcast %cst_132 : f32 to vector<32x1xf32>
    %346 = arith.divf %344, %345 : vector<32x1xf32>
    %347 = vector.broadcast %346 : vector<32x1xf32> to vector<32x32xf32>
    %348 = arith.subf %338, %347 : vector<32x32xf32>
    %349 = arith.mulf %348, %348 : vector<32x32xf32>
    %cst_133 = arith.constant dense<0.000000e+00> : vector<32xf32>
    %350 = vector.multi_reduction <add>, %349, %cst_133 [1] : vector<32x32xf32> to vector<32xf32>
    %351 = vector.shape_cast %350 : vector<32xf32> to vector<32x1xf32>
    %cst_134 = arith.constant 3.200000e+01 : f32
    %352 = vector.broadcast %cst_134 : f32 to vector<32x1xf32>
    %353 = arith.divf %351, %352 : vector<32x1xf32>
    %354 = vector.broadcast %346 : vector<32x1xf32> to vector<32x32xf32>
    %355 = arith.subf %338, %354 : vector<32x32xf32>
    %cst_135 = arith.constant 9.99999974E-6 : f32
    %356 = vector.broadcast %cst_135 : f32 to vector<32x1xf32>
    %357 = arith.addf %353, %356 : vector<32x1xf32>
    %358 = math.rsqrt %357 : vector<32x1xf32>
    %359 = vector.broadcast %358 : vector<32x1xf32> to vector<32x32xf32>
    %360 = arith.mulf %355, %359 : vector<32x32xf32>
    %361 = vector.broadcast %340 : vector<1x32xf32> to vector<32x32xf32>
    %362 = arith.mulf %360, %361 : vector<32x32xf32>
    %363 = vector.broadcast %342 : vector<1x32xf32> to vector<32x32xf32>
    %364 = arith.addf %362, %363 : vector<32x32xf32>
    %365 = arith.truncf %364 : vector<32x32xf32> to vector<32x32xbf16>
    %c1_136 = arith.constant 1 : index
    %c0_137 = arith.constant 0 : index
    %c0_138 = arith.constant 0 : index
    %366 = vector.load %arg13[%c1_136, %c0_137, %c0_138] : memref<4x32x128xbf16, #tpu.memory_space<vmem>>, vector<1x32x128xbf16>
    %367 = vector.shape_cast %366 : vector<1x32x128xbf16> to vector<32x128xbf16>
    %cst_139 = arith.constant dense<0.000000e+00> : vector<32x128xf32>
    %368 = tpu.matmul %365, %367, %cst_139 {dimension_numbers = #tpu.dot_dimension_numbers<[1], [0], [0], [1], [0, 0, 1, 1], [], []>} : vector<32x32xbf16>, vector<32x128xbf16>, vector<32x128xf32> -> vector<32x128xf32>
    %c1_140 = arith.constant 1 : index
    %c0_141 = arith.constant 0 : index
    %c0_142 = arith.constant 0 : index
    %369 = vector.load %arg14[%c1_140, %c0_141, %c0_142] : memref<4x1x128xf32, #tpu.memory_space<vmem>>, vector<1x1x128xf32>
    %370 = vector.shape_cast %369 : vector<1x1x128xf32> to vector<1x128xf32>
    %371 = vector.broadcast %370 : vector<1x128xf32> to vector<32x128xf32>
    %372 = arith.addf %368, %371 : vector<32x128xf32>
    %373 = arith.mulf %372, %372 : vector<32x128xf32>
    %374 = arith.mulf %372, %373 : vector<32x128xf32>
    %cst_143 = arith.constant 4.471500e-02 : f32
    %375 = vector.broadcast %cst_143 : f32 to vector<32x128xf32>
    %376 = arith.mulf %375, %374 : vector<32x128xf32>
    %377 = arith.addf %372, %376 : vector<32x128xf32>
    %cst_144 = arith.constant 0.797884583 : f32
    %378 = vector.broadcast %cst_144 : f32 to vector<32x128xf32>
    %379 = arith.mulf %378, %377 : vector<32x128xf32>
    %380 = math.tanh %379 : vector<32x128xf32>
    %cst_145 = arith.constant 1.000000e+00 : f32
    %381 = vector.broadcast %cst_145 : f32 to vector<32x128xf32>
    %382 = arith.addf %381, %380 : vector<32x128xf32>
    %cst_146 = arith.constant 5.000000e-01 : f32
    %383 = vector.broadcast %cst_146 : f32 to vector<32x128xf32>
    %384 = arith.mulf %383, %382 : vector<32x128xf32>
    %385 = arith.mulf %372, %384 : vector<32x128xf32>
    %386 = arith.truncf %385 : vector<32x128xf32> to vector<32x128xbf16>
    %c1_147 = arith.constant 1 : index
    %c0_148 = arith.constant 0 : index
    %c0_149 = arith.constant 0 : index
    %387 = vector.load %arg15[%c1_147, %c0_148, %c0_149] : memref<4x128x32xbf16, #tpu.memory_space<vmem>>, vector<1x128x32xbf16>
    %388 = vector.shape_cast %387 : vector<1x128x32xbf16> to vector<128x32xbf16>
    %cst_150 = arith.constant dense<0.000000e+00> : vector<32x32xf32>
    %389 = tpu.matmul %386, %388, %cst_150 {dimension_numbers = #tpu.dot_dimension_numbers<[1], [0], [0], [1], [0, 0, 1, 1], [], []>} : vector<32x128xbf16>, vector<128x32xbf16>, vector<32x32xf32> -> vector<32x32xf32>
    %c1_151 = arith.constant 1 : index
    %c0_152 = arith.constant 0 : index
    %c0_153 = arith.constant 0 : index
    %390 = vector.load %arg16[%c1_151, %c0_152, %c0_153] : memref<4x1x32xf32, #tpu.memory_space<vmem>>, vector<1x1x32xf32>
    %391 = vector.shape_cast %390 : vector<1x1x32xf32> to vector<1x32xf32>
    %392 = vector.broadcast %391 : vector<1x32xf32> to vector<32x32xf32>
    %393 = arith.addf %389, %392 : vector<32x32xf32>
    %394 = arith.addf %338, %393 : vector<32x32xf32>
    %c0_154 = arith.constant 0 : index
    %c0_155 = arith.constant 0 : index
    %395 = vector.load %arg19[%c0_154, %c0_155] : memref<32x32xf32, #tpu.memory_space<vmem>>, vector<32x32xf32>
    tpu.vector_store %arg19[%c0_154, %c0_155], %394 {strides = array<i32>} : memref<32x32xf32, #tpu.memory_space<vmem>>, vector<32x32xf32>,
    %c2 = arith.constant 2 : index
    %c0_156 = arith.constant 0 : index
    %c0_157 = arith.constant 0 : index
    %396 = vector.load %arg5[%c2, %c0_156, %c0_157] : memref<4x1x32xf32, #tpu.memory_space<vmem>>, vector<1x1x32xf32>
    %397 = vector.shape_cast %396 : vector<1x1x32xf32> to vector<1x32xf32>
    %c2_158 = arith.constant 2 : index
    %c0_159 = arith.constant 0 : index
    %c0_160 = arith.constant 0 : index
    %398 = vector.load %arg6[%c2_158, %c0_159, %c0_160] : memref<4x1x32xf32, #tpu.memory_space<vmem>>, vector<1x1x32xf32>
    %399 = vector.shape_cast %398 : vector<1x1x32xf32> to vector<1x32xf32>
    %cst_161 = arith.constant dense<0.000000e+00> : vector<32xf32>
    %400 = vector.multi_reduction <add>, %394, %cst_161 [1] : vector<32x32xf32> to vector<32xf32>
    %401 = vector.shape_cast %400 : vector<32xf32> to vector<32x1xf32>
    %cst_162 = arith.constant 3.200000e+01 : f32
    %402 = vector.broadcast %cst_162 : f32 to vector<32x1xf32>
    %403 = arith.divf %401, %402 : vector<32x1xf32>
    %404 = vector.broadcast %403 : vector<32x1xf32> to vector<32x32xf32>
    %405 = arith.subf %394, %404 : vector<32x32xf32>
    %406 = arith.mulf %405, %405 : vector<32x32xf32>
    %cst_163 = arith.constant dense<0.000000e+00> : vector<32xf32>
    %407 = vector.multi_reduction <add>, %406, %cst_163 [1] : vector<32x32xf32> to vector<32xf32>
    %408 = vector.shape_cast %407 : vector<32xf32> to vector<32x1xf32>
    %cst_164 = arith.constant 3.200000e+01 : f32
    %409 = vector.broadcast %cst_164 : f32 to vector<32x1xf32>
    %410 = arith.divf %408, %409 : vector<32x1xf32>
    %411 = vector.broadcast %403 : vector<32x1xf32> to vector<32x32xf32>
    %412 = arith.subf %394, %411 : vector<32x32xf32>
    %cst_165 = arith.constant 9.99999974E-6 : f32
    %413 = vector.broadcast %cst_165 : f32 to vector<32x1xf32>
    %414 = arith.addf %410, %413 : vector<32x1xf32>
    %415 = math.rsqrt %414 : vector<32x1xf32>
    %416 = vector.broadcast %415 : vector<32x1xf32> to vector<32x32xf32>
    %417 = arith.mulf %412, %416 : vector<32x32xf32>
    %418 = vector.broadcast %397 : vector<1x32xf32> to vector<32x32xf32>
    %419 = arith.mulf %417, %418 : vector<32x32xf32>
    %420 = vector.broadcast %399 : vector<1x32xf32> to vector<32x32xf32>
    %421 = arith.addf %419, %420 : vector<32x32xf32>
    %422 = arith.truncf %421 : vector<32x32xf32> to vector<32x32xbf16>
    %c2_166 = arith.constant 2 : index
    %c0_167 = arith.constant 0 : index
    %c0_168 = arith.constant 0 : index
    %423 = vector.load %arg7[%c2_166, %c0_167, %c0_168] : memref<4x32x96xbf16, #tpu.memory_space<vmem>>, vector<1x32x96xbf16>
    %424 = vector.shape_cast %423 : vector<1x32x96xbf16> to vector<32x96xbf16>
    %cst_169 = arith.constant dense<0.000000e+00> : vector<32x96xf32>
    %425 = tpu.matmul %422, %424, %cst_169 {dimension_numbers = #tpu.dot_dimension_numbers<[1], [0], [0], [1], [0, 0, 1, 1], [], []>} : vector<32x32xbf16>, vector<32x96xbf16>, vector<32x96xf32> -> vector<32x96xf32>
    %c2_170 = arith.constant 2 : index
    %c0_171 = arith.constant 0 : index
    %c0_172 = arith.constant 0 : index
    %426 = vector.load %arg8[%c2_170, %c0_171, %c0_172] : memref<4x1x96xf32, #tpu.memory_space<vmem>>, vector<1x1x96xf32>
    %427 = vector.shape_cast %426 : vector<1x1x96xf32> to vector<1x96xf32>
    %428 = vector.broadcast %427 : vector<1x96xf32> to vector<32x96xf32>
    %429 = arith.addf %425, %428 : vector<32x96xf32>
    %430 = vector.extract_strided_slice %429 {offsets = [0, 0], sizes = [32, 32], strides = [1, 1]} : vector<32x96xf32> to vector<32x32xf32>
    %431 = vector.shape_cast %430 : vector<32x32xf32> to vector<2x16x32xf32>
    %432 = vector.extract_strided_slice %429 {offsets = [0, 32], sizes = [32, 32], strides = [1, 1]} : vector<32x96xf32> to vector<32x32xf32>
    %433 = vector.shape_cast %432 : vector<32x32xf32> to vector<2x16x32xf32>
    %434 = vector.extract_strided_slice %429 {offsets = [0, 64], sizes = [32, 32], strides = [1, 1]} : vector<32x96xf32> to vector<32x32xf32>
    %435 = vector.shape_cast %434 : vector<32x32xf32> to vector<2x16x32xf32>
    %436 = vector.extract_strided_slice %431 {offsets = [0, 0, 0], sizes = [2, 16, 8], strides = [1, 1, 1]} : vector<2x16x32xf32> to vector<2x16x8xf32>
    %437 = arith.truncf %436 : vector<2x16x8xf32> to vector<2x16x8xbf16>
    %438 = vector.extract_strided_slice %433 {offsets = [0, 0, 0], sizes = [2, 16, 8], strides = [1, 1, 1]} : vector<2x16x32xf32> to vector<2x16x8xf32>
    %439 = arith.truncf %438 : vector<2x16x8xf32> to vector<2x16x8xbf16>
    %440 = vector.extract_strided_slice %435 {offsets = [0, 0, 0], sizes = [2, 16, 8], strides = [1, 1, 1]} : vector<2x16x32xf32> to vector<2x16x8xf32>
    %441 = arith.truncf %440 : vector<2x16x8xf32> to vector<2x16x8xbf16>
    "tpu.trace_start"() <{level = 10 : i32, message = "bqd,bkd->bqk"}> : () -> ()
    %cst_173 = arith.constant dense<0.000000e+00> : vector<2x16x16xf32>
    %442 = tpu.matmul %437, %439, %cst_173 {dimension_numbers = #tpu.dot_dimension_numbers<[2], [2], [1], [1], [0, 0, 0, 1, 1, 1], [0], [0]>} : vector<2x16x8xbf16>, vector<2x16x8xbf16>, vector<2x16x16xf32> -> vector<2x16x16xf32>
    "tpu.trace_stop"() : () -> ()
    %cst_174 = arith.constant 0.353553385 : f32
    %443 = vector.broadcast %cst_174 : f32 to vector<2x16x16xf32>
    %444 = arith.mulf %442, %443 : vector<2x16x16xf32>
    %cst_175 = arith.constant dense<0xFF800000> : vector<2x16xf32>
    %445 = vector.multi_reduction <maximumf>, %444, %cst_175 [2] : vector<2x16x16xf32> to vector<2x16xf32>
    %446 = vector.shape_cast %445 : vector<2x16xf32> to vector<2x16x1xf32>
    %447 = vector.broadcast %446 : vector<2x16x1xf32> to vector<2x16x16xf32>
    %448 = arith.subf %444, %447 : vector<2x16x16xf32>
    %449 = math.exp %448 : vector<2x16x16xf32>
    %cst_176 = arith.constant dense<0.000000e+00> : vector<2x16xf32>
    %450 = vector.multi_reduction <add>, %449, %cst_176 [2] : vector<2x16x16xf32> to vector<2x16xf32>
    %451 = vector.shape_cast %450 : vector<2x16xf32> to vector<2x16x1xf32>
    %452 = tpu.reciprocal %451 {approx = true} : vector<2x16x1xf32> -> vector<2x16x1xf32>
    %453 = vector.broadcast %452 : vector<2x16x1xf32> to vector<2x16x16xf32>
    %454 = arith.mulf %449, %453 : vector<2x16x16xf32>
    %455 = arith.truncf %454 : vector<2x16x16xf32> to vector<2x16x16xbf16>
    "tpu.trace_start"() <{level = 10 : i32, message = "bqk,bkd->bqd"}> : () -> ()
    %cst_177 = arith.constant dense<0.000000e+00> : vector<2x16x8xf32>
    %456 = tpu.matmul %455, %441, %cst_177 {dimension_numbers = #tpu.dot_dimension_numbers<[2], [1], [1], [2], [0, 0, 0, 1, 1, 2], [0], [0]>} : vector<2x16x16xbf16>, vector<2x16x8xbf16>, vector<2x16x8xf32> -> vector<2x16x8xf32>
    "tpu.trace_stop"() : () -> ()
    %457 = vector.extract_strided_slice %431 {offsets = [0, 0, 8], sizes = [2, 16, 8], strides = [1, 1, 1]} : vector<2x16x32xf32> to vector<2x16x8xf32>
    %458 = arith.truncf %457 : vector<2x16x8xf32> to vector<2x16x8xbf16>
    %459 = vector.extract_strided_slice %433 {offsets = [0, 0, 8], sizes = [2, 16, 8], strides = [1, 1, 1]} : vector<2x16x32xf32> to vector<2x16x8xf32>
    %460 = arith.truncf %459 : vector<2x16x8xf32> to vector<2x16x8xbf16>
    %461 = vector.extract_strided_slice %435 {offsets = [0, 0, 8], sizes = [2, 16, 8], strides = [1, 1, 1]} : vector<2x16x32xf32> to vector<2x16x8xf32>
    %462 = arith.truncf %461 : vector<2x16x8xf32> to vector<2x16x8xbf16>
    "tpu.trace_start"() <{level = 10 : i32, message = "bqd,bkd->bqk"}> : () -> ()
    %cst_178 = arith.constant dense<0.000000e+00> : vector<2x16x16xf32>
    %463 = tpu.matmul %458, %460, %cst_178 {dimension_numbers = #tpu.dot_dimension_numbers<[2], [2], [1], [1], [0, 0, 0, 1, 1, 1], [0], [0]>} : vector<2x16x8xbf16>, vector<2x16x8xbf16>, vector<2x16x16xf32> -> vector<2x16x16xf32>
    "tpu.trace_stop"() : () -> ()
    %cst_179 = arith.constant 0.353553385 : f32
    %464 = vector.broadcast %cst_179 : f32 to vector<2x16x16xf32>
    %465 = arith.mulf %463, %464 : vector<2x16x16xf32>
    %cst_180 = arith.constant dense<0xFF800000> : vector<2x16xf32>
    %466 = vector.multi_reduction <maximumf>, %465, %cst_180 [2] : vector<2x16x16xf32> to vector<2x16xf32>
    %467 = vector.shape_cast %466 : vector<2x16xf32> to vector<2x16x1xf32>
    %468 = vector.broadcast %467 : vector<2x16x1xf32> to vector<2x16x16xf32>
    %469 = arith.subf %465, %468 : vector<2x16x16xf32>
    %470 = math.exp %469 : vector<2x16x16xf32>
    %cst_181 = arith.constant dense<0.000000e+00> : vector<2x16xf32>
    %471 = vector.multi_reduction <add>, %470, %cst_181 [2] : vector<2x16x16xf32> to vector<2x16xf32>
    %472 = vector.shape_cast %471 : vector<2x16xf32> to vector<2x16x1xf32>
    %473 = tpu.reciprocal %472 {approx = true} : vector<2x16x1xf32> -> vector<2x16x1xf32>
    %474 = vector.broadcast %473 : vector<2x16x1xf32> to vector<2x16x16xf32>
    %475 = arith.mulf %470, %474 : vector<2x16x16xf32>
    %476 = arith.truncf %475 : vector<2x16x16xf32> to vector<2x16x16xbf16>
    "tpu.trace_start"() <{level = 10 : i32, message = "bqk,bkd->bqd"}> : () -> ()
    %cst_182 = arith.constant dense<0.000000e+00> : vector<2x16x8xf32>
    %477 = tpu.matmul %476, %462, %cst_182 {dimension_numbers = #tpu.dot_dimension_numbers<[2], [1], [1], [2], [0, 0, 0, 1, 1, 2], [0], [0]>} : vector<2x16x16xbf16>, vector<2x16x8xbf16>, vector<2x16x8xf32> -> vector<2x16x8xf32>
    "tpu.trace_stop"() : () -> ()
    %478 = vector.extract_strided_slice %431 {offsets = [0, 0, 16], sizes = [2, 16, 8], strides = [1, 1, 1]} : vector<2x16x32xf32> to vector<2x16x8xf32>
    %479 = arith.truncf %478 : vector<2x16x8xf32> to vector<2x16x8xbf16>
    %480 = vector.extract_strided_slice %433 {offsets = [0, 0, 16], sizes = [2, 16, 8], strides = [1, 1, 1]} : vector<2x16x32xf32> to vector<2x16x8xf32>
    %481 = arith.truncf %480 : vector<2x16x8xf32> to vector<2x16x8xbf16>
    %482 = vector.extract_strided_slice %435 {offsets = [0, 0, 16], sizes = [2, 16, 8], strides = [1, 1, 1]} : vector<2x16x32xf32> to vector<2x16x8xf32>
    %483 = arith.truncf %482 : vector<2x16x8xf32> to vector<2x16x8xbf16>
    "tpu.trace_start"() <{level = 10 : i32, message = "bqd,bkd->bqk"}> : () -> ()
    %cst_183 = arith.constant dense<0.000000e+00> : vector<2x16x16xf32>
    %484 = tpu.matmul %479, %481, %cst_183 {dimension_numbers = #tpu.dot_dimension_numbers<[2], [2], [1], [1], [0, 0, 0, 1, 1, 1], [0], [0]>} : vector<2x16x8xbf16>, vector<2x16x8xbf16>, vector<2x16x16xf32> -> vector<2x16x16xf32>
    "tpu.trace_stop"() : () -> ()
    %cst_184 = arith.constant 0.353553385 : f32
    %485 = vector.broadcast %cst_184 : f32 to vector<2x16x16xf32>
    %486 = arith.mulf %484, %485 : vector<2x16x16xf32>
    %cst_185 = arith.constant dense<0xFF800000> : vector<2x16xf32>
    %487 = vector.multi_reduction <maximumf>, %486, %cst_185 [2] : vector<2x16x16xf32> to vector<2x16xf32>
    %488 = vector.shape_cast %487 : vector<2x16xf32> to vector<2x16x1xf32>
    %489 = vector.broadcast %488 : vector<2x16x1xf32> to vector<2x16x16xf32>
    %490 = arith.subf %486, %489 : vector<2x16x16xf32>
    %491 = math.exp %490 : vector<2x16x16xf32>
    %cst_186 = arith.constant dense<0.000000e+00> : vector<2x16xf32>
    %492 = vector.multi_reduction <add>, %491, %cst_186 [2] : vector<2x16x16xf32> to vector<2x16xf32>
    %493 = vector.shape_cast %492 : vector<2x16xf32> to vector<2x16x1xf32>
    %494 = tpu.reciprocal %493 {approx = true} : vector<2x16x1xf32> -> vector<2x16x1xf32>
    %495 = vector.broadcast %494 : vector<2x16x1xf32> to vector<2x16x16xf32>
    %496 = arith.mulf %491, %495 : vector<2x16x16xf32>
    %497 = arith.truncf %496 : vector<2x16x16xf32> to vector<2x16x16xbf16>
    "tpu.trace_start"() <{level = 10 : i32, message = "bqk,bkd->bqd"}> : () -> ()
    %cst_187 = arith.constant dense<0.000000e+00> : vector<2x16x8xf32>
    %498 = tpu.matmul %497, %483, %cst_187 {dimension_numbers = #tpu.dot_dimension_numbers<[2], [1], [1], [2], [0, 0, 0, 1, 1, 2], [0], [0]>} : vector<2x16x16xbf16>, vector<2x16x8xbf16>, vector<2x16x8xf32> -> vector<2x16x8xf32>
    "tpu.trace_stop"() : () -> ()
    %499 = vector.extract_strided_slice %431 {offsets = [0, 0, 24], sizes = [2, 16, 8], strides = [1, 1, 1]} : vector<2x16x32xf32> to vector<2x16x8xf32>
    %500 = arith.truncf %499 : vector<2x16x8xf32> to vector<2x16x8xbf16>
    %501 = vector.extract_strided_slice %433 {offsets = [0, 0, 24], sizes = [2, 16, 8], strides = [1, 1, 1]} : vector<2x16x32xf32> to vector<2x16x8xf32>
    %502 = arith.truncf %501 : vector<2x16x8xf32> to vector<2x16x8xbf16>
    %503 = vector.extract_strided_slice %435 {offsets = [0, 0, 24], sizes = [2, 16, 8], strides = [1, 1, 1]} : vector<2x16x32xf32> to vector<2x16x8xf32>
    %504 = arith.truncf %503 : vector<2x16x8xf32> to vector<2x16x8xbf16>
    "tpu.trace_start"() <{level = 10 : i32, message = "bqd,bkd->bqk"}> : () -> ()
    %cst_188 = arith.constant dense<0.000000e+00> : vector<2x16x16xf32>
    %505 = tpu.matmul %500, %502, %cst_188 {dimension_numbers = #tpu.dot_dimension_numbers<[2], [2], [1], [1], [0, 0, 0, 1, 1, 1], [0], [0]>} : vector<2x16x8xbf16>, vector<2x16x8xbf16>, vector<2x16x16xf32> -> vector<2x16x16xf32>
    "tpu.trace_stop"() : () -> ()
    %cst_189 = arith.constant 0.353553385 : f32
    %506 = vector.broadcast %cst_189 : f32 to vector<2x16x16xf32>
    %507 = arith.mulf %505, %506 : vector<2x16x16xf32>
    %cst_190 = arith.constant dense<0xFF800000> : vector<2x16xf32>
    %508 = vector.multi_reduction <maximumf>, %507, %cst_190 [2] : vector<2x16x16xf32> to vector<2x16xf32>
    %509 = vector.shape_cast %508 : vector<2x16xf32> to vector<2x16x1xf32>
    %510 = vector.broadcast %509 : vector<2x16x1xf32> to vector<2x16x16xf32>
    %511 = arith.subf %507, %510 : vector<2x16x16xf32>
    %512 = math.exp %511 : vector<2x16x16xf32>
    %cst_191 = arith.constant dense<0.000000e+00> : vector<2x16xf32>
    %513 = vector.multi_reduction <add>, %512, %cst_191 [2] : vector<2x16x16xf32> to vector<2x16xf32>
    %514 = vector.shape_cast %513 : vector<2x16xf32> to vector<2x16x1xf32>
    %515 = tpu.reciprocal %514 {approx = true} : vector<2x16x1xf32> -> vector<2x16x1xf32>
    %516 = vector.broadcast %515 : vector<2x16x1xf32> to vector<2x16x16xf32>
    %517 = arith.mulf %512, %516 : vector<2x16x16xf32>
    %518 = arith.truncf %517 : vector<2x16x16xf32> to vector<2x16x16xbf16>
    "tpu.trace_start"() <{level = 10 : i32, message = "bqk,bkd->bqd"}> : () -> ()
    %cst_192 = arith.constant dense<0.000000e+00> : vector<2x16x8xf32>
    %519 = tpu.matmul %518, %504, %cst_192 {dimension_numbers = #tpu.dot_dimension_numbers<[2], [1], [1], [2], [0, 0, 0, 1, 1, 2], [0], [0]>} : vector<2x16x16xbf16>, vector<2x16x8xbf16>, vector<2x16x8xf32> -> vector<2x16x8xf32>
    "tpu.trace_stop"() : () -> ()
    %520 = tpu.concatenate %456, %477, %498, %519 in 2 : vector<2x16x8xf32>, vector<2x16x8xf32>, vector<2x16x8xf32>, vector<2x16x8xf32> -> vector<2x16x32xf32>
    %521 = vector.shape_cast %520 : vector<2x16x32xf32> to vector<32x32xf32>
    %522 = arith.truncf %521 : vector<32x32xf32> to vector<32x32xbf16>
    %c2_193 = arith.constant 2 : index
    %c0_194 = arith.constant 0 : index
    %c0_195 = arith.constant 0 : index
    %523 = vector.load %arg9[%c2_193, %c0_194, %c0_195] : memref<4x32x32xbf16, #tpu.memory_space<vmem>>, vector<1x32x32xbf16>
    %524 = vector.shape_cast %523 : vector<1x32x32xbf16> to vector<32x32xbf16>
    %cst_196 = arith.constant dense<0.000000e+00> : vector<32x32xf32>
    %525 = tpu.matmul %522, %524, %cst_196 {dimension_numbers = #tpu.dot_dimension_numbers<[1], [0], [0], [1], [0, 0, 1, 1], [], []>} : vector<32x32xbf16>, vector<32x32xbf16>, vector<32x32xf32> -> vector<32x32xf32>
    %c2_197 = arith.constant 2 : index
    %c0_198 = arith.constant 0 : index
    %c0_199 = arith.constant 0 : index
    %526 = vector.load %arg10[%c2_197, %c0_198, %c0_199] : memref<4x1x32xf32, #tpu.memory_space<vmem>>, vector<1x1x32xf32>
    %527 = vector.shape_cast %526 : vector<1x1x32xf32> to vector<1x32xf32>
    %528 = vector.broadcast %527 : vector<1x32xf32> to vector<32x32xf32>
    %529 = arith.addf %525, %528 : vector<32x32xf32>
    %530 = arith.addf %394, %529 : vector<32x32xf32>
    %c2_200 = arith.constant 2 : index
    %c0_201 = arith.constant 0 : index
    %c0_202 = arith.constant 0 : index
    %531 = vector.load %arg11[%c2_200, %c0_201, %c0_202] : memref<4x1x32xf32, #tpu.memory_space<vmem>>, vector<1x1x32xf32>
    %532 = vector.shape_cast %531 : vector<1x1x32xf32> to vector<1x32xf32>
    %c2_203 = arith.constant 2 : index
    %c0_204 = arith.constant 0 : index
    %c0_205 = arith.constant 0 : index
    %533 = vector.load %arg12[%c2_203, %c0_204, %c0_205] : memref<4x1x32xf32, #tpu.memory_space<vmem>>, vector<1x1x32xf32>
    %534 = vector.shape_cast %533 : vector<1x1x32xf32> to vector<1x32xf32>
    %cst_206 = arith.constant dense<0.000000e+00> : vector<32xf32>
    %535 = vector.multi_reduction <add>, %530, %cst_206 [1] : vector<32x32xf32> to vector<32xf32>
    %536 = vector.shape_cast %535 : vector<32xf32> to vector<32x1xf32>
    %cst_207 = arith.constant 3.200000e+01 : f32
    %537 = vector.broadcast %cst_207 : f32 to vector<32x1xf32>
    %538 = arith.divf %536, %537 : vector<32x1xf32>
    %539 = vector.broadcast %538 : vector<32x1xf32> to vector<32x32xf32>
    %540 = arith.subf %530, %539 : vector<32x32xf32>
    %541 = arith.mulf %540, %540 : vector<32x32xf32>
    %cst_208 = arith.constant dense<0.000000e+00> : vector<32xf32>
    %542 = vector.multi_reduction <add>, %541, %cst_208 [1] : vector<32x32xf32> to vector<32xf32>
    %543 = vector.shape_cast %542 : vector<32xf32> to vector<32x1xf32>
    %cst_209 = arith.constant 3.200000e+01 : f32
    %544 = vector.broadcast %cst_209 : f32 to vector<32x1xf32>
    %545 = arith.divf %543, %544 : vector<32x1xf32>
    %546 = vector.broadcast %538 : vector<32x1xf32> to vector<32x32xf32>
    %547 = arith.subf %530, %546 : vector<32x32xf32>
    %cst_210 = arith.constant 9.99999974E-6 : f32
    %548 = vector.broadcast %cst_210 : f32 to vector<32x1xf32>
    %549 = arith.addf %545, %548 : vector<32x1xf32>
    %550 = math.rsqrt %549 : vector<32x1xf32>
    %551 = vector.broadcast %550 : vector<32x1xf32> to vector<32x32xf32>
    %552 = arith.mulf %547, %551 : vector<32x32xf32>
    %553 = vector.broadcast %532 : vector<1x32xf32> to vector<32x32xf32>
    %554 = arith.mulf %552, %553 : vector<32x32xf32>
    %555 = vector.broadcast %534 : vector<1x32xf32> to vector<32x32xf32>
    %556 = arith.addf %554, %555 : vector<32x32xf32>
    %557 = arith.truncf %556 : vector<32x32xf32> to vector<32x32xbf16>
    %c2_211 = arith.constant 2 : index
    %c0_212 = arith.constant 0 : index
    %c0_213 = arith.constant 0 : index
    %558 = vector.load %arg13[%c2_211, %c0_212, %c0_213] : memref<4x32x128xbf16, #tpu.memory_space<vmem>>, vector<1x32x128xbf16>
    %559 = vector.shape_cast %558 : vector<1x32x128xbf16> to vector<32x128xbf16>
    %cst_214 = arith.constant dense<0.000000e+00> : vector<32x128xf32>
    %560 = tpu.matmul %557, %559, %cst_214 {dimension_numbers = #tpu.dot_dimension_numbers<[1], [0], [0], [1], [0, 0, 1, 1], [], []>} : vector<32x32xbf16>, vector<32x128xbf16>, vector<32x128xf32> -> vector<32x128xf32>
    %c2_215 = arith.constant 2 : index
    %c0_216 = arith.constant 0 : index
    %c0_217 = arith.constant 0 : index
    %561 = vector.load %arg14[%c2_215, %c0_216, %c0_217] : memref<4x1x128xf32, #tpu.memory_space<vmem>>, vector<1x1x128xf32>
    %562 = vector.shape_cast %561 : vector<1x1x128xf32> to vector<1x128xf32>
    %563 = vector.broadcast %562 : vector<1x128xf32> to vector<32x128xf32>
    %564 = arith.addf %560, %563 : vector<32x128xf32>
    %565 = arith.mulf %564, %564 : vector<32x128xf32>
    %566 = arith.mulf %564, %565 : vector<32x128xf32>
    %cst_218 = arith.constant 4.471500e-02 : f32
    %567 = vector.broadcast %cst_218 : f32 to vector<32x128xf32>
    %568 = arith.mulf %567, %566 : vector<32x128xf32>
    %569 = arith.addf %564, %568 : vector<32x128xf32>
    %cst_219 = arith.constant 0.797884583 : f32
    %570 = vector.broadcast %cst_219 : f32 to vector<32x128xf32>
    %571 = arith.mulf %570, %569 : vector<32x128xf32>
    %572 = math.tanh %571 : vector<32x128xf32>
    %cst_220 = arith.constant 1.000000e+00 : f32
    %573 = vector.broadcast %cst_220 : f32 to vector<32x128xf32>
    %574 = arith.addf %573, %572 : vector<32x128xf32>
    %cst_221 = arith.constant 5.000000e-01 : f32
    %575 = vector.broadcast %cst_221 : f32 to vector<32x128xf32>
    %576 = arith.mulf %575, %574 : vector<32x128xf32>
    %577 = arith.mulf %564, %576 : vector<32x128xf32>
    %578 = arith.truncf %577 : vector<32x128xf32> to vector<32x128xbf16>
    %c2_222 = arith.constant 2 : index
    %c0_223 = arith.constant 0 : index
    %c0_224 = arith.constant 0 : index
    %579 = vector.load %arg15[%c2_222, %c0_223, %c0_224] : memref<4x128x32xbf16, #tpu.memory_space<vmem>>, vector<1x128x32xbf16>
    %580 = vector.shape_cast %579 : vector<1x128x32xbf16> to vector<128x32xbf16>
    %cst_225 = arith.constant dense<0.000000e+00> : vector<32x32xf32>
    %581 = tpu.matmul %578, %580, %cst_225 {dimension_numbers = #tpu.dot_dimension_numbers<[1], [0], [0], [1], [0, 0, 1, 1], [], []>} : vector<32x128xbf16>, vector<128x32xbf16>, vector<32x32xf32> -> vector<32x32xf32>
    %c2_226 = arith.constant 2 : index
    %c0_227 = arith.constant 0 : index
    %c0_228 = arith.constant 0 : index
    %582 = vector.load %arg16[%c2_226, %c0_227, %c0_228] : memref<4x1x32xf32, #tpu.memory_space<vmem>>, vector<1x1x32xf32>
    %583 = vector.shape_cast %582 : vector<1x1x32xf32> to vector<1x32xf32>
    %584 = vector.broadcast %583 : vector<1x32xf32> to vector<32x32xf32>
    %585 = arith.addf %581, %584 : vector<32x32xf32>
    %586 = arith.addf %530, %585 : vector<32x32xf32>
    %c3 = arith.constant 3 : index
    %c0_229 = arith.constant 0 : index
    %c0_230 = arith.constant 0 : index
    %587 = vector.load %arg5[%c3, %c0_229, %c0_230] : memref<4x1x32xf32, #tpu.memory_space<vmem>>, vector<1x1x32xf32>
    %588 = vector.shape_cast %587 : vector<1x1x32xf32> to vector<1x32xf32>
    %c3_231 = arith.constant 3 : index
    %c0_232 = arith.constant 0 : index
    %c0_233 = arith.constant 0 : index
    %589 = vector.load %arg6[%c3_231, %c0_232, %c0_233] : memref<4x1x32xf32, #tpu.memory_space<vmem>>, vector<1x1x32xf32>
    %590 = vector.shape_cast %589 : vector<1x1x32xf32> to vector<1x32xf32>
    %cst_234 = arith.constant dense<0.000000e+00> : vector<32xf32>
    %591 = vector.multi_reduction <add>, %586, %cst_234 [1] : vector<32x32xf32> to vector<32xf32>
    %592 = vector.shape_cast %591 : vector<32xf32> to vector<32x1xf32>
    %cst_235 = arith.constant 3.200000e+01 : f32
    %593 = vector.broadcast %cst_235 : f32 to vector<32x1xf32>
    %594 = arith.divf %592, %593 : vector<32x1xf32>
    %595 = vector.broadcast %594 : vector<32x1xf32> to vector<32x32xf32>
    %596 = arith.subf %586, %595 : vector<32x32xf32>
    %597 = arith.mulf %596, %596 : vector<32x32xf32>
    %cst_236 = arith.constant dense<0.000000e+00> : vector<32xf32>
    %598 = vector.multi_reduction <add>, %597, %cst_236 [1] : vector<32x32xf32> to vector<32xf32>
    %599 = vector.shape_cast %598 : vector<32xf32> to vector<32x1xf32>
    %cst_237 = arith.constant 3.200000e+01 : f32
    %600 = vector.broadcast %cst_237 : f32 to vector<32x1xf32>
    %601 = arith.divf %599, %600 : vector<32x1xf32>
    %602 = vector.broadcast %594 : vector<32x1xf32> to vector<32x32xf32>
    %603 = arith.subf %586, %602 : vector<32x32xf32>
    %cst_238 = arith.constant 9.99999974E-6 : f32
    %604 = vector.broadcast %cst_238 : f32 to vector<32x1xf32>
    %605 = arith.addf %601, %604 : vector<32x1xf32>
    %606 = math.rsqrt %605 : vector<32x1xf32>
    %607 = vector.broadcast %606 : vector<32x1xf32> to vector<32x32xf32>
    %608 = arith.mulf %603, %607 : vector<32x32xf32>
    %609 = vector.broadcast %588 : vector<1x32xf32> to vector<32x32xf32>
    %610 = arith.mulf %608, %609 : vector<32x32xf32>
    %611 = vector.broadcast %590 : vector<1x32xf32> to vector<32x32xf32>
    %612 = arith.addf %610, %611 : vector<32x32xf32>
    %613 = arith.truncf %612 : vector<32x32xf32> to vector<32x32xbf16>
    %c3_239 = arith.constant 3 : index
    %c0_240 = arith.constant 0 : index
    %c0_241 = arith.constant 0 : index
    %614 = vector.load %arg7[%c3_239, %c0_240, %c0_241] : memref<4x32x96xbf16, #tpu.memory_space<vmem>>, vector<1x32x96xbf16>
    %615 = vector.shape_cast %614 : vector<1x32x96xbf16> to vector<32x96xbf16>
    %cst_242 = arith.constant dense<0.000000e+00> : vector<32x96xf32>
    %616 = tpu.matmul %613, %615, %cst_242 {dimension_numbers = #tpu.dot_dimension_numbers<[1], [0], [0], [1], [0, 0, 1, 1], [], []>} : vector<32x32xbf16>, vector<32x96xbf16>, vector<32x96xf32> -> vector<32x96xf32>
    %c3_243 = arith.constant 3 : index
    %c0_244 = arith.constant 0 : index
    %c0_245 = arith.constant 0 : index
    %617 = vector.load %arg8[%c3_243, %c0_244, %c0_245] : memref<4x1x96xf32, #tpu.memory_space<vmem>>, vector<1x1x96xf32>
    %618 = vector.shape_cast %617 : vector<1x1x96xf32> to vector<1x96xf32>
    %619 = vector.broadcast %618 : vector<1x96xf32> to vector<32x96xf32>
    %620 = arith.addf %616, %619 : vector<32x96xf32>
    %621 = vector.extract_strided_slice %620 {offsets = [0, 0], sizes = [32, 32], strides = [1, 1]} : vector<32x96xf32> to vector<32x32xf32>
    %622 = vector.shape_cast %621 : vector<32x32xf32> to vector<2x16x32xf32>
    %623 = vector.extract_strided_slice %620 {offsets = [0, 32], sizes = [32, 32], strides = [1, 1]} : vector<32x96xf32> to vector<32x32xf32>
    %624 = vector.shape_cast %623 : vector<32x32xf32> to vector<2x16x32xf32>
    %625 = vector.extract_strided_slice %620 {offsets = [0, 64], sizes = [32, 32], strides = [1, 1]} : vector<32x96xf32> to vector<32x32xf32>
    %626 = vector.shape_cast %625 : vector<32x32xf32> to vector<2x16x32xf32>
    %627 = vector.extract_strided_slice %622 {offsets = [0, 0, 0], sizes = [2, 16, 8], strides = [1, 1, 1]} : vector<2x16x32xf32> to vector<2x16x8xf32>
    %628 = arith.truncf %627 : vector<2x16x8xf32> to vector<2x16x8xbf16>
    %629 = vector.extract_strided_slice %624 {offsets = [0, 0, 0], sizes = [2, 16, 8], strides = [1, 1, 1]} : vector<2x16x32xf32> to vector<2x16x8xf32>
    %630 = arith.truncf %629 : vector<2x16x8xf32> to vector<2x16x8xbf16>
    %631 = vector.extract_strided_slice %626 {offsets = [0, 0, 0], sizes = [2, 16, 8], strides = [1, 1, 1]} : vector<2x16x32xf32> to vector<2x16x8xf32>
    %632 = arith.truncf %631 : vector<2x16x8xf32> to vector<2x16x8xbf16>
    "tpu.trace_start"() <{level = 10 : i32, message = "bqd,bkd->bqk"}> : () -> ()
    %cst_246 = arith.constant dense<0.000000e+00> : vector<2x16x16xf32>
    %633 = tpu.matmul %628, %630, %cst_246 {dimension_numbers = #tpu.dot_dimension_numbers<[2], [2], [1], [1], [0, 0, 0, 1, 1, 1], [0], [0]>} : vector<2x16x8xbf16>, vector<2x16x8xbf16>, vector<2x16x16xf32> -> vector<2x16x16xf32>
    "tpu.trace_stop"() : () -> ()
    %cst_247 = arith.constant 0.353553385 : f32
    %634 = vector.broadcast %cst_247 : f32 to vector<2x16x16xf32>
    %635 = arith.mulf %633, %634 : vector<2x16x16xf32>
    %cst_248 = arith.constant dense<0xFF800000> : vector<2x16xf32>
    %636 = vector.multi_reduction <maximumf>, %635, %cst_248 [2] : vector<2x16x16xf32> to vector<2x16xf32>
    %637 = vector.shape_cast %636 : vector<2x16xf32> to vector<2x16x1xf32>
    %638 = vector.broadcast %637 : vector<2x16x1xf32> to vector<2x16x16xf32>
    %639 = arith.subf %635, %638 : vector<2x16x16xf32>
    %640 = math.exp %639 : vector<2x16x16xf32>
    %cst_249 = arith.constant dense<0.000000e+00> : vector<2x16xf32>
    %641 = vector.multi_reduction <add>, %640, %cst_249 [2] : vector<2x16x16xf32> to vector<2x16xf32>
    %642 = vector.shape_cast %641 : vector<2x16xf32> to vector<2x16x1xf32>
    %643 = tpu.reciprocal %642 {approx = true} : vector<2x16x1xf32> -> vector<2x16x1xf32>
    %644 = vector.broadcast %643 : vector<2x16x1xf32> to vector<2x16x16xf32>
    %645 = arith.mulf %640, %644 : vector<2x16x16xf32>
    %646 = arith.truncf %645 : vector<2x16x16xf32> to vector<2x16x16xbf16>
    "tpu.trace_start"() <{level = 10 : i32, message = "bqk,bkd->bqd"}> : () -> ()
    %cst_250 = arith.constant dense<0.000000e+00> : vector<2x16x8xf32>
    %647 = tpu.matmul %646, %632, %cst_250 {dimension_numbers = #tpu.dot_dimension_numbers<[2], [1], [1], [2], [0, 0, 0, 1, 1, 2], [0], [0]>} : vector<2x16x16xbf16>, vector<2x16x8xbf16>, vector<2x16x8xf32> -> vector<2x16x8xf32>
    "tpu.trace_stop"() : () -> ()
    %648 = vector.extract_strided_slice %622 {offsets = [0, 0, 8], sizes = [2, 16, 8], strides = [1, 1, 1]} : vector<2x16x32xf32> to vector<2x16x8xf32>
    %649 = arith.truncf %648 : vector<2x16x8xf32> to vector<2x16x8xbf16>
    %650 = vector.extract_strided_slice %624 {offsets = [0, 0, 8], sizes = [2, 16, 8], strides = [1, 1, 1]} : vector<2x16x32xf32> to vector<2x16x8xf32>
    %651 = arith.truncf %650 : vector<2x16x8xf32> to vector<2x16x8xbf16>
    %652 = vector.extract_strided_slice %626 {offsets = [0, 0, 8], sizes = [2, 16, 8], strides = [1, 1, 1]} : vector<2x16x32xf32> to vector<2x16x8xf32>
    %653 = arith.truncf %652 : vector<2x16x8xf32> to vector<2x16x8xbf16>
    "tpu.trace_start"() <{level = 10 : i32, message = "bqd,bkd->bqk"}> : () -> ()
    %cst_251 = arith.constant dense<0.000000e+00> : vector<2x16x16xf32>
    %654 = tpu.matmul %649, %651, %cst_251 {dimension_numbers = #tpu.dot_dimension_numbers<[2], [2], [1], [1], [0, 0, 0, 1, 1, 1], [0], [0]>} : vector<2x16x8xbf16>, vector<2x16x8xbf16>, vector<2x16x16xf32> -> vector<2x16x16xf32>
    "tpu.trace_stop"() : () -> ()
    %cst_252 = arith.constant 0.353553385 : f32
    %655 = vector.broadcast %cst_252 : f32 to vector<2x16x16xf32>
    %656 = arith.mulf %654, %655 : vector<2x16x16xf32>
    %cst_253 = arith.constant dense<0xFF800000> : vector<2x16xf32>
    %657 = vector.multi_reduction <maximumf>, %656, %cst_253 [2] : vector<2x16x16xf32> to vector<2x16xf32>
    %658 = vector.shape_cast %657 : vector<2x16xf32> to vector<2x16x1xf32>
    %659 = vector.broadcast %658 : vector<2x16x1xf32> to vector<2x16x16xf32>
    %660 = arith.subf %656, %659 : vector<2x16x16xf32>
    %661 = math.exp %660 : vector<2x16x16xf32>
    %cst_254 = arith.constant dense<0.000000e+00> : vector<2x16xf32>
    %662 = vector.multi_reduction <add>, %661, %cst_254 [2] : vector<2x16x16xf32> to vector<2x16xf32>
    %663 = vector.shape_cast %662 : vector<2x16xf32> to vector<2x16x1xf32>
    %664 = tpu.reciprocal %663 {approx = true} : vector<2x16x1xf32> -> vector<2x16x1xf32>
    %665 = vector.broadcast %664 : vector<2x16x1xf32> to vector<2x16x16xf32>
    %666 = arith.mulf %661, %665 : vector<2x16x16xf32>
    %667 = arith.truncf %666 : vector<2x16x16xf32> to vector<2x16x16xbf16>
    "tpu.trace_start"() <{level = 10 : i32, message = "bqk,bkd->bqd"}> : () -> ()
    %cst_255 = arith.constant dense<0.000000e+00> : vector<2x16x8xf32>
    %668 = tpu.matmul %667, %653, %cst_255 {dimension_numbers = #tpu.dot_dimension_numbers<[2], [1], [1], [2], [0, 0, 0, 1, 1, 2], [0], [0]>} : vector<2x16x16xbf16>, vector<2x16x8xbf16>, vector<2x16x8xf32> -> vector<2x16x8xf32>
    "tpu.trace_stop"() : () -> ()
    %669 = vector.extract_strided_slice %622 {offsets = [0, 0, 16], sizes = [2, 16, 8], strides = [1, 1, 1]} : vector<2x16x32xf32> to vector<2x16x8xf32>
    %670 = arith.truncf %669 : vector<2x16x8xf32> to vector<2x16x8xbf16>
    %671 = vector.extract_strided_slice %624 {offsets = [0, 0, 16], sizes = [2, 16, 8], strides = [1, 1, 1]} : vector<2x16x32xf32> to vector<2x16x8xf32>
    %672 = arith.truncf %671 : vector<2x16x8xf32> to vector<2x16x8xbf16>
    %673 = vector.extract_strided_slice %626 {offsets = [0, 0, 16], sizes = [2, 16, 8], strides = [1, 1, 1]} : vector<2x16x32xf32> to vector<2x16x8xf32>
    %674 = arith.truncf %673 : vector<2x16x8xf32> to vector<2x16x8xbf16>
    "tpu.trace_start"() <{level = 10 : i32, message = "bqd,bkd->bqk"}> : () -> ()
    %cst_256 = arith.constant dense<0.000000e+00> : vector<2x16x16xf32>
    %675 = tpu.matmul %670, %672, %cst_256 {dimension_numbers = #tpu.dot_dimension_numbers<[2], [2], [1], [1], [0, 0, 0, 1, 1, 1], [0], [0]>} : vector<2x16x8xbf16>, vector<2x16x8xbf16>, vector<2x16x16xf32> -> vector<2x16x16xf32>
    "tpu.trace_stop"() : () -> ()
    %cst_257 = arith.constant 0.353553385 : f32
    %676 = vector.broadcast %cst_257 : f32 to vector<2x16x16xf32>
    %677 = arith.mulf %675, %676 : vector<2x16x16xf32>
    %cst_258 = arith.constant dense<0xFF800000> : vector<2x16xf32>
    %678 = vector.multi_reduction <maximumf>, %677, %cst_258 [2] : vector<2x16x16xf32> to vector<2x16xf32>
    %679 = vector.shape_cast %678 : vector<2x16xf32> to vector<2x16x1xf32>
    %680 = vector.broadcast %679 : vector<2x16x1xf32> to vector<2x16x16xf32>
    %681 = arith.subf %677, %680 : vector<2x16x16xf32>
    %682 = math.exp %681 : vector<2x16x16xf32>
    %cst_259 = arith.constant dense<0.000000e+00> : vector<2x16xf32>
    %683 = vector.multi_reduction <add>, %682, %cst_259 [2] : vector<2x16x16xf32> to vector<2x16xf32>
    %684 = vector.shape_cast %683 : vector<2x16xf32> to vector<2x16x1xf32>
    %685 = tpu.reciprocal %684 {approx = true} : vector<2x16x1xf32> -> vector<2x16x1xf32>
    %686 = vector.broadcast %685 : vector<2x16x1xf32> to vector<2x16x16xf32>
    %687 = arith.mulf %682, %686 : vector<2x16x16xf32>
    %688 = arith.truncf %687 : vector<2x16x16xf32> to vector<2x16x16xbf16>
    "tpu.trace_start"() <{level = 10 : i32, message = "bqk,bkd->bqd"}> : () -> ()
    %cst_260 = arith.constant dense<0.000000e+00> : vector<2x16x8xf32>
    %689 = tpu.matmul %688, %674, %cst_260 {dimension_numbers = #tpu.dot_dimension_numbers<[2], [1], [1], [2], [0, 0, 0, 1, 1, 2], [0], [0]>} : vector<2x16x16xbf16>, vector<2x16x8xbf16>, vector<2x16x8xf32> -> vector<2x16x8xf32>
    "tpu.trace_stop"() : () -> ()
    %690 = vector.extract_strided_slice %622 {offsets = [0, 0, 24], sizes = [2, 16, 8], strides = [1, 1, 1]} : vector<2x16x32xf32> to vector<2x16x8xf32>
    %691 = arith.truncf %690 : vector<2x16x8xf32> to vector<2x16x8xbf16>
    %692 = vector.extract_strided_slice %624 {offsets = [0, 0, 24], sizes = [2, 16, 8], strides = [1, 1, 1]} : vector<2x16x32xf32> to vector<2x16x8xf32>
    %693 = arith.truncf %692 : vector<2x16x8xf32> to vector<2x16x8xbf16>
    %694 = vector.extract_strided_slice %626 {offsets = [0, 0, 24], sizes = [2, 16, 8], strides = [1, 1, 1]} : vector<2x16x32xf32> to vector<2x16x8xf32>
    %695 = arith.truncf %694 : vector<2x16x8xf32> to vector<2x16x8xbf16>
    "tpu.trace_start"() <{level = 10 : i32, message = "bqd,bkd->bqk"}> : () -> ()
    %cst_261 = arith.constant dense<0.000000e+00> : vector<2x16x16xf32>
    %696 = tpu.matmul %691, %693, %cst_261 {dimension_numbers = #tpu.dot_dimension_numbers<[2], [2], [1], [1], [0, 0, 0, 1, 1, 1], [0], [0]>} : vector<2x16x8xbf16>, vector<2x16x8xbf16>, vector<2x16x16xf32> -> vector<2x16x16xf32>
    "tpu.trace_stop"() : () -> ()
    %cst_262 = arith.constant 0.353553385 : f32
    %697 = vector.broadcast %cst_262 : f32 to vector<2x16x16xf32>
    %698 = arith.mulf %696, %697 : vector<2x16x16xf32>
    %cst_263 = arith.constant dense<0xFF800000> : vector<2x16xf32>
    %699 = vector.multi_reduction <maximumf>, %698, %cst_263 [2] : vector<2x16x16xf32> to vector<2x16xf32>
    %700 = vector.shape_cast %699 : vector<2x16xf32> to vector<2x16x1xf32>
    %701 = vector.broadcast %700 : vector<2x16x1xf32> to vector<2x16x16xf32>
    %702 = arith.subf %698, %701 : vector<2x16x16xf32>
    %703 = math.exp %702 : vector<2x16x16xf32>
    %cst_264 = arith.constant dense<0.000000e+00> : vector<2x16xf32>
    %704 = vector.multi_reduction <add>, %703, %cst_264 [2] : vector<2x16x16xf32> to vector<2x16xf32>
    %705 = vector.shape_cast %704 : vector<2x16xf32> to vector<2x16x1xf32>
    %706 = tpu.reciprocal %705 {approx = true} : vector<2x16x1xf32> -> vector<2x16x1xf32>
    %707 = vector.broadcast %706 : vector<2x16x1xf32> to vector<2x16x16xf32>
    %708 = arith.mulf %703, %707 : vector<2x16x16xf32>
    %709 = arith.truncf %708 : vector<2x16x16xf32> to vector<2x16x16xbf16>
    "tpu.trace_start"() <{level = 10 : i32, message = "bqk,bkd->bqd"}> : () -> ()
    %cst_265 = arith.constant dense<0.000000e+00> : vector<2x16x8xf32>
    %710 = tpu.matmul %709, %695, %cst_265 {dimension_numbers = #tpu.dot_dimension_numbers<[2], [1], [1], [2], [0, 0, 0, 1, 1, 2], [0], [0]>} : vector<2x16x16xbf16>, vector<2x16x8xbf16>, vector<2x16x8xf32> -> vector<2x16x8xf32>
    "tpu.trace_stop"() : () -> ()
    %711 = tpu.concatenate %647, %668, %689, %710 in 2 : vector<2x16x8xf32>, vector<2x16x8xf32>, vector<2x16x8xf32>, vector<2x16x8xf32> -> vector<2x16x32xf32>
    %712 = vector.shape_cast %711 : vector<2x16x32xf32> to vector<32x32xf32>
    %713 = arith.truncf %712 : vector<32x32xf32> to vector<32x32xbf16>
    %c3_266 = arith.constant 3 : index
    %c0_267 = arith.constant 0 : index
    %c0_268 = arith.constant 0 : index
    %714 = vector.load %arg9[%c3_266, %c0_267, %c0_268] : memref<4x32x32xbf16, #tpu.memory_space<vmem>>, vector<1x32x32xbf16>
    %715 = vector.shape_cast %714 : vector<1x32x32xbf16> to vector<32x32xbf16>
    %cst_269 = arith.constant dense<0.000000e+00> : vector<32x32xf32>
    %716 = tpu.matmul %713, %715, %cst_269 {dimension_numbers = #tpu.dot_dimension_numbers<[1], [0], [0], [1], [0, 0, 1, 1], [], []>} : vector<32x32xbf16>, vector<32x32xbf16>, vector<32x32xf32> -> vector<32x32xf32>
    %c3_270 = arith.constant 3 : index
    %c0_271 = arith.constant 0 : index
    %c0_272 = arith.constant 0 : index
    %717 = vector.load %arg10[%c3_270, %c0_271, %c0_272] : memref<4x1x32xf32, #tpu.memory_space<vmem>>, vector<1x1x32xf32>
    %718 = vector.shape_cast %717 : vector<1x1x32xf32> to vector<1x32xf32>
    %719 = vector.broadcast %718 : vector<1x32xf32> to vector<32x32xf32>
    %720 = arith.addf %716, %719 : vector<32x32xf32>
    %721 = arith.addf %586, %720 : vector<32x32xf32>
    %c3_273 = arith.constant 3 : index
    %c0_274 = arith.constant 0 : index
    %c0_275 = arith.constant 0 : index
    %722 = vector.load %arg11[%c3_273, %c0_274, %c0_275] : memref<4x1x32xf32, #tpu.memory_space<vmem>>, vector<1x1x32xf32>
    %723 = vector.shape_cast %722 : vector<1x1x32xf32> to vector<1x32xf32>
    %c3_276 = arith.constant 3 : index
    %c0_277 = arith.constant 0 : index
    %c0_278 = arith.constant 0 : index
    %724 = vector.load %arg12[%c3_276, %c0_277, %c0_278] : memref<4x1x32xf32, #tpu.memory_space<vmem>>, vector<1x1x32xf32>
    %725 = vector.shape_cast %724 : vector<1x1x32xf32> to vector<1x32xf32>
    %cst_279 = arith.constant dense<0.000000e+00> : vector<32xf32>
    %726 = vector.multi_reduction <add>, %721, %cst_279 [1] : vector<32x32xf32> to vector<32xf32>
    %727 = vector.shape_cast %726 : vector<32xf32> to vector<32x1xf32>
    %cst_280 = arith.constant 3.200000e+01 : f32
    %728 = vector.broadcast %cst_280 : f32 to vector<32x1xf32>
    %729 = arith.divf %727, %728 : vector<32x1xf32>
    %730 = vector.broadcast %729 : vector<32x1xf32> to vector<32x32xf32>
    %731 = arith.subf %721, %730 : vector<32x32xf32>
    %732 = arith.mulf %731, %731 : vector<32x32xf32>
    %cst_281 = arith.constant dense<0.000000e+00> : vector<32xf32>
    %733 = vector.multi_reduction <add>, %732, %cst_281 [1] : vector<32x32xf32> to vector<32xf32>
    %734 = vector.shape_cast %733 : vector<32xf32> to vector<32x1xf32>
    %cst_282 = arith.constant 3.200000e+01 : f32
    %735 = vector.broadcast %cst_282 : f32 to vector<32x1xf32>
    %736 = arith.divf %734, %735 : vector<32x1xf32>
    %737 = vector.broadcast %729 : vector<32x1xf32> to vector<32x32xf32>
    %738 = arith.subf %721, %737 : vector<32x32xf32>
    %cst_283 = arith.constant 9.99999974E-6 : f32
    %739 = vector.broadcast %cst_283 : f32 to vector<32x1xf32>
    %740 = arith.addf %736, %739 : vector<32x1xf32>
    %741 = math.rsqrt %740 : vector<32x1xf32>
    %742 = vector.broadcast %741 : vector<32x1xf32> to vector<32x32xf32>
    %743 = arith.mulf %738, %742 : vector<32x32xf32>
    %744 = vector.broadcast %723 : vector<1x32xf32> to vector<32x32xf32>
    %745 = arith.mulf %743, %744 : vector<32x32xf32>
    %746 = vector.broadcast %725 : vector<1x32xf32> to vector<32x32xf32>
    %747 = arith.addf %745, %746 : vector<32x32xf32>
    %748 = arith.truncf %747 : vector<32x32xf32> to vector<32x32xbf16>
    %c3_284 = arith.constant 3 : index
    %c0_285 = arith.constant 0 : index
    %c0_286 = arith.constant 0 : index
    %749 = vector.load %arg13[%c3_284, %c0_285, %c0_286] : memref<4x32x128xbf16, #tpu.memory_space<vmem>>, vector<1x32x128xbf16>
    %750 = vector.shape_cast %749 : vector<1x32x128xbf16> to vector<32x128xbf16>
    %cst_287 = arith.constant dense<0.000000e+00> : vector<32x128xf32>
    %751 = tpu.matmul %748, %750, %cst_287 {dimension_numbers = #tpu.dot_dimension_numbers<[1], [0], [0], [1], [0, 0, 1, 1], [], []>} : vector<32x32xbf16>, vector<32x128xbf16>, vector<32x128xf32> -> vector<32x128xf32>
    %c3_288 = arith.constant 3 : index
    %c0_289 = arith.constant 0 : index
    %c0_290 = arith.constant 0 : index
    %752 = vector.load %arg14[%c3_288, %c0_289, %c0_290] : memref<4x1x128xf32, #tpu.memory_space<vmem>>, vector<1x1x128xf32>
    %753 = vector.shape_cast %752 : vector<1x1x128xf32> to vector<1x128xf32>
    %754 = vector.broadcast %753 : vector<1x128xf32> to vector<32x128xf32>
    %755 = arith.addf %751, %754 : vector<32x128xf32>
    %756 = arith.mulf %755, %755 : vector<32x128xf32>
    %757 = arith.mulf %755, %756 : vector<32x128xf32>
    %cst_291 = arith.constant 4.471500e-02 : f32
    %758 = vector.broadcast %cst_291 : f32 to vector<32x128xf32>
    %759 = arith.mulf %758, %757 : vector<32x128xf32>
    %760 = arith.addf %755, %759 : vector<32x128xf32>
    %cst_292 = arith.constant 0.797884583 : f32
    %761 = vector.broadcast %cst_292 : f32 to vector<32x128xf32>
    %762 = arith.mulf %761, %760 : vector<32x128xf32>
    %763 = math.tanh %762 : vector<32x128xf32>
    %cst_293 = arith.constant 1.000000e+00 : f32
    %764 = vector.broadcast %cst_293 : f32 to vector<32x128xf32>
    %765 = arith.addf %764, %763 : vector<32x128xf32>
    %cst_294 = arith.constant 5.000000e-01 : f32
    %766 = vector.broadcast %cst_294 : f32 to vector<32x128xf32>
    %767 = arith.mulf %766, %765 : vector<32x128xf32>
    %768 = arith.mulf %755, %767 : vector<32x128xf32>
    %769 = arith.truncf %768 : vector<32x128xf32> to vector<32x128xbf16>
    %c3_295 = arith.constant 3 : index
    %c0_296 = arith.constant 0 : index
    %c0_297 = arith.constant 0 : index
    %770 = vector.load %arg15[%c3_295, %c0_296, %c0_297] : memref<4x128x32xbf16, #tpu.memory_space<vmem>>, vector<1x128x32xbf16>
    %771 = vector.shape_cast %770 : vector<1x128x32xbf16> to vector<128x32xbf16>
    %cst_298 = arith.constant dense<0.000000e+00> : vector<32x32xf32>
    %772 = tpu.matmul %769, %771, %cst_298 {dimension_numbers = #tpu.dot_dimension_numbers<[1], [0], [0], [1], [0, 0, 1, 1], [], []>} : vector<32x128xbf16>, vector<128x32xbf16>, vector<32x32xf32> -> vector<32x32xf32>
    %c3_299 = arith.constant 3 : index
    %c0_300 = arith.constant 0 : index
    %c0_301 = arith.constant 0 : index
    %773 = vector.load %arg16[%c3_299, %c0_300, %c0_301] : memref<4x1x32xf32, #tpu.memory_space<vmem>>, vector<1x1x32xf32>
    %774 = vector.shape_cast %773 : vector<1x1x32xf32> to vector<1x32xf32>
    %775 = vector.broadcast %774 : vector<1x32xf32> to vector<32x32xf32>
    %776 = arith.addf %772, %775 : vector<32x32xf32>
    %777 = arith.addf %721, %776 : vector<32x32xf32>
    %778 = arith.truncf %777 : vector<32x32xf32> to vector<32x32xbf16>
    %c0_302 = arith.constant 0 : index
    %c0_303 = arith.constant 0 : index
    %779 = vector.load %arg17[%c0_302, %c0_303] : memref<32x768xbf16, #tpu.memory_space<vmem>>, vector<32x768xbf16>
    %cst_304 = arith.constant dense<0.000000e+00> : vector<32x768xf32>
    %780 = tpu.matmul %778, %779, %cst_304 {dimension_numbers = #tpu.dot_dimension_numbers<[1], [0], [0], [1], [0, 0, 1, 1], [], []>} : vector<32x32xbf16>, vector<32x768xbf16>, vector<32x768xf32> -> vector<32x768xf32>
    %c0_305 = arith.constant 0 : index
    %c0_306 = arith.constant 0 : index
    %781 = vector.load %arg18[%c0_305, %c0_306] : memref<1x768xf32, #tpu.memory_space<vmem>>, vector<1x768xf32>
    %782 = vector.broadcast %781 : vector<1x768xf32> to vector<32x768xf32>
    %783 = arith.addf %780, %782 : vector<32x768xf32>
    %c0_307 = arith.constant 0 : index
    %c0_308 = arith.constant 0 : index
    %784 = vector.load %arg20[%c0_307, %c0_308] : memref<32x768xf32, #tpu.memory_space<vmem>>, vector<32x768xf32>
    tpu.vector_store %arg20[%c0_307, %c0_308], %783 {strides = array<i32>} : memref<32x768xf32, #tpu.memory_space<vmem>>, vector<32x768xf32>,
    return
  }
  func.func @transform_0(%arg0: i32) -> (i32, i32) {
    %c0_i32 = arith.constant 0 : i32
    %c0_i32_0 = arith.constant 0 : i32
    return %arg0, %c0_i32 : i32, i32
  }
  func.func @transform_1(%arg0: i32) -> (i32, i32) {
    %c0_i32 = arith.constant 0 : i32
    %c0_i32_0 = arith.constant 0 : i32
    %c0_i32_1 = arith.constant 0 : i32
    return %c0_i32, %c0_i32_0 : i32, i32
  }
  func.func @transform_2(%arg0: i32) -> (i32, i32) {
    %c0_i32 = arith.constant 0 : i32
    %c0_i32_0 = arith.constant 0 : i32
    %c0_i32_1 = arith.constant 0 : i32
    return %c0_i32, %c0_i32_0 : i32, i32
  }
  func.func @transform_3(%arg0: i32) -> (i32, i32) {
    %c0_i32 = arith.constant 0 : i32
    %c0_i32_0 = arith.constant 0 : i32
    %c0_i32_1 = arith.constant 0 : i32
    return %c0_i32, %c0_i32_0 : i32, i32
  }
  func.func @transform_4(%arg0: i32) -> (i32, i32, i32) {
    %c0_i32 = arith.constant 0 : i32
    %c0_i32_0 = arith.constant 0 : i32
    %c0_i32_1 = arith.constant 0 : i32
    %c0_i32_2 = arith.constant 0 : i32
    return %c0_i32, %c0_i32_0, %c0_i32_1 : i32, i32, i32
  }
  func.func @transform_5(%arg0: i32) -> (i32, i32, i32) {
    %c0_i32 = arith.constant 0 : i32
    %c0_i32_0 = arith.constant 0 : i32
    %c0_i32_1 = arith.constant 0 : i32
    %c0_i32_2 = arith.constant 0 : i32
    return %c0_i32, %c0_i32_0, %c0_i32_1 : i32, i32, i32
  }
  func.func @transform_6(%arg0: i32) -> (i32, i32, i32) {
    %c0_i32 = arith.constant 0 : i32
    %c0_i32_0 = arith.constant 0 : i32
    %c0_i32_1 = arith.constant 0 : i32
    %c0_i32_2 = arith.constant 0 : i32
    return %c0_i32, %c0_i32_0, %c0_i32_1 : i32, i32, i32
  }
  func.func @transform_7(%arg0: i32) -> (i32, i32, i32) {
    %c0_i32 = arith.constant 0 : i32
    %c0_i32_0 = arith.constant 0 : i32
    %c0_i32_1 = arith.constant 0 : i32
    %c0_i32_2 = arith.constant 0 : i32
    return %c0_i32, %c0_i32_0, %c0_i32_1 : i32, i32, i32
  }
  func.func @transform_8(%arg0: i32) -> (i32, i32, i32) {
    %c0_i32 = arith.constant 0 : i32
    %c0_i32_0 = arith.constant 0 : i32
    %c0_i32_1 = arith.constant 0 : i32
    %c0_i32_2 = arith.constant 0 : i32
    return %c0_i32, %c0_i32_0, %c0_i32_1 : i32, i32, i32
  }
  func.func @transform_9(%arg0: i32) -> (i32, i32, i32) {
    %c0_i32 = arith.constant 0 : i32
    %c0_i32_0 = arith.constant 0 : i32
    %c0_i32_1 = arith.constant 0 : i32
    %c0_i32_2 = arith.constant 0 : i32
    return %c0_i32, %c0_i32_0, %c0_i32_1 : i32, i32, i32
  }
  func.func @transform_10(%arg0: i32) -> (i32, i32, i32) {
    %c0_i32 = arith.constant 0 : i32
    %c0_i32_0 = arith.constant 0 : i32
    %c0_i32_1 = arith.constant 0 : i32
    %c0_i32_2 = arith.constant 0 : i32
    return %c0_i32, %c0_i32_0, %c0_i32_1 : i32, i32, i32
  }
  func.func @transform_11(%arg0: i32) -> (i32, i32, i32) {
    %c0_i32 = arith.constant 0 : i32
    %c0_i32_0 = arith.constant 0 : i32
    %c0_i32_1 = arith.constant 0 : i32
    %c0_i32_2 = arith.constant 0 : i32
    return %c0_i32, %c0_i32_0, %c0_i32_1 : i32, i32, i32
  }
  func.func @transform_12(%arg0: i32) -> (i32, i32, i32) {
    %c0_i32 = arith.constant 0 : i32
    %c0_i32_0 = arith.constant 0 : i32
    %c0_i32_1 = arith.constant 0 : i32
    %c0_i32_2 = arith.constant 0 : i32
    return %c0_i32, %c0_i32_0, %c0_i32_1 : i32, i32, i32
  }
  func.func @transform_13(%arg0: i32) -> (i32, i32, i32) {
    %c0_i32 = arith.constant 0 : i32
    %c0_i32_0 = arith.constant 0 : i32
    %c0_i32_1 = arith.constant 0 : i32
    %c0_i32_2 = arith.constant 0 : i32
    return %c0_i32, %c0_i32_0, %c0_i32_1 : i32, i32, i32
  }
  func.func @transform_14(%arg0: i32) -> (i32, i32, i32) {
    %c0_i32 = arith.constant 0 : i32
    %c0_i32_0 = arith.constant 0 : i32
    %c0_i32_1 = arith.constant 0 : i32
    %c0_i32_2 = arith.constant 0 : i32
    return %c0_i32, %c0_i32_0, %c0_i32_1 : i32, i32, i32
  }
  func.func @transform_15(%arg0: i32) -> (i32, i32, i32) {
    %c0_i32 = arith.constant 0 : i32
    %c0_i32_0 = arith.constant 0 : i32
    %c0_i32_1 = arith.constant 0 : i32
    %c0_i32_2 = arith.constant 0 : i32
    return %c0_i32, %c0_i32_0, %c0_i32_1 : i32, i32, i32
  }
  func.func @transform_16(%arg0: i32) -> (i32, i32) {
    %c0_i32 = arith.constant 0 : i32
    %c0_i32_0 = arith.constant 0 : i32
    %c0_i32_1 = arith.constant 0 : i32
    return %c0_i32, %c0_i32_0 : i32, i32
  }
  func.func @transform_17(%arg0: i32) -> (i32, i32) {
    %c0_i32 = arith.constant 0 : i32
    %c0_i32_0 = arith.constant 0 : i32
    %c0_i32_1 = arith.constant 0 : i32
    return %c0_i32, %c0_i32_0 : i32, i32
  }
  func.func @transform_18(%arg0: i32) -> (i32, i32) {
    %c0_i32 = arith.constant 0 : i32
    %c0_i32_0 = arith.constant 0 : i32
    return %arg0, %c0_i32 : i32, i32
  }
  func.func @transform_19(%arg0: i32) -> (i32, i32) {
    %c0_i32 = arith.constant 0 : i32
    %c0_i32_0 = arith.constant 0 : i32
    return %arg0, %c0_i32 : i32, i32
  }
}

</mosaic_0001>

<llo_original>
// kernel: siamese_vit_autoencoder_forward.1
$region0: #{siamese_vit_autoencoder_forward.1}
  #allocation0 [shape = 'u32[]', space=smem, size = 0x4, offset = 0x4, fixed_abs, tag = 'smem constant byte address 0x4 - core index']
  #allocation1 [shape = 'u32[144,128]{1,0:T(1,128)}', space=vmem, size = 0x12000, scoped, tag = 'internal scratch']
  %s0 = inlined_call_operand.vmem [shape: f32[64,768], index: 0, kind: input, shape index: {}]
  %s1 = inlined_call_operand.vmem [shape: bf16[768,32], index: 1, kind: input, shape index: {}]
  %s2 = inlined_call_operand.vmem [shape: f32[1,32], index: 2, kind: input, shape index: {}]
  %s3 = inlined_call_operand.vmem [shape: f32[16,32], index: 3, kind: input, shape index: {}]
  %s4 = inlined_call_operand.vmem [shape: f32[4,1,32], index: 4, kind: input, shape index: {}]
  %s5 = inlined_call_operand.vmem [shape: f32[4,1,32], index: 5, kind: input, shape index: {}]
  %s6 = inlined_call_operand.vmem [shape: bf16[4,32,96], index: 6, kind: input, shape index: {}]
  %s7 = inlined_call_operand.vmem [shape: f32[4,1,96], index: 7, kind: input, shape index: {}]
  %s8 = inlined_call_operand.vmem [shape: bf16[4,32,32], index: 8, kind: input, shape index: {}]
  %s9 = inlined_call_operand.vmem [shape: f32[4,1,32], index: 9, kind: input, shape index: {}]
  %s10 = inlined_call_operand.vmem [shape: f32[4,1,32], index: 10, kind: input, shape index: {}]
  %s11 = inlined_call_operand.vmem [shape: f32[4,1,32], index: 11, kind: input, shape index: {}]
  %s12 = inlined_call_operand.vmem [shape: bf16[4,32,128], index: 12, kind: input, shape index: {}]
  %s13 = inlined_call_operand.vmem [shape: f32[4,1,128], index: 13, kind: input, shape index: {}]
  %s14 = inlined_call_operand.vmem [shape: bf16[4,128,32], index: 14, kind: input, shape index: {}]
  %s15 = inlined_call_operand.vmem [shape: f32[4,1,32], index: 15, kind: input, shape index: {}]
  %s16 = inlined_call_operand.vmem [shape: bf16[32,768], index: 16, kind: input, shape index: {}]
  %s17 = inlined_call_operand.vmem [shape: f32[1,768], index: 17, kind: input, shape index: {}]
  %s18 = inlined_call_operand.vmem [shape: f32[64,32], index: 18, kind: output, shape index: {0}]
  %s19 = inlined_call_operand.vmem [shape: f32[64,768], index: 19, kind: output, shape index: {1}]
  %20 = xla_tuple %s18, %s19
  %s21 = sld [smem:[#allocation0]]
  $region113: #{siamese_vit_autoencoder_forward.1} parent=0
    _
  %s23 = ssub.s32 1, %s21
  %s24 = scalar_select 0, %s23, %s21
  loop: start=0, step=1, limit=4
  $region2: #{siamese_vit_autoencoder_forward.1} parent=0 // loop_pre_header
    _
  $region3: #{siamese_vit_autoencoder_forward.1} parent=0 // loop_header
    %s26 = sphi 0, %s30
    %p27 = scmp.ge.s32.totalorder %s26, 4
    %s36 = sphi 0, %s38
    %s39 = sphi 0, %s36
    %s40 = sphi 0, %s39
    %s56 = sphi 0, %s40
    %s60 = sphi 0, %s60
    %s62 = sphi 0, %s60
    %s63 = sphi 0, %s62
    %s77 = sphi 0, %s63
    %s81 = sphi 0, %s81
    %s83 = sphi 0, %s81
    %s84 = sphi 0, %s83
    %s98 = sphi 0, %s84
    %s102 = sphi 0, %s102
    %s104 = sphi 0, %s102
    %s105 = sphi 0, %s104
    %s119 = sphi 0, %s105
    %s123 = sphi 0, %s123
    %s125 = sphi 0, %s123
    %s126 = sphi 0, %s125
    %s140 = sphi 0, %s126
    %s144 = sphi 0, %s144
    %s146 = sphi 0, %s144
    %s147 = sphi 0, %s146
    %s161 = sphi 0, %s147
    %s165 = sphi 0, %s165
    %s167 = sphi 0, %s165
    %s168 = sphi 0, %s167
    %s182 = sphi 0, %s168
    %s186 = sphi 0, %s186
    %s188 = sphi 0, %s186
    %s189 = sphi 0, %s188
    %s203 = sphi 0, %s189
    %s207 = sphi 0, %s207
    %s209 = sphi 0, %s207
    %s210 = sphi 0, %s209
    %s224 = sphi 0, %s210
    %s228 = sphi 0, %s228
    %s230 = sphi 0, %s228
    %s231 = sphi 0, %s230
    %s245 = sphi 0, %s231
    %s249 = sphi 0, %s249
    %s251 = sphi 0, %s249
    %s252 = sphi 0, %s251
    %s266 = sphi 0, %s252
    %s270 = sphi 0, %s270
    %s272 = sphi 0, %s270
    %s273 = sphi 0, %s272
    %s287 = sphi 0, %s273
    %s291 = sphi 0, %s291
    %s293 = sphi 0, %s291
    %s294 = sphi 0, %s293
    %s308 = sphi 0, %s294
    %s312 = sphi 0, %s312
    %s314 = sphi 0, %s312
    %s315 = sphi 0, %s314
    %s329 = sphi 0, %s315
    %s333 = sphi 0, %s333
    %s335 = sphi 0, %s333
    %s336 = sphi 0, %s335
    %s350 = sphi 0, %s336
    %s354 = sphi 0, %s354
    %s356 = sphi 0, %s354
    %s357 = sphi 0, %s356
    %s371 = sphi 0, %s357
    %s375 = sphi 0, %s375
    %s377 = sphi 0, %s375
    %s378 = sphi 0, %s377
    %s392 = sphi 0, %s378
    %s396 = sphi 0, %s396
    %s398 = sphi 0, %s396
    %s399 = sphi 0, %s398
    %s413 = sphi 0, %s399
    %s419 = sphi 0, %s421
    %s422 = sphi 0, %s419
    %s423 = sphi 0, %s422
    %s439 = sphi 0, %s423
    %s445 = sphi 0, %s447
    %s448 = sphi 0, %s445
    %s449 = sphi 0, %s448
    %s465 = sphi 0, %s449
  $region4: #{siamese_vit_autoencoder_forward.1} parent=0 // loop_header_branch
    %29 = sbr.rel (%p27) target = $region8
  $region5: #{siamese_vit_autoencoder_forward.1} parent=0 // loop_body
    %s31 = ssub.s32 %s26, 1
    %s32 = ssub.s32 %s26, 2
    %s33 = sadd.s32 %s26, 1
    %s34 = ssub.s32 %s26, %s33
    %p35 = scmp.eq.s32.totalorder %s34, 0
    %s37 = sadd.s32 %s36, 1
    %s38 = scalar_select %p35, %s36, %s37
    %p41 = pneg %p35
    %p42 = scmp.eq.s32.totalorder %s26, 1
    %p43 = por %p41, %p42
    %p44 = scmp.ne.s32.totalorder %s36, %s39
    %p45 = scmp.eq.s32.totalorder %s26, 0
    %p46 = por %p44, %p45
    %p47 = scmp.ne.s32.totalorder %s36, %s39
    %p48 = scmp.eq.s32.totalorder %s31, 1
    %p49 = por %p47, %p48
    %p50 = scmp.ne.s32.totalorder %s39, %s40
    %p51 = scmp.eq.s32.totalorder %s31, 0
    %p52 = por %p50, %p51
    %p53 = scmp.ne.s32.totalorder %s39, %s40
    %p54 = scmp.eq.s32.totalorder %s32, 1
    %p55 = por %p53, %p54
    %p57 = scmp.ne.s32.totalorder %s40, %s56
    %p58 = scmp.eq.s32.totalorder %s32, 0
    %p59 = por %p57, %p58
    %s61 = sadd.s32 %s60, 1
    %p64 = scmp.eq.s32.totalorder %s26, 1
    %p65 = scmp.ne.s32.totalorder %s60, %s62
    %p66 = scmp.eq.s32.totalorder %s26, 0
    %p67 = por %p65, %p66
    %p68 = scmp.ne.s32.totalorder %s60, %s62
    %p69 = scmp.eq.s32.totalorder %s31, 1
    %p70 = por %p68, %p69
    %p71 = scmp.ne.s32.totalorder %s62, %s63
    %p72 = scmp.eq.s32.totalorder %s31, 0
    %p73 = por %p71, %p72
    %p74 = scmp.ne.s32.totalorder %s62, %s63
    %p75 = scmp.eq.s32.totalorder %s32, 1
    %p76 = por %p74, %p75
    %p78 = scmp.ne.s32.totalorder %s63, %s77
    %p79 = scmp.eq.s32.totalorder %s32, 0
    %p80 = por %p78, %p79
    %s82 = sadd.s32 %s81, 1
    %p85 = scmp.eq.s32.totalorder %s26, 1
    %p86 = scmp.ne.s32.totalorder %s81, %s83
    %p87 = scmp.eq.s32.totalorder %s26, 0
    %p88 = por %p86, %p87
    %p89 = scmp.ne.s32.totalorder %s81, %s83
    %p90 = scmp.eq.s32.totalorder %s31, 1
    %p91 = por %p89, %p90
    %p92 = scmp.ne.s32.totalorder %s83, %s84
    %p93 = scmp.eq.s32.totalorder %s31, 0
    %p94 = por %p92, %p93
    %p95 = scmp.ne.s32.totalorder %s83, %s84
    %p96 = scmp.eq.s32.totalorder %s32, 1
    %p97 = por %p95, %p96
    %p99 = scmp.ne.s32.totalorder %s84, %s98
    %p100 = scmp.eq.s32.totalorder %s32, 0
    %p101 = por %p99, %p100
    %s103 = sadd.s32 %s102, 1
    %p106 = scmp.eq.s32.totalorder %s26, 1
    %p107 = scmp.ne.s32.totalorder %s102, %s104
    %p108 = scmp.eq.s32.totalorder %s26, 0
    %p109 = por %p107, %p108
    %p110 = scmp.ne.s32.totalorder %s102, %s104
    %p111 = scmp.eq.s32.totalorder %s31, 1
    %p112 = por %p110, %p111
    %p113 = scmp.ne.s32.totalorder %s104, %s105
    %p114 = scmp.eq.s32.totalorder %s31, 0
    %p115 = por %p113, %p114
    %p116 = scmp.ne.s32.totalorder %s104, %s105
    %p117 = scmp.eq.s32.totalorder %s32, 1
    %p118 = por %p116, %p117
    %p120 = scmp.ne.s32.totalorder %s105, %s119
    %p121 = scmp.eq.s32.totalorder %s32, 0
    %p122 = por %p120, %p121
    %s124 = sadd.s32 %s123, 1
    %p127 = scmp.eq.s32.totalorder %s26, 1
    %p128 = scmp.ne.s32.totalorder %s123, %s125
    %p129 = scmp.eq.s32.totalorder %s26, 0
    %p130 = por %p128, %p129
    %p131 = scmp.ne.s32.totalorder %s123, %s125
    %p132 = scmp.eq.s32.totalorder %s31, 1
    %p133 = por %p131, %p132
    %p134 = scmp.ne.s32.totalorder %s125, %s126
    %p135 = scmp.eq.s32.totalorder %s31, 0
    %p136 = por %p134, %p135
    %p137 = scmp.ne.s32.totalorder %s125, %s126
    %p138 = scmp.eq.s32.totalorder %s32, 1
    %p139 = por %p137, %p138
    %p141 = scmp.ne.s32.totalorder %s126, %s140
    %p142 = scmp.eq.s32.totalorder %s32, 0
    %p143 = por %p141, %p142
    %s145 = sadd.s32 %s144, 1
    %p148 = scmp.eq.s32.totalorder %s26, 1
    %p149 = scmp.ne.s32.totalorder %s144, %s146
    %p150 = scmp.eq.s32.totalorder %s26, 0
    %p151 = por %p149, %p150
    %p152 = scmp.ne.s32.totalorder %s144, %s146
    %p153 = scmp.eq.s32.totalorder %s31, 1
    %p154 = por %p152, %p153
    %p155 = scmp.ne.s32.totalorder %s146, %s147
    %p156 = scmp.eq.s32.totalorder %s31, 0
    %p157 = por %p155, %p156
    %p158 = scmp.ne.s32.totalorder %s146, %s147
    %p159 = scmp.eq.s32.totalorder %s32, 1
    %p160 = por %p158, %p159
    %p162 = scmp.ne.s32.totalorder %s147, %s161
    %p163 = scmp.eq.s32.totalorder %s32, 0
    %p164 = por %p162, %p163
    %s166 = sadd.s32 %s165, 1
    %p169 = scmp.eq.s32.totalorder %s26, 1
    %p170 = scmp.ne.s32.totalorder %s165, %s167
    %p171 = scmp.eq.s32.totalorder %s26, 0
    %p172 = por %p170, %p171
    %p173 = scmp.ne.s32.totalorder %s165, %s167
    %p174 = scmp.eq.s32.totalorder %s31, 1
    %p175 = por %p173, %p174
    %p176 = scmp.ne.s32.totalorder %s167, %s168
    %p177 = scmp.eq.s32.totalorder %s31, 0
    %p178 = por %p176, %p177
    %p179 = scmp.ne.s32.totalorder %s167, %s168
    %p180 = scmp.eq.s32.totalorder %s32, 1
    %p181 = por %p179, %p180
    %p183 = scmp.ne.s32.totalorder %s168, %s182
    %p184 = scmp.eq.s32.totalorder %s32, 0
    %p185 = por %p183, %p184
    %s187 = sadd.s32 %s186, 1
    %p190 = scmp.eq.s32.totalorder %s26, 1
    %p191 = scmp.ne.s32.totalorder %s186, %s188
    %p192 = scmp.eq.s32.totalorder %s26, 0
    %p193 = por %p191, %p192
    %p194 = scmp.ne.s32.totalorder %s186, %s188
    %p195 = scmp.eq.s32.totalorder %s31, 1
    %p196 = por %p194, %p195
    %p197 = scmp.ne.s32.totalorder %s188, %s189
    %p198 = scmp.eq.s32.totalorder %s31, 0
    %p199 = por %p197, %p198
    %p200 = scmp.ne.s32.totalorder %s188, %s189
    %p201 = scmp.eq.s32.totalorder %s32, 1
    %p202 = por %p200, %p201
    %p204 = scmp.ne.s32.totalorder %s189, %s203
    %p205 = scmp.eq.s32.totalorder %s32, 0
    %p206 = por %p204, %p205
    %s208 = sadd.s32 %s207, 1
    %p211 = scmp.eq.s32.totalorder %s26, 1
    %p212 = scmp.ne.s32.totalorder %s207, %s209
    %p213 = scmp.eq.s32.totalorder %s26, 0
    %p214 = por %p212, %p213
    %p215 = scmp.ne.s32.totalorder %s207, %s209
    %p216 = scmp.eq.s32.totalorder %s31, 1
    %p217 = por %p215, %p216
    %p218 = scmp.ne.s32.totalorder %s209, %s210
    %p219 = scmp.eq.s32.totalorder %s31, 0
    %p220 = por %p218, %p219
    %p221 = scmp.ne.s32.totalorder %s209, %s210
    %p222 = scmp.eq.s32.totalorder %s32, 1
    %p223 = por %p221, %p222
    %p225 = scmp.ne.s32.totalorder %s210, %s224
    %p226 = scmp.eq.s32.totalorder %s32, 0
    %p227 = por %p225, %p226
    %s229 = sadd.s32 %s228, 1
    %p232 = scmp.eq.s32.totalorder %s26, 1
    %p233 = scmp.ne.s32.totalorder %s228, %s230
    %p234 = scmp.eq.s32.totalorder %s26, 0
    %p235 = por %p233, %p234
    %p236 = scmp.ne.s32.totalorder %s228, %s230
    %p237 = scmp.eq.s32.totalorder %s31, 1
    %p238 = por %p236, %p237
    %p239 = scmp.ne.s32.totalorder %s230, %s231
    %p240 = scmp.eq.s32.totalorder %s31, 0
    %p241 = por %p239, %p240
    %p242 = scmp.ne.s32.totalorder %s230, %s231
    %p243 = scmp.eq.s32.totalorder %s32, 1
    %p244 = por %p242, %p243
    %p246 = scmp.ne.s32.totalorder %s231, %s245
    %p247 = scmp.eq.s32.totalorder %s32, 0
    %p248 = por %p246, %p247
    %s250 = sadd.s32 %s249, 1
    %p253 = scmp.eq.s32.totalorder %s26, 1
    %p254 = scmp.ne.s32.totalorder %s249, %s251
    %p255 = scmp.eq.s32.totalorder %s26, 0
    %p256 = por %p254, %p255
    %p257 = scmp.ne.s32.totalorder %s249, %s251
    %p258 = scmp.eq.s32.totalorder %s31, 1
    %p259 = por %p257, %p258
    %p260 = scmp.ne.s32.totalorder %s251, %s252
    %p261 = scmp.eq.s32.totalorder %s31, 0
    %p262 = por %p260, %p261
    %p263 = scmp.ne.s32.totalorder %s251, %s252
    %p264 = scmp.eq.s32.totalorder %s32, 1
    %p265 = por %p263, %p264
    %p267 = scmp.ne.s32.totalorder %s252, %s266
    %p268 = scmp.eq.s32.totalorder %s32, 0
    %p269 = por %p267, %p268
    %s271 = sadd.s32 %s270, 1
    %p274 = scmp.eq.s32.totalorder %s26, 1
    %p275 = scmp.ne.s32.totalorder %s270, %s272
    %p276 = scmp.eq.s32.totalorder %s26, 0
    %p277 = por %p275, %p276
    %p278 = scmp.ne.s32.totalorder %s270, %s272
    %p279 = scmp.eq.s32.totalorder %s31, 1
    %p280 = por %p278, %p279
    %p281 = scmp.ne.s32.totalorder %s272, %s273
    %p282 = scmp.eq.s32.totalorder %s31, 0
    %p283 = por %p281, %p282
    %p284 = scmp.ne.s32.totalorder %s272, %s273
    %p285 = scmp.eq.s32.totalorder %s32, 1
    %p286 = por %p284, %p285
    %p288 = scmp.ne.s32.totalorder %s273, %s287
    %p289 = scmp.eq.s32.totalorder %s32, 0
    %p290 = por %p288, %p289
    %s292 = sadd.s32 %s291, 1
    %p295 = scmp.eq.s32.totalorder %s26, 1
    %p296 = scmp.ne.s32.totalorder %s291, %s293
    %p297 = scmp.eq.s32.totalorder %s26, 0
    %p298 = por %p296, %p297
    %p299 = scmp.ne.s32.totalorder %s291, %s293
    %p300 = scmp.eq.s32.totalorder %s31, 1
    %p301 = por %p299, %p300
    %p302 = scmp.ne.s32.totalorder %s293, %s294
    %p303 = scmp.eq.s32.totalorder %s31, 0
    %p304 = por %p302, %p303
    %p305 = scmp.ne.s32.totalorder %s293, %s294
    %p306 = scmp.eq.s32.totalorder %s32, 1
    %p307 = por %p305, %p306
    %p309 = scmp.ne.s32.totalorder %s294, %s308
    %p310 = scmp.eq.s32.totalorder %s32, 0
    %p311 = por %p309, %p310
    %s313 = sadd.s32 %s312, 1
    %p316 = scmp.eq.s32.totalorder %s26, 1
    %p317 = scmp.ne.s32.totalorder %s312, %s314
    %p318 = scmp.eq.s32.totalorder %s26, 0
    %p319 = por %p317, %p318
    %p320 = scmp.ne.s32.totalorder %s312, %s314
    %p321 = scmp.eq.s32.totalorder %s31, 1
    %p322 = por %p320, %p321
    %p323 = scmp.ne.s32.totalorder %s314, %s315
    %p324 = scmp.eq.s32.totalorder %s31, 0
    %p325 = por %p323, %p324
    %p326 = scmp.ne.s32.totalorder %s314, %s315
    %p327 = scmp.eq.s32.totalorder %s32, 1
    %p328 = por %p326, %p327
    %p330 = scmp.ne.s32.totalorder %s315, %s329
    %p331 = scmp.eq.s32.totalorder %s32, 0
    %p332 = por %p330, %p331
    %s334 = sadd.s32 %s333, 1
    %p337 = scmp.eq.s32.totalorder %s26, 1
    %p338 = scmp.ne.s32.totalorder %s333, %s335
    %p339 = scmp.eq.s32.totalorder %s26, 0
    %p340 = por %p338, %p339
    %p341 = scmp.ne.s32.totalorder %s333, %s335
    %p342 = scmp.eq.s32.totalorder %s31, 1
    %p343 = por %p341, %p342
    %p344 = scmp.ne.s32.totalorder %s335, %s336
    %p345 = scmp.eq.s32.totalorder %s31, 0
    %p346 = por %p344, %p345
    %p347 = scmp.ne.s32.totalorder %s335, %s336
    %p348 = scmp.eq.s32.totalorder %s32, 1
    %p349 = por %p347, %p348
    %p351 = scmp.ne.s32.totalorder %s336, %s350
    %p352 = scmp.eq.s32.totalorder %s32, 0
    %p353 = por %p351, %p352
    %s355 = sadd.s32 %s354, 1
    %p358 = scmp.eq.s32.totalorder %s26, 1
    %p359 = scmp.ne.s32.totalorder %s354, %s356
    %p360 = scmp.eq.s32.totalorder %s26, 0
    %p361 = por %p359, %p360
    %p362 = scmp.ne.s32.totalorder %s354, %s356
    %p363 = scmp.eq.s32.totalorder %s31, 1
    %p364 = por %p362, %p363
    %p365 = scmp.ne.s32.totalorder %s356, %s357
    %p366 = scmp.eq.s32.totalorder %s31, 0
    %p367 = por %p365, %p366
    %p368 = scmp.ne.s32.totalorder %s356, %s357
    %p369 = scmp.eq.s32.totalorder %s32, 1
    %p370 = por %p368, %p369
    %p372 = scmp.ne.s32.totalorder %s357, %s371
    %p373 = scmp.eq.s32.totalorder %s32, 0
    %p374 = por %p372, %p373
    %s376 = sadd.s32 %s375, 1
    %p379 = scmp.eq.s32.totalorder %s26, 1
    %p380 = scmp.ne.s32.totalorder %s375, %s377
    %p381 = scmp.eq.s32.totalorder %s26, 0
    %p382 = por %p380, %p381
    %p383 = scmp.ne.s32.totalorder %s375, %s377
    %p384 = scmp.eq.s32.totalorder %s31, 1
    %p385 = por %p383, %p384
    %p386 = scmp.ne.s32.totalorder %s377, %s378
    %p387 = scmp.eq.s32.totalorder %s31, 0
    %p388 = por %p386, %p387
    %p389 = scmp.ne.s32.totalorder %s377, %s378
    %p390 = scmp.eq.s32.totalorder %s32, 1
    %p391 = por %p389, %p390
    %p393 = scmp.ne.s32.totalorder %s378, %s392
    %p394 = scmp.eq.s32.totalorder %s32, 0
    %p395 = por %p393, %p394
    %s397 = sadd.s32 %s396, 1
    %p400 = scmp.eq.s32.totalorder %s26, 1
    %p401 = scmp.ne.s32.totalorder %s396, %s398
    %p402 = scmp.eq.s32.totalorder %s26, 0
    %p403 = por %p401, %p402
    %p404 = scmp.ne.s32.totalorder %s396, %s398
    %p405 = scmp.eq.s32.totalorder %s31, 1
    %p406 = por %p404, %p405
    %p407 = scmp.ne.s32.totalorder %s398, %s399
    %p408 = scmp.eq.s32.totalorder %s31, 0
    %p409 = por %p407, %p408
    %p410 = scmp.ne.s32.totalorder %s398, %s399
    %p411 = scmp.eq.s32.totalorder %s32, 1
    %p412 = por %p410, %p411
    %p414 = scmp.ne.s32.totalorder %s399, %s413
    %p415 = scmp.eq.s32.totalorder %s32, 0
    %p416 = por %p414, %p415
    %s417 = ssub.s32 %s26, %s33
    %p418 = scmp.eq.s32.totalorder %s417, 0
    %s420 = sadd.s32 %s419, 1
    %s421 = scalar_select %p418, %s419, %s420
    %p424 = pneg %p418
    %p425 = scmp.eq.s32.totalorder %s26, 1
    %p426 = por %p424, %p425
    %p427 = scmp.ne.s32.totalorder %s419, %s422
    %p428 = scmp.eq.s32.totalorder %s26, 0
    %p429 = por %p427, %p428
    %p430 = scmp.ne.s32.totalorder %s419, %s422
    %p431 = scmp.eq.s32.totalorder %s31, 1
    %p432 = por %p430, %p431
    %p433 = scmp.ne.s32.totalorder %s422, %s423
    %p434 = scmp.eq.s32.totalorder %s31, 0
    %p435 = por %p433, %p434
    %p436 = scmp.ne.s32.totalorder %s422, %s423
    %p437 = scmp.eq.s32.totalorder %s32, 1
    %p438 = por %p436, %p437
    %p440 = scmp.ne.s32.totalorder %s423, %s439
    %p441 = scmp.eq.s32.totalorder %s32, 0
    %p442 = por %p440, %p441
    %s443 = ssub.s32 %s26, %s33
    %p444 = scmp.eq.s32.totalorder %s443, 0
    %s446 = sadd.s32 %s445, 1
    %s447 = scalar_select %p444, %s445, %s446
    %p450 = pneg %p444
    %p451 = scmp.eq.s32.totalorder %s26, 1
    %p452 = por %p450, %p451
    %p453 = scmp.ne.s32.totalorder %s445, %s448
    %p454 = scmp.eq.s32.totalorder %s26, 0
    %p455 = por %p453, %p454
    %p456 = scmp.ne.s32.totalorder %s445, %s448
    %p457 = scmp.eq.s32.totalorder %s31, 1
    %p458 = por %p456, %p457
    %p459 = scmp.ne.s32.totalorder %s448, %s449
    %p460 = scmp.eq.s32.totalorder %s31, 0
    %p461 = por %p459, %p460
    %p462 = scmp.ne.s32.totalorder %s448, %s449
    %p463 = scmp.eq.s32.totalorder %s32, 1
    %p464 = por %p462, %p463
    %p466 = scmp.ne.s32.totalorder %s449, %s465
    %p467 = scmp.eq.s32.totalorder %s32, 0
    %p468 = por %p466, %p467
    %p469 = scmp.le.s32.totalorder 1, %s26
    %p470 = scmp.lt.s32.totalorder %s26, 3
    %p471 = pnand %p469, %p470
    %p472 = pneg %p471
    // Predicated region
    $region9: #{siamese_vit_autoencoder_forward.1} parent=5 // pred_check
      _
    $region10: #{siamese_vit_autoencoder_forward.1} parent=5 // pred_check_branch
      %474 = sbr.rel (%p471) target = $region12
    $region11: #{siamese_vit_autoencoder_forward.1} parent=5 // pred_region
      %s475 = ssub.s32 %s26, 1
      // Predicated region
      $region13: #{siamese_vit_autoencoder_forward.1} parent=11 // pred_check
        %p476 = pneg %p73
      $region14: #{siamese_vit_autoencoder_forward.1} parent=11 // pred_check_branch
        %478 = sbr.rel (%p476) target = $region16
      $region15: #{siamese_vit_autoencoder_forward.1} parent=11 // pred_region
        _
      $region16: #{siamese_vit_autoencoder_forward.1} parent=11 // pred_fallthru
        _
      // Predicated region
      $region17: #{siamese_vit_autoencoder_forward.1} parent=11 // pred_check
        %p479 = pneg %p94
      $region18: #{siamese_vit_autoencoder_forward.1} parent=11 // pred_check_branch
        %481 = sbr.rel (%p479) target = $region20
      $region19: #{siamese_vit_autoencoder_forward.1} parent=11 // pred_region
        _
      $region20: #{siamese_vit_autoencoder_forward.1} parent=11 // pred_fallthru
        _
      // Predicated region
      $region21: #{siamese_vit_autoencoder_forward.1} parent=11 // pred_check
        %p482 = pneg %p115
      $region22: #{siamese_vit_autoencoder_forward.1} parent=11 // pred_check_branch
        %484 = sbr.rel (%p482) target = $region24
      $region23: #{siamese_vit_autoencoder_forward.1} parent=11 // pred_region
        _
      $region24: #{siamese_vit_autoencoder_forward.1} parent=11 // pred_fallthru
        _
      // Predicated region
      $region25: #{siamese_vit_autoencoder_forward.1} parent=11 // pred_check
        %p485 = pneg %p136
      $region26: #{siamese_vit_autoencoder_forward.1} parent=11 // pred_check_branch
        %487 = sbr.rel (%p485) target = $region28
      $region27: #{siamese_vit_autoencoder_forward.1} parent=11 // pred_region
        _
      $region28: #{siamese_vit_autoencoder_forward.1} parent=11 // pred_fallthru
        _
      // Predicated region
      $region29: #{siamese_vit_autoencoder_forward.1} parent=11 // pred_check
        %p488 = pneg %p157
      $region30: #{siamese_vit_autoencoder_forward.1} parent=11 // pred_check_branch
        %490 = sbr.rel (%p488) target = $region32
      $region31: #{siamese_vit_autoencoder_forward.1} parent=11 // pred_region
        _
      $region32: #{siamese_vit_autoencoder_forward.1} parent=11 // pred_fallthru
        _
      // Predicated region
      $region33: #{siamese_vit_autoencoder_forward.1} parent=11 // pred_check
        %p491 = pneg %p178
      $region34: #{siamese_vit_autoencoder_forward.1} parent=11 // pred_check_branch
        %493 = sbr.rel (%p491) target = $region36
      $region35: #{siamese_vit_autoencoder_forward.1} parent=11 // pred_region
        _
      $region36: #{siamese_vit_autoencoder_forward.1} parent=11 // pred_fallthru
        _
      // Predicated region
      $region37: #{siamese_vit_autoencoder_forward.1} parent=11 // pred_check
        %p494 = pneg %p199
      $region38: #{siamese_vit_autoencoder_forward.1} parent=11 // pred_check_branch
        %496 = sbr.rel (%p494) target = $region40
      $region39: #{siamese_vit_autoencoder_forward.1} parent=11 // pred_region
        _
      $region40: #{siamese_vit_autoencoder_forward.1} parent=11 // pred_fallthru
        _
      // Predicated region
      $region41: #{siamese_vit_autoencoder_forward.1} parent=11 // pred_check
        %p497 = pneg %p220
      $region42: #{siamese_vit_autoencoder_forward.1} parent=11 // pred_check_branch
        %499 = sbr.rel (%p497) target = $region44
      $region43: #{siamese_vit_autoencoder_forward.1} parent=11 // pred_region
        _
      $region44: #{siamese_vit_autoencoder_forward.1} parent=11 // pred_fallthru
        _
      // Predicated region
      $region45: #{siamese_vit_autoencoder_forward.1} parent=11 // pred_check
        %p500 = pneg %p241
      $region46: #{siamese_vit_autoencoder_forward.1} parent=11 // pred_check_branch
        %502 = sbr.rel (%p500) target = $region48
      $region47: #{siamese_vit_autoencoder_forward.1} parent=11 // pred_region
        _
      $region48: #{siamese_vit_autoencoder_forward.1} parent=11 // pred_fallthru
        _
      // Predicated region
      $region49: #{siamese_vit_autoencoder_forward.1} parent=11 // pred_check
        %p503 = pneg %p262
      $region50: #{siamese_vit_autoencoder_forward.1} parent=11 // pred_check_branch
        %505 = sbr.rel (%p503) target = $region52
      $region51: #{siamese_vit_autoencoder_forward.1} parent=11 // pred_region
        _
      $region52: #{siamese_vit_autoencoder_forward.1} parent=11 // pred_fallthru
        _
      // Predicated region
      $region53: #{siamese_vit_autoencoder_forward.1} parent=11 // pred_check
        %p506 = pneg %p283
      $region54: #{siamese_vit_autoencoder_forward.1} parent=11 // pred_check_branch
        %508 = sbr.rel (%p506) target = $region56
      $region55: #{siamese_vit_autoencoder_forward.1} parent=11 // pred_region
        _
      $region56: #{siamese_vit_autoencoder_forward.1} parent=11 // pred_fallthru
        _
      // Predicated region
      $region57: #{siamese_vit_autoencoder_forward.1} parent=11 // pred_check
        %p509 = pneg %p304
      $region58: #{siamese_vit_autoencoder_forward.1} parent=11 // pred_check_branch
        %511 = sbr.rel (%p509) target = $region60
      $region59: #{siamese_vit_autoencoder_forward.1} parent=11 // pred_region
        _
      $region60: #{siamese_vit_autoencoder_forward.1} parent=11 // pred_fallthru
        _
      // Predicated region
      $region61: #{siamese_vit_autoencoder_forward.1} parent=11 // pred_check
        %p512 = pneg %p325
      $region62: #{siamese_vit_autoencoder_forward.1} parent=11 // pred_check_branch
        %514 = sbr.rel (%p512) target = $region64
      $region63: #{siamese_vit_autoencoder_forward.1} parent=11 // pred_region
        _
      $region64: #{siamese_vit_autoencoder_forward.1} parent=11 // pred_fallthru
        _
      // Predicated region
      $region65: #{siamese_vit_autoencoder_forward.1} parent=11 // pred_check
        %p515 = pneg %p346
      $region66: #{siamese_vit_autoencoder_forward.1} parent=11 // pred_check_branch
        %517 = sbr.rel (%p515) target = $region68
      $region67: #{siamese_vit_autoencoder_forward.1} parent=11 // pred_region
        _
      $region68: #{siamese_vit_autoencoder_forward.1} parent=11 // pred_fallthru
        _
      // Predicated region
      $region69: #{siamese_vit_autoencoder_forward.1} parent=11 // pred_check
        %p518 = pneg %p367
      $region70: #{siamese_vit_autoencoder_forward.1} parent=11 // pred_check_branch
        %520 = sbr.rel (%p518) target = $region72
      $region71: #{siamese_vit_autoencoder_forward.1} parent=11 // pred_region
        _
      $region72: #{siamese_vit_autoencoder_forward.1} parent=11 // pred_fallthru
        _
      // Predicated region
      $region73: #{siamese_vit_autoencoder_forward.1} parent=11 // pred_check
        %p521 = pneg %p388
      $region74: #{siamese_vit_autoencoder_forward.1} parent=11 // pred_check_branch
        %523 = sbr.rel (%p521) target = $region76
      $region75: #{siamese_vit_autoencoder_forward.1} parent=11 // pred_region
        _
      $region76: #{siamese_vit_autoencoder_forward.1} parent=11 // pred_fallthru
        _
      // Predicated region
      $region77: #{siamese_vit_autoencoder_forward.1} parent=11 // pred_check
        %p524 = pneg %p409
      $region78: #{siamese_vit_autoencoder_forward.1} parent=11 // pred_check_branch
        %526 = sbr.rel (%p524) target = $region80
      $region79: #{siamese_vit_autoencoder_forward.1} parent=11 // pred_region
        _
      $region80: #{siamese_vit_autoencoder_forward.1} parent=11 // pred_fallthru
        _
    $region12: #{siamese_vit_autoencoder_forward.1} parent=5 // pred_fallthru
      _
    %p527 = scmp.lt.s32.totalorder %s26, 2
    // Predicated region
    $region81: #{siamese_vit_autoencoder_forward.1} parent=5 // pred_check
      %p528 = pneg %p527
    $region82: #{siamese_vit_autoencoder_forward.1} parent=5 // pred_check_branch
      %530 = sbr.rel (%p528) target = $region84
    $region83: #{siamese_vit_autoencoder_forward.1} parent=5 // pred_region
      // Predicated region
      $region85: #{siamese_vit_autoencoder_forward.1} parent=83 // pred_check
        %p531 = pneg %p46
      $region86: #{siamese_vit_autoencoder_forward.1} parent=83 // pred_check_branch
        %533 = sbr.rel (%p531) target = $region88
      $region87: #{siamese_vit_autoencoder_forward.1} parent=83 // pred_region
        %s534 = smul.u32 4, %s26
        %p535 = scmp.lt.s32.totalorder %s534, 7
        %s536 = scalar_select %p535, %s534, 7
        %s537 = smul.addr %s536, 6
        %s538 = smul.addr %s537, 8
        %s539 = scalar_lea.vmem %s0, %s538
        %s540 = smul.u32 4, %s26
      $region88: #{siamese_vit_autoencoder_forward.1} parent=83 // pred_fallthru
        _
    $region84: #{siamese_vit_autoencoder_forward.1} parent=5 // pred_fallthru
      _
    %p541 = scmp.le.s32.totalorder 1, %s26
    %p542 = scmp.lt.s32.totalorder %s26, 3
    %p543 = pnand %p541, %p542
    %p544 = pneg %p543
    // Predicated region
    $region89: #{siamese_vit_autoencoder_forward.1} parent=5 // pred_check
      _
    $region90: #{siamese_vit_autoencoder_forward.1} parent=5 // pred_check_branch
      %546 = sbr.rel (%p543) target = $region92
    $region91: #{siamese_vit_autoencoder_forward.1} parent=5 // pred_region
      %s547 = ssub.s32 %s26, 1
      %s548 = smul.u32 4, %s31
      %p549 = scmp.lt.s32.totalorder %s548, 7
      %s550 = scalar_select %p549, %s548, 7
      %s551 = smul.addr %s550, 6
      %s552 = smul.addr %s551, 8
      %s553 = scalar_lea.vmem %s0, %s552
      %p554 = pneg %p52
      %p555 = pneg %p49
      %p556 = pneg %p73
      %p557 = pneg %p70
      %p558 = pneg %p94
      %p559 = pneg %p91
      %p560 = pneg %p115
      %p561 = pneg %p112
      %p562 = pneg %p136
      %p563 = pneg %p133
      %p564 = pneg %p157
      %p565 = pneg %p154
      %p566 = pneg %p178
      %p567 = pneg %p175
      %p568 = pneg %p199
      %p569 = pneg %p196
      %p570 = pneg %p220
      %p571 = pneg %p217
      %p572 = pneg %p241
      %p573 = pneg %p238
      %p574 = pneg %p262
      %p575 = pneg %p259
      %p576 = pneg %p283
      %p577 = pneg %p280
      %p578 = pneg %p304
      %p579 = pneg %p301
      %p580 = pneg %p325
      %p581 = pneg %p322
      %p582 = pneg %p346
      %p583 = pneg %p343
      %p584 = pneg %p367
      %p585 = pneg %p364
      %p586 = pneg %p388
      %p587 = pneg %p385
      %p588 = pneg %p409
      %p589 = pneg %p406
      %p590 = pneg %p435
      %p591 = pneg %p432
      %s592 = smul.u32 4, %s31
      %p593 = scmp.lt.s32.totalorder %s592, 7
      %s594 = scalar_select %p593, %s592, 7
      %s595 = smul.addr %s594, 8
      %s596 = scalar_lea.vmem %s18, %s595
      %p597 = pneg %p461
      %p598 = pneg %p458
      %s599 = smul.u32 4, %s31
      %p600 = scmp.lt.s32.totalorder %s599, 7
      %s601 = scalar_select %p600, %s599, 7
      %s602 = smul.addr %s601, 6
      %s603 = smul.addr %s602, 8
      %s604 = scalar_lea.vmem %s19, %s603
      %s605 = smul.u32 4, %s31
      %p606 = scmp.lt.s32.totalorder %s605, 7
      %s607 = scalar_select %p606, %s605, 7
      %s608 = smul.addr %s607, 6
      %s609 = smul.addr %s608, 8
      %s610 = scalar_lea.vmem %s0, %s609
      %s611 = smul.u32 4, %s31
      %s612 = smul.u32 4, %s31
      %p613 = scmp.lt.s32.totalorder %s612, 7
      %s614 = scalar_select %p613, %s612, 7
      %s615 = smul.addr %s614, 8
      %s616 = scalar_lea.vmem %s18, %s615
      %s617 = smul.u32 4, %s31
      %s618 = smul.u32 4, %s31
      %p619 = scmp.lt.s32.totalorder %s618, 7
      %s620 = scalar_select %p619, %s618, 7
      %s621 = smul.addr %s620, 6
      %s622 = smul.addr %s621, 8
      %s623 = scalar_lea.vmem %s19, %s622
      %s624 = smul.u32 4, %s31
      %v626 = vld [vmem:[%s610] sm:$0xff]
      %v627 = vld [vmem:[%s610 + $0x8] sm:$0xff]
      %v628 = vld [vmem:[%s610 + $0x10] sm:$0xff]
      %v629 = vld [vmem:[%s610 + $0x18] sm:$0xff]
      %v630 = vld [vmem:[%s610 + $0x20] sm:$0xff]
      %v631 = vld [vmem:[%s610 + $0x28] sm:$0xff]
      %v632 = vld [vmem:[%s610 + $0x30] sm:$0xff]
      %v633 = vld [vmem:[%s610 + $0x38] sm:$0xff]
      %v634 = vld [vmem:[%s610 + $0x40] sm:$0xff]
      %v635 = vld [vmem:[%s610 + $0x48] sm:$0xff]
      %v636 = vld [vmem:[%s610 + $0x50] sm:$0xff]
      %v637 = vld [vmem:[%s610 + $0x58] sm:$0xff]
      %v638 = vld [vmem:[%s610 + $0x60] sm:$0xff]
      %v639 = vld [vmem:[%s610 + $0x68] sm:$0xff]
      %v640 = vld [vmem:[%s610 + $0x70] sm:$0xff]
      %v641 = vld [vmem:[%s610 + $0x78] sm:$0xff]
      %v642 = vld [vmem:[%s610 + $0x80] sm:$0xff]
      %v643 = vld [vmem:[%s610 + $0x88] sm:$0xff]
      %v644 = vld [vmem:[%s610 + $0x90] sm:$0xff]
      %v645 = vld [vmem:[%s610 + $0x98] sm:$0xff]
      %v646 = vld [vmem:[%s610 + $0xa0] sm:$0xff]
      %v647 = vld [vmem:[%s610 + $0xa8] sm:$0xff]
      %v648 = vld [vmem:[%s610 + $0xb0] sm:$0xff]
      %v649 = vld [vmem:[%s610 + $0xb8] sm:$0xff]
      %v650 = vpack.c.bf16 %v632, %v626
      %v651 = vpack.c.bf16 %v633, %v627
      %v652 = vpack.c.bf16 %v634, %v628
      %v653 = vpack.c.bf16 %v635, %v629
      %v654 = vpack.c.bf16 %v636, %v630
      %v655 = vpack.c.bf16 %v637, %v631
      %v656 = vpack.c.bf16 %v644, %v638
      %v657 = vpack.c.bf16 %v645, %v639
      %v658 = vpack.c.bf16 %v646, %v640
      %v659 = vpack.c.bf16 %v647, %v641
      %v660 = vpack.c.bf16 %v648, %v642
      %v661 = vpack.c.bf16 %v649, %v643
      %v662 = vld [vmem:[%s1] sm:$0xf]
      %v663 = vld [vmem:[%s1 + $0x4] sm:$0xf]
      %v664 = vld [vmem:[%s1 + $0x8] sm:$0xf]
      %v665 = vld [vmem:[%s1 + $0xc] sm:$0xf]
      %v666 = vld [vmem:[%s1 + $0x10] sm:$0xf]
      %v667 = vld [vmem:[%s1 + $0x14] sm:$0xf]
      %v668 = vld [vmem:[%s1 + $0x18] sm:$0xf]
      %v669 = vld [vmem:[%s1 + $0x1c] sm:$0xf]
      %v670 = vld [vmem:[%s1 + $0x20] sm:$0xf]
      %v671 = vld [vmem:[%s1 + $0x24] sm:$0xf]
      %v672 = vld [vmem:[%s1 + $0x28] sm:$0xf]
      %v673 = vld [vmem:[%s1 + $0x2c] sm:$0xf]
      %v674 = vld [vmem:[%s1 + $0x30] sm:$0xf]
      %v675 = vld [vmem:[%s1 + $0x34] sm:$0xf]
      %v676 = vld [vmem:[%s1 + $0x38] sm:$0xf]
      %v677 = vld [vmem:[%s1 + $0x3c] sm:$0xf]
      %v678 = vld [vmem:[%s1 + $0x40] sm:$0xf]
      %v679 = vld [vmem:[%s1 + $0x44] sm:$0xf]
      %v680 = vld [vmem:[%s1 + $0x48] sm:$0xf]
      %v681 = vld [vmem:[%s1 + $0x4c] sm:$0xf]
      %v682 = vld [vmem:[%s1 + $0x50] sm:$0xf]
      %v683 = vld [vmem:[%s1 + $0x54] sm:$0xf]
      %v684 = vld [vmem:[%s1 + $0x58] sm:$0xf]
      %v685 = vld [vmem:[%s1 + $0x5c] sm:$0xf]
      %v686 = vld [vmem:[%s1 + $0x60] sm:$0xf]
      %v687 = vld [vmem:[%s1 + $0x64] sm:$0xf]
      %v688 = vld [vmem:[%s1 + $0x68] sm:$0xf]
      %v689 = vld [vmem:[%s1 + $0x6c] sm:$0xf]
      %v690 = vld [vmem:[%s1 + $0x70] sm:$0xf]
      %v691 = vld [vmem:[%s1 + $0x74] sm:$0xf]
      %v692 = vld [vmem:[%s1 + $0x78] sm:$0xf]
      %v693 = vld [vmem:[%s1 + $0x7c] sm:$0xf]
      %v694 = vld [vmem:[%s1 + $0x80] sm:$0xf]
      %v695 = vld [vmem:[%s1 + $0x84] sm:$0xf]
      %v696 = vld [vmem:[%s1 + $0x88] sm:$0xf]
      %v697 = vld [vmem:[%s1 + $0x8c] sm:$0xf]
      %v698 = vld [vmem:[%s1 + $0x90] sm:$0xf]
      %v699 = vld [vmem:[%s1 + $0x94] sm:$0xf]
      %v700 = vld [vmem:[%s1 + $0x98] sm:$0xf]
      %v701 = vld [vmem:[%s1 + $0x9c] sm:$0xf]
      %v702 = vld [vmem:[%s1 + $0xa0] sm:$0xf]
      %v703 = vld [vmem:[%s1 + $0xa4] sm:$0xf]
      %v704 = vld [vmem:[%s1 + $0xa8] sm:$0xf]
      %v705 = vld [vmem:[%s1 + $0xac] sm:$0xf]
      %v706 = vld [vmem:[%s1 + $0xb0] sm:$0xf]
      %v707 = vld [vmem:[%s1 + $0xb4] sm:$0xf]
      %v708 = vld [vmem:[%s1 + $0xb8] sm:$0xf]
      %v709 = vld [vmem:[%s1 + $0xbc] sm:$0xf]
      %v710 = vld [vmem:[%s1 + $0xc0] sm:$0xf]
      %v711 = vld [vmem:[%s1 + $0xc4] sm:$0xf]
      %v712 = vld [vmem:[%s1 + $0xc8] sm:$0xf]
      %v713 = vld [vmem:[%s1 + $0xcc] sm:$0xf]
      %v714 = vld [vmem:[%s1 + $0xd0] sm:$0xf]
      %v715 = vld [vmem:[%s1 + $0xd4] sm:$0xf]
      %v716 = vld [vmem:[%s1 + $0xd8] sm:$0xf]
      %v717 = vld [vmem:[%s1 + $0xdc] sm:$0xf]
      %v718 = vld [vmem:[%s1 + $0xe0] sm:$0xf]
      %v719 = vld [vmem:[%s1 + $0xe4] sm:$0xf]
      %v720 = vld [vmem:[%s1 + $0xe8] sm:$0xf]
      %v721 = vld [vmem:[%s1 + $0xec] sm:$0xf]
      %v722 = vld [vmem:[%s1 + $0xf0] sm:$0xf]
      %v723 = vld [vmem:[%s1 + $0xf4] sm:$0xf]
      %v724 = vld [vmem:[%s1 + $0xf8] sm:$0xf]
      %v725 = vld [vmem:[%s1 + $0xfc] sm:$0xf]
      %v726 = vld [vmem:[%s1 + $0x100] sm:$0xf]
      %v727 = vld [vmem:[%s1 + $0x104] sm:$0xf]
      %v728 = vld [vmem:[%s1 + $0x108] sm:$0xf]
      %v729 = vld [vmem:[%s1 + $0x10c] sm:$0xf]
      %v730 = vld [vmem:[%s1 + $0x110] sm:$0xf]
      %v731 = vld [vmem:[%s1 + $0x114] sm:$0xf]
      %v732 = vld [vmem:[%s1 + $0x118] sm:$0xf]
      %v733 = vld [vmem:[%s1 + $0x11c] sm:$0xf]
      %v734 = vld [vmem:[%s1 + $0x120] sm:$0xf]
      %v735 = vld [vmem:[%s1 + $0x124] sm:$0xf]
      %v736 = vld [vmem:[%s1 + $0x128] sm:$0xf]
      %v737 = vld [vmem:[%s1 + $0x12c] sm:$0xf]
      %v738 = vld [vmem:[%s1 + $0x130] sm:$0xf]
      %v739 = vld [vmem:[%s1 + $0x134] sm:$0xf]
      %v740 = vld [vmem:[%s1 + $0x138] sm:$0xf]
      %v741 = vld [vmem:[%s1 + $0x13c] sm:$0xf]
      %v742 = vld [vmem:[%s1 + $0x140] sm:$0xf]
      %v743 = vld [vmem:[%s1 + $0x144] sm:$0xf]
      %v744 = vld [vmem:[%s1 + $0x148] sm:$0xf]
      %v745 = vld [vmem:[%s1 + $0x14c] sm:$0xf]
      %v746 = vld [vmem:[%s1 + $0x150] sm:$0xf]
      %v747 = vld [vmem:[%s1 + $0x154] sm:$0xf]
      %v748 = vld [vmem:[%s1 + $0x158] sm:$0xf]
      %v749 = vld [vmem:[%s1 + $0x15c] sm:$0xf]
      %v750 = vld [vmem:[%s1 + $0x160] sm:$0xf]
      %v751 = vld [vmem:[%s1 + $0x164] sm:$0xf]
      %v752 = vld [vmem:[%s1 + $0x168] sm:$0xf]
      %v753 = vld [vmem:[%s1 + $0x16c] sm:$0xf]
      %v754 = vld [vmem:[%s1 + $0x170] sm:$0xf]
      %v755 = vld [vmem:[%s1 + $0x174] sm:$0xf]
      %v756 = vld [vmem:[%s1 + $0x178] sm:$0xf]
      %v757 = vld [vmem:[%s1 + $0x17c] sm:$0xf]
      %v758 = vld [vmem:[%s2] sm:$0x1]
      %v760 = vlaneseq
      %v761 = vshrl.u32 %v760, 7
      %v762 = vsub.s32 0, %v761
      %v763 = vrot.slane %v758, %v762
      %v861 = vunpack.c.l.b16 %v662
      %v862 = vunpack.c.l.b16 %v663
      %v863 = vunpack.c.l.b16 %v664
      %v864 = vunpack.c.l.b16 %v665
      %v865 = vunpack.c.l.b16 %v666
      %v866 = vunpack.c.l.b16 %v667
      %v867 = vunpack.c.l.b16 %v668
      %v868 = vunpack.c.l.b16 %v669
      %v869 = vunpack.c.l.b16 %v670
      %v870 = vunpack.c.l.b16 %v671
      %v871 = vunpack.c.l.b16 %v672
      %v872 = vunpack.c.l.b16 %v673
      %v873 = vunpack.c.l.b16 %v674
      %v874 = vunpack.c.l.b16 %v675
      %v875 = vunpack.c.l.b16 %v676
      %v876 = vunpack.c.l.b16 %v677
      %v877 = vunpack.c.l.b16 %v678
      %v878 = vunpack.c.l.b16 %v679
      %v879 = vunpack.c.l.b16 %v680
      %v880 = vunpack.c.l.b16 %v681
      %v881 = vunpack.c.l.b16 %v682
      %v882 = vunpack.c.l.b16 %v683
      %v883 = vunpack.c.l.b16 %v684
      %v884 = vunpack.c.l.b16 %v685
      %v885 = vunpack.c.l.b16 %v686
      %v886 = vunpack.c.l.b16 %v687
      %v887 = vunpack.c.l.b16 %v688
      %v888 = vunpack.c.l.b16 %v689
      %v889 = vunpack.c.l.b16 %v690
      %v890 = vunpack.c.l.b16 %v691
      %v891 = vunpack.c.l.b16 %v692
      %v892 = vunpack.c.l.b16 %v693
      %v893 = vunpack.c.l.b16 %v694
      %v894 = vunpack.c.l.b16 %v695
      %v895 = vunpack.c.l.b16 %v696
      %v896 = vunpack.c.l.b16 %v697
      %v897 = vunpack.c.l.b16 %v698
      %v898 = vunpack.c.l.b16 %v699
      %v899 = vunpack.c.l.b16 %v700
      %v900 = vunpack.c.l.b16 %v701
      %v901 = vunpack.c.l.b16 %v702
      %v902 = vunpack.c.l.b16 %v703
      %v903 = vunpack.c.l.b16 %v704
      %v904 = vunpack.c.l.b16 %v705
      %v905 = vunpack.c.l.b16 %v706
      %v906 = vunpack.c.l.b16 %v707
      %v907 = vunpack.c.l.b16 %v708
      %v908 = vunpack.c.l.b16 %v709
      %v909 = vunpack.c.l.b16 %v710
      %v910 = vunpack.c.l.b16 %v711
      %v911 = vunpack.c.l.b16 %v712
      %v912 = vunpack.c.l.b16 %v713
      %v913 = vunpack.c.l.b16 %v714
      %v914 = vunpack.c.l.b16 %v715
      %v915 = vunpack.c.l.b16 %v716
      %v916 = vunpack.c.l.b16 %v717
      %v917 = vunpack.c.l.b16 %v718
      %v918 = vunpack.c.l.b16 %v719
      %v919 = vunpack.c.l.b16 %v720
      %v920 = vunpack.c.l.b16 %v721
      %v921 = vunpack.c.l.b16 %v722
      %v922 = vunpack.c.l.b16 %v723
      %v923 = vunpack.c.l.b16 %v724
      %v924 = vunpack.c.l.b16 %v725
      %v925 = vunpack.c.l.b16 %v726
      %v926 = vunpack.c.l.b16 %v727
      %v927 = vunpack.c.l.b16 %v728
      %v928 = vunpack.c.l.b16 %v729
      %v929 = vunpack.c.l.b16 %v730
      %v930 = vunpack.c.l.b16 %v731
      %v931 = vunpack.c.l.b16 %v732
      %v932 = vunpack.c.l.b16 %v733
      %v933 = vunpack.c.l.b16 %v734
      %v934 = vunpack.c.l.b16 %v735
      %v935 = vunpack.c.l.b16 %v736
      %v936 = vunpack.c.l.b16 %v737
      %v937 = vunpack.c.l.b16 %v738
      %v938 = vunpack.c.l.b16 %v739
      %v939 = vunpack.c.l.b16 %v740
      %v940 = vunpack.c.l.b16 %v741
      %v941 = vunpack.c.l.b16 %v742
      %v942 = vunpack.c.l.b16 %v743
      %v943 = vunpack.c.l.b16 %v744
      %v944 = vunpack.c.l.b16 %v745
      %v945 = vunpack.c.l.b16 %v746
      %v946 = vunpack.c.l.b16 %v747
      %v947 = vunpack.c.l.b16 %v748
      %v948 = vunpack.c.l.b16 %v749
      %v949 = vunpack.c.l.b16 %v750
      %v950 = vunpack.c.l.b16 %v751
      %v951 = vunpack.c.l.b16 %v752
      %v952 = vunpack.c.l.b16 %v753
      %v953 = vunpack.c.l.b16 %v754
      %v954 = vunpack.c.l.b16 %v755
      %v955 = vunpack.c.l.b16 %v756
      %v956 = vunpack.c.l.b16 %v757
      %v957 = vpack.c.b16 %v862, %v861
      %v958 = vpack.c.b16 %v864, %v863
      %v959 = vpack.c.b16 %v866, %v865
      %v960 = vpack.c.b16 %v868, %v867
      %v961 = vpack.c.b16 %v870, %v869
      %v962 = vpack.c.b16 %v872, %v871
      %v963 = vpack.c.b16 %v874, %v873
      %v964 = vpack.c.b16 %v876, %v875
      %v965 = vpack.c.b16 %v878, %v877
      %v966 = vpack.c.b16 %v880, %v879
      %v967 = vpack.c.b16 %v882, %v881
      %v968 = vpack.c.b16 %v884, %v883
      %v969 = vpack.c.b16 %v886, %v885
      %v970 = vpack.c.b16 %v888, %v887
      %v971 = vpack.c.b16 %v890, %v889
      %v972 = vpack.c.b16 %v892, %v891
      %v973 = vpack.c.b16 %v894, %v893
      %v974 = vpack.c.b16 %v896, %v895
      %v975 = vpack.c.b16 %v898, %v897
      %v976 = vpack.c.b16 %v900, %v899
      %v977 = vpack.c.b16 %v902, %v901
      %v978 = vpack.c.b16 %v904, %v903
      %v979 = vpack.c.b16 %v906, %v905
      %v980 = vpack.c.b16 %v908, %v907
      %v981 = vpack.c.b16 %v910, %v909
      %v982 = vpack.c.b16 %v912, %v911
      %v983 = vpack.c.b16 %v914, %v913
      %v984 = vpack.c.b16 %v916, %v915
      %v985 = vpack.c.b16 %v918, %v917
      %v986 = vpack.c.b16 %v920, %v919
      %v987 = vpack.c.b16 %v922, %v921
      %v988 = vpack.c.b16 %v924, %v923
      %v989 = vpack.c.b16 %v926, %v925
      %v990 = vpack.c.b16 %v928, %v927
      %v991 = vpack.c.b16 %v930, %v929
      %v992 = vpack.c.b16 %v932, %v931
      %v993 = vpack.c.b16 %v934, %v933
      %v994 = vpack.c.b16 %v936, %v935
      %v995 = vpack.c.b16 %v938, %v937
      %v996 = vpack.c.b16 %v940, %v939
      %v997 = vpack.c.b16 %v942, %v941
      %v998 = vpack.c.b16 %v944, %v943
      %v999 = vpack.c.b16 %v946, %v945
      %v1000 = vpack.c.b16 %v948, %v947
      %v1001 = vpack.c.b16 %v950, %v949
      %v1002 = vpack.c.b16 %v952, %v951
      %v1003 = vpack.c.b16 %v954, %v953
      %v1004 = vpack.c.b16 %v956, %v955
      %1053 = vmatprep.subr.bf16.mxu0 0
      %1054 = vmatpush1.bf16.msra.mxu0 %v957
      %1055 = vmatprep.subr.bf16.mxu0 0
      %1056 = vmatpush1.bf16.msra.mxu0 %v958
      %1057 = vmatprep.subr.bf16.mxu0 0
      %1058 = vmatpush1.bf16.msra.mxu0 %v959
      %1059 = vmatprep.subr.bf16.mxu0 0
      %1060 = vmatpush1.bf16.msra.mxu0 %v960
      %1061 = vmatprep.subr.bf16.mxu0 0
      %1062 = vmatpush1.bf16.msra.mxu0 %v961
      %1063 = vmatprep.subr.bf16.mxu0 0
      %1064 = vmatpush1.bf16.msra.mxu0 %v962
      %1065 = vmatprep.subr.bf16.mxu0 0
      %1066 = vmatpush1.bf16.msra.mxu0 %v963
      %1067 = vmatprep.subr.bf16.mxu0 0
      %1068 = vmatpush1.bf16.msra.mxu0 %v964
      %1069 = vmatprep.subr.bf16.mxu0 0
      %1070 = vmatpush1.bf16.msra.mxu0 %v965
      %1071 = vmatprep.subr.bf16.mxu0 0
      %1072 = vmatpush1.bf16.msra.mxu0 %v966
      %1073 = vmatprep.subr.bf16.mxu0 0
      %1074 = vmatpush1.bf16.msra.mxu0 %v967
      %1075 = vmatprep.subr.bf16.mxu0 0
      %1076 = vmatpush1.bf16.msra.mxu0 %v968
      %1077 = vmatprep.subr.bf16.mxu0 0
      %1078 = vmatpush1.bf16.msra.mxu0 %v969
      %1079 = vmatprep.subr.bf16.mxu0 0
      %1080 = vmatpush1.bf16.msra.mxu0 %v970
      %1081 = vmatprep.subr.bf16.mxu0 0
      %1082 = vmatpush1.bf16.msra.mxu0 %v971
      %1083 = vmatprep.subr.bf16.mxu0 0
      %1084 = vmatpush1.bf16.msra.mxu0 %v972
      %1085 = vmatprep.mubr.bf16.mxu0 %v651
      %1086 = vmatmul.mubr.bf16.gmra.mrb[0].mxu0 %v650
      %v1087 = vpop.f32.mrb[0].mxu0
      %v1088 = vadd.f32 %v763, %v1087
      %v1089 = vpop.f32.mrb[0].mxu0
      %v1090 = vpop.f32.mrb[0].mxu0
      %v1091 = vadd.f32 %v763, %v1090
      %v1092 = vpop.f32.mrb[0].mxu0
      %1093 = vmatprep.mubr.bf16.mxu0 %v657
      %1094 = vmatmul.mubr.bf16.gmra.mrb[0].mxu0 %v656
      %v1095 = vpop.f32.mrb[0].mxu0
      %v1096 = vadd.f32 %v763, %v1095
      %v1097 = vpop.f32.mrb[0].mxu0
      %v1098 = vpop.f32.mrb[0].mxu0
      %v1099 = vadd.f32 %v763, %v1098
      %v1100 = vpop.f32.mrb[0].mxu0
      %1101 = vdwg.mxu0
      %1102 = vmatprep.subr.bf16.mxu0 0
      %1103 = vmatpush1.bf16.msra.mxu0 %v973
      %1104 = vmatprep.subr.bf16.mxu0 0
      %1105 = vmatpush1.bf16.msra.mxu0 %v974
      %1106 = vmatprep.subr.bf16.mxu0 0
      %1107 = vmatpush1.bf16.msra.mxu0 %v975
      %1108 = vmatprep.subr.bf16.mxu0 0
      %1109 = vmatpush1.bf16.msra.mxu0 %v976
      %1110 = vmatprep.subr.bf16.mxu0 0
      %1111 = vmatpush1.bf16.msra.mxu0 %v977
      %1112 = vmatprep.subr.bf16.mxu0 0
      %1113 = vmatpush1.bf16.msra.mxu0 %v978
      %1114 = vmatprep.subr.bf16.mxu0 0
      %1115 = vmatpush1.bf16.msra.mxu0 %v979
      %1116 = vmatprep.subr.bf16.mxu0 0
      %1117 = vmatpush1.bf16.msra.mxu0 %v980
      %1118 = vmatprep.subr.bf16.mxu0 0
      %1119 = vmatpush1.bf16.msra.mxu0 %v981
      %1120 = vmatprep.subr.bf16.mxu0 0
      %1121 = vmatpush1.bf16.msra.mxu0 %v982
      %1122 = vmatprep.subr.bf16.mxu0 0
      %1123 = vmatpush1.bf16.msra.mxu0 %v983
      %1124 = vmatprep.subr.bf16.mxu0 0
      %1125 = vmatpush1.bf16.msra.mxu0 %v984
      %1126 = vmatprep.subr.bf16.mxu0 0
      %1127 = vmatpush1.bf16.msra.mxu0 %v985
      %1128 = vmatprep.subr.bf16.mxu0 0
      %1129 = vmatpush1.bf16.msra.mxu0 %v986
      %1130 = vmatprep.subr.bf16.mxu0 0
      %1131 = vmatpush1.bf16.msra.mxu0 %v987
      %1132 = vmatprep.subr.bf16.mxu0 0
      %1133 = vmatpush1.bf16.msra.mxu0 %v988
      %1134 = vmatprep.mubr.bf16.mxu0 %v653
      %1135 = vmatmul.mubr.bf16.gmra.mrb[0].mxu0 %v652
      %v1136 = vpop.f32.mrb[0].mxu0
      %v1137 = vadd.f32 %v1088, %v1136
      %v1138 = vpop.f32.mrb[0].mxu0
      %v1139 = vpop.f32.mrb[0].mxu0
      %v1140 = vadd.f32 %v1091, %v1139
      %v1141 = vpop.f32.mrb[0].mxu0
      %1142 = vmatprep.mubr.bf16.mxu0 %v659
      %1143 = vmatmul.mubr.bf16.gmra.mrb[0].mxu0 %v658
      %v1144 = vpop.f32.mrb[0].mxu0
      %v1145 = vadd.f32 %v1096, %v1144
      %v1146 = vpop.f32.mrb[0].mxu0
      %v1147 = vpop.f32.mrb[0].mxu0
      %v1148 = vadd.f32 %v1099, %v1147
      %v1149 = vpop.f32.mrb[0].mxu0
      %1150 = vdwg.mxu0
      %1151 = vmatprep.subr.bf16.mxu0 0
      %1152 = vmatpush1.bf16.msra.mxu0 %v989
      %1153 = vmatprep.subr.bf16.mxu0 0
      %1154 = vmatpush1.bf16.msra.mxu0 %v990
      %1155 = vmatprep.subr.bf16.mxu0 0
      %1156 = vmatpush1.bf16.msra.mxu0 %v991
      %1157 = vmatprep.subr.bf16.mxu0 0
      %1158 = vmatpush1.bf16.msra.mxu0 %v992
      %1159 = vmatprep.subr.bf16.mxu0 0
      %1160 = vmatpush1.bf16.msra.mxu0 %v993
      %1161 = vmatprep.subr.bf16.mxu0 0
      %1162 = vmatpush1.bf16.msra.mxu0 %v994
      %1163 = vmatprep.subr.bf16.mxu0 0
      %1164 = vmatpush1.bf16.msra.mxu0 %v995
      %1165 = vmatprep.subr.bf16.mxu0 0
      %1166 = vmatpush1.bf16.msra.mxu0 %v996
      %1167 = vmatprep.subr.bf16.mxu0 0
      %1168 = vmatpush1.bf16.msra.mxu0 %v997
      %1169 = vmatprep.subr.bf16.mxu0 0
      %1170 = vmatpush1.bf16.msra.mxu0 %v998
      %1171 = vmatprep.subr.bf16.mxu0 0
      %1172 = vmatpush1.bf16.msra.mxu0 %v999
      %1173 = vmatprep.subr.bf16.mxu0 0
      %1174 = vmatpush1.bf16.msra.mxu0 %v1000
      %1175 = vmatprep.subr.bf16.mxu0 0
      %1176 = vmatpush1.bf16.msra.mxu0 %v1001
      %1177 = vmatprep.subr.bf16.mxu0 0
      %1178 = vmatpush1.bf16.msra.mxu0 %v1002
      %1179 = vmatprep.subr.bf16.mxu0 0
      %1180 = vmatpush1.bf16.msra.mxu0 %v1003
      %1181 = vmatprep.subr.bf16.mxu0 0
      %1182 = vmatpush1.bf16.msra.mxu0 %v1004
      %1183 = vmatprep.mubr.bf16.mxu0 %v655
      %1184 = vmatmul.mubr.bf16.gmra.mrb[0].mxu0 %v654
      %v1185 = vpop.f32.mrb[0].mxu0
      %v1186 = vadd.f32 %v1137, %v1185
      %v1187 = vpop.f32.mrb[0].mxu0
      %v1188 = vpop.f32.mrb[0].mxu0
      %v1189 = vadd.f32 %v1140, %v1188
      %v1190 = vpop.f32.mrb[0].mxu0
      %1191 = vmatprep.mubr.bf16.mxu0 %v661
      %1192 = vmatmul.mubr.bf16.gmra.mrb[0].mxu0 %v660
      %v1193 = vpop.f32.mrb[0].mxu0
      %v1194 = vadd.f32 %v1145, %v1193
      %v1195 = vpop.f32.mrb[0].mxu0
      %v1196 = vpop.f32.mrb[0].mxu0
      %v1197 = vadd.f32 %v1148, %v1196
      %v1198 = vpop.f32.mrb[0].mxu0
      %1199 = vdwg.mxu0
      %v1200 = vld [vmem:[%s3] sm:$0xff]
      %v1201 = vld [vmem:[%s3 + $0x8] sm:$0xff]
      %v1202 = vadd.f32 %v1186, %v1200
      %v1203 = vadd.f32 %v1189, %v1201
      %v1204 = vadd.f32 %v1194, %v1200
      %v1205 = vadd.f32 %v1197, %v1201
      %v1206 = vld [vmem:[%s4] sm:$0x1]
      %v1207 = vld [vmem:[%s5] sm:$0x1]
      %vm1208 = vcmask 261120
      %v1209 = vsel %vm1208, %v1202, 0.0
      %1210 = vadd.xlane.f32.xlu0 %v1209
      %v1211 = vpop.xlane.xlu0 %1210
      %v1212 = vsel %vm1208, %v1203, 0.0
      %1213 = vadd.xlane.f32.xlu0 %v1212
      %v1214 = vpop.xlane.xlu0 %1213
      %v1215 = vsel %vm1208, %v1204, 0.0
      %1216 = vadd.xlane.f32.xlu0 %v1215
      %v1217 = vpop.xlane.xlu0 %1216
      %v1218 = vsel %vm1208, %v1205, 0.0
      %1219 = vadd.xlane.f32.xlu0 %v1218
      %v1220 = vpop.xlane.xlu0 %1219
      %v1221 = vrcp.pop 32.0
      %v1222 = vmul.f32 %v1211, %v1221
      %v1223 = vmul.f32 %v1214, %v1221
      %v1224 = vmul.f32 %v1217, %v1221
      %v1225 = vmul.f32 %v1220, %v1221
      %v1226 = vsub.f32 %v1202, %v1222
      %v1227 = vsub.f32 %v1203, %v1223
      %v1228 = vsub.f32 %v1204, %v1224
      %v1229 = vsub.f32 %v1205, %v1225
      %v1230 = vmul.f32 %v1226, %v1226
      %v1231 = vmul.f32 %v1227, %v1227
      %v1232 = vmul.f32 %v1228, %v1228
      %v1233 = vmul.f32 %v1229, %v1229
      %v1234 = vsel %vm1208, %v1230, 0.0
      %1235 = vadd.xlane.f32.xlu0 %v1234
      %v1236 = vpop.xlane.xlu0 %1235
      %v1237 = vsel %vm1208, %v1231, 0.0
      %1238 = vadd.xlane.f32.xlu0 %v1237
      %v1239 = vpop.xlane.xlu0 %1238
      %v1240 = vsel %vm1208, %v1232, 0.0
      %1241 = vadd.xlane.f32.xlu0 %v1240
      %v1242 = vpop.xlane.xlu0 %1241
      %v1243 = vsel %vm1208, %v1233, 0.0
      %1244 = vadd.xlane.f32.xlu0 %v1243
      %v1245 = vpop.xlane.xlu0 %1244
      %v1246 = vmul.f32 %v1236, %v1221
      %v1247 = vmul.f32 %v1239, %v1221
      %v1248 = vmul.f32 %v1242, %v1221
      %v1249 = vmul.f32 %v1245, %v1221
      %v1250 = vadd.f32 %v1246, 1e-05
      %v1251 = vadd.f32 %v1247, 1e-05
      %v1252 = vadd.f32 %v1248, 1e-05
      %v1253 = vadd.f32 %v1249, 1e-05
      %v1254 = vrsqrt.pop %v1250
      %v1255 = vrsqrt.pop %v1251
      %v1256 = vrsqrt.pop %v1252
      %v1257 = vrsqrt.pop %v1253
      %v1258 = vmul.f32 %v1226, %v1254
      %v1259 = vmul.f32 %v1227, %v1255
      %v1260 = vmul.f32 %v1228, %v1256
      %v1261 = vmul.f32 %v1229, %v1257
      %v1263 = vlaneseq
      %v1264 = vshrl.u32 %v1263, 7
      %v1265 = vsub.s32 0, %v1264
      %v1266 = vrot.slane %v1206, %v1265
      %v1268 = vmul.f32 %v1258, %v1266
      %v1269 = vmul.f32 %v1259, %v1266
      %v1270 = vmul.f32 %v1260, %v1266
      %v1271 = vmul.f32 %v1261, %v1266
      %v1273 = vlaneseq
      %v1274 = vshrl.u32 %v1273, 7
      %v1275 = vsub.s32 0, %v1274
      %v1276 = vrot.slane %v1207, %v1275
      %v1278 = vadd.f32 %v1268, %v1276
      %v1279 = vadd.f32 %v1269, %v1276
      %v1280 = vadd.f32 %v1270, %v1276
      %v1281 = vadd.f32 %v1271, %v1276
      %v1282 = vpack.c.bf16 %v1279, %v1278
      %v1283 = vpack.c.bf16 %v1281, %v1280
      %v1284 = vld [vmem:[%s6] sm:$0xf]
      %v1285 = vld [vmem:[%s6 + $0x4] sm:$0xf]
      %v1286 = vld [vmem:[%s6 + $0x8] sm:$0xf]
      %v1287 = vld [vmem:[%s6 + $0xc] sm:$0xf]
      %v1288 = vld [vmem:[%s7] sm:$0x1]
      %v1290 = vlaneseq
      %v1291 = vshrl.u32 %v1290, 7
      %v1292 = vsub.s32 0, %v1291
      %v1293 = vrot.slane %v1288, %v1292
      %v1299 = vunpack.c.l.b16 %v1284
      %v1300 = vunpack.c.l.b16 %v1285
      %v1301 = vunpack.c.l.b16 %v1286
      %v1302 = vunpack.c.l.b16 %v1287
      %v1303 = vpack.c.b16 %v1300, %v1299
      %v1304 = vpack.c.b16 %v1302, %v1301
      %v1308 = vsel %vm1208, %v1282, 0
      %v1311 = vsel %vm1208, %v1283, 0
      %1313 = vmatprep.subr.bf16.mxu0 0
      %1314 = vmatpush1.bf16.msra.mxu0 %v1303
      %1315 = vmatprep.subr.bf16.mxu0 0
      %1316 = vmatpush1.bf16.msra.mxu0 %v1304
      %1317 = vmatprep.subr.bf16.mxu0 0
      %1318 = vmatpush1.bf16.msra.mxu0 0
      %1319 = vmatprep.subr.bf16.mxu0 0
      %1320 = vmatpush1.bf16.msra.mxu0 0
      %1321 = vmatprep.subr.bf16.mxu0 0
      %1322 = vmatpush1.bf16.msra.mxu0 0
      %1323 = vmatprep.subr.bf16.mxu0 0
      %1324 = vmatpush1.bf16.msra.mxu0 0
      %1325 = vmatprep.subr.bf16.mxu0 0
      %1326 = vmatpush1.bf16.msra.mxu0 0
      %1327 = vmatprep.subr.bf16.mxu0 0
      %1328 = vmatpush1.bf16.msra.mxu0 0
      %1329 = vmatprep.subr.bf16.mxu0 0
      %1330 = vmatpush1.bf16.msra.mxu0 0
      %1331 = vmatprep.subr.bf16.mxu0 0
      %1332 = vmatpush1.bf16.msra.mxu0 0
      %1333 = vmatprep.subr.bf16.mxu0 0
      %1334 = vmatpush1.bf16.msra.mxu0 0
      %1335 = vmatprep.subr.bf16.mxu0 0
      %1336 = vmatpush1.bf16.msra.mxu0 0
      %1337 = vmatprep.subr.bf16.mxu0 0
      %1338 = vmatpush1.bf16.msra.mxu0 0
      %1339 = vmatprep.subr.bf16.mxu0 0
      %1340 = vmatpush1.bf16.msra.mxu0 0
      %1341 = vmatprep.subr.bf16.mxu0 0
      %1342 = vmatpush1.bf16.msra.mxu0 0
      %1343 = vmatprep.subr.bf16.mxu0 0
      %1344 = vmatpush1.bf16.msra.mxu0 0
      %1345 = vmatprep.mubr.bf16.mxu0 0
      %1346 = vmatmul.mubr.bf16.gmra.mrb[0].mxu0 %v1308
      %v1347 = vpop.f32.mrb[0].mxu0
      %v1348 = vadd.f32 %v1293, %v1347
      %v1349 = vpop.f32.mrb[0].mxu0
      %v1350 = vpop.f32.mrb[0].mxu0
      %v1351 = vadd.f32 %v1293, %v1350
      %v1352 = vpop.f32.mrb[0].mxu0
      %1353 = vmatprep.mubr.bf16.mxu0 0
      %1354 = vmatmul.mubr.bf16.gmra.mrb[0].mxu0 %v1311
      %v1355 = vpop.f32.mrb[0].mxu0
      %v1356 = vadd.f32 %v1293, %v1355
      %v1357 = vpop.f32.mrb[0].mxu0
      %v1358 = vpop.f32.mrb[0].mxu0
      %v1359 = vadd.f32 %v1293, %v1358
      %v1360 = vpop.f32.mrb[0].mxu0
      %1361 = vdwg.mxu0
      %v1362 = vpack.c.bf16 %v1351, %v1348
      %v1363 = vpack.c.bf16 %v1359, %v1356
      %1365 = vrot.lane.b32.xlu0 %v1362, 96
      %v1366 = vpop.permute.xlu0 %1365
      %vm1367 = vcmask 64512
      %v1369 = vsel %vm1367, %v1362, 0
      %v1372 = vsel %vm1367, %v1366, 0
      %1374 = vmatprep.subr.bf16.mxu0 0
      %1375 = vmatpush1.bf16.xpose.msra.mxu0 %v1372
      %1376 = vmatprep.subr.bf16.mxu0 0
      %1377 = vmatpush1.bf16.xpose.msra.mxu0 0
      %1378 = vmatprep.subr.bf16.mxu0 0
      %1379 = vmatpush1.bf16.xpose.msra.mxu0 0
      %1380 = vmatprep.subr.bf16.mxu0 0
      %1381 = vmatpush1.bf16.xpose.msra.mxu0 0
      %1382 = vmatprep.subr.bf16.mxu0 0
      %1383 = vmatpush1.bf16.xpose.msra.mxu0 0
      %1384 = vmatprep.subr.bf16.mxu0 0
      %1385 = vmatpush1.bf16.xpose.msra.mxu0 0
      %1386 = vmatprep.subr.bf16.mxu0 0
      %1387 = vmatpush1.bf16.xpose.msra.mxu0 0
      %1388 = vmatprep.subr.bf16.mxu0 0
      %1389 = vmatpush1.bf16.xpose.msra.mxu0 0
      %1390 = vmatprep.subr.bf16.mxu0 0
      %1391 = vmatpush1.bf16.xpose.msra.mxu0 0
      %1392 = vmatprep.subr.bf16.mxu0 0
      %1393 = vmatpush1.bf16.xpose.msra.mxu0 0
      %1394 = vmatprep.subr.bf16.mxu0 0
      %1395 = vmatpush1.bf16.xpose.msra.mxu0 0
      %1396 = vmatprep.subr.bf16.mxu0 0
      %1397 = vmatpush1.bf16.xpose.msra.mxu0 0
      %1398 = vmatprep.subr.bf16.mxu0 0
      %1399 = vmatpush1.bf16.xpose.msra.mxu0 0
      %1400 = vmatprep.subr.bf16.mxu0 0
      %1401 = vmatpush1.bf16.xpose.msra.mxu0 0
      %1402 = vmatprep.subr.bf16.mxu0 0
      %1403 = vmatpush1.bf16.xpose.msra.mxu0 0
      %1404 = vmatprep.subr.bf16.mxu0 0
      %1405 = vmatpush1.bf16.xpose.msra.mxu0 0
      %1406 = vmatprep.mubr.bf16.mxu0 0
      %1407 = vmatmul.mubr.bf16.gmra.mrb[0].mxu0 %v1369
      %v1408 = vpop.f32.mrb[0].mxu0
      %v1409 = vadd.f32 0.0, %v1408
      %v1410 = vpop.f32.mrb[0].mxu0
      %v1411 = vpop.f32.mrb[0].mxu0
      %v1412 = vadd.f32 0.0, %v1411
      %v1413 = vpop.f32.mrb[0].mxu0
      %1414 = vdwg.mxu0
      %1416 = vrot.lane.b32.xlu0 %v1363, 96
      %v1417 = vpop.permute.xlu0 %1416
      %v1419 = vsel %vm1367, %v1363, 0
      %v1422 = vsel %vm1367, %v1417, 0
      %1424 = vmatprep.subr.bf16.mxu0 0
      %1425 = vmatpush1.bf16.xpose.msra.mxu0 %v1422
      %1426 = vmatprep.subr.bf16.mxu0 0
      %1427 = vmatpush1.bf16.xpose.msra.mxu0 0
      %1428 = vmatprep.subr.bf16.mxu0 0
      %1429 = vmatpush1.bf16.xpose.msra.mxu0 0
      %1430 = vmatprep.subr.bf16.mxu0 0
      %1431 = vmatpush1.bf16.xpose.msra.mxu0 0
      %1432 = vmatprep.subr.bf16.mxu0 0
      %1433 = vmatpush1.bf16.xpose.msra.mxu0 0
      %1434 = vmatprep.subr.bf16.mxu0 0
      %1435 = vmatpush1.bf16.xpose.msra.mxu0 0
      %1436 = vmatprep.subr.bf16.mxu0 0
      %1437 = vmatpush1.bf16.xpose.msra.mxu0 0
      %1438 = vmatprep.subr.bf16.mxu0 0
      %1439 = vmatpush1.bf16.xpose.msra.mxu0 0
      %1440 = vmatprep.subr.bf16.mxu0 0
      %1441 = vmatpush1.bf16.xpose.msra.mxu0 0
      %1442 = vmatprep.subr.bf16.mxu0 0
      %1443 = vmatpush1.bf16.xpose.msra.mxu0 0
      %1444 = vmatprep.subr.bf16.mxu0 0
      %1445 = vmatpush1.bf16.xpose.msra.mxu0 0
      %1446 = vmatprep.subr.bf16.mxu0 0
      %1447 = vmatpush1.bf16.xpose.msra.mxu0 0
      %1448 = vmatprep.subr.bf16.mxu0 0
      %1449 = vmatpush1.bf16.xpose.msra.mxu0 0
      %1450 = vmatprep.subr.bf16.mxu0 0
      %1451 = vmatpush1.bf16.xpose.msra.mxu0 0
      %1452 = vmatprep.subr.bf16.mxu0 0
      %1453 = vmatpush1.bf16.xpose.msra.mxu0 0
      %1454 = vmatprep.subr.bf16.mxu0 0
      %1455 = vmatpush1.bf16.xpose.msra.mxu0 0
      %1456 = vmatprep.mubr.bf16.mxu0 0
      %1457 = vmatmul.mubr.bf16.gmra.mrb[0].mxu0 %v1419
      %v1458 = vpop.f32.mrb[0].mxu0
      %v1459 = vadd.f32 0.0, %v1458
      %v1460 = vpop.f32.mrb[0].mxu0
      %v1461 = vpop.f32.mrb[0].mxu0
      %v1462 = vadd.f32 0.0, %v1461
      %v1463 = vpop.f32.mrb[0].mxu0
      %1464 = vdwg.mxu0
      %v1465 = vmul.f32 %v1409, 0.35355338
      %v1466 = vmul.f32 %v1412, 0.35355338
      %v1467 = vmul.f32 %v1459, 0.35355338
      %v1468 = vmul.f32 %v1462, 0.35355338
      %vm1469 = vcmask 130048
      %v1470 = vsel %vm1469, %v1465, -inf
      %1471 = vmax.xlane.f32.xlu0 %v1470
      %v1472 = vpop.xlane.xlu0 %1471
      %v1473 = vsel %vm1469, %v1466, -inf
      %1474 = vmax.xlane.f32.xlu0 %v1473
      %v1475 = vpop.xlane.xlu0 %1474
      %v1476 = vsel %vm1469, %v1467, -inf
      %1477 = vmax.xlane.f32.xlu0 %v1476
      %v1478 = vpop.xlane.xlu0 %1477
      %v1479 = vsel %vm1469, %v1468, -inf
      %1480 = vmax.xlane.f32.xlu0 %v1479
      %v1481 = vpop.xlane.xlu0 %1480
      %v1482 = vsub.f32 %v1465, %v1472
      %v1483 = vsub.f32 %v1466, %v1475
      %v1484 = vsub.f32 %v1467, %v1478
      %v1485 = vsub.f32 %v1468, %v1481
      %v1486 = vmul.f32 %v1482, 1.442695
      %v1487 = vpow.pop %v1486
      %v1488 = vmul.f32 %v1483, 1.442695
      %v1489 = vpow.pop %v1488
      %v1490 = vmul.f32 %v1484, 1.442695
      %v1491 = vpow.pop %v1490
      %v1492 = vmul.f32 %v1485, 1.442695
      %v1493 = vpow.pop %v1492
      %v1494 = vsel %vm1469, %v1487, 0.0
      %1495 = vadd.xlane.f32.xlu0 %v1494
      %v1496 = vpop.xlane.xlu0 %1495
      %v1497 = vsel %vm1469, %v1489, 0.0
      %1498 = vadd.xlane.f32.xlu0 %v1497
      %v1499 = vpop.xlane.xlu0 %1498
      %v1500 = vsel %vm1469, %v1491, 0.0
      %1501 = vadd.xlane.f32.xlu0 %v1500
      %v1502 = vpop.xlane.xlu0 %1501
      %v1503 = vsel %vm1469, %v1493, 0.0
      %1504 = vadd.xlane.f32.xlu0 %v1503
      %v1505 = vpop.xlane.xlu0 %1504
      %v1506 = vrcp.pop %v1496
      %v1507 = vrcp.pop %v1499
      %v1508 = vrcp.pop %v1502
      %v1509 = vrcp.pop %v1505
      %v1510 = vmul.f32 %v1487, %v1506
      %v1511 = vmul.f32 %v1489, %v1507
      %v1512 = vmul.f32 %v1491, %v1508
      %v1513 = vmul.f32 %v1493, %v1509
      %v1514 = vpack.c.bf16 %v1511, %v1510
      %v1515 = vpack.c.bf16 %v1513, %v1512
      %1516 = vrot.lane.b32.xlu0 %v1362, 64
      %v1517 = vpop.permute.xlu0 %1516
      %v1520 = vsel %vm1469, %v1514, 0
      %1522 = vmatprep.subr.bf16.mxu0 0
      %1523 = vmatpush1.bf16.msra.mxu0 %v1517
      %1524 = vmatprep.subr.bf16.mxu0 0
      %1525 = vmatpush1.bf16.msra.mxu0 0
      %1526 = vmatprep.subr.bf16.mxu0 0
      %1527 = vmatpush1.bf16.msra.mxu0 0
      %1528 = vmatprep.subr.bf16.mxu0 0
      %1529 = vmatpush1.bf16.msra.mxu0 0
      %1530 = vmatprep.subr.bf16.mxu0 0
      %1531 = vmatpush1.bf16.msra.mxu0 0
      %1532 = vmatprep.subr.bf16.mxu0 0
      %1533 = vmatpush1.bf16.msra.mxu0 0
      %1534 = vmatprep.subr.bf16.mxu0 0
      %1535 = vmatpush1.bf16.msra.mxu0 0
      %1536 = vmatprep.subr.bf16.mxu0 0
      %1537 = vmatpush1.bf16.msra.mxu0 0
      %1538 = vmatprep.subr.bf16.mxu0 0
      %1539 = vmatpush1.bf16.msra.mxu0 0
      %1540 = vmatprep.subr.bf16.mxu0 0
      %1541 = vmatpush1.bf16.msra.mxu0 0
      %1542 = vmatprep.subr.bf16.mxu0 0
      %1543 = vmatpush1.bf16.msra.mxu0 0
      %1544 = vmatprep.subr.bf16.mxu0 0
      %1545 = vmatpush1.bf16.msra.mxu0 0
      %1546 = vmatprep.subr.bf16.mxu0 0
      %1547 = vmatpush1.bf16.msra.mxu0 0
      %1548 = vmatprep.subr.bf16.mxu0 0
      %1549 = vmatpush1.bf16.msra.mxu0 0
      %1550 = vmatprep.subr.bf16.mxu0 0
      %1551 = vmatpush1.bf16.msra.mxu0 0
      %1552 = vmatprep.subr.bf16.mxu0 0
      %1553 = vmatpush1.bf16.msra.mxu0 0
      %1554 = vmatprep.mubr.bf16.mxu0 0
      %1555 = vmatmul.mubr.bf16.gmra.mrb[0].mxu0 %v1520
      %v1556 = vpop.f32.mrb[0].mxu0
      %v1557 = vadd.f32 0.0, %v1556
      %v1558 = vpop.f32.mrb[0].mxu0
      %v1559 = vpop.f32.mrb[0].mxu0
      %v1560 = vadd.f32 0.0, %v1559
      %v1561 = vpop.f32.mrb[0].mxu0
      %1562 = vdwg.mxu0
      %1563 = vrot.lane.b32.xlu0 %v1363, 64
      %v1564 = vpop.permute.xlu0 %1563
      %v1567 = vsel %vm1469, %v1515, 0
      %1569 = vmatprep.subr.bf16.mxu0 0
      %1570 = vmatpush1.bf16.msra.mxu0 %v1564
      %1571 = vmatprep.subr.bf16.mxu0 0
      %1572 = vmatpush1.bf16.msra.mxu0 0
      %1573 = vmatprep.subr.bf16.mxu0 0
      %1574 = vmatpush1.bf16.msra.mxu0 0
      %1575 = vmatprep.subr.bf16.mxu0 0
      %1576 = vmatpush1.bf16.msra.mxu0 0
      %1577 = vmatprep.subr.bf16.mxu0 0
      %1578 = vmatpush1.bf16.msra.mxu0 0
      %1579 = vmatprep.subr.bf16.mxu0 0
      %1580 = vmatpush1.bf16.msra.mxu0 0
      %1581 = vmatprep.subr.bf16.mxu0 0
      %1582 = vmatpush1.bf16.msra.mxu0 0
      %1583 = vmatprep.subr.bf16.mxu0 0
      %1584 = vmatpush1.bf16.msra.mxu0 0
      %1585 = vmatprep.subr.bf16.mxu0 0
      %1586 = vmatpush1.bf16.msra.mxu0 0
      %1587 = vmatprep.subr.bf16.mxu0 0
      %1588 = vmatpush1.bf16.msra.mxu0 0
      %1589 = vmatprep.subr.bf16.mxu0 0
      %1590 = vmatpush1.bf16.msra.mxu0 0
      %1591 = vmatprep.subr.bf16.mxu0 0
      %1592 = vmatpush1.bf16.msra.mxu0 0
      %1593 = vmatprep.subr.bf16.mxu0 0
      %1594 = vmatpush1.bf16.msra.mxu0 0
      %1595 = vmatprep.subr.bf16.mxu0 0
      %1596 = vmatpush1.bf16.msra.mxu0 0
      %1597 = vmatprep.subr.bf16.mxu0 0
      %1598 = vmatpush1.bf16.msra.mxu0 0
      %1599 = vmatprep.subr.bf16.mxu0 0
      %1600 = vmatpush1.bf16.msra.mxu0 0
      %1601 = vmatprep.mubr.bf16.mxu0 0
      %1602 = vmatmul.mubr.bf16.gmra.mrb[0].mxu0 %v1567
      %v1603 = vpop.f32.mrb[0].mxu0
      %v1604 = vadd.f32 0.0, %v1603
      %v1605 = vpop.f32.mrb[0].mxu0
      %v1606 = vpop.f32.mrb[0].mxu0
      %v1607 = vadd.f32 0.0, %v1606
      %v1608 = vpop.f32.mrb[0].mxu0
      %1609 = vdwg.mxu0
      %1610 = vrot.lane.b32.xlu0 %v1362, 120
      %v1611 = vpop.permute.xlu0 %1610
      %1612 = vrot.lane.b32.xlu0 %v1362, 88
      %v1613 = vpop.permute.xlu0 %1612
      %v1615 = vsel %vm1367, %v1611, 0
      %v1618 = vsel %vm1367, %v1613, 0
      %1620 = vmatprep.subr.bf16.mxu0 0
      %1621 = vmatpush1.bf16.xpose.msra.mxu0 %v1618
      %1622 = vmatprep.subr.bf16.mxu0 0
      %1623 = vmatpush1.bf16.xpose.msra.mxu0 0
      %1624 = vmatprep.subr.bf16.mxu0 0
      %1625 = vmatpush1.bf16.xpose.msra.mxu0 0
      %1626 = vmatprep.subr.bf16.mxu0 0
      %1627 = vmatpush1.bf16.xpose.msra.mxu0 0
      %1628 = vmatprep.subr.bf16.mxu0 0
      %1629 = vmatpush1.bf16.xpose.msra.mxu0 0
      %1630 = vmatprep.subr.bf16.mxu0 0
      %1631 = vmatpush1.bf16.xpose.msra.mxu0 0
      %1632 = vmatprep.subr.bf16.mxu0 0
      %1633 = vmatpush1.bf16.xpose.msra.mxu0 0
      %1634 = vmatprep.subr.bf16.mxu0 0
      %1635 = vmatpush1.bf16.xpose.msra.mxu0 0
      %1636 = vmatprep.subr.bf16.mxu0 0
      %1637 = vmatpush1.bf16.xpose.msra.mxu0 0
      %1638 = vmatprep.subr.bf16.mxu0 0
      %1639 = vmatpush1.bf16.xpose.msra.mxu0 0
      %1640 = vmatprep.subr.bf16.mxu0 0
      %1641 = vmatpush1.bf16.xpose.msra.mxu0 0
      %1642 = vmatprep.subr.bf16.mxu0 0
      %1643 = vmatpush1.bf16.xpose.msra.mxu0 0
      %1644 = vmatprep.subr.bf16.mxu0 0
      %1645 = vmatpush1.bf16.xpose.msra.mxu0 0
      %1646 = vmatprep.subr.bf16.mxu0 0
      %1647 = vmatpush1.bf16.xpose.msra.mxu0 0
      %1648 = vmatprep.subr.bf16.mxu0 0
      %1649 = vmatpush1.bf16.xpose.msra.mxu0 0
      %1650 = vmatprep.subr.bf16.mxu0 0
      %1651 = vmatpush1.bf16.xpose.msra.mxu0 0
      %1652 = vmatprep.mubr.bf16.mxu0 0
      %1653 = vmatmul.mubr.bf16.gmra.mrb[0].mxu0 %v1615
      %v1654 = vpop.f32.mrb[0].mxu0
      %v1655 = vadd.f32 0.0, %v1654
      %v1656 = vpop.f32.mrb[0].mxu0
      %v1657 = vpop.f32.mrb[0].mxu0
      %v1658 = vadd.f32 0.0, %v1657
      %v1659 = vpop.f32.mrb[0].mxu0
      %1660 = vdwg.mxu0
      %1661 = vrot.lane.b32.xlu0 %v1363, 120
      %v1662 = vpop.permute.xlu0 %1661
      %1663 = vrot.lane.b32.xlu0 %v1363, 88
      %v1664 = vpop.permute.xlu0 %1663
      %v1666 = vsel %vm1367, %v1662, 0
      %v1669 = vsel %vm1367, %v1664, 0
      %1671 = vmatprep.subr.bf16.mxu0 0
      %1672 = vmatpush1.bf16.xpose.msra.mxu0 %v1669
      %1673 = vmatprep.subr.bf16.mxu0 0
      %1674 = vmatpush1.bf16.xpose.msra.mxu0 0
      %1675 = vmatprep.subr.bf16.mxu0 0
      %1676 = vmatpush1.bf16.xpose.msra.mxu0 0
      %1677 = vmatprep.subr.bf16.mxu0 0
      %1678 = vmatpush1.bf16.xpose.msra.mxu0 0
      %1679 = vmatprep.subr.bf16.mxu0 0
      %1680 = vmatpush1.bf16.xpose.msra.mxu0 0
      %1681 = vmatprep.subr.bf16.mxu0 0
      %1682 = vmatpush1.bf16.xpose.msra.mxu0 0
      %1683 = vmatprep.subr.bf16.mxu0 0
      %1684 = vmatpush1.bf16.xpose.msra.mxu0 0
      %1685 = vmatprep.subr.bf16.mxu0 0
      %1686 = vmatpush1.bf16.xpose.msra.mxu0 0
      %1687 = vmatprep.subr.bf16.mxu0 0
      %1688 = vmatpush1.bf16.xpose.msra.mxu0 0
      %1689 = vmatprep.subr.bf16.mxu0 0
      %1690 = vmatpush1.bf16.xpose.msra.mxu0 0
      %1691 = vmatprep.subr.bf16.mxu0 0
      %1692 = vmatpush1.bf16.xpose.msra.mxu0 0
      %1693 = vmatprep.subr.bf16.mxu0 0
      %1694 = vmatpush1.bf16.xpose.msra.mxu0 0
      %1695 = vmatprep.subr.bf16.mxu0 0
      %1696 = vmatpush1.bf16.xpose.msra.mxu0 0
      %1697 = vmatprep.subr.bf16.mxu0 0
      %1698 = vmatpush1.bf16.xpose.msra.mxu0 0
      %1699 = vmatprep.subr.bf16.mxu0 0
      %1700 = vmatpush1.bf16.xpose.msra.mxu0 0
      %1701 = vmatprep.subr.bf16.mxu0 0
      %1702 = vmatpush1.bf16.xpose.msra.mxu0 0
      %1703 = vmatprep.mubr.bf16.mxu0 0
      %1704 = vmatmul.mubr.bf16.gmra.mrb[0].mxu0 %v1666
      %v1705 = vpop.f32.mrb[0].mxu0
      %v1706 = vadd.f32 0.0, %v1705
      %v1707 = vpop.f32.mrb[0].mxu0
      %v1708 = vpop.f32.mrb[0].mxu0
      %v1709 = vadd.f32 0.0, %v1708
      %v1710 = vpop.f32.mrb[0].mxu0
      %1711 = vdwg.mxu0
      %v1712 = vmul.f32 %v1655, 0.35355338
      %v1713 = vmul.f32 %v1658, 0.35355338
      %v1714 = vmul.f32 %v1706, 0.35355338
      %v1715 = vmul.f32 %v1709, 0.35355338
      %v1716 = vsel %vm1469, %v1712, -inf
      %1717 = vmax.xlane.f32.xlu0 %v1716
      %v1718 = vpop.xlane.xlu0 %1717
      %v1719 = vsel %vm1469, %v1713, -inf
      %1720 = vmax.xlane.f32.xlu0 %v1719
      %v1721 = vpop.xlane.xlu0 %1720
      %v1722 = vsel %vm1469, %v1714, -inf
      %1723 = vmax.xlane.f32.xlu0 %v1722
      %v1724 = vpop.xlane.xlu0 %1723
      %v1725 = vsel %vm1469, %v1715, -inf
      %1726 = vmax.xlane.f32.xlu0 %v1725
      %v1727 = vpop.xlane.xlu0 %1726
      %v1728 = vsub.f32 %v1712, %v1718
      %v1729 = vsub.f32 %v1713, %v1721
      %v1730 = vsub.f32 %v1714, %v1724
      %v1731 = vsub.f32 %v1715, %v1727
      %v1732 = vmul.f32 %v1728, 1.442695
      %v1733 = vpow.pop %v1732
      %v1734 = vmul.f32 %v1729, 1.442695
      %v1735 = vpow.pop %v1734
      %v1736 = vmul.f32 %v1730, 1.442695
      %v1737 = vpow.pop %v1736
      %v1738 = vmul.f32 %v1731, 1.442695
      %v1739 = vpow.pop %v1738
      %v1740 = vsel %vm1469, %v1733, 0.0
      %1741 = vadd.xlane.f32.xlu0 %v1740
      %v1742 = vpop.xlane.xlu0 %1741
      %v1743 = vsel %vm1469, %v1735, 0.0
      %1744 = vadd.xlane.f32.xlu0 %v1743
      %v1745 = vpop.xlane.xlu0 %1744
      %v1746 = vsel %vm1469, %v1737, 0.0
      %1747 = vadd.xlane.f32.xlu0 %v1746
      %v1748 = vpop.xlane.xlu0 %1747
      %v1749 = vsel %vm1469, %v1739, 0.0
      %1750 = vadd.xlane.f32.xlu0 %v1749
      %v1751 = vpop.xlane.xlu0 %1750
      %v1752 = vrcp.pop %v1742
      %v1753 = vrcp.pop %v1745
      %v1754 = vrcp.pop %v1748
      %v1755 = vrcp.pop %v1751
      %v1756 = vmul.f32 %v1733, %v1752
      %v1757 = vmul.f32 %v1735, %v1753
      %v1758 = vmul.f32 %v1737, %v1754
      %v1759 = vmul.f32 %v1739, %v1755
      %v1760 = vpack.c.bf16 %v1757, %v1756
      %v1761 = vpack.c.bf16 %v1759, %v1758
      %1762 = vrot.lane.b32.xlu0 %v1362, 56
      %v1763 = vpop.permute.xlu0 %1762
      %v1766 = vsel %vm1469, %v1760, 0
      %1768 = vmatprep.subr.bf16.mxu0 0
      %1769 = vmatpush1.bf16.msra.mxu0 %v1763
      %1770 = vmatprep.subr.bf16.mxu0 0
      %1771 = vmatpush1.bf16.msra.mxu0 0
      %1772 = vmatprep.subr.bf16.mxu0 0
      %1773 = vmatpush1.bf16.msra.mxu0 0
      %1774 = vmatprep.subr.bf16.mxu0 0
      %1775 = vmatpush1.bf16.msra.mxu0 0
      %1776 = vmatprep.subr.bf16.mxu0 0
      %1777 = vmatpush1.bf16.msra.mxu0 0
      %1778 = vmatprep.subr.bf16.mxu0 0
      %1779 = vmatpush1.bf16.msra.mxu0 0
      %1780 = vmatprep.subr.bf16.mxu0 0
      %1781 = vmatpush1.bf16.msra.mxu0 0
      %1782 = vmatprep.subr.bf16.mxu0 0
      %1783 = vmatpush1.bf16.msra.mxu0 0
      %1784 = vmatprep.subr.bf16.mxu0 0
      %1785 = vmatpush1.bf16.msra.mxu0 0
      %1786 = vmatprep.subr.bf16.mxu0 0
      %1787 = vmatpush1.bf16.msra.mxu0 0
      %1788 = vmatprep.subr.bf16.mxu0 0
      %1789 = vmatpush1.bf16.msra.mxu0 0
      %1790 = vmatprep.subr.bf16.mxu0 0
      %1791 = vmatpush1.bf16.msra.mxu0 0
      %1792 = vmatprep.subr.bf16.mxu0 0
      %1793 = vmatpush1.bf16.msra.mxu0 0
      %1794 = vmatprep.subr.bf16.mxu0 0
      %1795 = vmatpush1.bf16.msra.mxu0 0
      %1796 = vmatprep.subr.bf16.mxu0 0
      %1797 = vmatpush1.bf16.msra.mxu0 0
      %1798 = vmatprep.subr.bf16.mxu0 0
      %1799 = vmatpush1.bf16.msra.mxu0 0
      %1800 = vmatprep.mubr.bf16.mxu0 0
      %1801 = vmatmul.mubr.bf16.gmra.mrb[0].mxu0 %v1766
      %v1802 = vpop.f32.mrb[0].mxu0
      %v1803 = vadd.f32 0.0, %v1802
      %v1804 = vpop.f32.mrb[0].mxu0
      %v1805 = vpop.f32.mrb[0].mxu0
      %v1806 = vadd.f32 0.0, %v1805
      %v1807 = vpop.f32.mrb[0].mxu0
      %1808 = vdwg.mxu0
      %1809 = vrot.lane.b32.xlu0 %v1363, 56
      %v1810 = vpop.permute.xlu0 %1809
      %v1813 = vsel %vm1469, %v1761, 0
      %1815 = vmatprep.subr.bf16.mxu0 0
      %1816 = vmatpush1.bf16.msra.mxu0 %v1810
      %1817 = vmatprep.subr.bf16.mxu0 0
      %1818 = vmatpush1.bf16.msra.mxu0 0
      %1819 = vmatprep.subr.bf16.mxu0 0
      %1820 = vmatpush1.bf16.msra.mxu0 0
      %1821 = vmatprep.subr.bf16.mxu0 0
      %1822 = vmatpush1.bf16.msra.mxu0 0
      %1823 = vmatprep.subr.bf16.mxu0 0
      %1824 = vmatpush1.bf16.msra.mxu0 0
      %1825 = vmatprep.subr.bf16.mxu0 0
      %1826 = vmatpush1.bf16.msra.mxu0 0
      %1827 = vmatprep.subr.bf16.mxu0 0
      %1828 = vmatpush1.bf16.msra.mxu0 0
      %1829 = vmatprep.subr.bf16.mxu0 0
      %1830 = vmatpush1.bf16.msra.mxu0 0
      %1831 = vmatprep.subr.bf16.mxu0 0
      %1832 = vmatpush1.bf16.msra.mxu0 0
      %1833 = vmatprep.subr.bf16.mxu0 0
      %1834 = vmatpush1.bf16.msra.mxu0 0
      %1835 = vmatprep.subr.bf16.mxu0 0
      %1836 = vmatpush1.bf16.msra.mxu0 0
      %1837 = vmatprep.subr.bf16.mxu0 0
      %1838 = vmatpush1.bf16.msra.mxu0 0
      %1839 = vmatprep.subr.bf16.mxu0 0
      %1840 = vmatpush1.bf16.msra.mxu0 0
      %1841 = vmatprep.subr.bf16.mxu0 0
      %1842 = vmatpush1.bf16.msra.mxu0 0
      %1843 = vmatprep.subr.bf16.mxu0 0
      %1844 = vmatpush1.bf16.msra.mxu0 0
      %1845 = vmatprep.subr.bf16.mxu0 0
      %1846 = vmatpush1.bf16.msra.mxu0 0
      %1847 = vmatprep.mubr.bf16.mxu0 0
      %1848 = vmatmul.mubr.bf16.gmra.mrb[0].mxu0 %v1813
      %v1849 = vpop.f32.mrb[0].mxu0
      %v1850 = vadd.f32 0.0, %v1849
      %v1851 = vpop.f32.mrb[0].mxu0
      %v1852 = vpop.f32.mrb[0].mxu0
      %v1853 = vadd.f32 0.0, %v1852
      %v1854 = vpop.f32.mrb[0].mxu0
      %1855 = vdwg.mxu0
      %1856 = vrot.lane.b32.xlu0 %v1362, 112
      %v1857 = vpop.permute.xlu0 %1856
      %1858 = vrot.lane.b32.xlu0 %v1362, 80
      %v1859 = vpop.permute.xlu0 %1858
      %v1861 = vsel %vm1367, %v1857, 0
      %v1864 = vsel %vm1367, %v1859, 0
      %1866 = vmatprep.subr.bf16.mxu0 0
      %1867 = vmatpush1.bf16.xpose.msra.mxu0 %v1864
      %1868 = vmatprep.subr.bf16.mxu0 0
      %1869 = vmatpush1.bf16.xpose.msra.mxu0 0
      %1870 = vmatprep.subr.bf16.mxu0 0
      %1871 = vmatpush1.bf16.xpose.msra.mxu0 0
      %1872 = vmatprep.subr.bf16.mxu0 0
      %1873 = vmatpush1.bf16.xpose.msra.mxu0 0
      %1874 = vmatprep.subr.bf16.mxu0 0
      %1875 = vmatpush1.bf16.xpose.msra.mxu0 0
      %1876 = vmatprep.subr.bf16.mxu0 0
      %1877 = vmatpush1.bf16.xpose.msra.mxu0 0
      %1878 = vmatprep.subr.bf16.mxu0 0
      %1879 = vmatpush1.bf16.xpose.msra.mxu0 0
      %1880 = vmatprep.subr.bf16.mxu0 0
      %1881 = vmatpush1.bf16.xpose.msra.mxu0 0
      %1882 = vmatprep.subr.bf16.mxu0 0
      %1883 = vmatpush1.bf16.xpose.msra.mxu0 0
      %1884 = vmatprep.subr.bf16.mxu0 0
      %1885 = vmatpush1.bf16.xpose.msra.mxu0 0
      %1886 = vmatprep.subr.bf16.mxu0 0
      %1887 = vmatpush1.bf16.xpose.msra.mxu0 0
      %1888 = vmatprep.subr.bf16.mxu0 0
      %1889 = vmatpush1.bf16.xpose.msra.mxu0 0
      %1890 = vmatprep.subr.bf16.mxu0 0
      %1891 = vmatpush1.bf16.xpose.msra.mxu0 0
      %1892 = vmatprep.subr.bf16.mxu0 0
      %1893 = vmatpush1.bf16.xpose.msra.mxu0 0
      %1894 = vmatprep.subr.bf16.mxu0 0
      %1895 = vmatpush1.bf16.xpose.msra.mxu0 0
      %1896 = vmatprep.subr.bf16.mxu0 0
      %1897 = vmatpush1.bf16.xpose.msra.mxu0 0
      %1898 = vmatprep.mubr.bf16.mxu0 0
      %1899 = vmatmul.mubr.bf16.gmra.mrb[0].mxu0 %v1861
      %v1900 = vpop.f32.mrb[0].mxu0
      %v1901 = vadd.f32 0.0, %v1900
      %v1902 = vpop.f32.mrb[0].mxu0
      %v1903 = vpop.f32.mrb[0].mxu0
      %v1904 = vadd.f32 0.0, %v1903
      %v1905 = vpop.f32.mrb[0].mxu0
      %1906 = vdwg.mxu0
      %1907 = vrot.lane.b32.xlu0 %v1363, 112
      %v1908 = vpop.permute.xlu0 %1907
      %1909 = vrot.lane.b32.xlu0 %v1363, 80
      %v1910 = vpop.permute.xlu0 %1909
      %v1912 = vsel %vm1367, %v1908, 0
      %v1915 = vsel %vm1367, %v1910, 0
      %1917 = vmatprep.subr.bf16.mxu0 0
      %1918 = vmatpush1.bf16.xpose.msra.mxu0 %v1915
      %1919 = vmatprep.subr.bf16.mxu0 0
      %1920 = vmatpush1.bf16.xpose.msra.mxu0 0
      %1921 = vmatprep.subr.bf16.mxu0 0
      %1922 = vmatpush1.bf16.xpose.msra.mxu0 0
      %1923 = vmatprep.subr.bf16.mxu0 0
      %1924 = vmatpush1.bf16.xpose.msra.mxu0 0
      %1925 = vmatprep.subr.bf16.mxu0 0
      %1926 = vmatpush1.bf16.xpose.msra.mxu0 0
      %1927 = vmatprep.subr.bf16.mxu0 0
      %1928 = vmatpush1.bf16.xpose.msra.mxu0 0
      %1929 = vmatprep.subr.bf16.mxu0 0
      %1930 = vmatpush1.bf16.xpose.msra.mxu0 0
      %1931 = vmatprep.subr.bf16.mxu0 0
      %1932 = vmatpush1.bf16.xpose.msra.mxu0 0
      %1933 = vmatprep.subr.bf16.mxu0 0
      %1934 = vmatpush1.bf16.xpose.msra.mxu0 0
      %1935 = vmatprep.subr.bf16.mxu0 0
      %1936 = vmatpush1.bf16.xpose.msra.mxu0 0
      %1937 = vmatprep.subr.bf16.mxu0 0
      %1938 = vmatpush1.bf16.xpose.msra.mxu0 0
      %1939 = vmatprep.subr.bf16.mxu0 0
      %1940 = vmatpush1.bf16.xpose.msra.mxu0 0
      %1941 = vmatprep.subr.bf16.mxu0 0
      %1942 = vmatpush1.bf16.xpose.msra.mxu0 0
      %1943 = vmatprep.subr.bf16.mxu0 0
      %1944 = vmatpush1.bf16.xpose.msra.mxu0 0
      %1945 = vmatprep.subr.bf16.mxu0 0
      %1946 = vmatpush1.bf16.xpose.msra.mxu0 0
      %1947 = vmatprep.subr.bf16.mxu0 0
      %1948 = vmatpush1.bf16.xpose.msra.mxu0 0
      %1949 = vmatprep.mubr.bf16.mxu0 0
      %1950 = vmatmul.mubr.bf16.gmra.mrb[0].mxu0 %v1912
      %v1951 = vpop.f32.mrb[0].mxu0
      %v1952 = vadd.f32 0.0, %v1951
      %v1953 = vpop.f32.mrb[0].mxu0
      %v1954 = vpop.f32.mrb[0].mxu0
      %v1955 = vadd.f32 0.0, %v1954
      %v1956 = vpop.f32.mrb[0].mxu0
      %1957 = vdwg.mxu0
      %v1958 = vmul.f32 %v1901, 0.35355338
      %v1959 = vmul.f32 %v1904, 0.35355338
      %v1960 = vmul.f32 %v1952, 0.35355338
      %v1961 = vmul.f32 %v1955, 0.35355338
      %v1962 = vsel %vm1469, %v1958, -inf
      %1963 = vmax.xlane.f32.xlu0 %v1962
      %v1964 = vpop.xlane.xlu0 %1963
      %v1965 = vsel %vm1469, %v1959, -inf
      %1966 = vmax.xlane.f32.xlu0 %v1965
      %v1967 = vpop.xlane.xlu0 %1966
      %v1968 = vsel %vm1469, %v1960, -inf
      %1969 = vmax.xlane.f32.xlu0 %v1968
      %v1970 = vpop.xlane.xlu0 %1969
      %v1971 = vsel %vm1469, %v1961, -inf
      %1972 = vmax.xlane.f32.xlu0 %v1971
      %v1973 = vpop.xlane.xlu0 %1972
      %v1974 = vsub.f32 %v1958, %v1964
      %v1975 = vsub.f32 %v1959, %v1967
      %v1976 = vsub.f32 %v1960, %v1970
      %v1977 = vsub.f32 %v1961, %v1973
      %v1978 = vmul.f32 %v1974, 1.442695
      %v1979 = vpow.pop %v1978
      %v1980 = vmul.f32 %v1975, 1.442695
      %v1981 = vpow.pop %v1980
      %v1982 = vmul.f32 %v1976, 1.442695
      %v1983 = vpow.pop %v1982
      %v1984 = vmul.f32 %v1977, 1.442695
      %v1985 = vpow.pop %v1984
      %v1986 = vsel %vm1469, %v1979, 0.0
      %1987 = vadd.xlane.f32.xlu0 %v1986
      %v1988 = vpop.xlane.xlu0 %1987
      %v1989 = vsel %vm1469, %v1981, 0.0
      %1990 = vadd.xlane.f32.xlu0 %v1989
      %v1991 = vpop.xlane.xlu0 %1990
      %v1992 = vsel %vm1469, %v1983, 0.0
      %1993 = vadd.xlane.f32.xlu0 %v1992
      %v1994 = vpop.xlane.xlu0 %1993
      %v1995 = vsel %vm1469, %v1985, 0.0
      %1996 = vadd.xlane.f32.xlu0 %v1995
      %v1997 = vpop.xlane.xlu0 %1996
      %v1998 = vrcp.pop %v1988
      %v1999 = vrcp.pop %v1991
      %v2000 = vrcp.pop %v1994
      %v2001 = vrcp.pop %v1997
      %v2002 = vmul.f32 %v1979, %v1998
      %v2003 = vmul.f32 %v1981, %v1999
      %v2004 = vmul.f32 %v1983, %v2000
      %v2005 = vmul.f32 %v1985, %v2001
      %v2006 = vpack.c.bf16 %v2003, %v2002
      %v2007 = vpack.c.bf16 %v2005, %v2004
      %2008 = vrot.lane.b32.xlu0 %v1362, 48
      %v2009 = vpop.permute.xlu0 %2008
      %v2012 = vsel %vm1469, %v2006, 0
      %2014 = vmatprep.subr.bf16.mxu0 0
      %2015 = vmatpush1.bf16.msra.mxu0 %v2009
      %2016 = vmatprep.subr.bf16.mxu0 0
      %2017 = vmatpush1.bf16.msra.mxu0 0
      %2018 = vmatprep.subr.bf16.mxu0 0
      %2019 = vmatpush1.bf16.msra.mxu0 0
      %2020 = vmatprep.subr.bf16.mxu0 0
      %2021 = vmatpush1.bf16.msra.mxu0 0
      %2022 = vmatprep.subr.bf16.mxu0 0
      %2023 = vmatpush1.bf16.msra.mxu0 0
      %2024 = vmatprep.subr.bf16.mxu0 0
      %2025 = vmatpush1.bf16.msra.mxu0 0
      %2026 = vmatprep.subr.bf16.mxu0 0
      %2027 = vmatpush1.bf16.msra.mxu0 0
      %2028 = vmatprep.subr.bf16.mxu0 0
      %2029 = vmatpush1.bf16.msra.mxu0 0
      %2030 = vmatprep.subr.bf16.mxu0 0
      %2031 = vmatpush1.bf16.msra.mxu0 0
      %2032 = vmatprep.subr.bf16.mxu0 0
      %2033 = vmatpush1.bf16.msra.mxu0 0
      %2034 = vmatprep.subr.bf16.mxu0 0
      %2035 = vmatpush1.bf16.msra.mxu0 0
      %2036 = vmatprep.subr.bf16.mxu0 0
      %2037 = vmatpush1.bf16.msra.mxu0 0
      %2038 = vmatprep.subr.bf16.mxu0 0
      %2039 = vmatpush1.bf16.msra.mxu0 0
      %2040 = vmatprep.subr.bf16.mxu0 0
      %2041 = vmatpush1.bf16.msra.mxu0 0
      %2042 = vmatprep.subr.bf16.mxu0 0
      %2043 = vmatpush1.bf16.msra.mxu0 0
      %2044 = vmatprep.subr.bf16.mxu0 0
      %2045 = vmatpush1.bf16.msra.mxu0 0
      %2046 = vmatprep.mubr.bf16.mxu0 0
      %2047 = vmatmul.mubr.bf16.gmra.mrb[0].mxu0 %v2012
      %v2048 = vpop.f32.mrb[0].mxu0
      %v2049 = vadd.f32 0.0, %v2048
      %v2050 = vpop.f32.mrb[0].mxu0
      %v2051 = vpop.f32.mrb[0].mxu0
      %v2052 = vadd.f32 0.0, %v2051
      %v2053 = vpop.f32.mrb[0].mxu0
      %2054 = vdwg.mxu0
      %2055 = vrot.lane.b32.xlu0 %v1363, 48
      %v2056 = vpop.permute.xlu0 %2055
      %v2059 = vsel %vm1469, %v2007, 0
      %2061 = vmatprep.subr.bf16.mxu0 0
      %2062 = vmatpush1.bf16.msra.mxu0 %v2056
      %2063 = vmatprep.subr.bf16.mxu0 0
      %2064 = vmatpush1.bf16.msra.mxu0 0
      %2065 = vmatprep.subr.bf16.mxu0 0
      %2066 = vmatpush1.bf16.msra.mxu0 0
      %2067 = vmatprep.subr.bf16.mxu0 0
      %2068 = vmatpush1.bf16.msra.mxu0 0
      %2069 = vmatprep.subr.bf16.mxu0 0
      %2070 = vmatpush1.bf16.msra.mxu0 0
      %2071 = vmatprep.subr.bf16.mxu0 0
      %2072 = vmatpush1.bf16.msra.mxu0 0
      %2073 = vmatprep.subr.bf16.mxu0 0
      %2074 = vmatpush1.bf16.msra.mxu0 0
      %2075 = vmatprep.subr.bf16.mxu0 0
      %2076 = vmatpush1.bf16.msra.mxu0 0
      %2077 = vmatprep.subr.bf16.mxu0 0
      %2078 = vmatpush1.bf16.msra.mxu0 0
      %2079 = vmatprep.subr.bf16.mxu0 0
      %2080 = vmatpush1.bf16.msra.mxu0 0
      %2081 = vmatprep.subr.bf16.mxu0 0
      %2082 = vmatpush1.bf16.msra.mxu0 0
      %2083 = vmatprep.subr.bf16.mxu0 0
      %2084 = vmatpush1.bf16.msra.mxu0 0
      %2085 = vmatprep.subr.bf16.mxu0 0
      %2086 = vmatpush1.bf16.msra.mxu0 0
      %2087 = vmatprep.subr.bf16.mxu0 0
      %2088 = vmatpush1.bf16.msra.mxu0 0
      %2089 = vmatprep.subr.bf16.mxu0 0
      %2090 = vmatpush1.bf16.msra.mxu0 0
      %2091 = vmatprep.subr.bf16.mxu0 0
      %2092 = vmatpush1.bf16.msra.mxu0 0
      %2093 = vmatprep.mubr.bf16.mxu0 0
      %2094 = vmatmul.mubr.bf16.gmra.mrb[0].mxu0 %v2059
      %v2095 = vpop.f32.mrb[0].mxu0
      %v2096 = vadd.f32 0.0, %v2095
      %v2097 = vpop.f32.mrb[0].mxu0
      %v2098 = vpop.f32.mrb[0].mxu0
      %v2099 = vadd.f32 0.0, %v2098
      %v2100 = vpop.f32.mrb[0].mxu0
      %2101 = vdwg.mxu0
      %2102 = vrot.lane.b32.xlu0 %v1362, 104
      %v2103 = vpop.permute.xlu0 %2102
      %2104 = vrot.lane.b32.xlu0 %v1362, 72
      %v2105 = vpop.permute.xlu0 %2104
      %v2107 = vsel %vm1367, %v2103, 0
      %v2110 = vsel %vm1367, %v2105, 0
      %2112 = vmatprep.subr.bf16.mxu0 0
      %2113 = vmatpush1.bf16.xpose.msra.mxu0 %v2110
      %2114 = vmatprep.subr.bf16.mxu0 0
      %2115 = vmatpush1.bf16.xpose.msra.mxu0 0
      %2116 = vmatprep.subr.bf16.mxu0 0
      %2117 = vmatpush1.bf16.xpose.msra.mxu0 0
      %2118 = vmatprep.subr.bf16.mxu0 0
      %2119 = vmatpush1.bf16.xpose.msra.mxu0 0
      %2120 = vmatprep.subr.bf16.mxu0 0
      %2121 = vmatpush1.bf16.xpose.msra.mxu0 0
      %2122 = vmatprep.subr.bf16.mxu0 0
      %2123 = vmatpush1.bf16.xpose.msra.mxu0 0
      %2124 = vmatprep.subr.bf16.mxu0 0
      %2125 = vmatpush1.bf16.xpose.msra.mxu0 0
      %2126 = vmatprep.subr.bf16.mxu0 0
      %2127 = vmatpush1.bf16.xpose.msra.mxu0 0
      %2128 = vmatprep.subr.bf16.mxu0 0
      %2129 = vmatpush1.bf16.xpose.msra.mxu0 0
      %2130 = vmatprep.subr.bf16.mxu0 0
      %2131 = vmatpush1.bf16.xpose.msra.mxu0 0
      %2132 = vmatprep.subr.bf16.mxu0 0
      %2133 = vmatpush1.bf16.xpose.msra.mxu0 0
      %2134 = vmatprep.subr.bf16.mxu0 0
      %2135 = vmatpush1.bf16.xpose.msra.mxu0 0
      %2136 = vmatprep.subr.bf16.mxu0 0
      %2137 = vmatpush1.bf16.xpose.msra.mxu0 0
      %2138 = vmatprep.subr.bf16.mxu0 0
      %2139 = vmatpush1.bf16.xpose.msra.mxu0 0
      %2140 = vmatprep.subr.bf16.mxu0 0
      %2141 = vmatpush1.bf16.xpose.msra.mxu0 0
      %2142 = vmatprep.subr.bf16.mxu0 0
      %2143 = vmatpush1.bf16.xpose.msra.mxu0 0
      %2144 = vmatprep.mubr.bf16.mxu0 0
      %2145 = vmatmul.mubr.bf16.gmra.mrb[0].mxu0 %v2107
      %v2146 = vpop.f32.mrb[0].mxu0
      %v2147 = vadd.f32 0.0, %v2146
      %v2148 = vpop.f32.mrb[0].mxu0
      %v2149 = vpop.f32.mrb[0].mxu0
      %v2150 = vadd.f32 0.0, %v2149
      %v2151 = vpop.f32.mrb[0].mxu0
      %2152 = vdwg.mxu0
      %2153 = vrot.lane.b32.xlu0 %v1363, 104
      %v2154 = vpop.permute.xlu0 %2153
      %2155 = vrot.lane.b32.xlu0 %v1363, 72
      %v2156 = vpop.permute.xlu0 %2155
      %v2158 = vsel %vm1367, %v2154, 0
      %v2161 = vsel %vm1367, %v2156, 0
      %2163 = vmatprep.subr.bf16.mxu0 0
      %2164 = vmatpush1.bf16.xpose.msra.mxu0 %v2161
      %2165 = vmatprep.subr.bf16.mxu0 0
      %2166 = vmatpush1.bf16.xpose.msra.mxu0 0
      %2167 = vmatprep.subr.bf16.mxu0 0
      %2168 = vmatpush1.bf16.xpose.msra.mxu0 0
      %2169 = vmatprep.subr.bf16.mxu0 0
      %2170 = vmatpush1.bf16.xpose.msra.mxu0 0
      %2171 = vmatprep.subr.bf16.mxu0 0
      %2172 = vmatpush1.bf16.xpose.msra.mxu0 0
      %2173 = vmatprep.subr.bf16.mxu0 0
      %2174 = vmatpush1.bf16.xpose.msra.mxu0 0
      %2175 = vmatprep.subr.bf16.mxu0 0
      %2176 = vmatpush1.bf16.xpose.msra.mxu0 0
      %2177 = vmatprep.subr.bf16.mxu0 0
      %2178 = vmatpush1.bf16.xpose.msra.mxu0 0
      %2179 = vmatprep.subr.bf16.mxu0 0
      %2180 = vmatpush1.bf16.xpose.msra.mxu0 0
      %2181 = vmatprep.subr.bf16.mxu0 0
      %2182 = vmatpush1.bf16.xpose.msra.mxu0 0
      %2183 = vmatprep.subr.bf16.mxu0 0
      %2184 = vmatpush1.bf16.xpose.msra.mxu0 0
      %2185 = vmatprep.subr.bf16.mxu0 0
      %2186 = vmatpush1.bf16.xpose.msra.mxu0 0
      %2187 = vmatprep.subr.bf16.mxu0 0
      %2188 = vmatpush1.bf16.xpose.msra.mxu0 0
      %2189 = vmatprep.subr.bf16.mxu0 0
      %2190 = vmatpush1.bf16.xpose.msra.mxu0 0
      %2191 = vmatprep.subr.bf16.mxu0 0
      %2192 = vmatpush1.bf16.xpose.msra.mxu0 0
      %2193 = vmatprep.subr.bf16.mxu0 0
      %2194 = vmatpush1.bf16.xpose.msra.mxu0 0
      %2195 = vmatprep.mubr.bf16.mxu0 0
      %2196 = vmatmul.mubr.bf16.gmra.mrb[0].mxu0 %v2158
      %v2197 = vpop.f32.mrb[0].mxu0
      %v2198 = vadd.f32 0.0, %v2197
      %v2199 = vpop.f32.mrb[0].mxu0
      %v2200 = vpop.f32.mrb[0].mxu0
      %v2201 = vadd.f32 0.0, %v2200
      %v2202 = vpop.f32.mrb[0].mxu0
      %2203 = vdwg.mxu0
      %v2204 = vmul.f32 %v2147, 0.35355338
      %v2205 = vmul.f32 %v2150, 0.35355338
      %v2206 = vmul.f32 %v2198, 0.35355338
      %v2207 = vmul.f32 %v2201, 0.35355338
      %v2208 = vsel %vm1469, %v2204, -inf
      %2209 = vmax.xlane.f32.xlu0 %v2208
      %v2210 = vpop.xlane.xlu0 %2209
      %v2211 = vsel %vm1469, %v2205, -inf
      %2212 = vmax.xlane.f32.xlu0 %v2211
      %v2213 = vpop.xlane.xlu0 %2212
      %v2214 = vsel %vm1469, %v2206, -inf
      %2215 = vmax.xlane.f32.xlu0 %v2214
      %v2216 = vpop.xlane.xlu0 %2215
      %v2217 = vsel %vm1469, %v2207, -inf
      %2218 = vmax.xlane.f32.xlu0 %v2217
      %v2219 = vpop.xlane.xlu0 %2218
      %v2220 = vsub.f32 %v2204, %v2210
      %v2221 = vsub.f32 %v2205, %v2213
      %v2222 = vsub.f32 %v2206, %v2216
      %v2223 = vsub.f32 %v2207, %v2219
      %v2224 = vmul.f32 %v2220, 1.442695
      %v2225 = vpow.pop %v2224
      %v2226 = vmul.f32 %v2221, 1.442695
      %v2227 = vpow.pop %v2226
      %v2228 = vmul.f32 %v2222, 1.442695
      %v2229 = vpow.pop %v2228
      %v2230 = vmul.f32 %v2223, 1.442695
      %v2231 = vpow.pop %v2230
      %v2232 = vsel %vm1469, %v2225, 0.0
      %2233 = vadd.xlane.f32.xlu0 %v2232
      %v2234 = vpop.xlane.xlu0 %2233
      %v2235 = vsel %vm1469, %v2227, 0.0
      %2236 = vadd.xlane.f32.xlu0 %v2235
      %v2237 = vpop.xlane.xlu0 %2236
      %v2238 = vsel %vm1469, %v2229, 0.0
      %2239 = vadd.xlane.f32.xlu0 %v2238
      %v2240 = vpop.xlane.xlu0 %2239
      %v2241 = vsel %vm1469, %v2231, 0.0
      %2242 = vadd.xlane.f32.xlu0 %v2241
      %v2243 = vpop.xlane.xlu0 %2242
      %v2244 = vrcp.pop %v2234
      %v2245 = vrcp.pop %v2237
      %v2246 = vrcp.pop %v2240
      %v2247 = vrcp.pop %v2243
      %v2248 = vmul.f32 %v2225, %v2244
      %v2249 = vmul.f32 %v2227, %v2245
      %v2250 = vmul.f32 %v2229, %v2246
      %v2251 = vmul.f32 %v2231, %v2247
      %v2252 = vpack.c.bf16 %v2249, %v2248
      %v2253 = vpack.c.bf16 %v2251, %v2250
      %2254 = vrot.lane.b32.xlu0 %v1362, 40
      %v2255 = vpop.permute.xlu0 %2254
      %v2258 = vsel %vm1469, %v2252, 0
      %2260 = vmatprep.subr.bf16.mxu0 0
      %2261 = vmatpush1.bf16.msra.mxu0 %v2255
      %2262 = vmatprep.subr.bf16.mxu0 0
      %2263 = vmatpush1.bf16.msra.mxu0 0
      %2264 = vmatprep.subr.bf16.mxu0 0
      %2265 = vmatpush1.bf16.msra.mxu0 0
      %2266 = vmatprep.subr.bf16.mxu0 0
      %2267 = vmatpush1.bf16.msra.mxu0 0
      %2268 = vmatprep.subr.bf16.mxu0 0
      %2269 = vmatpush1.bf16.msra.mxu0 0
      %2270 = vmatprep.subr.bf16.mxu0 0
      %2271 = vmatpush1.bf16.msra.mxu0 0
      %2272 = vmatprep.subr.bf16.mxu0 0
      %2273 = vmatpush1.bf16.msra.mxu0 0
      %2274 = vmatprep.subr.bf16.mxu0 0
      %2275 = vmatpush1.bf16.msra.mxu0 0
      %2276 = vmatprep.subr.bf16.mxu0 0
      %2277 = vmatpush1.bf16.msra.mxu0 0
      %2278 = vmatprep.subr.bf16.mxu0 0
      %2279 = vmatpush1.bf16.msra.mxu0 0
      %2280 = vmatprep.subr.bf16.mxu0 0
      %2281 = vmatpush1.bf16.msra.mxu0 0
      %2282 = vmatprep.subr.bf16.mxu0 0
      %2283 = vmatpush1.bf16.msra.mxu0 0
      %2284 = vmatprep.subr.bf16.mxu0 0
      %2285 = vmatpush1.bf16.msra.mxu0 0
      %2286 = vmatprep.subr.bf16.mxu0 0
      %2287 = vmatpush1.bf16.msra.mxu0 0
      %2288 = vmatprep.subr.bf16.mxu0 0
      %2289 = vmatpush1.bf16.msra.mxu0 0
      %2290 = vmatprep.subr.bf16.mxu0 0
      %2291 = vmatpush1.bf16.msra.mxu0 0
      %2292 = vmatprep.mubr.bf16.mxu0 0
      %2293 = vmatmul.mubr.bf16.gmra.mrb[0].mxu0 %v2258
      %v2294 = vpop.f32.mrb[0].mxu0
      %v2295 = vadd.f32 0.0, %v2294
      %v2296 = vpop.f32.mrb[0].mxu0
      %v2297 = vpop.f32.mrb[0].mxu0
      %v2298 = vadd.f32 0.0, %v2297
      %v2299 = vpop.f32.mrb[0].mxu0
      %2300 = vdwg.mxu0
      %2301 = vrot.lane.b32.xlu0 %v1363, 40
      %v2302 = vpop.permute.xlu0 %2301
      %v2305 = vsel %vm1469, %v2253, 0
      %2307 = vmatprep.subr.bf16.mxu0 0
      %2308 = vmatpush1.bf16.msra.mxu0 %v2302
      %2309 = vmatprep.subr.bf16.mxu0 0
      %2310 = vmatpush1.bf16.msra.mxu0 0
      %2311 = vmatprep.subr.bf16.mxu0 0
      %2312 = vmatpush1.bf16.msra.mxu0 0
      %2313 = vmatprep.subr.bf16.mxu0 0
      %2314 = vmatpush1.bf16.msra.mxu0 0
      %2315 = vmatprep.subr.bf16.mxu0 0
      %2316 = vmatpush1.bf16.msra.mxu0 0
      %2317 = vmatprep.subr.bf16.mxu0 0
      %2318 = vmatpush1.bf16.msra.mxu0 0
      %2319 = vmatprep.subr.bf16.mxu0 0
      %2320 = vmatpush1.bf16.msra.mxu0 0
      %2321 = vmatprep.subr.bf16.mxu0 0
      %2322 = vmatpush1.bf16.msra.mxu0 0
      %2323 = vmatprep.subr.bf16.mxu0 0
      %2324 = vmatpush1.bf16.msra.mxu0 0
      %2325 = vmatprep.subr.bf16.mxu0 0
      %2326 = vmatpush1.bf16.msra.mxu0 0
      %2327 = vmatprep.subr.bf16.mxu0 0
      %2328 = vmatpush1.bf16.msra.mxu0 0
      %2329 = vmatprep.subr.bf16.mxu0 0
      %2330 = vmatpush1.bf16.msra.mxu0 0
      %2331 = vmatprep.subr.bf16.mxu0 0
      %2332 = vmatpush1.bf16.msra.mxu0 0
      %2333 = vmatprep.subr.bf16.mxu0 0
      %2334 = vmatpush1.bf16.msra.mxu0 0
      %2335 = vmatprep.subr.bf16.mxu0 0
      %2336 = vmatpush1.bf16.msra.mxu0 0
      %2337 = vmatprep.subr.bf16.mxu0 0
      %2338 = vmatpush1.bf16.msra.mxu0 0
      %2339 = vmatprep.mubr.bf16.mxu0 0
      %2340 = vmatmul.mubr.bf16.gmra.mrb[0].mxu0 %v2305
      %v2341 = vpop.f32.mrb[0].mxu0
      %v2342 = vadd.f32 0.0, %v2341
      %v2343 = vpop.f32.mrb[0].mxu0
      %v2344 = vpop.f32.mrb[0].mxu0
      %v2345 = vadd.f32 0.0, %v2344
      %v2346 = vpop.f32.mrb[0].mxu0
      %2347 = vdwg.mxu0
      %2352 = vrot.lane.b32.xlu0 %v1803, 8
      %v2353 = vpop.permute.xlu0 %2352
      %2354 = vrot.lane.b32.xlu0 %v1806, 8
      %v2355 = vpop.permute.xlu0 %2354
      %2356 = vrot.lane.b32.xlu0 %v1850, 8
      %v2357 = vpop.permute.xlu0 %2356
      %2358 = vrot.lane.b32.xlu0 %v1853, 8
      %v2359 = vpop.permute.xlu0 %2358
      %2368 = vrot.lane.b32.xlu0 %v2049, 16
      %v2369 = vpop.permute.xlu0 %2368
      %2370 = vrot.lane.b32.xlu0 %v2052, 16
      %v2371 = vpop.permute.xlu0 %2370
      %2372 = vrot.lane.b32.xlu0 %v2096, 16
      %v2373 = vpop.permute.xlu0 %2372
      %2374 = vrot.lane.b32.xlu0 %v2099, 16
      %v2375 = vpop.permute.xlu0 %2374
      %2384 = vrot.lane.b32.xlu0 %v2295, 24
      %v2385 = vpop.permute.xlu0 %2384
      %2386 = vrot.lane.b32.xlu0 %v2298, 24
      %v2387 = vpop.permute.xlu0 %2386
      %2388 = vrot.lane.b32.xlu0 %v2342, 24
      %v2389 = vpop.permute.xlu0 %2388
      %2390 = vrot.lane.b32.xlu0 %v2345, 24
      %v2391 = vpop.permute.xlu0 %2390
      %v2396 = vsel %vm1367, %v1557, %v2353
      %v2397 = vsel %vm1367, %v1560, %v2355
      %v2398 = vsel %vm1367, %v1604, %v2357
      %v2399 = vsel %vm1367, %v1607, %v2359
      %v2400 = vsel %vm1469, %v2396, %v2369
      %v2401 = vsel %vm1469, %v2397, %v2371
      %v2402 = vsel %vm1469, %v2398, %v2373
      %v2403 = vsel %vm1469, %v2399, %v2375
      %vm2404 = vcmask 195584
      %v2405 = vsel %vm2404, %v2400, %v2385
      %v2406 = vsel %vm2404, %v2401, %v2387
      %v2407 = vsel %vm2404, %v2402, %v2389
      %v2408 = vsel %vm2404, %v2403, %v2391
      %v2409 = vpack.c.bf16 %v2406, %v2405
      %v2410 = vpack.c.bf16 %v2408, %v2407
      %v2411 = vld [vmem:[%s8] sm:$0xf]
      %v2412 = vld [vmem:[%s8 + $0x4] sm:$0xf]
      %v2413 = vld [vmem:[%s8 + $0x8] sm:$0xf]
      %v2414 = vld [vmem:[%s8 + $0xc] sm:$0xf]
      %v2415 = vld [vmem:[%s9] sm:$0x1]
      %v2417 = vlaneseq
      %v2418 = vshrl.u32 %v2417, 7
      %v2419 = vsub.s32 0, %v2418
      %v2420 = vrot.slane %v2415, %v2419
      %v2426 = vunpack.c.l.b16 %v2411
      %v2427 = vunpack.c.l.b16 %v2412
      %v2428 = vunpack.c.l.b16 %v2413
      %v2429 = vunpack.c.l.b16 %v2414
      %v2430 = vpack.c.b16 %v2427, %v2426
      %v2431 = vpack.c.b16 %v2429, %v2428
      %v2435 = vsel %vm1208, %v2409, 0
      %v2438 = vsel %vm1208, %v2410, 0
      %2440 = vmatprep.subr.bf16.mxu0 0
      %2441 = vmatpush1.bf16.msra.mxu0 %v2430
      %2442 = vmatprep.subr.bf16.mxu0 0
      %2443 = vmatpush1.bf16.msra.mxu0 %v2431
      %2444 = vmatprep.subr.bf16.mxu0 0
      %2445 = vmatpush1.bf16.msra.mxu0 0
      %2446 = vmatprep.subr.bf16.mxu0 0
      %2447 = vmatpush1.bf16.msra.mxu0 0
      %2448 = vmatprep.subr.bf16.mxu0 0
      %2449 = vmatpush1.bf16.msra.mxu0 0
      %2450 = vmatprep.subr.bf16.mxu0 0
      %2451 = vmatpush1.bf16.msra.mxu0 0
      %2452 = vmatprep.subr.bf16.mxu0 0
      %2453 = vmatpush1.bf16.msra.mxu0 0
      %2454 = vmatprep.subr.bf16.mxu0 0
      %2455 = vmatpush1.bf16.msra.mxu0 0
      %2456 = vmatprep.subr.bf16.mxu0 0
      %2457 = vmatpush1.bf16.msra.mxu0 0
      %2458 = vmatprep.subr.bf16.mxu0 0
      %2459 = vmatpush1.bf16.msra.mxu0 0
      %2460 = vmatprep.subr.bf16.mxu0 0
      %2461 = vmatpush1.bf16.msra.mxu0 0
      %2462 = vmatprep.subr.bf16.mxu0 0
      %2463 = vmatpush1.bf16.msra.mxu0 0
      %2464 = vmatprep.subr.bf16.mxu0 0
      %2465 = vmatpush1.bf16.msra.mxu0 0
      %2466 = vmatprep.subr.bf16.mxu0 0
      %2467 = vmatpush1.bf16.msra.mxu0 0
      %2468 = vmatprep.subr.bf16.mxu0 0
      %2469 = vmatpush1.bf16.msra.mxu0 0
      %2470 = vmatprep.subr.bf16.mxu0 0
      %2471 = vmatpush1.bf16.msra.mxu0 0
      %2472 = vmatprep.mubr.bf16.mxu0 0
      %2473 = vmatmul.mubr.bf16.gmra.mrb[0].mxu0 %v2435
      %v2474 = vpop.f32.mrb[0].mxu0
      %v2475 = vadd.f32 %v2420, %v2474
      %v2476 = vpop.f32.mrb[0].mxu0
      %v2477 = vpop.f32.mrb[0].mxu0
      %v2478 = vadd.f32 %v2420, %v2477
      %v2479 = vpop.f32.mrb[0].mxu0
      %2480 = vmatprep.mubr.bf16.mxu0 0
      %2481 = vmatmul.mubr.bf16.gmra.mrb[0].mxu0 %v2438
      %v2482 = vpop.f32.mrb[0].mxu0
      %v2483 = vadd.f32 %v2420, %v2482
      %v2484 = vpop.f32.mrb[0].mxu0
      %v2485 = vpop.f32.mrb[0].mxu0
      %v2486 = vadd.f32 %v2420, %v2485
      %v2487 = vpop.f32.mrb[0].mxu0
      %2488 = vdwg.mxu0
      %v2489 = vadd.f32 %v1202, %v2475
      %v2490 = vadd.f32 %v1203, %v2478
      %v2491 = vadd.f32 %v1204, %v2483
      %v2492 = vadd.f32 %v1205, %v2486
      %v2493 = vld [vmem:[%s10] sm:$0x1]
      %v2494 = vld [vmem:[%s11] sm:$0x1]
      %v2495 = vsel %vm1208, %v2489, 0.0
      %2496 = vadd.xlane.f32.xlu0 %v2495
      %v2497 = vpop.xlane.xlu0 %2496
      %v2498 = vsel %vm1208, %v2490, 0.0
      %2499 = vadd.xlane.f32.xlu0 %v2498
      %v2500 = vpop.xlane.xlu0 %2499
      %v2501 = vsel %vm1208, %v2491, 0.0
      %2502 = vadd.xlane.f32.xlu0 %v2501
      %v2503 = vpop.xlane.xlu0 %2502
      %v2504 = vsel %vm1208, %v2492, 0.0
      %2505 = vadd.xlane.f32.xlu0 %v2504
      %v2506 = vpop.xlane.xlu0 %2505
      %v2507 = vmul.f32 %v2497, %v1221
      %v2508 = vmul.f32 %v2500, %v1221
      %v2509 = vmul.f32 %v2503, %v1221
      %v2510 = vmul.f32 %v2506, %v1221
      %v2511 = vsub.f32 %v2489, %v2507
      %v2512 = vsub.f32 %v2490, %v2508
      %v2513 = vsub.f32 %v2491, %v2509
      %v2514 = vsub.f32 %v2492, %v2510
      %v2515 = vmul.f32 %v2511, %v2511
      %v2516 = vmul.f32 %v2512, %v2512
      %v2517 = vmul.f32 %v2513, %v2513
      %v2518 = vmul.f32 %v2514, %v2514
      %v2519 = vsel %vm1208, %v2515, 0.0
      %2520 = vadd.xlane.f32.xlu0 %v2519
      %v2521 = vpop.xlane.xlu0 %2520
      %v2522 = vsel %vm1208, %v2516, 0.0
      %2523 = vadd.xlane.f32.xlu0 %v2522
      %v2524 = vpop.xlane.xlu0 %2523
      %v2525 = vsel %vm1208, %v2517, 0.0
      %2526 = vadd.xlane.f32.xlu0 %v2525
      %v2527 = vpop.xlane.xlu0 %2526
      %v2528 = vsel %vm1208, %v2518, 0.0
      %2529 = vadd.xlane.f32.xlu0 %v2528
      %v2530 = vpop.xlane.xlu0 %2529
      %v2531 = vmul.f32 %v2521, %v1221
      %v2532 = vmul.f32 %v2524, %v1221
      %v2533 = vmul.f32 %v2527, %v1221
      %v2534 = vmul.f32 %v2530, %v1221
      %v2535 = vadd.f32 %v2531, 1e-05
      %v2536 = vadd.f32 %v2532, 1e-05
      %v2537 = vadd.f32 %v2533, 1e-05
      %v2538 = vadd.f32 %v2534, 1e-05
      %v2539 = vrsqrt.pop %v2535
      %v2540 = vrsqrt.pop %v2536
      %v2541 = vrsqrt.pop %v2537
      %v2542 = vrsqrt.pop %v2538
      %v2543 = vmul.f32 %v2511, %v2539
      %v2544 = vmul.f32 %v2512, %v2540
      %v2545 = vmul.f32 %v2513, %v2541
      %v2546 = vmul.f32 %v2514, %v2542
      %v2548 = vlaneseq
      %v2549 = vshrl.u32 %v2548, 7
      %v2550 = vsub.s32 0, %v2549
      %v2551 = vrot.slane %v2493, %v2550
      %v2553 = vmul.f32 %v2543, %v2551
      %v2554 = vmul.f32 %v2544, %v2551
      %v2555 = vmul.f32 %v2545, %v2551
      %v2556 = vmul.f32 %v2546, %v2551
      %v2558 = vlaneseq
      %v2559 = vshrl.u32 %v2558, 7
      %v2560 = vsub.s32 0, %v2559
      %v2561 = vrot.slane %v2494, %v2560
      %v2563 = vadd.f32 %v2553, %v2561
      %v2564 = vadd.f32 %v2554, %v2561
      %v2565 = vadd.f32 %v2555, %v2561
      %v2566 = vadd.f32 %v2556, %v2561
      %v2567 = vpack.c.bf16 %v2564, %v2563
      %v2568 = vpack.c.bf16 %v2566, %v2565
      %v2569 = vld [vmem:[%s12] sm:$0xf]
      %v2570 = vld [vmem:[%s12 + $0x4] sm:$0xf]
      %v2571 = vld [vmem:[%s12 + $0x8] sm:$0xf]
      %v2572 = vld [vmem:[%s12 + $0xc] sm:$0xf]
      %v2573 = vld [vmem:[%s13] sm:$0x1]
      %v2575 = vlaneseq
      %v2576 = vshrl.u32 %v2575, 7
      %v2577 = vsub.s32 0, %v2576
      %v2578 = vrot.slane %v2573, %v2577
      %v2584 = vunpack.c.l.b16 %v2569
      %v2585 = vunpack.c.l.b16 %v2570
      %v2586 = vunpack.c.l.b16 %v2571
      %v2587 = vunpack.c.l.b16 %v2572
      %v2588 = vpack.c.b16 %v2585, %v2584
      %v2589 = vpack.c.b16 %v2587, %v2586
      %v2593 = vsel %vm1208, %v2567, 0
      %v2596 = vsel %vm1208, %v2568, 0
      %2598 = vmatprep.subr.bf16.mxu0 0
      %2599 = vmatpush1.bf16.msra.mxu0 %v2588
      %2600 = vmatprep.subr.bf16.mxu0 0
      %2601 = vmatpush1.bf16.msra.mxu0 %v2589
      %2602 = vmatprep.subr.bf16.mxu0 0
      %2603 = vmatpush1.bf16.msra.mxu0 0
      %2604 = vmatprep.subr.bf16.mxu0 0
      %2605 = vmatpush1.bf16.msra.mxu0 0
      %2606 = vmatprep.subr.bf16.mxu0 0
      %2607 = vmatpush1.bf16.msra.mxu0 0
      %2608 = vmatprep.subr.bf16.mxu0 0
      %2609 = vmatpush1.bf16.msra.mxu0 0
      %2610 = vmatprep.subr.bf16.mxu0 0
      %2611 = vmatpush1.bf16.msra.mxu0 0
      %2612 = vmatprep.subr.bf16.mxu0 0
      %2613 = vmatpush1.bf16.msra.mxu0 0
      %2614 = vmatprep.subr.bf16.mxu0 0
      %2615 = vmatpush1.bf16.msra.mxu0 0
      %2616 = vmatprep.subr.bf16.mxu0 0
      %2617 = vmatpush1.bf16.msra.mxu0 0
      %2618 = vmatprep.subr.bf16.mxu0 0
      %2619 = vmatpush1.bf16.msra.mxu0 0
      %2620 = vmatprep.subr.bf16.mxu0 0
      %2621 = vmatpush1.bf16.msra.mxu0 0
      %2622 = vmatprep.subr.bf16.mxu0 0
      %2623 = vmatpush1.bf16.msra.mxu0 0
      %2624 = vmatprep.subr.bf16.mxu0 0
      %2625 = vmatpush1.bf16.msra.mxu0 0
      %2626 = vmatprep.subr.bf16.mxu0 0
      %2627 = vmatpush1.bf16.msra.mxu0 0
      %2628 = vmatprep.subr.bf16.mxu0 0
      %2629 = vmatpush1.bf16.msra.mxu0 0
      %2630 = vmatprep.mubr.bf16.mxu0 0
      %2631 = vmatmul.mubr.bf16.gmra.mrb[0].mxu0 %v2593
      %v2632 = vpop.f32.mrb[0].mxu0
      %v2633 = vadd.f32 %v2578, %v2632
      %v2634 = vpop.f32.mrb[0].mxu0
      %v2635 = vpop.f32.mrb[0].mxu0
      %v2636 = vadd.f32 %v2578, %v2635
      %v2637 = vpop.f32.mrb[0].mxu0
      %2638 = vmatprep.mubr.bf16.mxu0 0
      %2639 = vmatmul.mubr.bf16.gmra.mrb[0].mxu0 %v2596
      %v2640 = vpop.f32.mrb[0].mxu0
      %v2641 = vadd.f32 %v2578, %v2640
      %v2642 = vpop.f32.mrb[0].mxu0
      %v2643 = vpop.f32.mrb[0].mxu0
      %v2644 = vadd.f32 %v2578, %v2643
      %v2645 = vpop.f32.mrb[0].mxu0
      %2646 = vdwg.mxu0
      %v2647 = vmul.f32 %v2633, %v2633
      %v2648 = vmul.f32 %v2636, %v2636
      %v2649 = vmul.f32 %v2641, %v2641
      %v2650 = vmul.f32 %v2644, %v2644
      %v2651 = vmul.f32 %v2633, %v2647
      %v2652 = vmul.f32 %v2636, %v2648
      %v2653 = vmul.f32 %v2641, %v2649
      %v2654 = vmul.f32 %v2644, %v2650
      %v2655 = vmul.f32 %v2651, 0.044715
      %v2656 = vmul.f32 %v2652, 0.044715
      %v2657 = vmul.f32 %v2653, 0.044715
      %v2658 = vmul.f32 %v2654, 0.044715
      %v2659 = vadd.f32 %v2633, %v2655
      %v2660 = vadd.f32 %v2636, %v2656
      %v2661 = vadd.f32 %v2641, %v2657
      %v2662 = vadd.f32 %v2644, %v2658
      %v2663 = vmul.f32 %v2659, 0.7978846
      %v2664 = vmul.f32 %v2660, 0.7978846
      %v2665 = vmul.f32 %v2661, 0.7978846
      %v2666 = vmul.f32 %v2662, 0.7978846
      %v2667 = vtanh.pop %v2663
      %v2668 = vtanh.pop %v2664
      %v2669 = vtanh.pop %v2665
      %v2670 = vtanh.pop %v2666
      %v2671 = vadd.f32 %v2667, 1.0
      %v2672 = vadd.f32 %v2668, 1.0
      %v2673 = vadd.f32 %v2669, 1.0
      %v2674 = vadd.f32 %v2670, 1.0
      %v2675 = vmul.f32 %v2671, 0.5
      %v2676 = vmul.f32 %v2672, 0.5
      %v2677 = vmul.f32 %v2673, 0.5
      %v2678 = vmul.f32 %v2674, 0.5
      %v2679 = vmul.f32 %v2633, %v2675
      %v2680 = vmul.f32 %v2636, %v2676
      %v2681 = vmul.f32 %v2641, %v2677
      %v2682 = vmul.f32 %v2644, %v2678
      %v2683 = vpack.c.bf16 %v2680, %v2679
      %v2684 = vpack.c.bf16 %v2682, %v2681
      %v2685 = vld [vmem:[%s14] sm:$0xf]
      %v2686 = vld [vmem:[%s14 + $0x4] sm:$0xf]
      %v2687 = vld [vmem:[%s14 + $0x8] sm:$0xf]
      %v2688 = vld [vmem:[%s14 + $0xc] sm:$0xf]
      %v2689 = vld [vmem:[%s14 + $0x10] sm:$0xf]
      %v2690 = vld [vmem:[%s14 + $0x14] sm:$0xf]
      %v2691 = vld [vmem:[%s14 + $0x18] sm:$0xf]
      %v2692 = vld [vmem:[%s14 + $0x1c] sm:$0xf]
      %v2693 = vld [vmem:[%s14 + $0x20] sm:$0xf]
      %v2694 = vld [vmem:[%s14 + $0x24] sm:$0xf]
      %v2695 = vld [vmem:[%s14 + $0x28] sm:$0xf]
      %v2696 = vld [vmem:[%s14 + $0x2c] sm:$0xf]
      %v2697 = vld [vmem:[%s14 + $0x30] sm:$0xf]
      %v2698 = vld [vmem:[%s14 + $0x34] sm:$0xf]
      %v2699 = vld [vmem:[%s14 + $0x38] sm:$0xf]
      %v2700 = vld [vmem:[%s14 + $0x3c] sm:$0xf]
      %v2701 = vld [vmem:[%s15] sm:$0x1]
      %v2703 = vlaneseq
      %v2704 = vshrl.u32 %v2703, 7
      %v2705 = vsub.s32 0, %v2704
      %v2706 = vrot.slane %v2701, %v2705
      %v2724 = vunpack.c.l.b16 %v2685
      %v2725 = vunpack.c.l.b16 %v2686
      %v2726 = vunpack.c.l.b16 %v2687
      %v2727 = vunpack.c.l.b16 %v2688
      %v2728 = vunpack.c.l.b16 %v2689
      %v2729 = vunpack.c.l.b16 %v2690
      %v2730 = vunpack.c.l.b16 %v2691
      %v2731 = vunpack.c.l.b16 %v2692
      %v2732 = vunpack.c.l.b16 %v2693
      %v2733 = vunpack.c.l.b16 %v2694
      %v2734 = vunpack.c.l.b16 %v2695
      %v2735 = vunpack.c.l.b16 %v2696
      %v2736 = vunpack.c.l.b16 %v2697
      %v2737 = vunpack.c.l.b16 %v2698
      %v2738 = vunpack.c.l.b16 %v2699
      %v2739 = vunpack.c.l.b16 %v2700
      %v2740 = vpack.c.b16 %v2725, %v2724
      %v2741 = vpack.c.b16 %v2727, %v2726
      %v2742 = vpack.c.b16 %v2729, %v2728
      %v2743 = vpack.c.b16 %v2731, %v2730
      %v2744 = vpack.c.b16 %v2733, %v2732
      %v2745 = vpack.c.b16 %v2735, %v2734
      %v2746 = vpack.c.b16 %v2737, %v2736
      %v2747 = vpack.c.b16 %v2739, %v2738
      %2756 = vmatprep.subr.bf16.mxu0 0
      %2757 = vmatpush1.bf16.msra.mxu0 %v2740
      %2758 = vmatprep.subr.bf16.mxu0 0
      %2759 = vmatpush1.bf16.msra.mxu0 %v2741
      %2760 = vmatprep.subr.bf16.mxu0 0
      %2761 = vmatpush1.bf16.msra.mxu0 %v2742
      %2762 = vmatprep.subr.bf16.mxu0 0
      %2763 = vmatpush1.bf16.msra.mxu0 %v2743
      %2764 = vmatprep.subr.bf16.mxu0 0
      %2765 = vmatpush1.bf16.msra.mxu0 %v2744
      %2766 = vmatprep.subr.bf16.mxu0 0
      %2767 = vmatpush1.bf16.msra.mxu0 %v2745
      %2768 = vmatprep.subr.bf16.mxu0 0
      %2769 = vmatpush1.bf16.msra.mxu0 %v2746
      %2770 = vmatprep.subr.bf16.mxu0 0
      %2771 = vmatpush1.bf16.msra.mxu0 %v2747
      %2772 = vmatprep.subr.bf16.mxu0 0
      %2773 = vmatpush1.bf16.msra.mxu0 0
      %2774 = vmatprep.subr.bf16.mxu0 0
      %2775 = vmatpush1.bf16.msra.mxu0 0
      %2776 = vmatprep.subr.bf16.mxu0 0
      %2777 = vmatpush1.bf16.msra.mxu0 0
      %2778 = vmatprep.subr.bf16.mxu0 0
      %2779 = vmatpush1.bf16.msra.mxu0 0
      %2780 = vmatprep.subr.bf16.mxu0 0
      %2781 = vmatpush1.bf16.msra.mxu0 0
      %2782 = vmatprep.subr.bf16.mxu0 0
      %2783 = vmatpush1.bf16.msra.mxu0 0
      %2784 = vmatprep.subr.bf16.mxu0 0
      %2785 = vmatpush1.bf16.msra.mxu0 0
      %2786 = vmatprep.subr.bf16.mxu0 0
      %2787 = vmatpush1.bf16.msra.mxu0 0
      %2788 = vmatprep.mubr.bf16.mxu0 0
      %2789 = vmatmul.mubr.bf16.gmra.mrb[0].mxu0 %v2683
      %v2790 = vpop.f32.mrb[0].mxu0
      %v2791 = vadd.f32 %v2706, %v2790
      %v2792 = vpop.f32.mrb[0].mxu0
      %v2793 = vpop.f32.mrb[0].mxu0
      %v2794 = vadd.f32 %v2706, %v2793
      %v2795 = vpop.f32.mrb[0].mxu0
      %2796 = vmatprep.mubr.bf16.mxu0 0
      %2797 = vmatmul.mubr.bf16.gmra.mrb[0].mxu0 %v2684
      %v2798 = vpop.f32.mrb[0].mxu0
      %v2799 = vadd.f32 %v2706, %v2798
      %v2800 = vpop.f32.mrb[0].mxu0
      %v2801 = vpop.f32.mrb[0].mxu0
      %v2802 = vadd.f32 %v2706, %v2801
      %v2803 = vpop.f32.mrb[0].mxu0
      %2804 = vdwg.mxu0
      %v2805 = vadd.f32 %v2489, %v2791
      %v2806 = vadd.f32 %v2490, %v2794
      %v2807 = vadd.f32 %v2491, %v2799
      %v2808 = vadd.f32 %v2492, %v2802
      %s2809 = scalar_lea.vmem %s4, 1
      %v2810 = vld [vmem:[%s2809] sm:$0x1]
      %s2811 = scalar_lea.vmem %s5, 1
      %v2812 = vld [vmem:[%s2811] sm:$0x1]
      %v2813 = vsel %vm1208, %v2805, 0.0
      %2814 = vadd.xlane.f32.xlu0 %v2813
      %v2815 = vpop.xlane.xlu0 %2814
      %v2816 = vsel %vm1208, %v2806, 0.0
      %2817 = vadd.xlane.f32.xlu0 %v2816
      %v2818 = vpop.xlane.xlu0 %2817
      %v2819 = vsel %vm1208, %v2807, 0.0
      %2820 = vadd.xlane.f32.xlu0 %v2819
      %v2821 = vpop.xlane.xlu0 %2820
      %v2822 = vsel %vm1208, %v2808, 0.0
      %2823 = vadd.xlane.f32.xlu0 %v2822
      %v2824 = vpop.xlane.xlu0 %2823
      %v2825 = vmul.f32 %v2815, %v1221
      %v2826 = vmul.f32 %v2818, %v1221
      %v2827 = vmul.f32 %v2821, %v1221
      %v2828 = vmul.f32 %v2824, %v1221
      %v2829 = vsub.f32 %v2805, %v2825
      %v2830 = vsub.f32 %v2806, %v2826
      %v2831 = vsub.f32 %v2807, %v2827
      %v2832 = vsub.f32 %v2808, %v2828
      %v2833 = vmul.f32 %v2829, %v2829
      %v2834 = vmul.f32 %v2830, %v2830
      %v2835 = vmul.f32 %v2831, %v2831
      %v2836 = vmul.f32 %v2832, %v2832
      %v2837 = vsel %vm1208, %v2833, 0.0
      %2838 = vadd.xlane.f32.xlu0 %v2837
      %v2839 = vpop.xlane.xlu0 %2838
      %v2840 = vsel %vm1208, %v2834, 0.0
      %2841 = vadd.xlane.f32.xlu0 %v2840
      %v2842 = vpop.xlane.xlu0 %2841
      %v2843 = vsel %vm1208, %v2835, 0.0
      %2844 = vadd.xlane.f32.xlu0 %v2843
      %v2845 = vpop.xlane.xlu0 %2844
      %v2846 = vsel %vm1208, %v2836, 0.0
      %2847 = vadd.xlane.f32.xlu0 %v2846
      %v2848 = vpop.xlane.xlu0 %2847
      %v2849 = vmul.f32 %v2839, %v1221
      %v2850 = vmul.f32 %v2842, %v1221
      %v2851 = vmul.f32 %v2845, %v1221
      %v2852 = vmul.f32 %v2848, %v1221
      %v2853 = vadd.f32 %v2849, 1e-05
      %v2854 = vadd.f32 %v2850, 1e-05
      %v2855 = vadd.f32 %v2851, 1e-05
      %v2856 = vadd.f32 %v2852, 1e-05
      %v2857 = vrsqrt.pop %v2853
      %v2858 = vrsqrt.pop %v2854
      %v2859 = vrsqrt.pop %v2855
      %v2860 = vrsqrt.pop %v2856
      %v2861 = vmul.f32 %v2829, %v2857
      %v2862 = vmul.f32 %v2830, %v2858
      %v2863 = vmul.f32 %v2831, %v2859
      %v2864 = vmul.f32 %v2832, %v2860
      %v2866 = vlaneseq
      %v2867 = vshrl.u32 %v2866, 7
      %v2868 = vsub.s32 0, %v2867
      %v2869 = vrot.slane %v2810, %v2868
      %v2871 = vmul.f32 %v2861, %v2869
      %v2872 = vmul.f32 %v2862, %v2869
      %v2873 = vmul.f32 %v2863, %v2869
      %v2874 = vmul.f32 %v2864, %v2869
      %v2876 = vlaneseq
      %v2877 = vshrl.u32 %v2876, 7
      %v2878 = vsub.s32 0, %v2877
      %v2879 = vrot.slane %v2812, %v2878
      %v2881 = vadd.f32 %v2871, %v2879
      %v2882 = vadd.f32 %v2872, %v2879
      %v2883 = vadd.f32 %v2873, %v2879
      %v2884 = vadd.f32 %v2874, %v2879
      %v2885 = vpack.c.bf16 %v2882, %v2881
      %v2886 = vpack.c.bf16 %v2884, %v2883
      %s2887 = scalar_lea.vmem %s6, 16
      %v2888 = vld [vmem:[%s2887] sm:$0xf]
      %v2889 = vld [vmem:[%s2887 + $0x4] sm:$0xf]
      %v2890 = vld [vmem:[%s2887 + $0x8] sm:$0xf]
      %v2891 = vld [vmem:[%s2887 + $0xc] sm:$0xf]
      %s2892 = scalar_lea.vmem %s7, 1
      %v2893 = vld [vmem:[%s2892] sm:$0x1]
      %v2895 = vlaneseq
      %v2896 = vshrl.u32 %v2895, 7
      %v2897 = vsub.s32 0, %v2896
      %v2898 = vrot.slane %v2893, %v2897
      %v2904 = vunpack.c.l.b16 %v2888
      %v2905 = vunpack.c.l.b16 %v2889
      %v2906 = vunpack.c.l.b16 %v2890
      %v2907 = vunpack.c.l.b16 %v2891
      %v2908 = vpack.c.b16 %v2905, %v2904
      %v2909 = vpack.c.b16 %v2907, %v2906
      %v2913 = vsel %vm1208, %v2885, 0
      %v2916 = vsel %vm1208, %v2886, 0
      %2918 = vmatprep.subr.bf16.mxu0 0
      %2919 = vmatpush1.bf16.msra.mxu0 %v2908
      %2920 = vmatprep.subr.bf16.mxu0 0
      %2921 = vmatpush1.bf16.msra.mxu0 %v2909
      %2922 = vmatprep.subr.bf16.mxu0 0
      %2923 = vmatpush1.bf16.msra.mxu0 0
      %2924 = vmatprep.subr.bf16.mxu0 0
      %2925 = vmatpush1.bf16.msra.mxu0 0
      %2926 = vmatprep.subr.bf16.mxu0 0
      %2927 = vmatpush1.bf16.msra.mxu0 0
      %2928 = vmatprep.subr.bf16.mxu0 0
      %2929 = vmatpush1.bf16.msra.mxu0 0
      %2930 = vmatprep.subr.bf16.mxu0 0
      %2931 = vmatpush1.bf16.msra.mxu0 0
      %2932 = vmatprep.subr.bf16.mxu0 0
      %2933 = vmatpush1.bf16.msra.mxu0 0
      %2934 = vmatprep.subr.bf16.mxu0 0
      %2935 = vmatpush1.bf16.msra.mxu0 0
      %2936 = vmatprep.subr.bf16.mxu0 0
      %2937 = vmatpush1.bf16.msra.mxu0 0
      %2938 = vmatprep.subr.bf16.mxu0 0
      %2939 = vmatpush1.bf16.msra.mxu0 0
      %2940 = vmatprep.subr.bf16.mxu0 0
      %2941 = vmatpush1.bf16.msra.mxu0 0
      %2942 = vmatprep.subr.bf16.mxu0 0
      %2943 = vmatpush1.bf16.msra.mxu0 0
      %2944 = vmatprep.subr.bf16.mxu0 0
      %2945 = vmatpush1.bf16.msra.mxu0 0
      %2946 = vmatprep.subr.bf16.mxu0 0
      %2947 = vmatpush1.bf16.msra.mxu0 0
      %2948 = vmatprep.subr.bf16.mxu0 0
      %2949 = vmatpush1.bf16.msra.mxu0 0
      %2950 = vmatprep.mubr.bf16.mxu0 0
      %2951 = vmatmul.mubr.bf16.gmra.mrb[0].mxu0 %v2913
      %v2952 = vpop.f32.mrb[0].mxu0
      %v2953 = vadd.f32 %v2898, %v2952
      %v2954 = vpop.f32.mrb[0].mxu0
      %v2955 = vpop.f32.mrb[0].mxu0
      %v2956 = vadd.f32 %v2898, %v2955
      %v2957 = vpop.f32.mrb[0].mxu0
      %2958 = vmatprep.mubr.bf16.mxu0 0
      %2959 = vmatmul.mubr.bf16.gmra.mrb[0].mxu0 %v2916
      %v2960 = vpop.f32.mrb[0].mxu0
      %v2961 = vadd.f32 %v2898, %v2960
      %v2962 = vpop.f32.mrb[0].mxu0
      %v2963 = vpop.f32.mrb[0].mxu0
      %v2964 = vadd.f32 %v2898, %v2963
      %v2965 = vpop.f32.mrb[0].mxu0
      %2966 = vdwg.mxu0
      %v2967 = vpack.c.bf16 %v2956, %v2953
      %v2968 = vpack.c.bf16 %v2964, %v2961
      %2970 = vrot.lane.b32.xlu0 %v2967, 96
      %v2971 = vpop.permute.xlu0 %2970
      %v2973 = vsel %vm1367, %v2967, 0
      %v2976 = vsel %vm1367, %v2971, 0
      %2978 = vmatprep.subr.bf16.mxu0 0
      %2979 = vmatpush1.bf16.xpose.msra.mxu0 %v2976
      %2980 = vmatprep.subr.bf16.mxu0 0
      %2981 = vmatpush1.bf16.xpose.msra.mxu0 0
      %2982 = vmatprep.subr.bf16.mxu0 0
      %2983 = vmatpush1.bf16.xpose.msra.mxu0 0
      %2984 = vmatprep.subr.bf16.mxu0 0
      %2985 = vmatpush1.bf16.xpose.msra.mxu0 0
      %2986 = vmatprep.subr.bf16.mxu0 0
      %2987 = vmatpush1.bf16.xpose.msra.mxu0 0
      %2988 = vmatprep.subr.bf16.mxu0 0
      %2989 = vmatpush1.bf16.xpose.msra.mxu0 0
      %2990 = vmatprep.subr.bf16.mxu0 0
      %2991 = vmatpush1.bf16.xpose.msra.mxu0 0
      %2992 = vmatprep.subr.bf16.mxu0 0
      %2993 = vmatpush1.bf16.xpose.msra.mxu0 0
      %2994 = vmatprep.subr.bf16.mxu0 0
      %2995 = vmatpush1.bf16.xpose.msra.mxu0 0
      %2996 = vmatprep.subr.bf16.mxu0 0
      %2997 = vmatpush1.bf16.xpose.msra.mxu0 0
      %2998 = vmatprep.subr.bf16.mxu0 0
      %2999 = vmatpush1.bf16.xpose.msra.mxu0 0
      %3000 = vmatprep.subr.bf16.mxu0 0
      %3001 = vmatpush1.bf16.xpose.msra.mxu0 0
      %3002 = vmatprep.subr.bf16.mxu0 0
      %3003 = vmatpush1.bf16.xpose.msra.mxu0 0
      %3004 = vmatprep.subr.bf16.mxu0 0
      %3005 = vmatpush1.bf16.xpose.msra.mxu0 0
      %3006 = vmatprep.subr.bf16.mxu0 0
      %3007 = vmatpush1.bf16.xpose.msra.mxu0 0
      %3008 = vmatprep.subr.bf16.mxu0 0
      %3009 = vmatpush1.bf16.xpose.msra.mxu0 0
      %3010 = vmatprep.mubr.bf16.mxu0 0
      %3011 = vmatmul.mubr.bf16.gmra.mrb[0].mxu0 %v2973
      %v3012 = vpop.f32.mrb[0].mxu0
      %v3013 = vadd.f32 0.0, %v3012
      %v3014 = vpop.f32.mrb[0].mxu0
      %v3015 = vpop.f32.mrb[0].mxu0
      %v3016 = vadd.f32 0.0, %v3015
      %v3017 = vpop.f32.mrb[0].mxu0
      %3018 = vdwg.mxu0
      %3020 = vrot.lane.b32.xlu0 %v2968, 96
      %v3021 = vpop.permute.xlu0 %3020
      %v3023 = vsel %vm1367, %v2968, 0
      %v3026 = vsel %vm1367, %v3021, 0
      %3028 = vmatprep.subr.bf16.mxu0 0
      %3029 = vmatpush1.bf16.xpose.msra.mxu0 %v3026
      %3030 = vmatprep.subr.bf16.mxu0 0
      %3031 = vmatpush1.bf16.xpose.msra.mxu0 0
      %3032 = vmatprep.subr.bf16.mxu0 0
      %3033 = vmatpush1.bf16.xpose.msra.mxu0 0
      %3034 = vmatprep.subr.bf16.mxu0 0
      %3035 = vmatpush1.bf16.xpose.msra.mxu0 0
      %3036 = vmatprep.subr.bf16.mxu0 0
      %3037 = vmatpush1.bf16.xpose.msra.mxu0 0
      %3038 = vmatprep.subr.bf16.mxu0 0
      %3039 = vmatpush1.bf16.xpose.msra.mxu0 0
      %3040 = vmatprep.subr.bf16.mxu0 0
      %3041 = vmatpush1.bf16.xpose.msra.mxu0 0
      %3042 = vmatprep.subr.bf16.mxu0 0
      %3043 = vmatpush1.bf16.xpose.msra.mxu0 0
      %3044 = vmatprep.subr.bf16.mxu0 0
      %3045 = vmatpush1.bf16.xpose.msra.mxu0 0
      %3046 = vmatprep.subr.bf16.mxu0 0
      %3047 = vmatpush1.bf16.xpose.msra.mxu0 0
      %3048 = vmatprep.subr.bf16.mxu0 0
      %3049 = vmatpush1.bf16.xpose.msra.mxu0 0
      %3050 = vmatprep.subr.bf16.mxu0 0
      %3051 = vmatpush1.bf16.xpose.msra.mxu0 0
      %3052 = vmatprep.subr.bf16.mxu0 0
      %3053 = vmatpush1.bf16.xpose.msra.mxu0 0
      %3054 = vmatprep.subr.bf16.mxu0 0
      %3055 = vmatpush1.bf16.xpose.msra.mxu0 0
      %3056 = vmatprep.subr.bf16.mxu0 0
      %3057 = vmatpush1.bf16.xpose.msra.mxu0 0
      %3058 = vmatprep.subr.bf16.mxu0 0
      %3059 = vmatpush1.bf16.xpose.msra.mxu0 0
      %3060 = vmatprep.mubr.bf16.mxu0 0
      %3061 = vmatmul.mubr.bf16.gmra.mrb[0].mxu0 %v3023
      %v3062 = vpop.f32.mrb[0].mxu0
      %v3063 = vadd.f32 0.0, %v3062
      %v3064 = vpop.f32.mrb[0].mxu0
      %v3065 = vpop.f32.mrb[0].mxu0
      %v3066 = vadd.f32 0.0, %v3065
      %v3067 = vpop.f32.mrb[0].mxu0
      %3068 = vdwg.mxu0
      %v3069 = vmul.f32 %v3013, 0.35355338
      %v3070 = vmul.f32 %v3016, 0.35355338
      %v3071 = vmul.f32 %v3063, 0.35355338
      %v3072 = vmul.f32 %v3066, 0.35355338
      %v3073 = vsel %vm1469, %v3069, -inf
      %3074 = vmax.xlane.f32.xlu0 %v3073
      %v3075 = vpop.xlane.xlu0 %3074
      %v3076 = vsel %vm1469, %v3070, -inf
      %3077 = vmax.xlane.f32.xlu0 %v3076
      %v3078 = vpop.xlane.xlu0 %3077
      %v3079 = vsel %vm1469, %v3071, -inf
      %3080 = vmax.xlane.f32.xlu0 %v3079
      %v3081 = vpop.xlane.xlu0 %3080
      %v3082 = vsel %vm1469, %v3072, -inf
      %3083 = vmax.xlane.f32.xlu0 %v3082
      %v3084 = vpop.xlane.xlu0 %3083
      %v3085 = vsub.f32 %v3069, %v3075
      %v3086 = vsub.f32 %v3070, %v3078
      %v3087 = vsub.f32 %v3071, %v3081
      %v3088 = vsub.f32 %v3072, %v3084
      %v3089 = vmul.f32 %v3085, 1.442695
      %v3090 = vpow.pop %v3089
      %v3091 = vmul.f32 %v3086, 1.442695
      %v3092 = vpow.pop %v3091
      %v3093 = vmul.f32 %v3087, 1.442695
      %v3094 = vpow.pop %v3093
      %v3095 = vmul.f32 %v3088, 1.442695
      %v3096 = vpow.pop %v3095
      %v3097 = vsel %vm1469, %v3090, 0.0
      %3098 = vadd.xlane.f32.xlu0 %v3097
      %v3099 = vpop.xlane.xlu0 %3098
      %v3100 = vsel %vm1469, %v3092, 0.0
      %3101 = vadd.xlane.f32.xlu0 %v3100
      %v3102 = vpop.xlane.xlu0 %3101
      %v3103 = vsel %vm1469, %v3094, 0.0
      %3104 = vadd.xlane.f32.xlu0 %v3103
      %v3105 = vpop.xlane.xlu0 %3104
      %v3106 = vsel %vm1469, %v3096, 0.0
      %3107 = vadd.xlane.f32.xlu0 %v3106
      %v3108 = vpop.xlane.xlu0 %3107
      %v3109 = vrcp.pop %v3099
      %v3110 = vrcp.pop %v3102
      %v3111 = vrcp.pop %v3105
      %v3112 = vrcp.pop %v3108
      %v3113 = vmul.f32 %v3090, %v3109
      %v3114 = vmul.f32 %v3092, %v3110
      %v3115 = vmul.f32 %v3094, %v3111
      %v3116 = vmul.f32 %v3096, %v3112
      %v3117 = vpack.c.bf16 %v3114, %v3113
      %v3118 = vpack.c.bf16 %v3116, %v3115
      %3119 = vrot.lane.b32.xlu0 %v2967, 64
      %v3120 = vpop.permute.xlu0 %3119
      %v3123 = vsel %vm1469, %v3117, 0
      %3125 = vmatprep.subr.bf16.mxu0 0
      %3126 = vmatpush1.bf16.msra.mxu0 %v3120
      %3127 = vmatprep.subr.bf16.mxu0 0
      %3128 = vmatpush1.bf16.msra.mxu0 0
      %3129 = vmatprep.subr.bf16.mxu0 0
      %3130 = vmatpush1.bf16.msra.mxu0 0
      %3131 = vmatprep.subr.bf16.mxu0 0
      %3132 = vmatpush1.bf16.msra.mxu0 0
      %3133 = vmatprep.subr.bf16.mxu0 0
      %3134 = vmatpush1.bf16.msra.mxu0 0
      %3135 = vmatprep.subr.bf16.mxu0 0
      %3136 = vmatpush1.bf16.msra.mxu0 0
      %3137 = vmatprep.subr.bf16.mxu0 0
      %3138 = vmatpush1.bf16.msra.mxu0 0
      %3139 = vmatprep.subr.bf16.mxu0 0
      %3140 = vmatpush1.bf16.msra.mxu0 0
      %3141 = vmatprep.subr.bf16.mxu0 0
      %3142 = vmatpush1.bf16.msra.mxu0 0
      %3143 = vmatprep.subr.bf16.mxu0 0
      %3144 = vmatpush1.bf16.msra.mxu0 0
      %3145 = vmatprep.subr.bf16.mxu0 0
      %3146 = vmatpush1.bf16.msra.mxu0 0
      %3147 = vmatprep.subr.bf16.mxu0 0
      %3148 = vmatpush1.bf16.msra.mxu0 0
      %3149 = vmatprep.subr.bf16.mxu0 0
      %3150 = vmatpush1.bf16.msra.mxu0 0
      %3151 = vmatprep.subr.bf16.mxu0 0
      %3152 = vmatpush1.bf16.msra.mxu0 0
      %3153 = vmatprep.subr.bf16.mxu0 0
      %3154 = vmatpush1.bf16.msra.mxu0 0
      %3155 = vmatprep.subr.bf16.mxu0 0
      %3156 = vmatpush1.bf16.msra.mxu0 0
      %3157 = vmatprep.mubr.bf16.mxu0 0
      %3158 = vmatmul.mubr.bf16.gmra.mrb[0].mxu0 %v3123
      %v3159 = vpop.f32.mrb[0].mxu0
      %v3160 = vadd.f32 0.0, %v3159
      %v3161 = vpop.f32.mrb[0].mxu0
      %v3162 = vpop.f32.mrb[0].mxu0
      %v3163 = vadd.f32 0.0, %v3162
      %v3164 = vpop.f32.mrb[0].mxu0
      %3165 = vdwg.mxu0
      %3166 = vrot.lane.b32.xlu0 %v2968, 64
      %v3167 = vpop.permute.xlu0 %3166
      %v3170 = vsel %vm1469, %v3118, 0
      %3172 = vmatprep.subr.bf16.mxu0 0
      %3173 = vmatpush1.bf16.msra.mxu0 %v3167
      %3174 = vmatprep.subr.bf16.mxu0 0
      %3175 = vmatpush1.bf16.msra.mxu0 0
      %3176 = vmatprep.subr.bf16.mxu0 0
      %3177 = vmatpush1.bf16.msra.mxu0 0
      %3178 = vmatprep.subr.bf16.mxu0 0
      %3179 = vmatpush1.bf16.msra.mxu0 0
      %3180 = vmatprep.subr.bf16.mxu0 0
      %3181 = vmatpush1.bf16.msra.mxu0 0
      %3182 = vmatprep.subr.bf16.mxu0 0
      %3183 = vmatpush1.bf16.msra.mxu0 0
      %3184 = vmatprep.subr.bf16.mxu0 0
      %3185 = vmatpush1.bf16.msra.mxu0 0
      %3186 = vmatprep.subr.bf16.mxu0 0
      %3187 = vmatpush1.bf16.msra.mxu0 0
      %3188 = vmatprep.subr.bf16.mxu0 0
      %3189 = vmatpush1.bf16.msra.mxu0 0
      %3190 = vmatprep.subr.bf16.mxu0 0
      %3191 = vmatpush1.bf16.msra.mxu0 0
      %3192 = vmatprep.subr.bf16.mxu0 0
      %3193 = vmatpush1.bf16.msra.mxu0 0
      %3194 = vmatprep.subr.bf16.mxu0 0
      %3195 = vmatpush1.bf16.msra.mxu0 0
      %3196 = vmatprep.subr.bf16.mxu0 0
      %3197 = vmatpush1.bf16.msra.mxu0 0
      %3198 = vmatprep.subr.bf16.mxu0 0
      %3199 = vmatpush1.bf16.msra.mxu0 0
      %3200 = vmatprep.subr.bf16.mxu0 0
      %3201 = vmatpush1.bf16.msra.mxu0 0
      %3202 = vmatprep.subr.bf16.mxu0 0
      %3203 = vmatpush1.bf16.msra.mxu0 0
      %3204 = vmatprep.mubr.bf16.mxu0 0
      %3205 = vmatmul.mubr.bf16.gmra.mrb[0].mxu0 %v3170
      %v3206 = vpop.f32.mrb[0].mxu0
      %v3207 = vadd.f32 0.0, %v3206
      %v3208 = vpop.f32.mrb[0].mxu0
      %v3209 = vpop.f32.mrb[0].mxu0
      %v3210 = vadd.f32 0.0, %v3209
      %v3211 = vpop.f32.mrb[0].mxu0
      %3212 = vdwg.mxu0
      %3213 = vrot.lane.b32.xlu0 %v2967, 120
      %v3214 = vpop.permute.xlu0 %3213
      %3215 = vrot.lane.b32.xlu0 %v2967, 88
      %v3216 = vpop.permute.xlu0 %3215
      %v3218 = vsel %vm1367, %v3214, 0
      %v3221 = vsel %vm1367, %v3216, 0
      %3223 = vmatprep.subr.bf16.mxu0 0
      %3224 = vmatpush1.bf16.xpose.msra.mxu0 %v3221
      %3225 = vmatprep.subr.bf16.mxu0 0
      %3226 = vmatpush1.bf16.xpose.msra.mxu0 0
      %3227 = vmatprep.subr.bf16.mxu0 0
      %3228 = vmatpush1.bf16.xpose.msra.mxu0 0
      %3229 = vmatprep.subr.bf16.mxu0 0
      %3230 = vmatpush1.bf16.xpose.msra.mxu0 0
      %3231 = vmatprep.subr.bf16.mxu0 0
      %3232 = vmatpush1.bf16.xpose.msra.mxu0 0
      %3233 = vmatprep.subr.bf16.mxu0 0
      %3234 = vmatpush1.bf16.xpose.msra.mxu0 0
      %3235 = vmatprep.subr.bf16.mxu0 0
      %3236 = vmatpush1.bf16.xpose.msra.mxu0 0
      %3237 = vmatprep.subr.bf16.mxu0 0
      %3238 = vmatpush1.bf16.xpose.msra.mxu0 0
      %3239 = vmatprep.subr.bf16.mxu0 0
      %3240 = vmatpush1.bf16.xpose.msra.mxu0 0
      %3241 = vmatprep.subr.bf16.mxu0 0
      %3242 = vmatpush1.bf16.xpose.msra.mxu0 0
      %3243 = vmatprep.subr.bf16.mxu0 0
      %3244 = vmatpush1.bf16.xpose.msra.mxu0 0
      %3245 = vmatprep.subr.bf16.mxu0 0
      %3246 = vmatpush1.bf16.xpose.msra.mxu0 0
      %3247 = vmatprep.subr.bf16.mxu0 0
      %3248 = vmatpush1.bf16.xpose.msra.mxu0 0
      %3249 = vmatprep.subr.bf16.mxu0 0
      %3250 = vmatpush1.bf16.xpose.msra.mxu0 0
      %3251 = vmatprep.subr.bf16.mxu0 0
      %3252 = vmatpush1.bf16.xpose.msra.mxu0 0
      %3253 = vmatprep.subr.bf16.mxu0 0
      %3254 = vmatpush1.bf16.xpose.msra.mxu0 0
      %3255 = vmatprep.mubr.bf16.mxu0 0
      %3256 = vmatmul.mubr.bf16.gmra.mrb[0].mxu0 %v3218
      %v3257 = vpop.f32.mrb[0].mxu0
      %v3258 = vadd.f32 0.0, %v3257
      %v3259 = vpop.f32.mrb[0].mxu0
      %v3260 = vpop.f32.mrb[0].mxu0
      %v3261 = vadd.f32 0.0, %v3260
      %v3262 = vpop.f32.mrb[0].mxu0
      %3263 = vdwg.mxu0
      %3264 = vrot.lane.b32.xlu0 %v2968, 120
      %v3265 = vpop.permute.xlu0 %3264
      %3266 = vrot.lane.b32.xlu0 %v2968, 88
      %v3267 = vpop.permute.xlu0 %3266
      %v3269 = vsel %vm1367, %v3265, 0
      %v3272 = vsel %vm1367, %v3267, 0
      %3274 = vmatprep.subr.bf16.mxu0 0
      %3275 = vmatpush1.bf16.xpose.msra.mxu0 %v3272
      %3276 = vmatprep.subr.bf16.mxu0 0
      %3277 = vmatpush1.bf16.xpose.msra.mxu0 0
      %3278 = vmatprep.subr.bf16.mxu0 0
      %3279 = vmatpush1.bf16.xpose.msra.mxu0 0
      %3280 = vmatprep.subr.bf16.mxu0 0
      %3281 = vmatpush1.bf16.xpose.msra.mxu0 0
      %3282 = vmatprep.subr.bf16.mxu0 0
      %3283 = vmatpush1.bf16.xpose.msra.mxu0 0
      %3284 = vmatprep.subr.bf16.mxu0 0
      %3285 = vmatpush1.bf16.xpose.msra.mxu0 0
      %3286 = vmatprep.subr.bf16.mxu0 0
      %3287 = vmatpush1.bf16.xpose.msra.mxu0 0
      %3288 = vmatprep.subr.bf16.mxu0 0
      %3289 = vmatpush1.bf16.xpose.msra.mxu0 0
      %3290 = vmatprep.subr.bf16.mxu0 0
      %3291 = vmatpush1.bf16.xpose.msra.mxu0 0
      %3292 = vmatprep.subr.bf16.mxu0 0
      %3293 = vmatpush1.bf16.xpose.msra.mxu0 0
      %3294 = vmatprep.subr.bf16.mxu0 0
      %3295 = vmatpush1.bf16.xpose.msra.mxu0 0
      %3296 = vmatprep.subr.bf16.mxu0 0
      %3297 = vmatpush1.bf16.xpose.msra.mxu0 0
      %3298 = vmatprep.subr.bf16.mxu0 0
      %3299 = vmatpush1.bf16.xpose.msra.mxu0 0
      %3300 = vmatprep.subr.bf16.mxu0 0
      %3301 = vmatpush1.bf16.xpose.msra.mxu0 0
      %3302 = vmatprep.subr.bf16.mxu0 0
      %3303 = vmatpush1.bf16.xpose.msra.mxu0 0
      %3304 = vmatprep.subr.bf16.mxu0 0
      %3305 = vmatpush1.bf16.xpose.msra.mxu0 0
      %3306 = vmatprep.mubr.bf16.mxu0 0
      %3307 = vmatmul.mubr.bf16.gmra.mrb[0].mxu0 %v3269
      %v3308 = vpop.f32.mrb[0].mxu0
      %v3309 = vadd.f32 0.0, %v3308
      %v3310 = vpop.f32.mrb[0].mxu0
      %v3311 = vpop.f32.mrb[0].mxu0
      %v3312 = vadd.f32 0.0, %v3311
      %v3313 = vpop.f32.mrb[0].mxu0
      %3314 = vdwg.mxu0
      %v3315 = vmul.f32 %v3258, 0.35355338
      %v3316 = vmul.f32 %v3261, 0.35355338
      %v3317 = vmul.f32 %v3309, 0.35355338
      %v3318 = vmul.f32 %v3312, 0.35355338
      %v3319 = vsel %vm1469, %v3315, -inf
      %3320 = vmax.xlane.f32.xlu0 %v3319
      %v3321 = vpop.xlane.xlu0 %3320
      %v3322 = vsel %vm1469, %v3316, -inf
      %3323 = vmax.xlane.f32.xlu0 %v3322
      %v3324 = vpop.xlane.xlu0 %3323
      %v3325 = vsel %vm1469, %v3317, -inf
      %3326 = vmax.xlane.f32.xlu0 %v3325
      %v3327 = vpop.xlane.xlu0 %3326
      %v3328 = vsel %vm1469, %v3318, -inf
      %3329 = vmax.xlane.f32.xlu0 %v3328
      %v3330 = vpop.xlane.xlu0 %3329
      %v3331 = vsub.f32 %v3315, %v3321
      %v3332 = vsub.f32 %v3316, %v3324
      %v3333 = vsub.f32 %v3317, %v3327
      %v3334 = vsub.f32 %v3318, %v3330
      %v3335 = vmul.f32 %v3331, 1.442695
      %v3336 = vpow.pop %v3335
      %v3337 = vmul.f32 %v3332, 1.442695
      %v3338 = vpow.pop %v3337
      %v3339 = vmul.f32 %v3333, 1.442695
      %v3340 = vpow.pop %v3339
      %v3341 = vmul.f32 %v3334, 1.442695
      %v3342 = vpow.pop %v3341
      %v3343 = vsel %vm1469, %v3336, 0.0
      %3344 = vadd.xlane.f32.xlu0 %v3343
      %v3345 = vpop.xlane.xlu0 %3344
      %v3346 = vsel %vm1469, %v3338, 0.0
      %3347 = vadd.xlane.f32.xlu0 %v3346
      %v3348 = vpop.xlane.xlu0 %3347
      %v3349 = vsel %vm1469, %v3340, 0.0
      %3350 = vadd.xlane.f32.xlu0 %v3349
      %v3351 = vpop.xlane.xlu0 %3350
      %v3352 = vsel %vm1469, %v3342, 0.0
      %3353 = vadd.xlane.f32.xlu0 %v3352
      %v3354 = vpop.xlane.xlu0 %3353
      %v3355 = vrcp.pop %v3345
      %v3356 = vrcp.pop %v3348
      %v3357 = vrcp.pop %v3351
      %v3358 = vrcp.pop %v3354
      %v3359 = vmul.f32 %v3336, %v3355
      %v3360 = vmul.f32 %v3338, %v3356
      %v3361 = vmul.f32 %v3340, %v3357
      %v3362 = vmul.f32 %v3342, %v3358
      %v3363 = vpack.c.bf16 %v3360, %v3359
      %v3364 = vpack.c.bf16 %v3362, %v3361
      %3365 = vrot.lane.b32.xlu0 %v2967, 56
      %v3366 = vpop.permute.xlu0 %3365
      %v3369 = vsel %vm1469, %v3363, 0
      %3371 = vmatprep.subr.bf16.mxu0 0
      %3372 = vmatpush1.bf16.msra.mxu0 %v3366
      %3373 = vmatprep.subr.bf16.mxu0 0
      %3374 = vmatpush1.bf16.msra.mxu0 0
      %3375 = vmatprep.subr.bf16.mxu0 0
      %3376 = vmatpush1.bf16.msra.mxu0 0
      %3377 = vmatprep.subr.bf16.mxu0 0
      %3378 = vmatpush1.bf16.msra.mxu0 0
      %3379 = vmatprep.subr.bf16.mxu0 0
      %3380 = vmatpush1.bf16.msra.mxu0 0
      %3381 = vmatprep.subr.bf16.mxu0 0
      %3382 = vmatpush1.bf16.msra.mxu0 0
      %3383 = vmatprep.subr.bf16.mxu0 0
      %3384 = vmatpush1.bf16.msra.mxu0 0
      %3385 = vmatprep.subr.bf16.mxu0 0
      %3386 = vmatpush1.bf16.msra.mxu0 0
      %3387 = vmatprep.subr.bf16.mxu0 0
      %3388 = vmatpush1.bf16.msra.mxu0 0
      %3389 = vmatprep.subr.bf16.mxu0 0
      %3390 = vmatpush1.bf16.msra.mxu0 0
      %3391 = vmatprep.subr.bf16.mxu0 0
      %3392 = vmatpush1.bf16.msra.mxu0 0
      %3393 = vmatprep.subr.bf16.mxu0 0
      %3394 = vmatpush1.bf16.msra.mxu0 0
      %3395 = vmatprep.subr.bf16.mxu0 0
      %3396 = vmatpush1.bf16.msra.mxu0 0
      %3397 = vmatprep.subr.bf16.mxu0 0
      %3398 = vmatpush1.bf16.msra.mxu0 0
      %3399 = vmatprep.subr.bf16.mxu0 0
      %3400 = vmatpush1.bf16.msra.mxu0 0
      %3401 = vmatprep.subr.bf16.mxu0 0
      %3402 = vmatpush1.bf16.msra.mxu0 0
      %3403 = vmatprep.mubr.bf16.mxu0 0
      %3404 = vmatmul.mubr.bf16.gmra.mrb[0].mxu0 %v3369
      %v3405 = vpop.f32.mrb[0].mxu0
      %v3406 = vadd.f32 0.0, %v3405
      %v3407 = vpop.f32.mrb[0].mxu0
      %v3408 = vpop.f32.mrb[0].mxu0
      %v3409 = vadd.f32 0.0, %v3408
      %v3410 = vpop.f32.mrb[0].mxu0
      %3411 = vdwg.mxu0
      %3412 = vrot.lane.b32.xlu0 %v2968, 56
      %v3413 = vpop.permute.xlu0 %3412
      %v3416 = vsel %vm1469, %v3364, 0
      %3418 = vmatprep.subr.bf16.mxu0 0
      %3419 = vmatpush1.bf16.msra.mxu0 %v3413
      %3420 = vmatprep.subr.bf16.mxu0 0
      %3421 = vmatpush1.bf16.msra.mxu0 0
      %3422 = vmatprep.subr.bf16.mxu0 0
      %3423 = vmatpush1.bf16.msra.mxu0 0
      %3424 = vmatprep.subr.bf16.mxu0 0
      %3425 = vmatpush1.bf16.msra.mxu0 0
      %3426 = vmatprep.subr.bf16.mxu0 0
      %3427 = vmatpush1.bf16.msra.mxu0 0
      %3428 = vmatprep.subr.bf16.mxu0 0
      %3429 = vmatpush1.bf16.msra.mxu0 0
      %3430 = vmatprep.subr.bf16.mxu0 0
      %3431 = vmatpush1.bf16.msra.mxu0 0
      %3432 = vmatprep.subr.bf16.mxu0 0
      %3433 = vmatpush1.bf16.msra.mxu0 0
      %3434 = vmatprep.subr.bf16.mxu0 0
      %3435 = vmatpush1.bf16.msra.mxu0 0
      %3436 = vmatprep.subr.bf16.mxu0 0
      %3437 = vmatpush1.bf16.msra.mxu0 0
      %3438 = vmatprep.subr.bf16.mxu0 0
      %3439 = vmatpush1.bf16.msra.mxu0 0
      %3440 = vmatprep.subr.bf16.mxu0 0
      %3441 = vmatpush1.bf16.msra.mxu0 0
      %3442 = vmatprep.subr.bf16.mxu0 0
      %3443 = vmatpush1.bf16.msra.mxu0 0
      %3444 = vmatprep.subr.bf16.mxu0 0
      %3445 = vmatpush1.bf16.msra.mxu0 0
      %3446 = vmatprep.subr.bf16.mxu0 0
      %3447 = vmatpush1.bf16.msra.mxu0 0
      %3448 = vmatprep.subr.bf16.mxu0 0
      %3449 = vmatpush1.bf16.msra.mxu0 0
      %3450 = vmatprep.mubr.bf16.mxu0 0
      %3451 = vmatmul.mubr.bf16.gmra.mrb[0].mxu0 %v3416
      %v3452 = vpop.f32.mrb[0].mxu0
      %v3453 = vadd.f32 0.0, %v3452
      %v3454 = vpop.f32.mrb[0].mxu0
      %v3455 = vpop.f32.mrb[0].mxu0
      %v3456 = vadd.f32 0.0, %v3455
      %v3457 = vpop.f32.mrb[0].mxu0
      %3458 = vdwg.mxu0
      %3459 = vrot.lane.b32.xlu0 %v2967, 112
      %v3460 = vpop.permute.xlu0 %3459
      %3461 = vrot.lane.b32.xlu0 %v2967, 80
      %v3462 = vpop.permute.xlu0 %3461
      %v3464 = vsel %vm1367, %v3460, 0
      %v3467 = vsel %vm1367, %v3462, 0
      %3469 = vmatprep.subr.bf16.mxu0 0
      %3470 = vmatpush1.bf16.xpose.msra.mxu0 %v3467
      %3471 = vmatprep.subr.bf16.mxu0 0
      %3472 = vmatpush1.bf16.xpose.msra.mxu0 0
      %3473 = vmatprep.subr.bf16.mxu0 0
      %3474 = vmatpush1.bf16.xpose.msra.mxu0 0
      %3475 = vmatprep.subr.bf16.mxu0 0
      %3476 = vmatpush1.bf16.xpose.msra.mxu0 0
      %3477 = vmatprep.subr.bf16.mxu0 0
      %3478 = vmatpush1.bf16.xpose.msra.mxu0 0
      %3479 = vmatprep.subr.bf16.mxu0 0
      %3480 = vmatpush1.bf16.xpose.msra.mxu0 0
      %3481 = vmatprep.subr.bf16.mxu0 0
      %3482 = vmatpush1.bf16.xpose.msra.mxu0 0
      %3483 = vmatprep.subr.bf16.mxu0 0
      %3484 = vmatpush1.bf16.xpose.msra.mxu0 0
      %3485 = vmatprep.subr.bf16.mxu0 0
      %3486 = vmatpush1.bf16.xpose.msra.mxu0 0
      %3487 = vmatprep.subr.bf16.mxu0 0
      %3488 = vmatpush1.bf16.xpose.msra.mxu0 0
      %3489 = vmatprep.subr.bf16.mxu0 0
      %3490 = vmatpush1.bf16.xpose.msra.mxu0 0
      %3491 = vmatprep.subr.bf16.mxu0 0
      %3492 = vmatpush1.bf16.xpose.msra.mxu0 0
      %3493 = vmatprep.subr.bf16.mxu0 0
      %3494 = vmatpush1.bf16.xpose.msra.mxu0 0
      %3495 = vmatprep.subr.bf16.mxu0 0
      %3496 = vmatpush1.bf16.xpose.msra.mxu0 0
      %3497 = vmatprep.subr.bf16.mxu0 0
      %3498 = vmatpush1.bf16.xpose.msra.mxu0 0
      %3499 = vmatprep.subr.bf16.mxu0 0
      %3500 = vmatpush1.bf16.xpose.msra.mxu0 0
      %3501 = vmatprep.mubr.bf16.mxu0 0
      %3502 = vmatmul.mubr.bf16.gmra.mrb[0].mxu0 %v3464
      %v3503 = vpop.f32.mrb[0].mxu0
      %v3504 = vadd.f32 0.0, %v3503
      %v3505 = vpop.f32.mrb[0].mxu0
      %v3506 = vpop.f32.mrb[0].mxu0
      %v3507 = vadd.f32 0.0, %v3506
      %v3508 = vpop.f32.mrb[0].mxu0
      %3509 = vdwg.mxu0
      %3510 = vrot.lane.b32.xlu0 %v2968, 112
      %v3511 = vpop.permute.xlu0 %3510
      %3512 = vrot.lane.b32.xlu0 %v2968, 80
      %v3513 = vpop.permute.xlu0 %3512
      %v3515 = vsel %vm1367, %v3511, 0
      %v3518 = vsel %vm1367, %v3513, 0
      %3520 = vmatprep.subr.bf16.mxu0 0
      %3521 = vmatpush1.bf16.xpose.msra.mxu0 %v3518
      %3522 = vmatprep.subr.bf16.mxu0 0
      %3523 = vmatpush1.bf16.xpose.msra.mxu0 0
      %3524 = vmatprep.subr.bf16.mxu0 0
      %3525 = vmatpush1.bf16.xpose.msra.mxu0 0
      %3526 = vmatprep.subr.bf16.mxu0 0
      %3527 = vmatpush1.bf16.xpose.msra.mxu0 0
      %3528 = vmatprep.subr.bf16.mxu0 0
      %3529 = vmatpush1.bf16.xpose.msra.mxu0 0
      %3530 = vmatprep.subr.bf16.mxu0 0
      %3531 = vmatpush1.bf16.xpose.msra.mxu0 0
      %3532 = vmatprep.subr.bf16.mxu0 0
      %3533 = vmatpush1.bf16.xpose.msra.mxu0 0
      %3534 = vmatprep.subr.bf16.mxu0 0
      %3535 = vmatpush1.bf16.xpose.msra.mxu0 0
      %3536 = vmatprep.subr.bf16.mxu0 0
      %3537 = vmatpush1.bf16.xpose.msra.mxu0 0
      %3538 = vmatprep.subr.bf16.mxu0 0
      %3539 = vmatpush1.bf16.xpose.msra.mxu0 0
      %3540 = vmatprep.subr.bf16.mxu0 0
      %3541 = vmatpush1.bf16.xpose.msra.mxu0 0
      %3542 = vmatprep.subr.bf16.mxu0 0
      %3543 = vmatpush1.bf16.xpose.msra.mxu0 0
      %3544 = vmatprep.subr.bf16.mxu0 0
      %3545 = vmatpush1.bf16.xpose.msra.mxu0 0
      %3546 = vmatprep.subr.bf16.mxu0 0
      %3547 = vmatpush1.bf16.xpose.msra.mxu0 0
      %3548 = vmatprep.subr.bf16.mxu0 0
      %3549 = vmatpush1.bf16.xpose.msra.mxu0 0
      %3550 = vmatprep.subr.bf16.mxu0 0
      %3551 = vmatpush1.bf16.xpose.msra.mxu0 0
      %3552 = vmatprep.mubr.bf16.mxu0 0
      %3553 = vmatmul.mubr.bf16.gmra.mrb[0].mxu0 %v3515
      %v3554 = vpop.f32.mrb[0].mxu0
      %v3555 = vadd.f32 0.0, %v3554
      %v3556 = vpop.f32.mrb[0].mxu0
      %v3557 = vpop.f32.mrb[0].mxu0
      %v3558 = vadd.f32 0.0, %v3557
      %v3559 = vpop.f32.mrb[0].mxu0
      %3560 = vdwg.mxu0
      %v3561 = vmul.f32 %v3504, 0.35355338
      %v3562 = vmul.f32 %v3507, 0.35355338
      %v3563 = vmul.f32 %v3555, 0.35355338
      %v3564 = vmul.f32 %v3558, 0.35355338
      %v3565 = vsel %vm1469, %v3561, -inf
      %3566 = vmax.xlane.f32.xlu0 %v3565
      %v3567 = vpop.xlane.xlu0 %3566
      %v3568 = vsel %vm1469, %v3562, -inf
      %3569 = vmax.xlane.f32.xlu0 %v3568
      %v3570 = vpop.xlane.xlu0 %3569
      %v3571 = vsel %vm1469, %v3563, -inf
      %3572 = vmax.xlane.f32.xlu0 %v3571
      %v3573 = vpop.xlane.xlu0 %3572
      %v3574 = vsel %vm1469, %v3564, -inf
      %3575 = vmax.xlane.f32.xlu0 %v3574
      %v3576 = vpop.xlane.xlu0 %3575
      %v3577 = vsub.f32 %v3561, %v3567
      %v3578 = vsub.f32 %v3562, %v3570
      %v3579 = vsub.f32 %v3563, %v3573
      %v3580 = vsub.f32 %v3564, %v3576
      %v3581 = vmul.f32 %v3577, 1.442695
      %v3582 = vpow.pop %v3581
      %v3583 = vmul.f32 %v3578, 1.442695
      %v3584 = vpow.pop %v3583
      %v3585 = vmul.f32 %v3579, 1.442695
      %v3586 = vpow.pop %v3585
      %v3587 = vmul.f32 %v3580, 1.442695
      %v3588 = vpow.pop %v3587
      %v3589 = vsel %vm1469, %v3582, 0.0
      %3590 = vadd.xlane.f32.xlu0 %v3589
      %v3591 = vpop.xlane.xlu0 %3590
      %v3592 = vsel %vm1469, %v3584, 0.0
      %3593 = vadd.xlane.f32.xlu0 %v3592
      %v3594 = vpop.xlane.xlu0 %3593
      %v3595 = vsel %vm1469, %v3586, 0.0
      %3596 = vadd.xlane.f32.xlu0 %v3595
      %v3597 = vpop.xlane.xlu0 %3596
      %v3598 = vsel %vm1469, %v3588, 0.0
      %3599 = vadd.xlane.f32.xlu0 %v3598
      %v3600 = vpop.xlane.xlu0 %3599
      %v3601 = vrcp.pop %v3591
      %v3602 = vrcp.pop %v3594
      %v3603 = vrcp.pop %v3597
      %v3604 = vrcp.pop %v3600
      %v3605 = vmul.f32 %v3582, %v3601
      %v3606 = vmul.f32 %v3584, %v3602
      %v3607 = vmul.f32 %v3586, %v3603
      %v3608 = vmul.f32 %v3588, %v3604
      %v3609 = vpack.c.bf16 %v3606, %v3605
      %v3610 = vpack.c.bf16 %v3608, %v3607
      %3611 = vrot.lane.b32.xlu0 %v2967, 48
      %v3612 = vpop.permute.xlu0 %3611
      %v3615 = vsel %vm1469, %v3609, 0
      %3617 = vmatprep.subr.bf16.mxu0 0
      %3618 = vmatpush1.bf16.msra.mxu0 %v3612
      %3619 = vmatprep.subr.bf16.mxu0 0
      %3620 = vmatpush1.bf16.msra.mxu0 0
      %3621 = vmatprep.subr.bf16.mxu0 0
      %3622 = vmatpush1.bf16.msra.mxu0 0
      %3623 = vmatprep.subr.bf16.mxu0 0
      %3624 = vmatpush1.bf16.msra.mxu0 0
      %3625 = vmatprep.subr.bf16.mxu0 0
      %3626 = vmatpush1.bf16.msra.mxu0 0
      %3627 = vmatprep.subr.bf16.mxu0 0
      %3628 = vmatpush1.bf16.msra.mxu0 0
      %3629 = vmatprep.subr.bf16.mxu0 0
      %3630 = vmatpush1.bf16.msra.mxu0 0
      %3631 = vmatprep.subr.bf16.mxu0 0
      %3632 = vmatpush1.bf16.msra.mxu0 0
      %3633 = vmatprep.subr.bf16.mxu0 0
      %3634 = vmatpush1.bf16.msra.mxu0 0
      %3635 = vmatprep.subr.bf16.mxu0 0
      %3636 = vmatpush1.bf16.msra.mxu0 0
      %3637 = vmatprep.subr.bf16.mxu0 0
      %3638 = vmatpush1.bf16.msra.mxu0 0
      %3639 = vmatprep.subr.bf16.mxu0 0
      %3640 = vmatpush1.bf16.msra.mxu0 0
      %3641 = vmatprep.subr.bf16.mxu0 0
      %3642 = vmatpush1.bf16.msra.mxu0 0
      %3643 = vmatprep.subr.bf16.mxu0 0
      %3644 = vmatpush1.bf16.msra.mxu0 0
      %3645 = vmatprep.subr.bf16.mxu0 0
      %3646 = vmatpush1.bf16.msra.mxu0 0
      %3647 = vmatprep.subr.bf16.mxu0 0
      %3648 = vmatpush1.bf16.msra.mxu0 0
      %3649 = vmatprep.mubr.bf16.mxu0 0
      %3650 = vmatmul.mubr.bf16.gmra.mrb[0].mxu0 %v3615
      %v3651 = vpop.f32.mrb[0].mxu0
      %v3652 = vadd.f32 0.0, %v3651
      %v3653 = vpop.f32.mrb[0].mxu0
      %v3654 = vpop.f32.mrb[0].mxu0
      %v3655 = vadd.f32 0.0, %v3654
      %v3656 = vpop.f32.mrb[0].mxu0
      %3657 = vdwg.mxu0
      %3658 = vrot.lane.b32.xlu0 %v2968, 48
      %v3659 = vpop.permute.xlu0 %3658
      %v3662 = vsel %vm1469, %v3610, 0
      %3664 = vmatprep.subr.bf16.mxu0 0
      %3665 = vmatpush1.bf16.msra.mxu0 %v3659
      %3666 = vmatprep.subr.bf16.mxu0 0
      %3667 = vmatpush1.bf16.msra.mxu0 0
      %3668 = vmatprep.subr.bf16.mxu0 0
      %3669 = vmatpush1.bf16.msra.mxu0 0
      %3670 = vmatprep.subr.bf16.mxu0 0
      %3671 = vmatpush1.bf16.msra.mxu0 0
      %3672 = vmatprep.subr.bf16.mxu0 0
      %3673 = vmatpush1.bf16.msra.mxu0 0
      %3674 = vmatprep.subr.bf16.mxu0 0
      %3675 = vmatpush1.bf16.msra.mxu0 0
      %3676 = vmatprep.subr.bf16.mxu0 0
      %3677 = vmatpush1.bf16.msra.mxu0 0
      %3678 = vmatprep.subr.bf16.mxu0 0
      %3679 = vmatpush1.bf16.msra.mxu0 0
      %3680 = vmatprep.subr.bf16.mxu0 0
      %3681 = vmatpush1.bf16.msra.mxu0 0
      %3682 = vmatprep.subr.bf16.mxu0 0
      %3683 = vmatpush1.bf16.msra.mxu0 0
      %3684 = vmatprep.subr.bf16.mxu0 0
      %3685 = vmatpush1.bf16.msra.mxu0 0
      %3686 = vmatprep.subr.bf16.mxu0 0
      %3687 = vmatpush1.bf16.msra.mxu0 0
      %3688 = vmatprep.subr.bf16.mxu0 0
      %3689 = vmatpush1.bf16.msra.mxu0 0
      %3690 = vmatprep.subr.bf16.mxu0 0
      %3691 = vmatpush1.bf16.msra.mxu0 0
      %3692 = vmatprep.subr.bf16.mxu0 0
      %3693 = vmatpush1.bf16.msra.mxu0 0
      %3694 = vmatprep.subr.bf16.mxu0 0
      %3695 = vmatpush1.bf16.msra.mxu0 0
      %3696 = vmatprep.mubr.bf16.mxu0 0
      %3697 = vmatmul.mubr.bf16.gmra.mrb[0].mxu0 %v3662
      %v3698 = vpop.f32.mrb[0].mxu0
      %v3699 = vadd.f32 0.0, %v3698
      %v3700 = vpop.f32.mrb[0].mxu0
      %v3701 = vpop.f32.mrb[0].mxu0
      %v3702 = vadd.f32 0.0, %v3701
      %v3703 = vpop.f32.mrb[0].mxu0
      %3704 = vdwg.mxu0
      %3705 = vrot.lane.b32.xlu0 %v2967, 104
      %v3706 = vpop.permute.xlu0 %3705
      %3707 = vrot.lane.b32.xlu0 %v2967, 72
      %v3708 = vpop.permute.xlu0 %3707
      %v3710 = vsel %vm1367, %v3706, 0
      %v3713 = vsel %vm1367, %v3708, 0
      %3715 = vmatprep.subr.bf16.mxu0 0
      %3716 = vmatpush1.bf16.xpose.msra.mxu0 %v3713
      %3717 = vmatprep.subr.bf16.mxu0 0
      %3718 = vmatpush1.bf16.xpose.msra.mxu0 0
      %3719 = vmatprep.subr.bf16.mxu0 0
      %3720 = vmatpush1.bf16.xpose.msra.mxu0 0
      %3721 = vmatprep.subr.bf16.mxu0 0
      %3722 = vmatpush1.bf16.xpose.msra.mxu0 0
      %3723 = vmatprep.subr.bf16.mxu0 0
      %3724 = vmatpush1.bf16.xpose.msra.mxu0 0
      %3725 = vmatprep.subr.bf16.mxu0 0
      %3726 = vmatpush1.bf16.xpose.msra.mxu0 0
      %3727 = vmatprep.subr.bf16.mxu0 0
      %3728 = vmatpush1.bf16.xpose.msra.mxu0 0
      %3729 = vmatprep.subr.bf16.mxu0 0
      %3730 = vmatpush1.bf16.xpose.msra.mxu0 0
      %3731 = vmatprep.subr.bf16.mxu0 0
      %3732 = vmatpush1.bf16.xpose.msra.mxu0 0
      %3733 = vmatprep.subr.bf16.mxu0 0
      %3734 = vmatpush1.bf16.xpose.msra.mxu0 0
      %3735 = vmatprep.subr.bf16.mxu0 0
      %3736 = vmatpush1.bf16.xpose.msra.mxu0 0
      %3737 = vmatprep.subr.bf16.mxu0 0
      %3738 = vmatpush1.bf16.xpose.msra.mxu0 0
      %3739 = vmatprep.subr.bf16.mxu0 0
      %3740 = vmatpush1.bf16.xpose.msra.mxu0 0
      %3741 = vmatprep.subr.bf16.mxu0 0
      %3742 = vmatpush1.bf16.xpose.msra.mxu0 0
      %3743 = vmatprep.subr.bf16.mxu0 0
      %3744 = vmatpush1.bf16.xpose.msra.mxu0 0
      %3745 = vmatprep.subr.bf16.mxu0 0
      %3746 = vmatpush1.bf16.xpose.msra.mxu0 0
      %3747 = vmatprep.mubr.bf16.mxu0 0
      %3748 = vmatmul.mubr.bf16.gmra.mrb[0].mxu0 %v3710
      %v3749 = vpop.f32.mrb[0].mxu0
      %v3750 = vadd.f32 0.0, %v3749
      %v3751 = vpop.f32.mrb[0].mxu0
      %v3752 = vpop.f32.mrb[0].mxu0
      %v3753 = vadd.f32 0.0, %v3752
      %v3754 = vpop.f32.mrb[0].mxu0
      %3755 = vdwg.mxu0
      %3756 = vrot.lane.b32.xlu0 %v2968, 104
      %v3757 = vpop.permute.xlu0 %3756
      %3758 = vrot.lane.b32.xlu0 %v2968, 72
      %v3759 = vpop.permute.xlu0 %3758
      %v3761 = vsel %vm1367, %v3757, 0
      %v3764 = vsel %vm1367, %v3759, 0
      %3766 = vmatprep.subr.bf16.mxu0 0
      %3767 = vmatpush1.bf16.xpose.msra.mxu0 %v3764
      %3768 = vmatprep.subr.bf16.mxu0 0
      %3769 = vmatpush1.bf16.xpose.msra.mxu0 0
      %3770 = vmatprep.subr.bf16.mxu0 0
      %3771 = vmatpush1.bf16.xpose.msra.mxu0 0
      %3772 = vmatprep.subr.bf16.mxu0 0
      %3773 = vmatpush1.bf16.xpose.msra.mxu0 0
      %3774 = vmatprep.subr.bf16.mxu0 0
      %3775 = vmatpush1.bf16.xpose.msra.mxu0 0
      %3776 = vmatprep.subr.bf16.mxu0 0
      %3777 = vmatpush1.bf16.xpose.msra.mxu0 0
      %3778 = vmatprep.subr.bf16.mxu0 0
      %3779 = vmatpush1.bf16.xpose.msra.mxu0 0
      %3780 = vmatprep.subr.bf16.mxu0 0
      %3781 = vmatpush1.bf16.xpose.msra.mxu0 0
      %3782 = vmatprep.subr.bf16.mxu0 0
      %3783 = vmatpush1.bf16.xpose.msra.mxu0 0
      %3784 = vmatprep.subr.bf16.mxu0 0
      %3785 = vmatpush1.bf16.xpose.msra.mxu0 0
      %3786 = vmatprep.subr.bf16.mxu0 0
      %3787 = vmatpush1.bf16.xpose.msra.mxu0 0
      %3788 = vmatprep.subr.bf16.mxu0 0
      %3789 = vmatpush1.bf16.xpose.msra.mxu0 0
      %3790 = vmatprep.subr.bf16.mxu0 0
      %3791 = vmatpush1.bf16.xpose.msra.mxu0 0
      %3792 = vmatprep.subr.bf16.mxu0 0
      %3793 = vmatpush1.bf16.xpose.msra.mxu0 0
      %3794 = vmatprep.subr.bf16.mxu0 0
      %3795 = vmatpush1.bf16.xpose.msra.mxu0 0
      %3796 = vmatprep.subr.bf16.mxu0 0
      %3797 = vmatpush1.bf16.xpose.msra.mxu0 0
      %3798 = vmatprep.mubr.bf16.mxu0 0
      %3799 = vmatmul.mubr.bf16.gmra.mrb[0].mxu0 %v3761
      %v3800 = vpop.f32.mrb[0].mxu0
      %v3801 = vadd.f32 0.0, %v3800
      %v3802 = vpop.f32.mrb[0].mxu0
      %v3803 = vpop.f32.mrb[0].mxu0
      %v3804 = vadd.f32 0.0, %v3803
      %v3805 = vpop.f32.mrb[0].mxu0
      %3806 = vdwg.mxu0
      %v3807 = vmul.f32 %v3750, 0.35355338
      %v3808 = vmul.f32 %v3753, 0.35355338
      %v3809 = vmul.f32 %v3801, 0.35355338
      %v3810 = vmul.f32 %v3804, 0.35355338
      %v3811 = vsel %vm1469, %v3807, -inf
      %3812 = vmax.xlane.f32.xlu0 %v3811
      %v3813 = vpop.xlane.xlu0 %3812
      %v3814 = vsel %vm1469, %v3808, -inf
      %3815 = vmax.xlane.f32.xlu0 %v3814
      %v3816 = vpop.xlane.xlu0 %3815
      %v3817 = vsel %vm1469, %v3809, -inf
      %3818 = vmax.xlane.f32.xlu0 %v3817
      %v3819 = vpop.xlane.xlu0 %3818
      %v3820 = vsel %vm1469, %v3810, -inf
      %3821 = vmax.xlane.f32.xlu0 %v3820
      %v3822 = vpop.xlane.xlu0 %3821
      %v3823 = vsub.f32 %v3807, %v3813
      %v3824 = vsub.f32 %v3808, %v3816
      %v3825 = vsub.f32 %v3809, %v3819
      %v3826 = vsub.f32 %v3810, %v3822
      %v3827 = vmul.f32 %v3823, 1.442695
      %v3828 = vpow.pop %v3827
      %v3829 = vmul.f32 %v3824, 1.442695
      %v3830 = vpow.pop %v3829
      %v3831 = vmul.f32 %v3825, 1.442695
      %v3832 = vpow.pop %v3831
      %v3833 = vmul.f32 %v3826, 1.442695
      %v3834 = vpow.pop %v3833
      %v3835 = vsel %vm1469, %v3828, 0.0
      %3836 = vadd.xlane.f32.xlu0 %v3835
      %v3837 = vpop.xlane.xlu0 %3836
      %v3838 = vsel %vm1469, %v3830, 0.0
      %3839 = vadd.xlane.f32.xlu0 %v3838
      %v3840 = vpop.xlane.xlu0 %3839
      %v3841 = vsel %vm1469, %v3832, 0.0
      %3842 = vadd.xlane.f32.xlu0 %v3841
      %v3843 = vpop.xlane.xlu0 %3842
      %v3844 = vsel %vm1469, %v3834, 0.0
      %3845 = vadd.xlane.f32.xlu0 %v3844
      %v3846 = vpop.xlane.xlu0 %3845
      %v3847 = vrcp.pop %v3837
      %v3848 = vrcp.pop %v3840
      %v3849 = vrcp.pop %v3843
      %v3850 = vrcp.pop %v3846
      %v3851 = vmul.f32 %v3828, %v3847
      %v3852 = vmul.f32 %v3830, %v3848
      %v3853 = vmul.f32 %v3832, %v3849
      %v3854 = vmul.f32 %v3834, %v3850
      %v3855 = vpack.c.bf16 %v3852, %v3851
      %v3856 = vpack.c.bf16 %v3854, %v3853
      %3857 = vrot.lane.b32.xlu0 %v2967, 40
      %v3858 = vpop.permute.xlu0 %3857
      %v3861 = vsel %vm1469, %v3855, 0
      %3863 = vmatprep.subr.bf16.mxu0 0
      %3864 = vmatpush1.bf16.msra.mxu0 %v3858
      %3865 = vmatprep.subr.bf16.mxu0 0
      %3866 = vmatpush1.bf16.msra.mxu0 0
      %3867 = vmatprep.subr.bf16.mxu0 0
      %3868 = vmatpush1.bf16.msra.mxu0 0
      %3869 = vmatprep.subr.bf16.mxu0 0
      %3870 = vmatpush1.bf16.msra.mxu0 0
      %3871 = vmatprep.subr.bf16.mxu0 0
      %3872 = vmatpush1.bf16.msra.mxu0 0
      %3873 = vmatprep.subr.bf16.mxu0 0
      %3874 = vmatpush1.bf16.msra.mxu0 0
      %3875 = vmatprep.subr.bf16.mxu0 0
      %3876 = vmatpush1.bf16.msra.mxu0 0
      %3877 = vmatprep.subr.bf16.mxu0 0
      %3878 = vmatpush1.bf16.msra.mxu0 0
      %3879 = vmatprep.subr.bf16.mxu0 0
      %3880 = vmatpush1.bf16.msra.mxu0 0
      %3881 = vmatprep.subr.bf16.mxu0 0
      %3882 = vmatpush1.bf16.msra.mxu0 0
      %3883 = vmatprep.subr.bf16.mxu0 0
      %3884 = vmatpush1.bf16.msra.mxu0 0
      %3885 = vmatprep.subr.bf16.mxu0 0
      %3886 = vmatpush1.bf16.msra.mxu0 0
      %3887 = vmatprep.subr.bf16.mxu0 0
      %3888 = vmatpush1.bf16.msra.mxu0 0
      %3889 = vmatprep.subr.bf16.mxu0 0
      %3890 = vmatpush1.bf16.msra.mxu0 0
      %3891 = vmatprep.subr.bf16.mxu0 0
      %3892 = vmatpush1.bf16.msra.mxu0 0
      %3893 = vmatprep.subr.bf16.mxu0 0
      %3894 = vmatpush1.bf16.msra.mxu0 0
      %3895 = vmatprep.mubr.bf16.mxu0 0
      %3896 = vmatmul.mubr.bf16.gmra.mrb[0].mxu0 %v3861
      %v3897 = vpop.f32.mrb[0].mxu0
      %v3898 = vadd.f32 0.0, %v3897
      %v3899 = vpop.f32.mrb[0].mxu0
      %v3900 = vpop.f32.mrb[0].mxu0
      %v3901 = vadd.f32 0.0, %v3900
      %v3902 = vpop.f32.mrb[0].mxu0
      %3903 = vdwg.mxu0
      %3904 = vrot.lane.b32.xlu0 %v2968, 40
      %v3905 = vpop.permute.xlu0 %3904
      %v3908 = vsel %vm1469, %v3856, 0
      %3910 = vmatprep.subr.bf16.mxu0 0
      %3911 = vmatpush1.bf16.msra.mxu0 %v3905
      %3912 = vmatprep.subr.bf16.mxu0 0
      %3913 = vmatpush1.bf16.msra.mxu0 0
      %3914 = vmatprep.subr.bf16.mxu0 0
      %3915 = vmatpush1.bf16.msra.mxu0 0
      %3916 = vmatprep.subr.bf16.mxu0 0
      %3917 = vmatpush1.bf16.msra.mxu0 0
      %3918 = vmatprep.subr.bf16.mxu0 0
      %3919 = vmatpush1.bf16.msra.mxu0 0
      %3920 = vmatprep.subr.bf16.mxu0 0
      %3921 = vmatpush1.bf16.msra.mxu0 0
      %3922 = vmatprep.subr.bf16.mxu0 0
      %3923 = vmatpush1.bf16.msra.mxu0 0
      %3924 = vmatprep.subr.bf16.mxu0 0
      %3925 = vmatpush1.bf16.msra.mxu0 0
      %3926 = vmatprep.subr.bf16.mxu0 0
      %3927 = vmatpush1.bf16.msra.mxu0 0
      %3928 = vmatprep.subr.bf16.mxu0 0
      %3929 = vmatpush1.bf16.msra.mxu0 0
      %3930 = vmatprep.subr.bf16.mxu0 0
      %3931 = vmatpush1.bf16.msra.mxu0 0
      %3932 = vmatprep.subr.bf16.mxu0 0
      %3933 = vmatpush1.bf16.msra.mxu0 0
      %3934 = vmatprep.subr.bf16.mxu0 0
      %3935 = vmatpush1.bf16.msra.mxu0 0
      %3936 = vmatprep.subr.bf16.mxu0 0
      %3937 = vmatpush1.bf16.msra.mxu0 0
      %3938 = vmatprep.subr.bf16.mxu0 0
      %3939 = vmatpush1.bf16.msra.mxu0 0
      %3940 = vmatprep.subr.bf16.mxu0 0
      %3941 = vmatpush1.bf16.msra.mxu0 0
      %3942 = vmatprep.mubr.bf16.mxu0 0
      %3943 = vmatmul.mubr.bf16.gmra.mrb[0].mxu0 %v3908
      %v3944 = vpop.f32.mrb[0].mxu0
      %v3945 = vadd.f32 0.0, %v3944
      %v3946 = vpop.f32.mrb[0].mxu0
      %v3947 = vpop.f32.mrb[0].mxu0
      %v3948 = vadd.f32 0.0, %v3947
      %v3949 = vpop.f32.mrb[0].mxu0
      %3950 = vdwg.mxu0
      %3955 = vrot.lane.b32.xlu0 %v3406, 8
      %v3956 = vpop.permute.xlu0 %3955
      %3957 = vrot.lane.b32.xlu0 %v3409, 8
      %v3958 = vpop.permute.xlu0 %3957
      %3959 = vrot.lane.b32.xlu0 %v3453, 8
      %v3960 = vpop.permute.xlu0 %3959
      %3961 = vrot.lane.b32.xlu0 %v3456, 8
      %v3962 = vpop.permute.xlu0 %3961
      %3971 = vrot.lane.b32.xlu0 %v3652, 16
      %v3972 = vpop.permute.xlu0 %3971
      %3973 = vrot.lane.b32.xlu0 %v3655, 16
      %v3974 = vpop.permute.xlu0 %3973
      %3975 = vrot.lane.b32.xlu0 %v3699, 16
      %v3976 = vpop.permute.xlu0 %3975
      %3977 = vrot.lane.b32.xlu0 %v3702, 16
      %v3978 = vpop.permute.xlu0 %3977
      %3987 = vrot.lane.b32.xlu0 %v3898, 24
      %v3988 = vpop.permute.xlu0 %3987
      %3989 = vrot.lane.b32.xlu0 %v3901, 24
      %v3990 = vpop.permute.xlu0 %3989
      %3991 = vrot.lane.b32.xlu0 %v3945, 24
      %v3992 = vpop.permute.xlu0 %3991
      %3993 = vrot.lane.b32.xlu0 %v3948, 24
      %v3994 = vpop.permute.xlu0 %3993
      %v3999 = vsel %vm1367, %v3160, %v3956
      %v4000 = vsel %vm1367, %v3163, %v3958
      %v4001 = vsel %vm1367, %v3207, %v3960
      %v4002 = vsel %vm1367, %v3210, %v3962
      %v4003 = vsel %vm1469, %v3999, %v3972
      %v4004 = vsel %vm1469, %v4000, %v3974
      %v4005 = vsel %vm1469, %v4001, %v3976
      %v4006 = vsel %vm1469, %v4002, %v3978
      %v4007 = vsel %vm2404, %v4003, %v3988
      %v4008 = vsel %vm2404, %v4004, %v3990
      %v4009 = vsel %vm2404, %v4005, %v3992
      %v4010 = vsel %vm2404, %v4006, %v3994
      %v4011 = vpack.c.bf16 %v4008, %v4007
      %v4012 = vpack.c.bf16 %v4010, %v4009
      %s4013 = scalar_lea.vmem %s8, 16
      %v4014 = vld [vmem:[%s4013] sm:$0xf]
      %v4015 = vld [vmem:[%s4013 + $0x4] sm:$0xf]
      %v4016 = vld [vmem:[%s4013 + $0x8] sm:$0xf]
      %v4017 = vld [vmem:[%s4013 + $0xc] sm:$0xf]
      %s4018 = scalar_lea.vmem %s9, 1
      %v4019 = vld [vmem:[%s4018] sm:$0x1]
      %v4021 = vlaneseq
      %v4022 = vshrl.u32 %v4021, 7
      %v4023 = vsub.s32 0, %v4022
      %v4024 = vrot.slane %v4019, %v4023
      %v4030 = vunpack.c.l.b16 %v4014
      %v4031 = vunpack.c.l.b16 %v4015
      %v4032 = vunpack.c.l.b16 %v4016
      %v4033 = vunpack.c.l.b16 %v4017
      %v4034 = vpack.c.b16 %v4031, %v4030
      %v4035 = vpack.c.b16 %v4033, %v4032
      %v4039 = vsel %vm1208, %v4011, 0
      %v4042 = vsel %vm1208, %v4012, 0
      %4044 = vmatprep.subr.bf16.mxu0 0
      %4045 = vmatpush1.bf16.msra.mxu0 %v4034
      %4046 = vmatprep.subr.bf16.mxu0 0
      %4047 = vmatpush1.bf16.msra.mxu0 %v4035
      %4048 = vmatprep.subr.bf16.mxu0 0
      %4049 = vmatpush1.bf16.msra.mxu0 0
      %4050 = vmatprep.subr.bf16.mxu0 0
      %4051 = vmatpush1.bf16.msra.mxu0 0
      %4052 = vmatprep.subr.bf16.mxu0 0
      %4053 = vmatpush1.bf16.msra.mxu0 0
      %4054 = vmatprep.subr.bf16.mxu0 0
      %4055 = vmatpush1.bf16.msra.mxu0 0
      %4056 = vmatprep.subr.bf16.mxu0 0
      %4057 = vmatpush1.bf16.msra.mxu0 0
      %4058 = vmatprep.subr.bf16.mxu0 0
      %4059 = vmatpush1.bf16.msra.mxu0 0
      %4060 = vmatprep.subr.bf16.mxu0 0
      %4061 = vmatpush1.bf16.msra.mxu0 0
      %4062 = vmatprep.subr.bf16.mxu0 0
      %4063 = vmatpush1.bf16.msra.mxu0 0
      %4064 = vmatprep.subr.bf16.mxu0 0
      %4065 = vmatpush1.bf16.msra.mxu0 0
      %4066 = vmatprep.subr.bf16.mxu0 0
      %4067 = vmatpush1.bf16.msra.mxu0 0
      %4068 = vmatprep.subr.bf16.mxu0 0
      %4069 = vmatpush1.bf16.msra.mxu0 0
      %4070 = vmatprep.subr.bf16.mxu0 0
      %4071 = vmatpush1.bf16.msra.mxu0 0
      %4072 = vmatprep.subr.bf16.mxu0 0
      %4073 = vmatpush1.bf16.msra.mxu0 0
      %4074 = vmatprep.subr.bf16.mxu0 0
      %4075 = vmatpush1.bf16.msra.mxu0 0
      %4076 = vmatprep.mubr.bf16.mxu0 0
      %4077 = vmatmul.mubr.bf16.gmra.mrb[0].mxu0 %v4039
      %v4078 = vpop.f32.mrb[0].mxu0
      %v4079 = vadd.f32 %v4024, %v4078
      %v4080 = vpop.f32.mrb[0].mxu0
      %v4081 = vpop.f32.mrb[0].mxu0
      %v4082 = vadd.f32 %v4024, %v4081
      %v4083 = vpop.f32.mrb[0].mxu0
      %4084 = vmatprep.mubr.bf16.mxu0 0
      %4085 = vmatmul.mubr.bf16.gmra.mrb[0].mxu0 %v4042
      %v4086 = vpop.f32.mrb[0].mxu0
      %v4087 = vadd.f32 %v4024, %v4086
      %v4088 = vpop.f32.mrb[0].mxu0
      %v4089 = vpop.f32.mrb[0].mxu0
      %v4090 = vadd.f32 %v4024, %v4089
      %v4091 = vpop.f32.mrb[0].mxu0
      %4092 = vdwg.mxu0
      %v4093 = vadd.f32 %v2805, %v4079
      %v4094 = vadd.f32 %v2806, %v4082
      %v4095 = vadd.f32 %v2807, %v4087
      %v4096 = vadd.f32 %v2808, %v4090
      %s4097 = scalar_lea.vmem %s10, 1
      %v4098 = vld [vmem:[%s4097] sm:$0x1]
      %s4099 = scalar_lea.vmem %s11, 1
      %v4100 = vld [vmem:[%s4099] sm:$0x1]
      %v4101 = vsel %vm1208, %v4093, 0.0
      %4102 = vadd.xlane.f32.xlu0 %v4101
      %v4103 = vpop.xlane.xlu0 %4102
      %v4104 = vsel %vm1208, %v4094, 0.0
      %4105 = vadd.xlane.f32.xlu0 %v4104
      %v4106 = vpop.xlane.xlu0 %4105
      %v4107 = vsel %vm1208, %v4095, 0.0
      %4108 = vadd.xlane.f32.xlu0 %v4107
      %v4109 = vpop.xlane.xlu0 %4108
      %v4110 = vsel %vm1208, %v4096, 0.0
      %4111 = vadd.xlane.f32.xlu0 %v4110
      %v4112 = vpop.xlane.xlu0 %4111
      %v4113 = vmul.f32 %v4103, %v1221
      %v4114 = vmul.f32 %v4106, %v1221
      %v4115 = vmul.f32 %v4109, %v1221
      %v4116 = vmul.f32 %v4112, %v1221
      %v4117 = vsub.f32 %v4093, %v4113
      %v4118 = vsub.f32 %v4094, %v4114
      %v4119 = vsub.f32 %v4095, %v4115
      %v4120 = vsub.f32 %v4096, %v4116
      %v4121 = vmul.f32 %v4117, %v4117
      %v4122 = vmul.f32 %v4118, %v4118
      %v4123 = vmul.f32 %v4119, %v4119
      %v4124 = vmul.f32 %v4120, %v4120
      %v4125 = vsel %vm1208, %v4121, 0.0
      %4126 = vadd.xlane.f32.xlu0 %v4125
      %v4127 = vpop.xlane.xlu0 %4126
      %v4128 = vsel %vm1208, %v4122, 0.0
      %4129 = vadd.xlane.f32.xlu0 %v4128
      %v4130 = vpop.xlane.xlu0 %4129
      %v4131 = vsel %vm1208, %v4123, 0.0
      %4132 = vadd.xlane.f32.xlu0 %v4131
      %v4133 = vpop.xlane.xlu0 %4132
      %v4134 = vsel %vm1208, %v4124, 0.0
      %4135 = vadd.xlane.f32.xlu0 %v4134
      %v4136 = vpop.xlane.xlu0 %4135
      %v4137 = vmul.f32 %v4127, %v1221
      %v4138 = vmul.f32 %v4130, %v1221
      %v4139 = vmul.f32 %v4133, %v1221
      %v4140 = vmul.f32 %v4136, %v1221
      %v4141 = vadd.f32 %v4137, 1e-05
      %v4142 = vadd.f32 %v4138, 1e-05
      %v4143 = vadd.f32 %v4139, 1e-05
      %v4144 = vadd.f32 %v4140, 1e-05
      %v4145 = vrsqrt.pop %v4141
      %v4146 = vrsqrt.pop %v4142
      %v4147 = vrsqrt.pop %v4143
      %v4148 = vrsqrt.pop %v4144
      %v4149 = vmul.f32 %v4117, %v4145
      %v4150 = vmul.f32 %v4118, %v4146
      %v4151 = vmul.f32 %v4119, %v4147
      %v4152 = vmul.f32 %v4120, %v4148
      %v4154 = vlaneseq
      %v4155 = vshrl.u32 %v4154, 7
      %v4156 = vsub.s32 0, %v4155
      %v4157 = vrot.slane %v4098, %v4156
      %v4159 = vmul.f32 %v4149, %v4157
      %v4160 = vmul.f32 %v4150, %v4157
      %v4161 = vmul.f32 %v4151, %v4157
      %v4162 = vmul.f32 %v4152, %v4157
      %v4164 = vlaneseq
      %v4165 = vshrl.u32 %v4164, 7
      %v4166 = vsub.s32 0, %v4165
      %v4167 = vrot.slane %v4100, %v4166
      %v4169 = vadd.f32 %v4159, %v4167
      %v4170 = vadd.f32 %v4160, %v4167
      %v4171 = vadd.f32 %v4161, %v4167
      %v4172 = vadd.f32 %v4162, %v4167
      %v4173 = vpack.c.bf16 %v4170, %v4169
      %v4174 = vpack.c.bf16 %v4172, %v4171
      %s4175 = scalar_lea.vmem %s12, 16
      %v4176 = vld [vmem:[%s4175] sm:$0xf]
      %v4177 = vld [vmem:[%s4175 + $0x4] sm:$0xf]
      %v4178 = vld [vmem:[%s4175 + $0x8] sm:$0xf]
      %v4179 = vld [vmem:[%s4175 + $0xc] sm:$0xf]
      %s4180 = scalar_lea.vmem %s13, 1
      %v4181 = vld [vmem:[%s4180] sm:$0x1]
      %v4183 = vlaneseq
      %v4184 = vshrl.u32 %v4183, 7
      %v4185 = vsub.s32 0, %v4184
      %v4186 = vrot.slane %v4181, %v4185
      %v4192 = vunpack.c.l.b16 %v4176
      %v4193 = vunpack.c.l.b16 %v4177
      %v4194 = vunpack.c.l.b16 %v4178
      %v4195 = vunpack.c.l.b16 %v4179
      %v4196 = vpack.c.b16 %v4193, %v4192
      %v4197 = vpack.c.b16 %v4195, %v4194
      %v4201 = vsel %vm1208, %v4173, 0
      %v4204 = vsel %vm1208, %v4174, 0
      %4206 = vmatprep.subr.bf16.mxu0 0
      %4207 = vmatpush1.bf16.msra.mxu0 %v4196
      %4208 = vmatprep.subr.bf16.mxu0 0
      %4209 = vmatpush1.bf16.msra.mxu0 %v4197
      %4210 = vmatprep.subr.bf16.mxu0 0
      %4211 = vmatpush1.bf16.msra.mxu0 0
      %4212 = vmatprep.subr.bf16.mxu0 0
      %4213 = vmatpush1.bf16.msra.mxu0 0
      %4214 = vmatprep.subr.bf16.mxu0 0
      %4215 = vmatpush1.bf16.msra.mxu0 0
      %4216 = vmatprep.subr.bf16.mxu0 0
      %4217 = vmatpush1.bf16.msra.mxu0 0
      %4218 = vmatprep.subr.bf16.mxu0 0
      %4219 = vmatpush1.bf16.msra.mxu0 0
      %4220 = vmatprep.subr.bf16.mxu0 0
      %4221 = vmatpush1.bf16.msra.mxu0 0
      %4222 = vmatprep.subr.bf16.mxu0 0
      %4223 = vmatpush1.bf16.msra.mxu0 0
      %4224 = vmatprep.subr.bf16.mxu0 0
      %4225 = vmatpush1.bf16.msra.mxu0 0
      %4226 = vmatprep.subr.bf16.mxu0 0
      %4227 = vmatpush1.bf16.msra.mxu0 0
      %4228 = vmatprep.subr.bf16.mxu0 0
      %4229 = vmatpush1.bf16.msra.mxu0 0
      %4230 = vmatprep.subr.bf16.mxu0 0
      %4231 = vmatpush1.bf16.msra.mxu0 0
      %4232 = vmatprep.subr.bf16.mxu0 0
      %4233 = vmatpush1.bf16.msra.mxu0 0
      %4234 = vmatprep.subr.bf16.mxu0 0
      %4235 = vmatpush1.bf16.msra.mxu0 0
      %4236 = vmatprep.subr.bf16.mxu0 0
      %4237 = vmatpush1.bf16.msra.mxu0 0
      %4238 = vmatprep.mubr.bf16.mxu0 0
      %4239 = vmatmul.mubr.bf16.gmra.mrb[0].mxu0 %v4201
      %v4240 = vpop.f32.mrb[0].mxu0
      %v4241 = vadd.f32 %v4186, %v4240
      %v4242 = vpop.f32.mrb[0].mxu0
      %v4243 = vpop.f32.mrb[0].mxu0
      %v4244 = vadd.f32 %v4186, %v4243
      %v4245 = vpop.f32.mrb[0].mxu0
      %4246 = vmatprep.mubr.bf16.mxu0 0
      %4247 = vmatmul.mubr.bf16.gmra.mrb[0].mxu0 %v4204
      %v4248 = vpop.f32.mrb[0].mxu0
      %v4249 = vadd.f32 %v4186, %v4248
      %v4250 = vpop.f32.mrb[0].mxu0
      %v4251 = vpop.f32.mrb[0].mxu0
      %v4252 = vadd.f32 %v4186, %v4251
      %v4253 = vpop.f32.mrb[0].mxu0
      %4254 = vdwg.mxu0
      %v4255 = vmul.f32 %v4241, %v4241
      %v4256 = vmul.f32 %v4244, %v4244
      %v4257 = vmul.f32 %v4249, %v4249
      %v4258 = vmul.f32 %v4252, %v4252
      %v4259 = vmul.f32 %v4241, %v4255
      %v4260 = vmul.f32 %v4244, %v4256
      %v4261 = vmul.f32 %v4249, %v4257
      %v4262 = vmul.f32 %v4252, %v4258
      %v4263 = vmul.f32 %v4259, 0.044715
      %v4264 = vmul.f32 %v4260, 0.044715
      %v4265 = vmul.f32 %v4261, 0.044715
      %v4266 = vmul.f32 %v4262, 0.044715
      %v4267 = vadd.f32 %v4241, %v4263
      %v4268 = vadd.f32 %v4244, %v4264
      %v4269 = vadd.f32 %v4249, %v4265
      %v4270 = vadd.f32 %v4252, %v4266
      %v4271 = vmul.f32 %v4267, 0.7978846
      %v4272 = vmul.f32 %v4268, 0.7978846
      %v4273 = vmul.f32 %v4269, 0.7978846
      %v4274 = vmul.f32 %v4270, 0.7978846
      %v4275 = vtanh.pop %v4271
      %v4276 = vtanh.pop %v4272
      %v4277 = vtanh.pop %v4273
      %v4278 = vtanh.pop %v4274
      %v4279 = vadd.f32 %v4275, 1.0
      %v4280 = vadd.f32 %v4276, 1.0
      %v4281 = vadd.f32 %v4277, 1.0
      %v4282 = vadd.f32 %v4278, 1.0
      %v4283 = vmul.f32 %v4279, 0.5
      %v4284 = vmul.f32 %v4280, 0.5
      %v4285 = vmul.f32 %v4281, 0.5
      %v4286 = vmul.f32 %v4282, 0.5
      %v4287 = vmul.f32 %v4241, %v4283
      %v4288 = vmul.f32 %v4244, %v4284
      %v4289 = vmul.f32 %v4249, %v4285
      %v4290 = vmul.f32 %v4252, %v4286
      %v4291 = vpack.c.bf16 %v4288, %v4287
      %v4292 = vpack.c.bf16 %v4290, %v4289
      %s4293 = scalar_lea.vmem %s14, 64
      %v4294 = vld [vmem:[%s4293] sm:$0xf]
      %v4295 = vld [vmem:[%s4293 + $0x4] sm:$0xf]
      %v4296 = vld [vmem:[%s4293 + $0x8] sm:$0xf]
      %v4297 = vld [vmem:[%s4293 + $0xc] sm:$0xf]
      %v4298 = vld [vmem:[%s4293 + $0x10] sm:$0xf]
      %v4299 = vld [vmem:[%s4293 + $0x14] sm:$0xf]
      %v4300 = vld [vmem:[%s4293 + $0x18] sm:$0xf]
      %v4301 = vld [vmem:[%s4293 + $0x1c] sm:$0xf]
      %v4302 = vld [vmem:[%s4293 + $0x20] sm:$0xf]
      %v4303 = vld [vmem:[%s4293 + $0x24] sm:$0xf]
      %v4304 = vld [vmem:[%s4293 + $0x28] sm:$0xf]
      %v4305 = vld [vmem:[%s4293 + $0x2c] sm:$0xf]
      %v4306 = vld [vmem:[%s4293 + $0x30] sm:$0xf]
      %v4307 = vld [vmem:[%s4293 + $0x34] sm:$0xf]
      %v4308 = vld [vmem:[%s4293 + $0x38] sm:$0xf]
      %v4309 = vld [vmem:[%s4293 + $0x3c] sm:$0xf]
      %s4310 = scalar_lea.vmem %s15, 1
      %v4311 = vld [vmem:[%s4310] sm:$0x1]
      %v4313 = vlaneseq
      %v4314 = vshrl.u32 %v4313, 7
      %v4315 = vsub.s32 0, %v4314
      %v4316 = vrot.slane %v4311, %v4315
      %v4334 = vunpack.c.l.b16 %v4294
      %v4335 = vunpack.c.l.b16 %v4295
      %v4336 = vunpack.c.l.b16 %v4296
      %v4337 = vunpack.c.l.b16 %v4297
      %v4338 = vunpack.c.l.b16 %v4298
      %v4339 = vunpack.c.l.b16 %v4299
      %v4340 = vunpack.c.l.b16 %v4300
      %v4341 = vunpack.c.l.b16 %v4301
      %v4342 = vunpack.c.l.b16 %v4302
      %v4343 = vunpack.c.l.b16 %v4303
      %v4344 = vunpack.c.l.b16 %v4304
      %v4345 = vunpack.c.l.b16 %v4305
      %v4346 = vunpack.c.l.b16 %v4306
      %v4347 = vunpack.c.l.b16 %v4307
      %v4348 = vunpack.c.l.b16 %v4308
      %v4349 = vunpack.c.l.b16 %v4309
      %v4350 = vpack.c.b16 %v4335, %v4334
      %v4351 = vpack.c.b16 %v4337, %v4336
      %v4352 = vpack.c.b16 %v4339, %v4338
      %v4353 = vpack.c.b16 %v4341, %v4340
      %v4354 = vpack.c.b16 %v4343, %v4342
      %v4355 = vpack.c.b16 %v4345, %v4344
      %v4356 = vpack.c.b16 %v4347, %v4346
      %v4357 = vpack.c.b16 %v4349, %v4348
      %4366 = vmatprep.subr.bf16.mxu0 0
      %4367 = vmatpush1.bf16.msra.mxu0 %v4350
      %4368 = vmatprep.subr.bf16.mxu0 0
      %4369 = vmatpush1.bf16.msra.mxu0 %v4351
      %4370 = vmatprep.subr.bf16.mxu0 0
      %4371 = vmatpush1.bf16.msra.mxu0 %v4352
      %4372 = vmatprep.subr.bf16.mxu0 0
      %4373 = vmatpush1.bf16.msra.mxu0 %v4353
      %4374 = vmatprep.subr.bf16.mxu0 0
      %4375 = vmatpush1.bf16.msra.mxu0 %v4354
      %4376 = vmatprep.subr.bf16.mxu0 0
      %4377 = vmatpush1.bf16.msra.mxu0 %v4355
      %4378 = vmatprep.subr.bf16.mxu0 0
      %4379 = vmatpush1.bf16.msra.mxu0 %v4356
      %4380 = vmatprep.subr.bf16.mxu0 0
      %4381 = vmatpush1.bf16.msra.mxu0 %v4357
      %4382 = vmatprep.subr.bf16.mxu0 0
      %4383 = vmatpush1.bf16.msra.mxu0 0
      %4384 = vmatprep.subr.bf16.mxu0 0
      %4385 = vmatpush1.bf16.msra.mxu0 0
      %4386 = vmatprep.subr.bf16.mxu0 0
      %4387 = vmatpush1.bf16.msra.mxu0 0
      %4388 = vmatprep.subr.bf16.mxu0 0
      %4389 = vmatpush1.bf16.msra.mxu0 0
      %4390 = vmatprep.subr.bf16.mxu0 0
      %4391 = vmatpush1.bf16.msra.mxu0 0
      %4392 = vmatprep.subr.bf16.mxu0 0
      %4393 = vmatpush1.bf16.msra.mxu0 0
      %4394 = vmatprep.subr.bf16.mxu0 0
      %4395 = vmatpush1.bf16.msra.mxu0 0
      %4396 = vmatprep.subr.bf16.mxu0 0
      %4397 = vmatpush1.bf16.msra.mxu0 0
      %4398 = vmatprep.mubr.bf16.mxu0 0
      %4399 = vmatmul.mubr.bf16.gmra.mrb[0].mxu0 %v4291
      %v4400 = vpop.f32.mrb[0].mxu0
      %v4401 = vadd.f32 %v4316, %v4400
      %v4402 = vpop.f32.mrb[0].mxu0
      %v4403 = vpop.f32.mrb[0].mxu0
      %v4404 = vadd.f32 %v4316, %v4403
      %v4405 = vpop.f32.mrb[0].mxu0
      %4406 = vmatprep.mubr.bf16.mxu0 0
      %4407 = vmatmul.mubr.bf16.gmra.mrb[0].mxu0 %v4292
      %v4408 = vpop.f32.mrb[0].mxu0
      %v4409 = vadd.f32 %v4316, %v4408
      %v4410 = vpop.f32.mrb[0].mxu0
      %v4411 = vpop.f32.mrb[0].mxu0
      %v4412 = vadd.f32 %v4316, %v4411
      %v4413 = vpop.f32.mrb[0].mxu0
      %4414 = vdwg.mxu0
      %v4415 = vadd.f32 %v4093, %v4401
      %v4416 = vadd.f32 %v4094, %v4404
      %v4417 = vadd.f32 %v4095, %v4409
      %v4418 = vadd.f32 %v4096, %v4412
      %4419 = vst.msk [vmem:[%s616] sm:$0xff] %vm1208, %v4415
      %4420 = vst.msk [vmem:[%s616 + $0x8] sm:$0xff] %vm1208, %v4416
      %4421 = vst.msk [vmem:[%s616 + $0x10] sm:$0xff] %vm1208, %v4417
      %4422 = vst.msk [vmem:[%s616 + $0x18] sm:$0xff] %vm1208, %v4418
      %s4423 = scalar_lea.vmem %s4, 2
      %v4424 = vld [vmem:[%s4423] sm:$0x1]
      %s4425 = scalar_lea.vmem %s5, 2
      %v4426 = vld [vmem:[%s4425] sm:$0x1]
      %v4427 = vsel %vm1208, %v4415, 0.0
      %4428 = vadd.xlane.f32.xlu0 %v4427
      %v4429 = vpop.xlane.xlu0 %4428
      %v4430 = vsel %vm1208, %v4416, 0.0
      %4431 = vadd.xlane.f32.xlu0 %v4430
      %v4432 = vpop.xlane.xlu0 %4431
      %v4433 = vsel %vm1208, %v4417, 0.0
      %4434 = vadd.xlane.f32.xlu0 %v4433
      %v4435 = vpop.xlane.xlu0 %4434
      %v4436 = vsel %vm1208, %v4418, 0.0
      %4437 = vadd.xlane.f32.xlu0 %v4436
      %v4438 = vpop.xlane.xlu0 %4437
      %v4439 = vmul.f32 %v4429, %v1221
      %v4440 = vmul.f32 %v4432, %v1221
      %v4441 = vmul.f32 %v4435, %v1221
      %v4442 = vmul.f32 %v4438, %v1221
      %v4443 = vsub.f32 %v4415, %v4439
      %v4444 = vsub.f32 %v4416, %v4440
      %v4445 = vsub.f32 %v4417, %v4441
      %v4446 = vsub.f32 %v4418, %v4442
      %v4447 = vmul.f32 %v4443, %v4443
      %v4448 = vmul.f32 %v4444, %v4444
      %v4449 = vmul.f32 %v4445, %v4445
      %v4450 = vmul.f32 %v4446, %v4446
      %v4451 = vsel %vm1208, %v4447, 0.0
      %4452 = vadd.xlane.f32.xlu0 %v4451
      %v4453 = vpop.xlane.xlu0 %4452
      %v4454 = vsel %vm1208, %v4448, 0.0
      %4455 = vadd.xlane.f32.xlu0 %v4454
      %v4456 = vpop.xlane.xlu0 %4455
      %v4457 = vsel %vm1208, %v4449, 0.0
      %4458 = vadd.xlane.f32.xlu0 %v4457
      %v4459 = vpop.xlane.xlu0 %4458
      %v4460 = vsel %vm1208, %v4450, 0.0
      %4461 = vadd.xlane.f32.xlu0 %v4460
      %v4462 = vpop.xlane.xlu0 %4461
      %v4463 = vmul.f32 %v4453, %v1221
      %v4464 = vmul.f32 %v4456, %v1221
      %v4465 = vmul.f32 %v4459, %v1221
      %v4466 = vmul.f32 %v4462, %v1221
      %v4467 = vadd.f32 %v4463, 1e-05
      %v4468 = vadd.f32 %v4464, 1e-05
      %v4469 = vadd.f32 %v4465, 1e-05
      %v4470 = vadd.f32 %v4466, 1e-05
      %v4471 = vrsqrt.pop %v4467
      %v4472 = vrsqrt.pop %v4468
      %v4473 = vrsqrt.pop %v4469
      %v4474 = vrsqrt.pop %v4470
      %v4475 = vmul.f32 %v4443, %v4471
      %v4476 = vmul.f32 %v4444, %v4472
      %v4477 = vmul.f32 %v4445, %v4473
      %v4478 = vmul.f32 %v4446, %v4474
      %v4480 = vlaneseq
      %v4481 = vshrl.u32 %v4480, 7
      %v4482 = vsub.s32 0, %v4481
      %v4483 = vrot.slane %v4424, %v4482
      %v4485 = vmul.f32 %v4475, %v4483
      %v4486 = vmul.f32 %v4476, %v4483
      %v4487 = vmul.f32 %v4477, %v4483
      %v4488 = vmul.f32 %v4478, %v4483
      %v4490 = vlaneseq
      %v4491 = vshrl.u32 %v4490, 7
      %v4492 = vsub.s32 0, %v4491
      %v4493 = vrot.slane %v4426, %v4492
      %v4495 = vadd.f32 %v4485, %v4493
      %v4496 = vadd.f32 %v4486, %v4493
      %v4497 = vadd.f32 %v4487, %v4493
      %v4498 = vadd.f32 %v4488, %v4493
      %v4499 = vpack.c.bf16 %v4496, %v4495
      %v4500 = vpack.c.bf16 %v4498, %v4497
      %s4501 = scalar_lea.vmem %s6, 32
      %v4502 = vld [vmem:[%s4501] sm:$0xf]
      %v4503 = vld [vmem:[%s4501 + $0x4] sm:$0xf]
      %v4504 = vld [vmem:[%s4501 + $0x8] sm:$0xf]
      %v4505 = vld [vmem:[%s4501 + $0xc] sm:$0xf]
      %s4506 = scalar_lea.vmem %s7, 2
      %v4507 = vld [vmem:[%s4506] sm:$0x1]
      %v4509 = vlaneseq
      %v4510 = vshrl.u32 %v4509, 7
      %v4511 = vsub.s32 0, %v4510
      %v4512 = vrot.slane %v4507, %v4511
      %v4518 = vunpack.c.l.b16 %v4502
      %v4519 = vunpack.c.l.b16 %v4503
      %v4520 = vunpack.c.l.b16 %v4504
      %v4521 = vunpack.c.l.b16 %v4505
      %v4522 = vpack.c.b16 %v4519, %v4518
      %v4523 = vpack.c.b16 %v4521, %v4520
      %v4527 = vsel %vm1208, %v4499, 0
      %v4530 = vsel %vm1208, %v4500, 0
      %4532 = vmatprep.subr.bf16.mxu0 0
      %4533 = vmatpush1.bf16.msra.mxu0 %v4522
      %4534 = vmatprep.subr.bf16.mxu0 0
      %4535 = vmatpush1.bf16.msra.mxu0 %v4523
      %4536 = vmatprep.subr.bf16.mxu0 0
      %4537 = vmatpush1.bf16.msra.mxu0 0
      %4538 = vmatprep.subr.bf16.mxu0 0
      %4539 = vmatpush1.bf16.msra.mxu0 0
      %4540 = vmatprep.subr.bf16.mxu0 0
      %4541 = vmatpush1.bf16.msra.mxu0 0
      %4542 = vmatprep.subr.bf16.mxu0 0
      %4543 = vmatpush1.bf16.msra.mxu0 0
      %4544 = vmatprep.subr.bf16.mxu0 0
      %4545 = vmatpush1.bf16.msra.mxu0 0
      %4546 = vmatprep.subr.bf16.mxu0 0
      %4547 = vmatpush1.bf16.msra.mxu0 0
      %4548 = vmatprep.subr.bf16.mxu0 0
      %4549 = vmatpush1.bf16.msra.mxu0 0
      %4550 = vmatprep.subr.bf16.mxu0 0
      %4551 = vmatpush1.bf16.msra.mxu0 0
      %4552 = vmatprep.subr.bf16.mxu0 0
      %4553 = vmatpush1.bf16.msra.mxu0 0
      %4554 = vmatprep.subr.bf16.mxu0 0
      %4555 = vmatpush1.bf16.msra.mxu0 0
      %4556 = vmatprep.subr.bf16.mxu0 0
      %4557 = vmatpush1.bf16.msra.mxu0 0
      %4558 = vmatprep.subr.bf16.mxu0 0
      %4559 = vmatpush1.bf16.msra.mxu0 0
      %4560 = vmatprep.subr.bf16.mxu0 0
      %4561 = vmatpush1.bf16.msra.mxu0 0
      %4562 = vmatprep.subr.bf16.mxu0 0
      %4563 = vmatpush1.bf16.msra.mxu0 0
      %4564 = vmatprep.mubr.bf16.mxu0 0
      %4565 = vmatmul.mubr.bf16.gmra.mrb[0].mxu0 %v4527
      %v4566 = vpop.f32.mrb[0].mxu0
      %v4567 = vadd.f32 %v4512, %v4566
      %v4568 = vpop.f32.mrb[0].mxu0
      %v4569 = vpop.f32.mrb[0].mxu0
      %v4570 = vadd.f32 %v4512, %v4569
      %v4571 = vpop.f32.mrb[0].mxu0
      %4572 = vmatprep.mubr.bf16.mxu0 0
      %4573 = vmatmul.mubr.bf16.gmra.mrb[0].mxu0 %v4530
      %v4574 = vpop.f32.mrb[0].mxu0
      %v4575 = vadd.f32 %v4512, %v4574
      %v4576 = vpop.f32.mrb[0].mxu0
      %v4577 = vpop.f32.mrb[0].mxu0
      %v4578 = vadd.f32 %v4512, %v4577
      %v4579 = vpop.f32.mrb[0].mxu0
      %4580 = vdwg.mxu0
      %v4581 = vpack.c.bf16 %v4570, %v4567
      %v4582 = vpack.c.bf16 %v4578, %v4575
      %4584 = vrot.lane.b32.xlu0 %v4581, 96
      %v4585 = vpop.permute.xlu0 %4584
      %v4587 = vsel %vm1367, %v4581, 0
      %v4590 = vsel %vm1367, %v4585, 0
      %4592 = vmatprep.subr.bf16.mxu0 0
      %4593 = vmatpush1.bf16.xpose.msra.mxu0 %v4590
      %4594 = vmatprep.subr.bf16.mxu0 0
      %4595 = vmatpush1.bf16.xpose.msra.mxu0 0
      %4596 = vmatprep.subr.bf16.mxu0 0
      %4597 = vmatpush1.bf16.xpose.msra.mxu0 0
      %4598 = vmatprep.subr.bf16.mxu0 0
      %4599 = vmatpush1.bf16.xpose.msra.mxu0 0
      %4600 = vmatprep.subr.bf16.mxu0 0
      %4601 = vmatpush1.bf16.xpose.msra.mxu0 0
      %4602 = vmatprep.subr.bf16.mxu0 0
      %4603 = vmatpush1.bf16.xpose.msra.mxu0 0
      %4604 = vmatprep.subr.bf16.mxu0 0
      %4605 = vmatpush1.bf16.xpose.msra.mxu0 0
      %4606 = vmatprep.subr.bf16.mxu0 0
      %4607 = vmatpush1.bf16.xpose.msra.mxu0 0
      %4608 = vmatprep.subr.bf16.mxu0 0
      %4609 = vmatpush1.bf16.xpose.msra.mxu0 0
      %4610 = vmatprep.subr.bf16.mxu0 0
      %4611 = vmatpush1.bf16.xpose.msra.mxu0 0
      %4612 = vmatprep.subr.bf16.mxu0 0
      %4613 = vmatpush1.bf16.xpose.msra.mxu0 0
      %4614 = vmatprep.subr.bf16.mxu0 0
      %4615 = vmatpush1.bf16.xpose.msra.mxu0 0
      %4616 = vmatprep.subr.bf16.mxu0 0
      %4617 = vmatpush1.bf16.xpose.msra.mxu0 0
      %4618 = vmatprep.subr.bf16.mxu0 0
      %4619 = vmatpush1.bf16.xpose.msra.mxu0 0
      %4620 = vmatprep.subr.bf16.mxu0 0
      %4621 = vmatpush1.bf16.xpose.msra.mxu0 0
      %4622 = vmatprep.subr.bf16.mxu0 0
      %4623 = vmatpush1.bf16.xpose.msra.mxu0 0
      %4624 = vmatprep.mubr.bf16.mxu0 0
      %4625 = vmatmul.mubr.bf16.gmra.mrb[0].mxu0 %v4587
      %v4626 = vpop.f32.mrb[0].mxu0
      %v4627 = vadd.f32 0.0, %v4626
      %v4628 = vpop.f32.mrb[0].mxu0
      %v4629 = vpop.f32.mrb[0].mxu0
      %v4630 = vadd.f32 0.0, %v4629
      %v4631 = vpop.f32.mrb[0].mxu0
      %4632 = vdwg.mxu0
      %4634 = vrot.lane.b32.xlu0 %v4582, 96
      %v4635 = vpop.permute.xlu0 %4634
      %v4637 = vsel %vm1367, %v4582, 0
      %v4640 = vsel %vm1367, %v4635, 0
      %4642 = vmatprep.subr.bf16.mxu0 0
      %4643 = vmatpush1.bf16.xpose.msra.mxu0 %v4640
      %4644 = vmatprep.subr.bf16.mxu0 0
      %4645 = vmatpush1.bf16.xpose.msra.mxu0 0
      %4646 = vmatprep.subr.bf16.mxu0 0
      %4647 = vmatpush1.bf16.xpose.msra.mxu0 0
      %4648 = vmatprep.subr.bf16.mxu0 0
      %4649 = vmatpush1.bf16.xpose.msra.mxu0 0
      %4650 = vmatprep.subr.bf16.mxu0 0
      %4651 = vmatpush1.bf16.xpose.msra.mxu0 0
      %4652 = vmatprep.subr.bf16.mxu0 0
      %4653 = vmatpush1.bf16.xpose.msra.mxu0 0
      %4654 = vmatprep.subr.bf16.mxu0 0
      %4655 = vmatpush1.bf16.xpose.msra.mxu0 0
      %4656 = vmatprep.subr.bf16.mxu0 0
      %4657 = vmatpush1.bf16.xpose.msra.mxu0 0
      %4658 = vmatprep.subr.bf16.mxu0 0
      %4659 = vmatpush1.bf16.xpose.msra.mxu0 0
      %4660 = vmatprep.subr.bf16.mxu0 0
      %4661 = vmatpush1.bf16.xpose.msra.mxu0 0
      %4662 = vmatprep.subr.bf16.mxu0 0
      %4663 = vmatpush1.bf16.xpose.msra.mxu0 0
      %4664 = vmatprep.subr.bf16.mxu0 0
      %4665 = vmatpush1.bf16.xpose.msra.mxu0 0
      %4666 = vmatprep.subr.bf16.mxu0 0
      %4667 = vmatpush1.bf16.xpose.msra.mxu0 0
      %4668 = vmatprep.subr.bf16.mxu0 0
      %4669 = vmatpush1.bf16.xpose.msra.mxu0 0
      %4670 = vmatprep.subr.bf16.mxu0 0
      %4671 = vmatpush1.bf16.xpose.msra.mxu0 0
      %4672 = vmatprep.subr.bf16.mxu0 0
      %4673 = vmatpush1.bf16.xpose.msra.mxu0 0
      %4674 = vmatprep.mubr.bf16.mxu0 0
      %4675 = vmatmul.mubr.bf16.gmra.mrb[0].mxu0 %v4637
      %v4676 = vpop.f32.mrb[0].mxu0
      %v4677 = vadd.f32 0.0, %v4676
      %v4678 = vpop.f32.mrb[0].mxu0
      %v4679 = vpop.f32.mrb[0].mxu0
      %v4680 = vadd.f32 0.0, %v4679
      %v4681 = vpop.f32.mrb[0].mxu0
      %4682 = vdwg.mxu0
      %v4683 = vmul.f32 %v4627, 0.35355338
      %v4684 = vmul.f32 %v4630, 0.35355338
      %v4685 = vmul.f32 %v4677, 0.35355338
      %v4686 = vmul.f32 %v4680, 0.35355338
      %v4687 = vsel %vm1469, %v4683, -inf
      %4688 = vmax.xlane.f32.xlu0 %v4687
      %v4689 = vpop.xlane.xlu0 %4688
      %v4690 = vsel %vm1469, %v4684, -inf
      %4691 = vmax.xlane.f32.xlu0 %v4690
      %v4692 = vpop.xlane.xlu0 %4691
      %v4693 = vsel %vm1469, %v4685, -inf
      %4694 = vmax.xlane.f32.xlu0 %v4693
      %v4695 = vpop.xlane.xlu0 %4694
      %v4696 = vsel %vm1469, %v4686, -inf
      %4697 = vmax.xlane.f32.xlu0 %v4696
      %v4698 = vpop.xlane.xlu0 %4697
      %v4699 = vsub.f32 %v4683, %v4689
      %v4700 = vsub.f32 %v4684, %v4692
      %v4701 = vsub.f32 %v4685, %v4695
      %v4702 = vsub.f32 %v4686, %v4698
      %v4703 = vmul.f32 %v4699, 1.442695
      %v4704 = vpow.pop %v4703
      %v4705 = vmul.f32 %v4700, 1.442695
      %v4706 = vpow.pop %v4705
      %v4707 = vmul.f32 %v4701, 1.442695
      %v4708 = vpow.pop %v4707
      %v4709 = vmul.f32 %v4702, 1.442695
      %v4710 = vpow.pop %v4709
      %v4711 = vsel %vm1469, %v4704, 0.0
      %4712 = vadd.xlane.f32.xlu0 %v4711
      %v4713 = vpop.xlane.xlu0 %4712
      %v4714 = vsel %vm1469, %v4706, 0.0
      %4715 = vadd.xlane.f32.xlu0 %v4714
      %v4716 = vpop.xlane.xlu0 %4715
      %v4717 = vsel %vm1469, %v4708, 0.0
      %4718 = vadd.xlane.f32.xlu0 %v4717
      %v4719 = vpop.xlane.xlu0 %4718
      %v4720 = vsel %vm1469, %v4710, 0.0
      %4721 = vadd.xlane.f32.xlu0 %v4720
      %v4722 = vpop.xlane.xlu0 %4721
      %v4723 = vrcp.pop %v4713
      %v4724 = vrcp.pop %v4716
      %v4725 = vrcp.pop %v4719
      %v4726 = vrcp.pop %v4722
      %v4727 = vmul.f32 %v4704, %v4723
      %v4728 = vmul.f32 %v4706, %v4724
      %v4729 = vmul.f32 %v4708, %v4725
      %v4730 = vmul.f32 %v4710, %v4726
      %v4731 = vpack.c.bf16 %v4728, %v4727
      %v4732 = vpack.c.bf16 %v4730, %v4729
      %4733 = vrot.lane.b32.xlu0 %v4581, 64
      %v4734 = vpop.permute.xlu0 %4733
      %v4737 = vsel %vm1469, %v4731, 0
      %4739 = vmatprep.subr.bf16.mxu0 0
      %4740 = vmatpush1.bf16.msra.mxu0 %v4734
      %4741 = vmatprep.subr.bf16.mxu0 0
      %4742 = vmatpush1.bf16.msra.mxu0 0
      %4743 = vmatprep.subr.bf16.mxu0 0
      %4744 = vmatpush1.bf16.msra.mxu0 0
      %4745 = vmatprep.subr.bf16.mxu0 0
      %4746 = vmatpush1.bf16.msra.mxu0 0
      %4747 = vmatprep.subr.bf16.mxu0 0
      %4748 = vmatpush1.bf16.msra.mxu0 0
      %4749 = vmatprep.subr.bf16.mxu0 0
      %4750 = vmatpush1.bf16.msra.mxu0 0
      %4751 = vmatprep.subr.bf16.mxu0 0
      %4752 = vmatpush1.bf16.msra.mxu0 0
      %4753 = vmatprep.subr.bf16.mxu0 0
      %4754 = vmatpush1.bf16.msra.mxu0 0
      %4755 = vmatprep.subr.bf16.mxu0 0
      %4756 = vmatpush1.bf16.msra.mxu0 0
      %4757 = vmatprep.subr.bf16.mxu0 0
      %4758 = vmatpush1.bf16.msra.mxu0 0
      %4759 = vmatprep.subr.bf16.mxu0 0
      %4760 = vmatpush1.bf16.msra.mxu0 0
      %4761 = vmatprep.subr.bf16.mxu0 0
      %4762 = vmatpush1.bf16.msra.mxu0 0
      %4763 = vmatprep.subr.bf16.mxu0 0
      %4764 = vmatpush1.bf16.msra.mxu0 0
      %4765 = vmatprep.subr.bf16.mxu0 0
      %4766 = vmatpush1.bf16.msra.mxu0 0
      %4767 = vmatprep.subr.bf16.mxu0 0
      %4768 = vmatpush1.bf16.msra.mxu0 0
      %4769 = vmatprep.subr.bf16.mxu0 0
      %4770 = vmatpush1.bf16.msra.mxu0 0
      %4771 = vmatprep.mubr.bf16.mxu0 0
      %4772 = vmatmul.mubr.bf16.gmra.mrb[0].mxu0 %v4737
      %v4773 = vpop.f32.mrb[0].mxu0
      %v4774 = vadd.f32 0.0, %v4773
      %v4775 = vpop.f32.mrb[0].mxu0
      %v4776 = vpop.f32.mrb[0].mxu0
      %v4777 = vadd.f32 0.0, %v4776
      %v4778 = vpop.f32.mrb[0].mxu0
      %4779 = vdwg.mxu0
      %4780 = vrot.lane.b32.xlu0 %v4582, 64
      %v4781 = vpop.permute.xlu0 %4780
      %v4784 = vsel %vm1469, %v4732, 0
      %4786 = vmatprep.subr.bf16.mxu0 0
      %4787 = vmatpush1.bf16.msra.mxu0 %v4781
      %4788 = vmatprep.subr.bf16.mxu0 0
      %4789 = vmatpush1.bf16.msra.mxu0 0
      %4790 = vmatprep.subr.bf16.mxu0 0
      %4791 = vmatpush1.bf16.msra.mxu0 0
      %4792 = vmatprep.subr.bf16.mxu0 0
      %4793 = vmatpush1.bf16.msra.mxu0 0
      %4794 = vmatprep.subr.bf16.mxu0 0
      %4795 = vmatpush1.bf16.msra.mxu0 0
      %4796 = vmatprep.subr.bf16.mxu0 0
      %4797 = vmatpush1.bf16.msra.mxu0 0
      %4798 = vmatprep.subr.bf16.mxu0 0
      %4799 = vmatpush1.bf16.msra.mxu0 0
      %4800 = vmatprep.subr.bf16.mxu0 0
      %4801 = vmatpush1.bf16.msra.mxu0 0
      %4802 = vmatprep.subr.bf16.mxu0 0
      %4803 = vmatpush1.bf16.msra.mxu0 0
      %4804 = vmatprep.subr.bf16.mxu0 0
      %4805 = vmatpush1.bf16.msra.mxu0 0
      %4806 = vmatprep.subr.bf16.mxu0 0
      %4807 = vmatpush1.bf16.msra.mxu0 0
      %4808 = vmatprep.subr.bf16.mxu0 0
      %4809 = vmatpush1.bf16.msra.mxu0 0
      %4810 = vmatprep.subr.bf16.mxu0 0
      %4811 = vmatpush1.bf16.msra.mxu0 0
      %4812 = vmatprep.subr.bf16.mxu0 0
      %4813 = vmatpush1.bf16.msra.mxu0 0
      %4814 = vmatprep.subr.bf16.mxu0 0
      %4815 = vmatpush1.bf16.msra.mxu0 0
      %4816 = vmatprep.subr.bf16.mxu0 0
      %4817 = vmatpush1.bf16.msra.mxu0 0
      %4818 = vmatprep.mubr.bf16.mxu0 0
      %4819 = vmatmul.mubr.bf16.gmra.mrb[0].mxu0 %v4784
      %v4820 = vpop.f32.mrb[0].mxu0
      %v4821 = vadd.f32 0.0, %v4820
      %v4822 = vpop.f32.mrb[0].mxu0
      %v4823 = vpop.f32.mrb[0].mxu0
      %v4824 = vadd.f32 0.0, %v4823
      %v4825 = vpop.f32.mrb[0].mxu0
      %4826 = vdwg.mxu0
      %4827 = vrot.lane.b32.xlu0 %v4581, 120
      %v4828 = vpop.permute.xlu0 %4827
      %4829 = vrot.lane.b32.xlu0 %v4581, 88
      %v4830 = vpop.permute.xlu0 %4829
      %v4832 = vsel %vm1367, %v4828, 0
      %v4835 = vsel %vm1367, %v4830, 0
      %4837 = vmatprep.subr.bf16.mxu0 0
      %4838 = vmatpush1.bf16.xpose.msra.mxu0 %v4835
      %4839 = vmatprep.subr.bf16.mxu0 0
      %4840 = vmatpush1.bf16.xpose.msra.mxu0 0
      %4841 = vmatprep.subr.bf16.mxu0 0
      %4842 = vmatpush1.bf16.xpose.msra.mxu0 0
      %4843 = vmatprep.subr.bf16.mxu0 0
      %4844 = vmatpush1.bf16.xpose.msra.mxu0 0
      %4845 = vmatprep.subr.bf16.mxu0 0
      %4846 = vmatpush1.bf16.xpose.msra.mxu0 0
      %4847 = vmatprep.subr.bf16.mxu0 0
      %4848 = vmatpush1.bf16.xpose.msra.mxu0 0
      %4849 = vmatprep.subr.bf16.mxu0 0
      %4850 = vmatpush1.bf16.xpose.msra.mxu0 0
      %4851 = vmatprep.subr.bf16.mxu0 0
      %4852 = vmatpush1.bf16.xpose.msra.mxu0 0
      %4853 = vmatprep.subr.bf16.mxu0 0
      %4854 = vmatpush1.bf16.xpose.msra.mxu0 0
      %4855 = vmatprep.subr.bf16.mxu0 0
      %4856 = vmatpush1.bf16.xpose.msra.mxu0 0
      %4857 = vmatprep.subr.bf16.mxu0 0
      %4858 = vmatpush1.bf16.xpose.msra.mxu0 0
      %4859 = vmatprep.subr.bf16.mxu0 0
      %4860 = vmatpush1.bf16.xpose.msra.mxu0 0
      %4861 = vmatprep.subr.bf16.mxu0 0
      %4862 = vmatpush1.bf16.xpose.msra.mxu0 0
      %4863 = vmatprep.subr.bf16.mxu0 0
      %4864 = vmatpush1.bf16.xpose.msra.mxu0 0
      %4865 = vmatprep.subr.bf16.mxu0 0
      %4866 = vmatpush1.bf16.xpose.msra.mxu0 0
      %4867 = vmatprep.subr.bf16.mxu0 0
      %4868 = vmatpush1.bf16.xpose.msra.mxu0 0
      %4869 = vmatprep.mubr.bf16.mxu0 0
      %4870 = vmatmul.mubr.bf16.gmra.mrb[0].mxu0 %v4832
      %v4871 = vpop.f32.mrb[0].mxu0
      %v4872 = vadd.f32 0.0, %v4871
      %v4873 = vpop.f32.mrb[0].mxu0
      %v4874 = vpop.f32.mrb[0].mxu0
      %v4875 = vadd.f32 0.0, %v4874
      %v4876 = vpop.f32.mrb[0].mxu0
      %4877 = vdwg.mxu0
      %4878 = vrot.lane.b32.xlu0 %v4582, 120
      %v4879 = vpop.permute.xlu0 %4878
      %4880 = vrot.lane.b32.xlu0 %v4582, 88
      %v4881 = vpop.permute.xlu0 %4880
      %v4883 = vsel %vm1367, %v4879, 0
      %v4886 = vsel %vm1367, %v4881, 0
      %4888 = vmatprep.subr.bf16.mxu0 0
      %4889 = vmatpush1.bf16.xpose.msra.mxu0 %v4886
      %4890 = vmatprep.subr.bf16.mxu0 0
      %4891 = vmatpush1.bf16.xpose.msra.mxu0 0
      %4892 = vmatprep.subr.bf16.mxu0 0
      %4893 = vmatpush1.bf16.xpose.msra.mxu0 0
      %4894 = vmatprep.subr.bf16.mxu0 0
      %4895 = vmatpush1.bf16.xpose.msra.mxu0 0
      %4896 = vmatprep.subr.bf16.mxu0 0
      %4897 = vmatpush1.bf16.xpose.msra.mxu0 0
      %4898 = vmatprep.subr.bf16.mxu0 0
      %4899 = vmatpush1.bf16.xpose.msra.mxu0 0
      %4900 = vmatprep.subr.bf16.mxu0 0
      %4901 = vmatpush1.bf16.xpose.msra.mxu0 0
      %4902 = vmatprep.subr.bf16.mxu0 0
      %4903 = vmatpush1.bf16.xpose.msra.mxu0 0
      %4904 = vmatprep.subr.bf16.mxu0 0
      %4905 = vmatpush1.bf16.xpose.msra.mxu0 0
      %4906 = vmatprep.subr.bf16.mxu0 0
      %4907 = vmatpush1.bf16.xpose.msra.mxu0 0
      %4908 = vmatprep.subr.bf16.mxu0 0
      %4909 = vmatpush1.bf16.xpose.msra.mxu0 0
      %4910 = vmatprep.subr.bf16.mxu0 0
      %4911 = vmatpush1.bf16.xpose.msra.mxu0 0
      %4912 = vmatprep.subr.bf16.mxu0 0
      %4913 = vmatpush1.bf16.xpose.msra.mxu0 0
      %4914 = vmatprep.subr.bf16.mxu0 0
      %4915 = vmatpush1.bf16.xpose.msra.mxu0 0
      %4916 = vmatprep.subr.bf16.mxu0 0
      %4917 = vmatpush1.bf16.xpose.msra.mxu0 0
      %4918 = vmatprep.subr.bf16.mxu0 0
      %4919 = vmatpush1.bf16.xpose.msra.mxu0 0
      %4920 = vmatprep.mubr.bf16.mxu0 0
      %4921 = vmatmul.mubr.bf16.gmra.mrb[0].mxu0 %v4883
      %v4922 = vpop.f32.mrb[0].mxu0
      %v4923 = vadd.f32 0.0, %v4922
      %v4924 = vpop.f32.mrb[0].mxu0
      %v4925 = vpop.f32.mrb[0].mxu0
      %v4926 = vadd.f32 0.0, %v4925
      %v4927 = vpop.f32.mrb[0].mxu0
      %4928 = vdwg.mxu0
      %v4929 = vmul.f32 %v4872, 0.35355338
      %v4930 = vmul.f32 %v4875, 0.35355338
      %v4931 = vmul.f32 %v4923, 0.35355338
      %v4932 = vmul.f32 %v4926, 0.35355338
      %v4933 = vsel %vm1469, %v4929, -inf
      %4934 = vmax.xlane.f32.xlu0 %v4933
      %v4935 = vpop.xlane.xlu0 %4934
      %v4936 = vsel %vm1469, %v4930, -inf
      %4937 = vmax.xlane.f32.xlu0 %v4936
      %v4938 = vpop.xlane.xlu0 %4937
      %v4939 = vsel %vm1469, %v4931, -inf
      %4940 = vmax.xlane.f32.xlu0 %v4939
      %v4941 = vpop.xlane.xlu0 %4940
      %v4942 = vsel %vm1469, %v4932, -inf
      %4943 = vmax.xlane.f32.xlu0 %v4942
      %v4944 = vpop.xlane.xlu0 %4943
      %v4945 = vsub.f32 %v4929, %v4935
      %v4946 = vsub.f32 %v4930, %v4938
      %v4947 = vsub.f32 %v4931, %v4941
      %v4948 = vsub.f32 %v4932, %v4944
      %v4949 = vmul.f32 %v4945, 1.442695
      %v4950 = vpow.pop %v4949
      %v4951 = vmul.f32 %v4946, 1.442695
      %v4952 = vpow.pop %v4951
      %v4953 = vmul.f32 %v4947, 1.442695
      %v4954 = vpow.pop %v4953
      %v4955 = vmul.f32 %v4948, 1.442695
      %v4956 = vpow.pop %v4955
      %v4957 = vsel %vm1469, %v4950, 0.0
      %4958 = vadd.xlane.f32.xlu0 %v4957
      %v4959 = vpop.xlane.xlu0 %4958
      %v4960 = vsel %vm1469, %v4952, 0.0
      %4961 = vadd.xlane.f32.xlu0 %v4960
      %v4962 = vpop.xlane.xlu0 %4961
      %v4963 = vsel %vm1469, %v4954, 0.0
      %4964 = vadd.xlane.f32.xlu0 %v4963
      %v4965 = vpop.xlane.xlu0 %4964
      %v4966 = vsel %vm1469, %v4956, 0.0
      %4967 = vadd.xlane.f32.xlu0 %v4966
      %v4968 = vpop.xlane.xlu0 %4967
      %v4969 = vrcp.pop %v4959
      %v4970 = vrcp.pop %v4962
      %v4971 = vrcp.pop %v4965
      %v4972 = vrcp.pop %v4968
      %v4973 = vmul.f32 %v4950, %v4969
      %v4974 = vmul.f32 %v4952, %v4970
      %v4975 = vmul.f32 %v4954, %v4971
      %v4976 = vmul.f32 %v4956, %v4972
      %v4977 = vpack.c.bf16 %v4974, %v4973
      %v4978 = vpack.c.bf16 %v4976, %v4975
      %4979 = vrot.lane.b32.xlu0 %v4581, 56
      %v4980 = vpop.permute.xlu0 %4979
      %v4983 = vsel %vm1469, %v4977, 0
      %4985 = vmatprep.subr.bf16.mxu0 0
      %4986 = vmatpush1.bf16.msra.mxu0 %v4980
      %4987 = vmatprep.subr.bf16.mxu0 0
      %4988 = vmatpush1.bf16.msra.mxu0 0
      %4989 = vmatprep.subr.bf16.mxu0 0
      %4990 = vmatpush1.bf16.msra.mxu0 0
      %4991 = vmatprep.subr.bf16.mxu0 0
      %4992 = vmatpush1.bf16.msra.mxu0 0
      %4993 = vmatprep.subr.bf16.mxu0 0
      %4994 = vmatpush1.bf16.msra.mxu0 0
      %4995 = vmatprep.subr.bf16.mxu0 0
      %4996 = vmatpush1.bf16.msra.mxu0 0
      %4997 = vmatprep.subr.bf16.mxu0 0
      %4998 = vmatpush1.bf16.msra.mxu0 0
      %4999 = vmatprep.subr.bf16.mxu0 0
      %5000 = vmatpush1.bf16.msra.mxu0 0
      %5001 = vmatprep.subr.bf16.mxu0 0
      %5002 = vmatpush1.bf16.msra.mxu0 0
      %5003 = vmatprep.subr.bf16.mxu0 0
      %5004 = vmatpush1.bf16.msra.mxu0 0
      %5005 = vmatprep.subr.bf16.mxu0 0
      %5006 = vmatpush1.bf16.msra.mxu0 0
      %5007 = vmatprep.subr.bf16.mxu0 0
      %5008 = vmatpush1.bf16.msra.mxu0 0
      %5009 = vmatprep.subr.bf16.mxu0 0
      %5010 = vmatpush1.bf16.msra.mxu0 0
      %5011 = vmatprep.subr.bf16.mxu0 0
      %5012 = vmatpush1.bf16.msra.mxu0 0
      %5013 = vmatprep.subr.bf16.mxu0 0
      %5014 = vmatpush1.bf16.msra.mxu0 0
      %5015 = vmatprep.subr.bf16.mxu0 0
      %5016 = vmatpush1.bf16.msra.mxu0 0
      %5017 = vmatprep.mubr.bf16.mxu0 0
      %5018 = vmatmul.mubr.bf16.gmra.mrb[0].mxu0 %v4983
      %v5019 = vpop.f32.mrb[0].mxu0
      %v5020 = vadd.f32 0.0, %v5019
      %v5021 = vpop.f32.mrb[0].mxu0
      %v5022 = vpop.f32.mrb[0].mxu0
      %v5023 = vadd.f32 0.0, %v5022
      %v5024 = vpop.f32.mrb[0].mxu0
      %5025 = vdwg.mxu0
      %5026 = vrot.lane.b32.xlu0 %v4582, 56
      %v5027 = vpop.permute.xlu0 %5026
      %v5030 = vsel %vm1469, %v4978, 0
      %5032 = vmatprep.subr.bf16.mxu0 0
      %5033 = vmatpush1.bf16.msra.mxu0 %v5027
      %5034 = vmatprep.subr.bf16.mxu0 0
      %5035 = vmatpush1.bf16.msra.mxu0 0
      %5036 = vmatprep.subr.bf16.mxu0 0
      %5037 = vmatpush1.bf16.msra.mxu0 0
      %5038 = vmatprep.subr.bf16.mxu0 0
      %5039 = vmatpush1.bf16.msra.mxu0 0
      %5040 = vmatprep.subr.bf16.mxu0 0
      %5041 = vmatpush1.bf16.msra.mxu0 0
      %5042 = vmatprep.subr.bf16.mxu0 0
      %5043 = vmatpush1.bf16.msra.mxu0 0
      %5044 = vmatprep.subr.bf16.mxu0 0
      %5045 = vmatpush1.bf16.msra.mxu0 0
      %5046 = vmatprep.subr.bf16.mxu0 0
      %5047 = vmatpush1.bf16.msra.mxu0 0
      %5048 = vmatprep.subr.bf16.mxu0 0
      %5049 = vmatpush1.bf16.msra.mxu0 0
      %5050 = vmatprep.subr.bf16.mxu0 0
      %5051 = vmatpush1.bf16.msra.mxu0 0
      %5052 = vmatprep.subr.bf16.mxu0 0
      %5053 = vmatpush1.bf16.msra.mxu0 0
      %5054 = vmatprep.subr.bf16.mxu0 0
      %5055 = vmatpush1.bf16.msra.mxu0 0
      %5056 = vmatprep.subr.bf16.mxu0 0
      %5057 = vmatpush1.bf16.msra.mxu0 0
      %5058 = vmatprep.subr.bf16.mxu0 0
      %5059 = vmatpush1.bf16.msra.mxu0 0
      %5060 = vmatprep.subr.bf16.mxu0 0
      %5061 = vmatpush1.bf16.msra.mxu0 0
      %5062 = vmatprep.subr.bf16.mxu0 0
      %5063 = vmatpush1.bf16.msra.mxu0 0
      %5064 = vmatprep.mubr.bf16.mxu0 0
      %5065 = vmatmul.mubr.bf16.gmra.mrb[0].mxu0 %v5030
      %v5066 = vpop.f32.mrb[0].mxu0
      %v5067 = vadd.f32 0.0, %v5066
      %v5068 = vpop.f32.mrb[0].mxu0
      %v5069 = vpop.f32.mrb[0].mxu0
      %v5070 = vadd.f32 0.0, %v5069
      %v5071 = vpop.f32.mrb[0].mxu0
      %5072 = vdwg.mxu0
      %5073 = vrot.lane.b32.xlu0 %v4581, 112
      %v5074 = vpop.permute.xlu0 %5073
      %5075 = vrot.lane.b32.xlu0 %v4581, 80
      %v5076 = vpop.permute.xlu0 %5075
      %v5078 = vsel %vm1367, %v5074, 0
      %v5081 = vsel %vm1367, %v5076, 0
      %5083 = vmatprep.subr.bf16.mxu0 0
      %5084 = vmatpush1.bf16.xpose.msra.mxu0 %v5081
      %5085 = vmatprep.subr.bf16.mxu0 0
      %5086 = vmatpush1.bf16.xpose.msra.mxu0 0
      %5087 = vmatprep.subr.bf16.mxu0 0
      %5088 = vmatpush1.bf16.xpose.msra.mxu0 0
      %5089 = vmatprep.subr.bf16.mxu0 0
      %5090 = vmatpush1.bf16.xpose.msra.mxu0 0
      %5091 = vmatprep.subr.bf16.mxu0 0
      %5092 = vmatpush1.bf16.xpose.msra.mxu0 0
      %5093 = vmatprep.subr.bf16.mxu0 0
      %5094 = vmatpush1.bf16.xpose.msra.mxu0 0
      %5095 = vmatprep.subr.bf16.mxu0 0
      %5096 = vmatpush1.bf16.xpose.msra.mxu0 0
      %5097 = vmatprep.subr.bf16.mxu0 0
      %5098 = vmatpush1.bf16.xpose.msra.mxu0 0
      %5099 = vmatprep.subr.bf16.mxu0 0
      %5100 = vmatpush1.bf16.xpose.msra.mxu0 0
      %5101 = vmatprep.subr.bf16.mxu0 0
      %5102 = vmatpush1.bf16.xpose.msra.mxu0 0
      %5103 = vmatprep.subr.bf16.mxu0 0
      %5104 = vmatpush1.bf16.xpose.msra.mxu0 0
      %5105 = vmatprep.subr.bf16.mxu0 0
      %5106 = vmatpush1.bf16.xpose.msra.mxu0 0
      %5107 = vmatprep.subr.bf16.mxu0 0
      %5108 = vmatpush1.bf16.xpose.msra.mxu0 0
      %5109 = vmatprep.subr.bf16.mxu0 0
      %5110 = vmatpush1.bf16.xpose.msra.mxu0 0
      %5111 = vmatprep.subr.bf16.mxu0 0
      %5112 = vmatpush1.bf16.xpose.msra.mxu0 0
      %5113 = vmatprep.subr.bf16.mxu0 0
      %5114 = vmatpush1.bf16.xpose.msra.mxu0 0
      %5115 = vmatprep.mubr.bf16.mxu0 0
      %5116 = vmatmul.mubr.bf16.gmra.mrb[0].mxu0 %v5078
      %v5117 = vpop.f32.mrb[0].mxu0
      %v5118 = vadd.f32 0.0, %v5117
      %v5119 = vpop.f32.mrb[0].mxu0
      %v5120 = vpop.f32.mrb[0].mxu0
      %v5121 = vadd.f32 0.0, %v5120
      %v5122 = vpop.f32.mrb[0].mxu0
      %5123 = vdwg.mxu0
      %5124 = vrot.lane.b32.xlu0 %v4582, 112
      %v5125 = vpop.permute.xlu0 %5124
      %5126 = vrot.lane.b32.xlu0 %v4582, 80
      %v5127 = vpop.permute.xlu0 %5126
      %v5129 = vsel %vm1367, %v5125, 0
      %v5132 = vsel %vm1367, %v5127, 0
      %5134 = vmatprep.subr.bf16.mxu0 0
      %5135 = vmatpush1.bf16.xpose.msra.mxu0 %v5132
      %5136 = vmatprep.subr.bf16.mxu0 0
      %5137 = vmatpush1.bf16.xpose.msra.mxu0 0
      %5138 = vmatprep.subr.bf16.mxu0 0
      %5139 = vmatpush1.bf16.xpose.msra.mxu0 0
      %5140 = vmatprep.subr.bf16.mxu0 0
      %5141 = vmatpush1.bf16.xpose.msra.mxu0 0
      %5142 = vmatprep.subr.bf16.mxu0 0
      %5143 = vmatpush1.bf16.xpose.msra.mxu0 0
      %5144 = vmatprep.subr.bf16.mxu0 0
      %5145 = vmatpush1.bf16.xpose.msra.mxu0 0
      %5146 = vmatprep.subr.bf16.mxu0 0
      %5147 = vmatpush1.bf16.xpose.msra.mxu0 0
      %5148 = vmatprep.subr.bf16.mxu0 0
      %5149 = vmatpush1.bf16.xpose.msra.mxu0 0
      %5150 = vmatprep.subr.bf16.mxu0 0
      %5151 = vmatpush1.bf16.xpose.msra.mxu0 0
      %5152 = vmatprep.subr.bf16.mxu0 0
      %5153 = vmatpush1.bf16.xpose.msra.mxu0 0
      %5154 = vmatprep.subr.bf16.mxu0 0
      %5155 = vmatpush1.bf16.xpose.msra.mxu0 0
      %5156 = vmatprep.subr.bf16.mxu0 0
      %5157 = vmatpush1.bf16.xpose.msra.mxu0 0
      %5158 = vmatprep.subr.bf16.mxu0 0
      %5159 = vmatpush1.bf16.xpose.msra.mxu0 0
      %5160 = vmatprep.subr.bf16.mxu0 0
      %5161 = vmatpush1.bf16.xpose.msra.mxu0 0
      %5162 = vmatprep.subr.bf16.mxu0 0
      %5163 = vmatpush1.bf16.xpose.msra.mxu0 0
      %5164 = vmatprep.subr.bf16.mxu0 0
      %5165 = vmatpush1.bf16.xpose.msra.mxu0 0
      %5166 = vmatprep.mubr.bf16.mxu0 0
      %5167 = vmatmul.mubr.bf16.gmra.mrb[0].mxu0 %v5129
      %v5168 = vpop.f32.mrb[0].mxu0
      %v5169 = vadd.f32 0.0, %v5168
      %v5170 = vpop.f32.mrb[0].mxu0
      %v5171 = vpop.f32.mrb[0].mxu0
      %v5172 = vadd.f32 0.0, %v5171
      %v5173 = vpop.f32.mrb[0].mxu0
      %5174 = vdwg.mxu0
      %v5175 = vmul.f32 %v5118, 0.35355338
      %v5176 = vmul.f32 %v5121, 0.35355338
      %v5177 = vmul.f32 %v5169, 0.35355338
      %v5178 = vmul.f32 %v5172, 0.35355338
      %v5179 = vsel %vm1469, %v5175, -inf
      %5180 = vmax.xlane.f32.xlu0 %v5179
      %v5181 = vpop.xlane.xlu0 %5180
      %v5182 = vsel %vm1469, %v5176, -inf
      %5183 = vmax.xlane.f32.xlu0 %v5182
      %v5184 = vpop.xlane.xlu0 %5183
      %v5185 = vsel %vm1469, %v5177, -inf
      %5186 = vmax.xlane.f32.xlu0 %v5185
      %v5187 = vpop.xlane.xlu0 %5186
      %v5188 = vsel %vm1469, %v5178, -inf
      %5189 = vmax.xlane.f32.xlu0 %v5188
      %v5190 = vpop.xlane.xlu0 %5189
      %v5191 = vsub.f32 %v5175, %v5181
      %v5192 = vsub.f32 %v5176, %v5184
      %v5193 = vsub.f32 %v5177, %v5187
      %v5194 = vsub.f32 %v5178, %v5190
      %v5195 = vmul.f32 %v5191, 1.442695
      %v5196 = vpow.pop %v5195
      %v5197 = vmul.f32 %v5192, 1.442695
      %v5198 = vpow.pop %v5197
      %v5199 = vmul.f32 %v5193, 1.442695
      %v5200 = vpow.pop %v5199
      %v5201 = vmul.f32 %v5194, 1.442695
      %v5202 = vpow.pop %v5201
      %v5203 = vsel %vm1469, %v5196, 0.0
      %5204 = vadd.xlane.f32.xlu0 %v5203
      %v5205 = vpop.xlane.xlu0 %5204
      %v5206 = vsel %vm1469, %v5198, 0.0
      %5207 = vadd.xlane.f32.xlu0 %v5206
      %v5208 = vpop.xlane.xlu0 %5207
      %v5209 = vsel %vm1469, %v5200, 0.0
      %5210 = vadd.xlane.f32.xlu0 %v5209
      %v5211 = vpop.xlane.xlu0 %5210
      %v5212 = vsel %vm1469, %v5202, 0.0
      %5213 = vadd.xlane.f32.xlu0 %v5212
      %v5214 = vpop.xlane.xlu0 %5213
      %v5215 = vrcp.pop %v5205
      %v5216 = vrcp.pop %v5208
      %v5217 = vrcp.pop %v5211
      %v5218 = vrcp.pop %v5214
      %v5219 = vmul.f32 %v5196, %v5215
      %v5220 = vmul.f32 %v5198, %v5216
      %v5221 = vmul.f32 %v5200, %v5217
      %v5222 = vmul.f32 %v5202, %v5218
      %v5223 = vpack.c.bf16 %v5220, %v5219
      %v5224 = vpack.c.bf16 %v5222, %v5221
      %5225 = vrot.lane.b32.xlu0 %v4581, 48
      %v5226 = vpop.permute.xlu0 %5225
      %v5229 = vsel %vm1469, %v5223, 0
      %5231 = vmatprep.subr.bf16.mxu0 0
      %5232 = vmatpush1.bf16.msra.mxu0 %v5226
      %5233 = vmatprep.subr.bf16.mxu0 0
      %5234 = vmatpush1.bf16.msra.mxu0 0
      %5235 = vmatprep.subr.bf16.mxu0 0
      %5236 = vmatpush1.bf16.msra.mxu0 0
      %5237 = vmatprep.subr.bf16.mxu0 0
      %5238 = vmatpush1.bf16.msra.mxu0 0
      %5239 = vmatprep.subr.bf16.mxu0 0
      %5240 = vmatpush1.bf16.msra.mxu0 0
      %5241 = vmatprep.subr.bf16.mxu0 0
      %5242 = vmatpush1.bf16.msra.mxu0 0
      %5243 = vmatprep.subr.bf16.mxu0 0
      %5244 = vmatpush1.bf16.msra.mxu0 0
      %5245 = vmatprep.subr.bf16.mxu0 0
      %5246 = vmatpush1.bf16.msra.mxu0 0
      %5247 = vmatprep.subr.bf16.mxu0 0
      %5248 = vmatpush1.bf16.msra.mxu0 0
      %5249 = vmatprep.subr.bf16.mxu0 0
      %5250 = vmatpush1.bf16.msra.mxu0 0
      %5251 = vmatprep.subr.bf16.mxu0 0
      %5252 = vmatpush1.bf16.msra.mxu0 0
      %5253 = vmatprep.subr.bf16.mxu0 0
      %5254 = vmatpush1.bf16.msra.mxu0 0
      %5255 = vmatprep.subr.bf16.mxu0 0
      %5256 = vmatpush1.bf16.msra.mxu0 0
      %5257 = vmatprep.subr.bf16.mxu0 0
      %5258 = vmatpush1.bf16.msra.mxu0 0
      %5259 = vmatprep.subr.bf16.mxu0 0
      %5260 = vmatpush1.bf16.msra.mxu0 0
      %5261 = vmatprep.subr.bf16.mxu0 0
      %5262 = vmatpush1.bf16.msra.mxu0 0
      %5263 = vmatprep.mubr.bf16.mxu0 0
      %5264 = vmatmul.mubr.bf16.gmra.mrb[0].mxu0 %v5229
      %v5265 = vpop.f32.mrb[0].mxu0
      %v5266 = vadd.f32 0.0, %v5265
      %v5267 = vpop.f32.mrb[0].mxu0
      %v5268 = vpop.f32.mrb[0].mxu0
      %v5269 = vadd.f32 0.0, %v5268
      %v5270 = vpop.f32.mrb[0].mxu0
      %5271 = vdwg.mxu0
      %5272 = vrot.lane.b32.xlu0 %v4582, 48
      %v5273 = vpop.permute.xlu0 %5272
      %v5276 = vsel %vm1469, %v5224, 0
      %5278 = vmatprep.subr.bf16.mxu0 0
      %5279 = vmatpush1.bf16.msra.mxu0 %v5273
      %5280 = vmatprep.subr.bf16.mxu0 0
      %5281 = vmatpush1.bf16.msra.mxu0 0
      %5282 = vmatprep.subr.bf16.mxu0 0
      %5283 = vmatpush1.bf16.msra.mxu0 0
      %5284 = vmatprep.subr.bf16.mxu0 0
      %5285 = vmatpush1.bf16.msra.mxu0 0
      %5286 = vmatprep.subr.bf16.mxu0 0
      %5287 = vmatpush1.bf16.msra.mxu0 0
      %5288 = vmatprep.subr.bf16.mxu0 0
      %5289 = vmatpush1.bf16.msra.mxu0 0
      %5290 = vmatprep.subr.bf16.mxu0 0
      %5291 = vmatpush1.bf16.msra.mxu0 0
      %5292 = vmatprep.subr.bf16.mxu0 0
      %5293 = vmatpush1.bf16.msra.mxu0 0
      %5294 = vmatprep.subr.bf16.mxu0 0
      %5295 = vmatpush1.bf16.msra.mxu0 0
      %5296 = vmatprep.subr.bf16.mxu0 0
      %5297 = vmatpush1.bf16.msra.mxu0 0
      %5298 = vmatprep.subr.bf16.mxu0 0
      %5299 = vmatpush1.bf16.msra.mxu0 0
      %5300 = vmatprep.subr.bf16.mxu0 0
      %5301 = vmatpush1.bf16.msra.mxu0 0
      %5302 = vmatprep.subr.bf16.mxu0 0
      %5303 = vmatpush1.bf16.msra.mxu0 0
      %5304 = vmatprep.subr.bf16.mxu0 0
      %5305 = vmatpush1.bf16.msra.mxu0 0
      %5306 = vmatprep.subr.bf16.mxu0 0
      %5307 = vmatpush1.bf16.msra.mxu0 0
      %5308 = vmatprep.subr.bf16.mxu0 0
      %5309 = vmatpush1.bf16.msra.mxu0 0
      %5310 = vmatprep.mubr.bf16.mxu0 0
      %5311 = vmatmul.mubr.bf16.gmra.mrb[0].mxu0 %v5276
      %v5312 = vpop.f32.mrb[0].mxu0
      %v5313 = vadd.f32 0.0, %v5312
      %v5314 = vpop.f32.mrb[0].mxu0
      %v5315 = vpop.f32.mrb[0].mxu0
      %v5316 = vadd.f32 0.0, %v5315
      %v5317 = vpop.f32.mrb[0].mxu0
      %5318 = vdwg.mxu0
      %5319 = vrot.lane.b32.xlu0 %v4581, 104
      %v5320 = vpop.permute.xlu0 %5319
      %5321 = vrot.lane.b32.xlu0 %v4581, 72
      %v5322 = vpop.permute.xlu0 %5321
      %v5324 = vsel %vm1367, %v5320, 0
      %v5327 = vsel %vm1367, %v5322, 0
      %5329 = vmatprep.subr.bf16.mxu0 0
      %5330 = vmatpush1.bf16.xpose.msra.mxu0 %v5327
      %5331 = vmatprep.subr.bf16.mxu0 0
      %5332 = vmatpush1.bf16.xpose.msra.mxu0 0
      %5333 = vmatprep.subr.bf16.mxu0 0
      %5334 = vmatpush1.bf16.xpose.msra.mxu0 0
      %5335 = vmatprep.subr.bf16.mxu0 0
      %5336 = vmatpush1.bf16.xpose.msra.mxu0 0
      %5337 = vmatprep.subr.bf16.mxu0 0
      %5338 = vmatpush1.bf16.xpose.msra.mxu0 0
      %5339 = vmatprep.subr.bf16.mxu0 0
      %5340 = vmatpush1.bf16.xpose.msra.mxu0 0
      %5341 = vmatprep.subr.bf16.mxu0 0
      %5342 = vmatpush1.bf16.xpose.msra.mxu0 0
      %5343 = vmatprep.subr.bf16.mxu0 0
      %5344 = vmatpush1.bf16.xpose.msra.mxu0 0
      %5345 = vmatprep.subr.bf16.mxu0 0
      %5346 = vmatpush1.bf16.xpose.msra.mxu0 0
      %5347 = vmatprep.subr.bf16.mxu0 0
      %5348 = vmatpush1.bf16.xpose.msra.mxu0 0
      %5349 = vmatprep.subr.bf16.mxu0 0
      %5350 = vmatpush1.bf16.xpose.msra.mxu0 0
      %5351 = vmatprep.subr.bf16.mxu0 0
      %5352 = vmatpush1.bf16.xpose.msra.mxu0 0
      %5353 = vmatprep.subr.bf16.mxu0 0
      %5354 = vmatpush1.bf16.xpose.msra.mxu0 0
      %5355 = vmatprep.subr.bf16.mxu0 0
      %5356 = vmatpush1.bf16.xpose.msra.mxu0 0
      %5357 = vmatprep.subr.bf16.mxu0 0
      %5358 = vmatpush1.bf16.xpose.msra.mxu0 0
      %5359 = vmatprep.subr.bf16.mxu0 0
      %5360 = vmatpush1.bf16.xpose.msra.mxu0 0
      %5361 = vmatprep.mubr.bf16.mxu0 0
      %5362 = vmatmul.mubr.bf16.gmra.mrb[0].mxu0 %v5324
      %v5363 = vpop.f32.mrb[0].mxu0
      %v5364 = vadd.f32 0.0, %v5363
      %v5365 = vpop.f32.mrb[0].mxu0
      %v5366 = vpop.f32.mrb[0].mxu0
      %v5367 = vadd.f32 0.0, %v5366
      %v5368 = vpop.f32.mrb[0].mxu0
      %5369 = vdwg.mxu0
      %5370 = vrot.lane.b32.xlu0 %v4582, 104
      %v5371 = vpop.permute.xlu0 %5370
      %5372 = vrot.lane.b32.xlu0 %v4582, 72
      %v5373 = vpop.permute.xlu0 %5372
      %v5375 = vsel %vm1367, %v5371, 0
      %v5378 = vsel %vm1367, %v5373, 0
      %5380 = vmatprep.subr.bf16.mxu0 0
      %5381 = vmatpush1.bf16.xpose.msra.mxu0 %v5378
      %5382 = vmatprep.subr.bf16.mxu0 0
      %5383 = vmatpush1.bf16.xpose.msra.mxu0 0
      %5384 = vmatprep.subr.bf16.mxu0 0
      %5385 = vmatpush1.bf16.xpose.msra.mxu0 0
      %5386 = vmatprep.subr.bf16.mxu0 0
      %5387 = vmatpush1.bf16.xpose.msra.mxu0 0
      %5388 = vmatprep.subr.bf16.mxu0 0
      %5389 = vmatpush1.bf16.xpose.msra.mxu0 0
      %5390 = vmatprep.subr.bf16.mxu0 0
      %5391 = vmatpush1.bf16.xpose.msra.mxu0 0
      %5392 = vmatprep.subr.bf16.mxu0 0
      %5393 = vmatpush1.bf16.xpose.msra.mxu0 0
      %5394 = vmatprep.subr.bf16.mxu0 0
      %5395 = vmatpush1.bf16.xpose.msra.mxu0 0
      %5396 = vmatprep.subr.bf16.mxu0 0
      %5397 = vmatpush1.bf16.xpose.msra.mxu0 0
      %5398 = vmatprep.subr.bf16.mxu0 0
      %5399 = vmatpush1.bf16.xpose.msra.mxu0 0
      %5400 = vmatprep.subr.bf16.mxu0 0
      %5401 = vmatpush1.bf16.xpose.msra.mxu0 0
      %5402 = vmatprep.subr.bf16.mxu0 0
      %5403 = vmatpush1.bf16.xpose.msra.mxu0 0
      %5404 = vmatprep.subr.bf16.mxu0 0
      %5405 = vmatpush1.bf16.xpose.msra.mxu0 0
      %5406 = vmatprep.subr.bf16.mxu0 0
      %5407 = vmatpush1.bf16.xpose.msra.mxu0 0
      %5408 = vmatprep.subr.bf16.mxu0 0
      %5409 = vmatpush1.bf16.xpose.msra.mxu0 0
      %5410 = vmatprep.subr.bf16.mxu0 0
      %5411 = vmatpush1.bf16.xpose.msra.mxu0 0
      %5412 = vmatprep.mubr.bf16.mxu0 0
      %5413 = vmatmul.mubr.bf16.gmra.mrb[0].mxu0 %v5375
      %v5414 = vpop.f32.mrb[0].mxu0
      %v5415 = vadd.f32 0.0, %v5414
      %v5416 = vpop.f32.mrb[0].mxu0
      %v5417 = vpop.f32.mrb[0].mxu0
      %v5418 = vadd.f32 0.0, %v5417
      %v5419 = vpop.f32.mrb[0].mxu0
      %5420 = vdwg.mxu0
      %v5421 = vmul.f32 %v5364, 0.35355338
      %v5422 = vmul.f32 %v5367, 0.35355338
      %v5423 = vmul.f32 %v5415, 0.35355338
      %v5424 = vmul.f32 %v5418, 0.35355338
      %v5425 = vsel %vm1469, %v5421, -inf
      %5426 = vmax.xlane.f32.xlu0 %v5425
      %v5427 = vpop.xlane.xlu0 %5426
      %v5428 = vsel %vm1469, %v5422, -inf
      %5429 = vmax.xlane.f32.xlu0 %v5428
      %v5430 = vpop.xlane.xlu0 %5429
      %v5431 = vsel %vm1469, %v5423, -inf
      %5432 = vmax.xlane.f32.xlu0 %v5431
      %v5433 = vpop.xlane.xlu0 %5432
      %v5434 = vsel %vm1469, %v5424, -inf
      %5435 = vmax.xlane.f32.xlu0 %v5434
      %v5436 = vpop.xlane.xlu0 %5435
      %v5437 = vsub.f32 %v5421, %v5427
      %v5438 = vsub.f32 %v5422, %v5430
      %v5439 = vsub.f32 %v5423, %v5433
      %v5440 = vsub.f32 %v5424, %v5436
      %v5441 = vmul.f32 %v5437, 1.442695
      %v5442 = vpow.pop %v5441
      %v5443 = vmul.f32 %v5438, 1.442695
      %v5444 = vpow.pop %v5443
      %v5445 = vmul.f32 %v5439, 1.442695
      %v5446 = vpow.pop %v5445
      %v5447 = vmul.f32 %v5440, 1.442695
      %v5448 = vpow.pop %v5447
      %v5449 = vsel %vm1469, %v5442, 0.0
      %5450 = vadd.xlane.f32.xlu0 %v5449
      %v5451 = vpop.xlane.xlu0 %5450
      %v5452 = vsel %vm1469, %v5444, 0.0
      %5453 = vadd.xlane.f32.xlu0 %v5452
      %v5454 = vpop.xlane.xlu0 %5453
      %v5455 = vsel %vm1469, %v5446, 0.0
      %5456 = vadd.xlane.f32.xlu0 %v5455
      %v5457 = vpop.xlane.xlu0 %5456
      %v5458 = vsel %vm1469, %v5448, 0.0
      %5459 = vadd.xlane.f32.xlu0 %v5458
      %v5460 = vpop.xlane.xlu0 %5459
      %v5461 = vrcp.pop %v5451
      %v5462 = vrcp.pop %v5454
      %v5463 = vrcp.pop %v5457
      %v5464 = vrcp.pop %v5460
      %v5465 = vmul.f32 %v5442, %v5461
      %v5466 = vmul.f32 %v5444, %v5462
      %v5467 = vmul.f32 %v5446, %v5463
      %v5468 = vmul.f32 %v5448, %v5464
      %v5469 = vpack.c.bf16 %v5466, %v5465
      %v5470 = vpack.c.bf16 %v5468, %v5467
      %5471 = vrot.lane.b32.xlu0 %v4581, 40
      %v5472 = vpop.permute.xlu0 %5471
      %v5475 = vsel %vm1469, %v5469, 0
      %5477 = vmatprep.subr.bf16.mxu0 0
      %5478 = vmatpush1.bf16.msra.mxu0 %v5472
      %5479 = vmatprep.subr.bf16.mxu0 0
      %5480 = vmatpush1.bf16.msra.mxu0 0
      %5481 = vmatprep.subr.bf16.mxu0 0
      %5482 = vmatpush1.bf16.msra.mxu0 0
      %5483 = vmatprep.subr.bf16.mxu0 0
      %5484 = vmatpush1.bf16.msra.mxu0 0
      %5485 = vmatprep.subr.bf16.mxu0 0
      %5486 = vmatpush1.bf16.msra.mxu0 0
      %5487 = vmatprep.subr.bf16.mxu0 0
      %5488 = vmatpush1.bf16.msra.mxu0 0
      %5489 = vmatprep.subr.bf16.mxu0 0
      %5490 = vmatpush1.bf16.msra.mxu0 0
      %5491 = vmatprep.subr.bf16.mxu0 0
      %5492 = vmatpush1.bf16.msra.mxu0 0
      %5493 = vmatprep.subr.bf16.mxu0 0
      %5494 = vmatpush1.bf16.msra.mxu0 0
      %5495 = vmatprep.subr.bf16.mxu0 0
      %5496 = vmatpush1.bf16.msra.mxu0 0
      %5497 = vmatprep.subr.bf16.mxu0 0
      %5498 = vmatpush1.bf16.msra.mxu0 0
      %5499 = vmatprep.subr.bf16.mxu0 0
      %5500 = vmatpush1.bf16.msra.mxu0 0
      %5501 = vmatprep.subr.bf16.mxu0 0
      %5502 = vmatpush1.bf16.msra.mxu0 0
      %5503 = vmatprep.subr.bf16.mxu0 0
      %5504 = vmatpush1.bf16.msra.mxu0 0
      %5505 = vmatprep.subr.bf16.mxu0 0
      %5506 = vmatpush1.bf16.msra.mxu0 0
      %5507 = vmatprep.subr.bf16.mxu0 0
      %5508 = vmatpush1.bf16.msra.mxu0 0
      %5509 = vmatprep.mubr.bf16.mxu0 0
      %5510 = vmatmul.mubr.bf16.gmra.mrb[0].mxu0 %v5475
      %v5511 = vpop.f32.mrb[0].mxu0
      %v5512 = vadd.f32 0.0, %v5511
      %v5513 = vpop.f32.mrb[0].mxu0
      %v5514 = vpop.f32.mrb[0].mxu0
      %v5515 = vadd.f32 0.0, %v5514
      %v5516 = vpop.f32.mrb[0].mxu0
      %5517 = vdwg.mxu0
      %5518 = vrot.lane.b32.xlu0 %v4582, 40
      %v5519 = vpop.permute.xlu0 %5518
      %v5522 = vsel %vm1469, %v5470, 0
      %5524 = vmatprep.subr.bf16.mxu0 0
      %5525 = vmatpush1.bf16.msra.mxu0 %v5519
      %5526 = vmatprep.subr.bf16.mxu0 0
      %5527 = vmatpush1.bf16.msra.mxu0 0
      %5528 = vmatprep.subr.bf16.mxu0 0
      %5529 = vmatpush1.bf16.msra.mxu0 0
      %5530 = vmatprep.subr.bf16.mxu0 0
      %5531 = vmatpush1.bf16.msra.mxu0 0
      %5532 = vmatprep.subr.bf16.mxu0 0
      %5533 = vmatpush1.bf16.msra.mxu0 0
      %5534 = vmatprep.subr.bf16.mxu0 0
      %5535 = vmatpush1.bf16.msra.mxu0 0
      %5536 = vmatprep.subr.bf16.mxu0 0
      %5537 = vmatpush1.bf16.msra.mxu0 0
      %5538 = vmatprep.subr.bf16.mxu0 0
      %5539 = vmatpush1.bf16.msra.mxu0 0
      %5540 = vmatprep.subr.bf16.mxu0 0
      %5541 = vmatpush1.bf16.msra.mxu0 0
      %5542 = vmatprep.subr.bf16.mxu0 0
      %5543 = vmatpush1.bf16.msra.mxu0 0
      %5544 = vmatprep.subr.bf16.mxu0 0
      %5545 = vmatpush1.bf16.msra.mxu0 0
      %5546 = vmatprep.subr.bf16.mxu0 0
      %5547 = vmatpush1.bf16.msra.mxu0 0
      %5548 = vmatprep.subr.bf16.mxu0 0
      %5549 = vmatpush1.bf16.msra.mxu0 0
      %5550 = vmatprep.subr.bf16.mxu0 0
      %5551 = vmatpush1.bf16.msra.mxu0 0
      %5552 = vmatprep.subr.bf16.mxu0 0
      %5553 = vmatpush1.bf16.msra.mxu0 0
      %5554 = vmatprep.subr.bf16.mxu0 0
      %5555 = vmatpush1.bf16.msra.mxu0 0
      %5556 = vmatprep.mubr.bf16.mxu0 0
      %5557 = vmatmul.mubr.bf16.gmra.mrb[0].mxu0 %v5522
      %v5558 = vpop.f32.mrb[0].mxu0
      %v5559 = vadd.f32 0.0, %v5558
      %v5560 = vpop.f32.mrb[0].mxu0
      %v5561 = vpop.f32.mrb[0].mxu0
      %v5562 = vadd.f32 0.0, %v5561
      %v5563 = vpop.f32.mrb[0].mxu0
      %5564 = vdwg.mxu0
      %5569 = vrot.lane.b32.xlu0 %v5020, 8
      %v5570 = vpop.permute.xlu0 %5569
      %5571 = vrot.lane.b32.xlu0 %v5023, 8
      %v5572 = vpop.permute.xlu0 %5571
      %5573 = vrot.lane.b32.xlu0 %v5067, 8
      %v5574 = vpop.permute.xlu0 %5573
      %5575 = vrot.lane.b32.xlu0 %v5070, 8
      %v5576 = vpop.permute.xlu0 %5575
      %5585 = vrot.lane.b32.xlu0 %v5266, 16
      %v5586 = vpop.permute.xlu0 %5585
      %5587 = vrot.lane.b32.xlu0 %v5269, 16
      %v5588 = vpop.permute.xlu0 %5587
      %5589 = vrot.lane.b32.xlu0 %v5313, 16
      %v5590 = vpop.permute.xlu0 %5589
      %5591 = vrot.lane.b32.xlu0 %v5316, 16
      %v5592 = vpop.permute.xlu0 %5591
      %5601 = vrot.lane.b32.xlu0 %v5512, 24
      %v5602 = vpop.permute.xlu0 %5601
      %5603 = vrot.lane.b32.xlu0 %v5515, 24
      %v5604 = vpop.permute.xlu0 %5603
      %5605 = vrot.lane.b32.xlu0 %v5559, 24
      %v5606 = vpop.permute.xlu0 %5605
      %5607 = vrot.lane.b32.xlu0 %v5562, 24
      %v5608 = vpop.permute.xlu0 %5607
      %v5613 = vsel %vm1367, %v4774, %v5570
      %v5614 = vsel %vm1367, %v4777, %v5572
      %v5615 = vsel %vm1367, %v4821, %v5574
      %v5616 = vsel %vm1367, %v4824, %v5576
      %v5617 = vsel %vm1469, %v5613, %v5586
      %v5618 = vsel %vm1469, %v5614, %v5588
      %v5619 = vsel %vm1469, %v5615, %v5590
      %v5620 = vsel %vm1469, %v5616, %v5592
      %v5621 = vsel %vm2404, %v5617, %v5602
      %v5622 = vsel %vm2404, %v5618, %v5604
      %v5623 = vsel %vm2404, %v5619, %v5606
      %v5624 = vsel %vm2404, %v5620, %v5608
      %v5625 = vpack.c.bf16 %v5622, %v5621
      %v5626 = vpack.c.bf16 %v5624, %v5623
      %s5627 = scalar_lea.vmem %s8, 32
      %v5628 = vld [vmem:[%s5627] sm:$0xf]
      %v5629 = vld [vmem:[%s5627 + $0x4] sm:$0xf]
      %v5630 = vld [vmem:[%s5627 + $0x8] sm:$0xf]
      %v5631 = vld [vmem:[%s5627 + $0xc] sm:$0xf]
      %s5632 = scalar_lea.vmem %s9, 2
      %v5633 = vld [vmem:[%s5632] sm:$0x1]
      %v5635 = vlaneseq
      %v5636 = vshrl.u32 %v5635, 7
      %v5637 = vsub.s32 0, %v5636
      %v5638 = vrot.slane %v5633, %v5637
      %v5644 = vunpack.c.l.b16 %v5628
      %v5645 = vunpack.c.l.b16 %v5629
      %v5646 = vunpack.c.l.b16 %v5630
      %v5647 = vunpack.c.l.b16 %v5631
      %v5648 = vpack.c.b16 %v5645, %v5644
      %v5649 = vpack.c.b16 %v5647, %v5646
      %v5653 = vsel %vm1208, %v5625, 0
      %v5656 = vsel %vm1208, %v5626, 0
      %5658 = vmatprep.subr.bf16.mxu0 0
      %5659 = vmatpush1.bf16.msra.mxu0 %v5648
      %5660 = vmatprep.subr.bf16.mxu0 0
      %5661 = vmatpush1.bf16.msra.mxu0 %v5649
      %5662 = vmatprep.subr.bf16.mxu0 0
      %5663 = vmatpush1.bf16.msra.mxu0 0
      %5664 = vmatprep.subr.bf16.mxu0 0
      %5665 = vmatpush1.bf16.msra.mxu0 0
      %5666 = vmatprep.subr.bf16.mxu0 0
      %5667 = vmatpush1.bf16.msra.mxu0 0
      %5668 = vmatprep.subr.bf16.mxu0 0
      %5669 = vmatpush1.bf16.msra.mxu0 0
      %5670 = vmatprep.subr.bf16.mxu0 0
      %5671 = vmatpush1.bf16.msra.mxu0 0
      %5672 = vmatprep.subr.bf16.mxu0 0
      %5673 = vmatpush1.bf16.msra.mxu0 0
      %5674 = vmatprep.subr.bf16.mxu0 0
      %5675 = vmatpush1.bf16.msra.mxu0 0
      %5676 = vmatprep.subr.bf16.mxu0 0
      %5677 = vmatpush1.bf16.msra.mxu0 0
      %5678 = vmatprep.subr.bf16.mxu0 0
      %5679 = vmatpush1.bf16.msra.mxu0 0
      %5680 = vmatprep.subr.bf16.mxu0 0
      %5681 = vmatpush1.bf16.msra.mxu0 0
      %5682 = vmatprep.subr.bf16.mxu0 0
      %5683 = vmatpush1.bf16.msra.mxu0 0
      %5684 = vmatprep.subr.bf16.mxu0 0
      %5685 = vmatpush1.bf16.msra.mxu0 0
      %5686 = vmatprep.subr.bf16.mxu0 0
      %5687 = vmatpush1.bf16.msra.mxu0 0
      %5688 = vmatprep.subr.bf16.mxu0 0
      %5689 = vmatpush1.bf16.msra.mxu0 0
      %5690 = vmatprep.mubr.bf16.mxu0 0
      %5691 = vmatmul.mubr.bf16.gmra.mrb[0].mxu0 %v5653
      %v5692 = vpop.f32.mrb[0].mxu0
      %v5693 = vadd.f32 %v5638, %v5692
      %v5694 = vpop.f32.mrb[0].mxu0
      %v5695 = vpop.f32.mrb[0].mxu0
      %v5696 = vadd.f32 %v5638, %v5695
      %v5697 = vpop.f32.mrb[0].mxu0
      %5698 = vmatprep.mubr.bf16.mxu0 0
      %5699 = vmatmul.mubr.bf16.gmra.mrb[0].mxu0 %v5656
      %v5700 = vpop.f32.mrb[0].mxu0
      %v5701 = vadd.f32 %v5638, %v5700
      %v5702 = vpop.f32.mrb[0].mxu0
      %v5703 = vpop.f32.mrb[0].mxu0
      %v5704 = vadd.f32 %v5638, %v5703
      %v5705 = vpop.f32.mrb[0].mxu0
      %5706 = vdwg.mxu0
      %v5707 = vadd.f32 %v4415, %v5693
      %v5708 = vadd.f32 %v4416, %v5696
      %v5709 = vadd.f32 %v4417, %v5701
      %v5710 = vadd.f32 %v4418, %v5704
      %s5711 = scalar_lea.vmem %s10, 2
      %v5712 = vld [vmem:[%s5711] sm:$0x1]
      %s5713 = scalar_lea.vmem %s11, 2
      %v5714 = vld [vmem:[%s5713] sm:$0x1]
      %v5715 = vsel %vm1208, %v5707, 0.0
      %5716 = vadd.xlane.f32.xlu0 %v5715
      %v5717 = vpop.xlane.xlu0 %5716
      %v5718 = vsel %vm1208, %v5708, 0.0
      %5719 = vadd.xlane.f32.xlu0 %v5718
      %v5720 = vpop.xlane.xlu0 %5719
      %v5721 = vsel %vm1208, %v5709, 0.0
      %5722 = vadd.xlane.f32.xlu0 %v5721
      %v5723 = vpop.xlane.xlu0 %5722
      %v5724 = vsel %vm1208, %v5710, 0.0
      %5725 = vadd.xlane.f32.xlu0 %v5724
      %v5726 = vpop.xlane.xlu0 %5725
      %v5727 = vmul.f32 %v5717, %v1221
      %v5728 = vmul.f32 %v5720, %v1221
      %v5729 = vmul.f32 %v5723, %v1221
      %v5730 = vmul.f32 %v5726, %v1221
      %v5731 = vsub.f32 %v5707, %v5727
      %v5732 = vsub.f32 %v5708, %v5728
      %v5733 = vsub.f32 %v5709, %v5729
      %v5734 = vsub.f32 %v5710, %v5730
      %v5735 = vmul.f32 %v5731, %v5731
      %v5736 = vmul.f32 %v5732, %v5732
      %v5737 = vmul.f32 %v5733, %v5733
      %v5738 = vmul.f32 %v5734, %v5734
      %v5739 = vsel %vm1208, %v5735, 0.0
      %5740 = vadd.xlane.f32.xlu0 %v5739
      %v5741 = vpop.xlane.xlu0 %5740
      %v5742 = vsel %vm1208, %v5736, 0.0
      %5743 = vadd.xlane.f32.xlu0 %v5742
      %v5744 = vpop.xlane.xlu0 %5743
      %v5745 = vsel %vm1208, %v5737, 0.0
      %5746 = vadd.xlane.f32.xlu0 %v5745
      %v5747 = vpop.xlane.xlu0 %5746
      %v5748 = vsel %vm1208, %v5738, 0.0
      %5749 = vadd.xlane.f32.xlu0 %v5748
      %v5750 = vpop.xlane.xlu0 %5749
      %v5751 = vmul.f32 %v5741, %v1221
      %v5752 = vmul.f32 %v5744, %v1221
      %v5753 = vmul.f32 %v5747, %v1221
      %v5754 = vmul.f32 %v5750, %v1221
      %v5755 = vadd.f32 %v5751, 1e-05
      %v5756 = vadd.f32 %v5752, 1e-05
      %v5757 = vadd.f32 %v5753, 1e-05
      %v5758 = vadd.f32 %v5754, 1e-05
      %v5759 = vrsqrt.pop %v5755
      %v5760 = vrsqrt.pop %v5756
      %v5761 = vrsqrt.pop %v5757
      %v5762 = vrsqrt.pop %v5758
      %v5763 = vmul.f32 %v5731, %v5759
      %v5764 = vmul.f32 %v5732, %v5760
      %v5765 = vmul.f32 %v5733, %v5761
      %v5766 = vmul.f32 %v5734, %v5762
      %v5768 = vlaneseq
      %v5769 = vshrl.u32 %v5768, 7
      %v5770 = vsub.s32 0, %v5769
      %v5771 = vrot.slane %v5712, %v5770
      %v5773 = vmul.f32 %v5763, %v5771
      %v5774 = vmul.f32 %v5764, %v5771
      %v5775 = vmul.f32 %v5765, %v5771
      %v5776 = vmul.f32 %v5766, %v5771
      %v5778 = vlaneseq
      %v5779 = vshrl.u32 %v5778, 7
      %v5780 = vsub.s32 0, %v5779
      %v5781 = vrot.slane %v5714, %v5780
      %v5783 = vadd.f32 %v5773, %v5781
      %v5784 = vadd.f32 %v5774, %v5781
      %v5785 = vadd.f32 %v5775, %v5781
      %v5786 = vadd.f32 %v5776, %v5781
      %v5787 = vpack.c.bf16 %v5784, %v5783
      %v5788 = vpack.c.bf16 %v5786, %v5785
      %s5789 = scalar_lea.vmem %s12, 32
      %v5790 = vld [vmem:[%s5789] sm:$0xf]
      %v5791 = vld [vmem:[%s5789 + $0x4] sm:$0xf]
      %v5792 = vld [vmem:[%s5789 + $0x8] sm:$0xf]
      %v5793 = vld [vmem:[%s5789 + $0xc] sm:$0xf]
      %s5794 = scalar_lea.vmem %s13, 2
      %v5795 = vld [vmem:[%s5794] sm:$0x1]
      %v5797 = vlaneseq
      %v5798 = vshrl.u32 %v5797, 7
      %v5799 = vsub.s32 0, %v5798
      %v5800 = vrot.slane %v5795, %v5799
      %v5806 = vunpack.c.l.b16 %v5790
      %v5807 = vunpack.c.l.b16 %v5791
      %v5808 = vunpack.c.l.b16 %v5792
      %v5809 = vunpack.c.l.b16 %v5793
      %v5810 = vpack.c.b16 %v5807, %v5806
      %v5811 = vpack.c.b16 %v5809, %v5808
      %v5815 = vsel %vm1208, %v5787, 0
      %v5818 = vsel %vm1208, %v5788, 0
      %5820 = vmatprep.subr.bf16.mxu0 0
      %5821 = vmatpush1.bf16.msra.mxu0 %v5810
      %5822 = vmatprep.subr.bf16.mxu0 0
      %5823 = vmatpush1.bf16.msra.mxu0 %v5811
      %5824 = vmatprep.subr.bf16.mxu0 0
      %5825 = vmatpush1.bf16.msra.mxu0 0
      %5826 = vmatprep.subr.bf16.mxu0 0
      %5827 = vmatpush1.bf16.msra.mxu0 0
      %5828 = vmatprep.subr.bf16.mxu0 0
      %5829 = vmatpush1.bf16.msra.mxu0 0
      %5830 = vmatprep.subr.bf16.mxu0 0
      %5831 = vmatpush1.bf16.msra.mxu0 0
      %5832 = vmatprep.subr.bf16.mxu0 0
      %5833 = vmatpush1.bf16.msra.mxu0 0
      %5834 = vmatprep.subr.bf16.mxu0 0
      %5835 = vmatpush1.bf16.msra.mxu0 0
      %5836 = vmatprep.subr.bf16.mxu0 0
      %5837 = vmatpush1.bf16.msra.mxu0 0
      %5838 = vmatprep.subr.bf16.mxu0 0
      %5839 = vmatpush1.bf16.msra.mxu0 0
      %5840 = vmatprep.subr.bf16.mxu0 0
      %5841 = vmatpush1.bf16.msra.mxu0 0
      %5842 = vmatprep.subr.bf16.mxu0 0
      %5843 = vmatpush1.bf16.msra.mxu0 0
      %5844 = vmatprep.subr.bf16.mxu0 0
      %5845 = vmatpush1.bf16.msra.mxu0 0
      %5846 = vmatprep.subr.bf16.mxu0 0
      %5847 = vmatpush1.bf16.msra.mxu0 0
      %5848 = vmatprep.subr.bf16.mxu0 0
      %5849 = vmatpush1.bf16.msra.mxu0 0
      %5850 = vmatprep.subr.bf16.mxu0 0
      %5851 = vmatpush1.bf16.msra.mxu0 0
      %5852 = vmatprep.mubr.bf16.mxu0 0
      %5853 = vmatmul.mubr.bf16.gmra.mrb[0].mxu0 %v5815
      %v5854 = vpop.f32.mrb[0].mxu0
      %v5855 = vadd.f32 %v5800, %v5854
      %v5856 = vpop.f32.mrb[0].mxu0
      %v5857 = vpop.f32.mrb[0].mxu0
      %v5858 = vadd.f32 %v5800, %v5857
      %v5859 = vpop.f32.mrb[0].mxu0
      %5860 = vmatprep.mubr.bf16.mxu0 0
      %5861 = vmatmul.mubr.bf16.gmra.mrb[0].mxu0 %v5818
      %v5862 = vpop.f32.mrb[0].mxu0
      %v5863 = vadd.f32 %v5800, %v5862
      %v5864 = vpop.f32.mrb[0].mxu0
      %v5865 = vpop.f32.mrb[0].mxu0
      %v5866 = vadd.f32 %v5800, %v5865
      %v5867 = vpop.f32.mrb[0].mxu0
      %5868 = vdwg.mxu0
      %v5869 = vmul.f32 %v5855, %v5855
      %v5870 = vmul.f32 %v5858, %v5858
      %v5871 = vmul.f32 %v5863, %v5863
      %v5872 = vmul.f32 %v5866, %v5866
      %v5873 = vmul.f32 %v5855, %v5869
      %v5874 = vmul.f32 %v5858, %v5870
      %v5875 = vmul.f32 %v5863, %v5871
      %v5876 = vmul.f32 %v5866, %v5872
      %v5877 = vmul.f32 %v5873, 0.044715
      %v5878 = vmul.f32 %v5874, 0.044715
      %v5879 = vmul.f32 %v5875, 0.044715
      %v5880 = vmul.f32 %v5876, 0.044715
      %v5881 = vadd.f32 %v5855, %v5877
      %v5882 = vadd.f32 %v5858, %v5878
      %v5883 = vadd.f32 %v5863, %v5879
      %v5884 = vadd.f32 %v5866, %v5880
      %v5885 = vmul.f32 %v5881, 0.7978846
      %v5886 = vmul.f32 %v5882, 0.7978846
      %v5887 = vmul.f32 %v5883, 0.7978846
      %v5888 = vmul.f32 %v5884, 0.7978846
      %v5889 = vtanh.pop %v5885
      %v5890 = vtanh.pop %v5886
      %v5891 = vtanh.pop %v5887
      %v5892 = vtanh.pop %v5888
      %v5893 = vadd.f32 %v5889, 1.0
      %v5894 = vadd.f32 %v5890, 1.0
      %v5895 = vadd.f32 %v5891, 1.0
      %v5896 = vadd.f32 %v5892, 1.0
      %v5897 = vmul.f32 %v5893, 0.5
      %v5898 = vmul.f32 %v5894, 0.5
      %v5899 = vmul.f32 %v5895, 0.5
      %v5900 = vmul.f32 %v5896, 0.5
      %v5901 = vmul.f32 %v5855, %v5897
      %v5902 = vmul.f32 %v5858, %v5898
      %v5903 = vmul.f32 %v5863, %v5899
      %v5904 = vmul.f32 %v5866, %v5900
      %v5905 = vpack.c.bf16 %v5902, %v5901
      %v5906 = vpack.c.bf16 %v5904, %v5903
      %s5907 = scalar_lea.vmem %s14, 128
      %v5908 = vld [vmem:[%s5907] sm:$0xf]
      %v5909 = vld [vmem:[%s5907 + $0x4] sm:$0xf]
      %v5910 = vld [vmem:[%s5907 + $0x8] sm:$0xf]
      %v5911 = vld [vmem:[%s5907 + $0xc] sm:$0xf]
      %v5912 = vld [vmem:[%s5907 + $0x10] sm:$0xf]
      %v5913 = vld [vmem:[%s5907 + $0x14] sm:$0xf]
      %v5914 = vld [vmem:[%s5907 + $0x18] sm:$0xf]
      %v5915 = vld [vmem:[%s5907 + $0x1c] sm:$0xf]
      %v5916 = vld [vmem:[%s5907 + $0x20] sm:$0xf]
      %v5917 = vld [vmem:[%s5907 + $0x24] sm:$0xf]
      %v5918 = vld [vmem:[%s5907 + $0x28] sm:$0xf]
      %v5919 = vld [vmem:[%s5907 + $0x2c] sm:$0xf]
      %v5920 = vld [vmem:[%s5907 + $0x30] sm:$0xf]
      %v5921 = vld [vmem:[%s5907 + $0x34] sm:$0xf]
      %v5922 = vld [vmem:[%s5907 + $0x38] sm:$0xf]
      %v5923 = vld [vmem:[%s5907 + $0x3c] sm:$0xf]
      %s5924 = scalar_lea.vmem %s15, 2
      %v5925 = vld [vmem:[%s5924] sm:$0x1]
      %v5927 = vlaneseq
      %v5928 = vshrl.u32 %v5927, 7
      %v5929 = vsub.s32 0, %v5928
      %v5930 = vrot.slane %v5925, %v5929
      %v5948 = vunpack.c.l.b16 %v5908
      %v5949 = vunpack.c.l.b16 %v5909
      %v5950 = vunpack.c.l.b16 %v5910
      %v5951 = vunpack.c.l.b16 %v5911
      %v5952 = vunpack.c.l.b16 %v5912
      %v5953 = vunpack.c.l.b16 %v5913
      %v5954 = vunpack.c.l.b16 %v5914
      %v5955 = vunpack.c.l.b16 %v5915
      %v5956 = vunpack.c.l.b16 %v5916
      %v5957 = vunpack.c.l.b16 %v5917
      %v5958 = vunpack.c.l.b16 %v5918
      %v5959 = vunpack.c.l.b16 %v5919
      %v5960 = vunpack.c.l.b16 %v5920
      %v5961 = vunpack.c.l.b16 %v5921
      %v5962 = vunpack.c.l.b16 %v5922
      %v5963 = vunpack.c.l.b16 %v5923
      %v5964 = vpack.c.b16 %v5949, %v5948
      %v5965 = vpack.c.b16 %v5951, %v5950
      %v5966 = vpack.c.b16 %v5953, %v5952
      %v5967 = vpack.c.b16 %v5955, %v5954
      %v5968 = vpack.c.b16 %v5957, %v5956
      %v5969 = vpack.c.b16 %v5959, %v5958
      %v5970 = vpack.c.b16 %v5961, %v5960
      %v5971 = vpack.c.b16 %v5963, %v5962
      %5980 = vmatprep.subr.bf16.mxu0 0
      %5981 = vmatpush1.bf16.msra.mxu0 %v5964
      %5982 = vmatprep.subr.bf16.mxu0 0
      %5983 = vmatpush1.bf16.msra.mxu0 %v5965
      %5984 = vmatprep.subr.bf16.mxu0 0
      %5985 = vmatpush1.bf16.msra.mxu0 %v5966
      %5986 = vmatprep.subr.bf16.mxu0 0
      %5987 = vmatpush1.bf16.msra.mxu0 %v5967
      %5988 = vmatprep.subr.bf16.mxu0 0
      %5989 = vmatpush1.bf16.msra.mxu0 %v5968
      %5990 = vmatprep.subr.bf16.mxu0 0
      %5991 = vmatpush1.bf16.msra.mxu0 %v5969
      %5992 = vmatprep.subr.bf16.mxu0 0
      %5993 = vmatpush1.bf16.msra.mxu0 %v5970
      %5994 = vmatprep.subr.bf16.mxu0 0
      %5995 = vmatpush1.bf16.msra.mxu0 %v5971
      %5996 = vmatprep.subr.bf16.mxu0 0
      %5997 = vmatpush1.bf16.msra.mxu0 0
      %5998 = vmatprep.subr.bf16.mxu0 0
      %5999 = vmatpush1.bf16.msra.mxu0 0
      %6000 = vmatprep.subr.bf16.mxu0 0
      %6001 = vmatpush1.bf16.msra.mxu0 0
      %6002 = vmatprep.subr.bf16.mxu0 0
      %6003 = vmatpush1.bf16.msra.mxu0 0
      %6004 = vmatprep.subr.bf16.mxu0 0
      %6005 = vmatpush1.bf16.msra.mxu0 0
      %6006 = vmatprep.subr.bf16.mxu0 0
      %6007 = vmatpush1.bf16.msra.mxu0 0
      %6008 = vmatprep.subr.bf16.mxu0 0
      %6009 = vmatpush1.bf16.msra.mxu0 0
      %6010 = vmatprep.subr.bf16.mxu0 0
      %6011 = vmatpush1.bf16.msra.mxu0 0
      %6012 = vmatprep.mubr.bf16.mxu0 0
      %6013 = vmatmul.mubr.bf16.gmra.mrb[0].mxu0 %v5905
      %v6014 = vpop.f32.mrb[0].mxu0
      %v6015 = vadd.f32 %v5930, %v6014
      %v6016 = vpop.f32.mrb[0].mxu0
      %v6017 = vpop.f32.mrb[0].mxu0
      %v6018 = vadd.f32 %v5930, %v6017
      %v6019 = vpop.f32.mrb[0].mxu0
      %6020 = vmatprep.mubr.bf16.mxu0 0
      %6021 = vmatmul.mubr.bf16.gmra.mrb[0].mxu0 %v5906
      %v6022 = vpop.f32.mrb[0].mxu0
      %v6023 = vadd.f32 %v5930, %v6022
      %v6024 = vpop.f32.mrb[0].mxu0
      %v6025 = vpop.f32.mrb[0].mxu0
      %v6026 = vadd.f32 %v5930, %v6025
      %v6027 = vpop.f32.mrb[0].mxu0
      %6028 = vdwg.mxu0
      %v6029 = vadd.f32 %v5707, %v6015
      %v6030 = vadd.f32 %v5708, %v6018
      %v6031 = vadd.f32 %v5709, %v6023
      %v6032 = vadd.f32 %v5710, %v6026
      %s6033 = scalar_lea.vmem %s4, 3
      %v6034 = vld [vmem:[%s6033] sm:$0x1]
      %s6035 = scalar_lea.vmem %s5, 3
      %v6036 = vld [vmem:[%s6035] sm:$0x1]
      %v6037 = vsel %vm1208, %v6029, 0.0
      %6038 = vadd.xlane.f32.xlu0 %v6037
      %v6039 = vpop.xlane.xlu0 %6038
      %v6040 = vsel %vm1208, %v6030, 0.0
      %6041 = vadd.xlane.f32.xlu0 %v6040
      %v6042 = vpop.xlane.xlu0 %6041
      %v6043 = vsel %vm1208, %v6031, 0.0
      %6044 = vadd.xlane.f32.xlu0 %v6043
      %v6045 = vpop.xlane.xlu0 %6044
      %v6046 = vsel %vm1208, %v6032, 0.0
      %6047 = vadd.xlane.f32.xlu0 %v6046
      %v6048 = vpop.xlane.xlu0 %6047
      %v6049 = vmul.f32 %v6039, %v1221
      %v6050 = vmul.f32 %v6042, %v1221
      %v6051 = vmul.f32 %v6045, %v1221
      %v6052 = vmul.f32 %v6048, %v1221
      %v6053 = vsub.f32 %v6029, %v6049
      %v6054 = vsub.f32 %v6030, %v6050
      %v6055 = vsub.f32 %v6031, %v6051
      %v6056 = vsub.f32 %v6032, %v6052
      %v6057 = vmul.f32 %v6053, %v6053
      %v6058 = vmul.f32 %v6054, %v6054
      %v6059 = vmul.f32 %v6055, %v6055
      %v6060 = vmul.f32 %v6056, %v6056
      %v6061 = vsel %vm1208, %v6057, 0.0
      %6062 = vadd.xlane.f32.xlu0 %v6061
      %v6063 = vpop.xlane.xlu0 %6062
      %v6064 = vsel %vm1208, %v6058, 0.0
      %6065 = vadd.xlane.f32.xlu0 %v6064
      %v6066 = vpop.xlane.xlu0 %6065
      %v6067 = vsel %vm1208, %v6059, 0.0
      %6068 = vadd.xlane.f32.xlu0 %v6067
      %v6069 = vpop.xlane.xlu0 %6068
      %v6070 = vsel %vm1208, %v6060, 0.0
      %6071 = vadd.xlane.f32.xlu0 %v6070
      %v6072 = vpop.xlane.xlu0 %6071
      %v6073 = vmul.f32 %v6063, %v1221
      %v6074 = vmul.f32 %v6066, %v1221
      %v6075 = vmul.f32 %v6069, %v1221
      %v6076 = vmul.f32 %v6072, %v1221
      %v6077 = vadd.f32 %v6073, 1e-05
      %v6078 = vadd.f32 %v6074, 1e-05
      %v6079 = vadd.f32 %v6075, 1e-05
      %v6080 = vadd.f32 %v6076, 1e-05
      %v6081 = vrsqrt.pop %v6077
      %v6082 = vrsqrt.pop %v6078
      %v6083 = vrsqrt.pop %v6079
      %v6084 = vrsqrt.pop %v6080
      %v6085 = vmul.f32 %v6053, %v6081
      %v6086 = vmul.f32 %v6054, %v6082
      %v6087 = vmul.f32 %v6055, %v6083
      %v6088 = vmul.f32 %v6056, %v6084
      %v6090 = vlaneseq
      %v6091 = vshrl.u32 %v6090, 7
      %v6092 = vsub.s32 0, %v6091
      %v6093 = vrot.slane %v6034, %v6092
      %v6095 = vmul.f32 %v6085, %v6093
      %v6096 = vmul.f32 %v6086, %v6093
      %v6097 = vmul.f32 %v6087, %v6093
      %v6098 = vmul.f32 %v6088, %v6093
      %v6100 = vlaneseq
      %v6101 = vshrl.u32 %v6100, 7
      %v6102 = vsub.s32 0, %v6101
      %v6103 = vrot.slane %v6036, %v6102
      %v6105 = vadd.f32 %v6095, %v6103
      %v6106 = vadd.f32 %v6096, %v6103
      %v6107 = vadd.f32 %v6097, %v6103
      %v6108 = vadd.f32 %v6098, %v6103
      %v6109 = vpack.c.bf16 %v6106, %v6105
      %v6110 = vpack.c.bf16 %v6108, %v6107
      %s6111 = scalar_lea.vmem %s6, 48
      %v6112 = vld [vmem:[%s6111] sm:$0xf]
      %v6113 = vld [vmem:[%s6111 + $0x4] sm:$0xf]
      %v6114 = vld [vmem:[%s6111 + $0x8] sm:$0xf]
      %v6115 = vld [vmem:[%s6111 + $0xc] sm:$0xf]
      %s6116 = scalar_lea.vmem %s7, 3
      %v6117 = vld [vmem:[%s6116] sm:$0x1]
      %v6119 = vlaneseq
      %v6120 = vshrl.u32 %v6119, 7
      %v6121 = vsub.s32 0, %v6120
      %v6122 = vrot.slane %v6117, %v6121
      %v6128 = vunpack.c.l.b16 %v6112
      %v6129 = vunpack.c.l.b16 %v6113
      %v6130 = vunpack.c.l.b16 %v6114
      %v6131 = vunpack.c.l.b16 %v6115
      %v6132 = vpack.c.b16 %v6129, %v6128
      %v6133 = vpack.c.b16 %v6131, %v6130
      %v6137 = vsel %vm1208, %v6109, 0
      %v6140 = vsel %vm1208, %v6110, 0
      %6142 = vmatprep.subr.bf16.mxu0 0
      %6143 = vmatpush1.bf16.msra.mxu0 %v6132
      %6144 = vmatprep.subr.bf16.mxu0 0
      %6145 = vmatpush1.bf16.msra.mxu0 %v6133
      %6146 = vmatprep.subr.bf16.mxu0 0
      %6147 = vmatpush1.bf16.msra.mxu0 0
      %6148 = vmatprep.subr.bf16.mxu0 0
      %6149 = vmatpush1.bf16.msra.mxu0 0
      %6150 = vmatprep.subr.bf16.mxu0 0
      %6151 = vmatpush1.bf16.msra.mxu0 0
      %6152 = vmatprep.subr.bf16.mxu0 0
      %6153 = vmatpush1.bf16.msra.mxu0 0
      %6154 = vmatprep.subr.bf16.mxu0 0
      %6155 = vmatpush1.bf16.msra.mxu0 0
      %6156 = vmatprep.subr.bf16.mxu0 0
      %6157 = vmatpush1.bf16.msra.mxu0 0
      %6158 = vmatprep.subr.bf16.mxu0 0
      %6159 = vmatpush1.bf16.msra.mxu0 0
      %6160 = vmatprep.subr.bf16.mxu0 0
      %6161 = vmatpush1.bf16.msra.mxu0 0
      %6162 = vmatprep.subr.bf16.mxu0 0
      %6163 = vmatpush1.bf16.msra.mxu0 0
      %6164 = vmatprep.subr.bf16.mxu0 0
      %6165 = vmatpush1.bf16.msra.mxu0 0
      %6166 = vmatprep.subr.bf16.mxu0 0
      %6167 = vmatpush1.bf16.msra.mxu0 0
      %6168 = vmatprep.subr.bf16.mxu0 0
      %6169 = vmatpush1.bf16.msra.mxu0 0
      %6170 = vmatprep.subr.bf16.mxu0 0
      %6171 = vmatpush1.bf16.msra.mxu0 0
      %6172 = vmatprep.subr.bf16.mxu0 0
      %6173 = vmatpush1.bf16.msra.mxu0 0
      %6174 = vmatprep.mubr.bf16.mxu0 0
      %6175 = vmatmul.mubr.bf16.gmra.mrb[0].mxu0 %v6137
      %v6176 = vpop.f32.mrb[0].mxu0
      %v6177 = vadd.f32 %v6122, %v6176
      %v6178 = vpop.f32.mrb[0].mxu0
      %v6179 = vpop.f32.mrb[0].mxu0
      %v6180 = vadd.f32 %v6122, %v6179
      %v6181 = vpop.f32.mrb[0].mxu0
      %6182 = vmatprep.mubr.bf16.mxu0 0
      %6183 = vmatmul.mubr.bf16.gmra.mrb[0].mxu0 %v6140
      %v6184 = vpop.f32.mrb[0].mxu0
      %v6185 = vadd.f32 %v6122, %v6184
      %v6186 = vpop.f32.mrb[0].mxu0
      %v6187 = vpop.f32.mrb[0].mxu0
      %v6188 = vadd.f32 %v6122, %v6187
      %v6189 = vpop.f32.mrb[0].mxu0
      %6190 = vdwg.mxu0
      %v6191 = vpack.c.bf16 %v6180, %v6177
      %v6192 = vpack.c.bf16 %v6188, %v6185
      %6194 = vrot.lane.b32.xlu0 %v6191, 96
      %v6195 = vpop.permute.xlu0 %6194
      %v6197 = vsel %vm1367, %v6191, 0
      %v6200 = vsel %vm1367, %v6195, 0
      %6202 = vmatprep.subr.bf16.mxu0 0
      %6203 = vmatpush1.bf16.xpose.msra.mxu0 %v6200
      %6204 = vmatprep.subr.bf16.mxu0 0
      %6205 = vmatpush1.bf16.xpose.msra.mxu0 0
      %6206 = vmatprep.subr.bf16.mxu0 0
      %6207 = vmatpush1.bf16.xpose.msra.mxu0 0
      %6208 = vmatprep.subr.bf16.mxu0 0
      %6209 = vmatpush1.bf16.xpose.msra.mxu0 0
      %6210 = vmatprep.subr.bf16.mxu0 0
      %6211 = vmatpush1.bf16.xpose.msra.mxu0 0
      %6212 = vmatprep.subr.bf16.mxu0 0
      %6213 = vmatpush1.bf16.xpose.msra.mxu0 0
      %6214 = vmatprep.subr.bf16.mxu0 0
      %6215 = vmatpush1.bf16.xpose.msra.mxu0 0
      %6216 = vmatprep.subr.bf16.mxu0 0
      %6217 = vmatpush1.bf16.xpose.msra.mxu0 0
      %6218 = vmatprep.subr.bf16.mxu0 0
      %6219 = vmatpush1.bf16.xpose.msra.mxu0 0
      %6220 = vmatprep.subr.bf16.mxu0 0
      %6221 = vmatpush1.bf16.xpose.msra.mxu0 0
      %6222 = vmatprep.subr.bf16.mxu0 0
      %6223 = vmatpush1.bf16.xpose.msra.mxu0 0
      %6224 = vmatprep.subr.bf16.mxu0 0
      %6225 = vmatpush1.bf16.xpose.msra.mxu0 0
      %6226 = vmatprep.subr.bf16.mxu0 0
      %6227 = vmatpush1.bf16.xpose.msra.mxu0 0
      %6228 = vmatprep.subr.bf16.mxu0 0
      %6229 = vmatpush1.bf16.xpose.msra.mxu0 0
      %6230 = vmatprep.subr.bf16.mxu0 0
      %6231 = vmatpush1.bf16.xpose.msra.mxu0 0
      %6232 = vmatprep.subr.bf16.mxu0 0
      %6233 = vmatpush1.bf16.xpose.msra.mxu0 0
      %6234 = vmatprep.mubr.bf16.mxu0 0
      %6235 = vmatmul.mubr.bf16.gmra.mrb[0].mxu0 %v6197
      %v6236 = vpop.f32.mrb[0].mxu0
      %v6237 = vadd.f32 0.0, %v6236
      %v6238 = vpop.f32.mrb[0].mxu0
      %v6239 = vpop.f32.mrb[0].mxu0
      %v6240 = vadd.f32 0.0, %v6239
      %v6241 = vpop.f32.mrb[0].mxu0
      %6242 = vdwg.mxu0
      %6244 = vrot.lane.b32.xlu0 %v6192, 96
      %v6245 = vpop.permute.xlu0 %6244
      %v6247 = vsel %vm1367, %v6192, 0
      %v6250 = vsel %vm1367, %v6245, 0
      %6252 = vmatprep.subr.bf16.mxu0 0
      %6253 = vmatpush1.bf16.xpose.msra.mxu0 %v6250
      %6254 = vmatprep.subr.bf16.mxu0 0
      %6255 = vmatpush1.bf16.xpose.msra.mxu0 0
      %6256 = vmatprep.subr.bf16.mxu0 0
      %6257 = vmatpush1.bf16.xpose.msra.mxu0 0
      %6258 = vmatprep.subr.bf16.mxu0 0
      %6259 = vmatpush1.bf16.xpose.msra.mxu0 0
      %6260 = vmatprep.subr.bf16.mxu0 0
      %6261 = vmatpush1.bf16.xpose.msra.mxu0 0
      %6262 = vmatprep.subr.bf16.mxu0 0
      %6263 = vmatpush1.bf16.xpose.msra.mxu0 0
      %6264 = vmatprep.subr.bf16.mxu0 0
      %6265 = vmatpush1.bf16.xpose.msra.mxu0 0
      %6266 = vmatprep.subr.bf16.mxu0 0
      %6267 = vmatpush1.bf16.xpose.msra.mxu0 0
      %6268 = vmatprep.subr.bf16.mxu0 0
      %6269 = vmatpush1.bf16.xpose.msra.mxu0 0
      %6270 = vmatprep.subr.bf16.mxu0 0
      %6271 = vmatpush1.bf16.xpose.msra.mxu0 0
      %6272 = vmatprep.subr.bf16.mxu0 0
      %6273 = vmatpush1.bf16.xpose.msra.mxu0 0
      %6274 = vmatprep.subr.bf16.mxu0 0
      %6275 = vmatpush1.bf16.xpose.msra.mxu0 0
      %6276 = vmatprep.subr.bf16.mxu0 0
      %6277 = vmatpush1.bf16.xpose.msra.mxu0 0
      %6278 = vmatprep.subr.bf16.mxu0 0
      %6279 = vmatpush1.bf16.xpose.msra.mxu0 0
      %6280 = vmatprep.subr.bf16.mxu0 0
      %6281 = vmatpush1.bf16.xpose.msra.mxu0 0
      %6282 = vmatprep.subr.bf16.mxu0 0
      %6283 = vmatpush1.bf16.xpose.msra.mxu0 0
      %6284 = vmatprep.mubr.bf16.mxu0 0
      %6285 = vmatmul.mubr.bf16.gmra.mrb[0].mxu0 %v6247
      %v6286 = vpop.f32.mrb[0].mxu0
      %v6287 = vadd.f32 0.0, %v6286
      %v6288 = vpop.f32.mrb[0].mxu0
      %v6289 = vpop.f32.mrb[0].mxu0
      %v6290 = vadd.f32 0.0, %v6289
      %v6291 = vpop.f32.mrb[0].mxu0
      %6292 = vdwg.mxu0
      %v6293 = vmul.f32 %v6237, 0.35355338
      %v6294 = vmul.f32 %v6240, 0.35355338
      %v6295 = vmul.f32 %v6287, 0.35355338
      %v6296 = vmul.f32 %v6290, 0.35355338
      %v6297 = vsel %vm1469, %v6293, -inf
      %6298 = vmax.xlane.f32.xlu0 %v6297
      %v6299 = vpop.xlane.xlu0 %6298
      %v6300 = vsel %vm1469, %v6294, -inf
      %6301 = vmax.xlane.f32.xlu0 %v6300
      %v6302 = vpop.xlane.xlu0 %6301
      %v6303 = vsel %vm1469, %v6295, -inf
      %6304 = vmax.xlane.f32.xlu0 %v6303
      %v6305 = vpop.xlane.xlu0 %6304
      %v6306 = vsel %vm1469, %v6296, -inf
      %6307 = vmax.xlane.f32.xlu0 %v6306
      %v6308 = vpop.xlane.xlu0 %6307
      %v6309 = vsub.f32 %v6293, %v6299
      %v6310 = vsub.f32 %v6294, %v6302
      %v6311 = vsub.f32 %v6295, %v6305
      %v6312 = vsub.f32 %v6296, %v6308
      %v6313 = vmul.f32 %v6309, 1.442695
      %v6314 = vpow.pop %v6313
      %v6315 = vmul.f32 %v6310, 1.442695
      %v6316 = vpow.pop %v6315
      %v6317 = vmul.f32 %v6311, 1.442695
      %v6318 = vpow.pop %v6317
      %v6319 = vmul.f32 %v6312, 1.442695
      %v6320 = vpow.pop %v6319
      %v6321 = vsel %vm1469, %v6314, 0.0
      %6322 = vadd.xlane.f32.xlu0 %v6321
      %v6323 = vpop.xlane.xlu0 %6322
      %v6324 = vsel %vm1469, %v6316, 0.0
      %6325 = vadd.xlane.f32.xlu0 %v6324
      %v6326 = vpop.xlane.xlu0 %6325
      %v6327 = vsel %vm1469, %v6318, 0.0
      %6328 = vadd.xlane.f32.xlu0 %v6327
      %v6329 = vpop.xlane.xlu0 %6328
      %v6330 = vsel %vm1469, %v6320, 0.0
      %6331 = vadd.xlane.f32.xlu0 %v6330
      %v6332 = vpop.xlane.xlu0 %6331
      %v6333 = vrcp.pop %v6323
      %v6334 = vrcp.pop %v6326
      %v6335 = vrcp.pop %v6329
      %v6336 = vrcp.pop %v6332
      %v6337 = vmul.f32 %v6314, %v6333
      %v6338 = vmul.f32 %v6316, %v6334
      %v6339 = vmul.f32 %v6318, %v6335
      %v6340 = vmul.f32 %v6320, %v6336
      %v6341 = vpack.c.bf16 %v6338, %v6337
      %v6342 = vpack.c.bf16 %v6340, %v6339
      %6343 = vrot.lane.b32.xlu0 %v6191, 64
      %v6344 = vpop.permute.xlu0 %6343
      %v6347 = vsel %vm1469, %v6341, 0
      %6349 = vmatprep.subr.bf16.mxu0 0
      %6350 = vmatpush1.bf16.msra.mxu0 %v6344
      %6351 = vmatprep.subr.bf16.mxu0 0
      %6352 = vmatpush1.bf16.msra.mxu0 0
      %6353 = vmatprep.subr.bf16.mxu0 0
      %6354 = vmatpush1.bf16.msra.mxu0 0
      %6355 = vmatprep.subr.bf16.mxu0 0
      %6356 = vmatpush1.bf16.msra.mxu0 0
      %6357 = vmatprep.subr.bf16.mxu0 0
      %6358 = vmatpush1.bf16.msra.mxu0 0
      %6359 = vmatprep.subr.bf16.mxu0 0
      %6360 = vmatpush1.bf16.msra.mxu0 0
      %6361 = vmatprep.subr.bf16.mxu0 0
      %6362 = vmatpush1.bf16.msra.mxu0 0
      %6363 = vmatprep.subr.bf16.mxu0 0
      %6364 = vmatpush1.bf16.msra.mxu0 0
      %6365 = vmatprep.subr.bf16.mxu0 0
      %6366 = vmatpush1.bf16.msra.mxu0 0
      %6367 = vmatprep.subr.bf16.mxu0 0
      %6368 = vmatpush1.bf16.msra.mxu0 0
      %6369 = vmatprep.subr.bf16.mxu0 0
      %6370 = vmatpush1.bf16.msra.mxu0 0
      %6371 = vmatprep.subr.bf16.mxu0 0
      %6372 = vmatpush1.bf16.msra.mxu0 0
      %6373 = vmatprep.subr.bf16.mxu0 0
      %6374 = vmatpush1.bf16.msra.mxu0 0
      %6375 = vmatprep.subr.bf16.mxu0 0
      %6376 = vmatpush1.bf16.msra.mxu0 0
      %6377 = vmatprep.subr.bf16.mxu0 0
      %6378 = vmatpush1.bf16.msra.mxu0 0
      %6379 = vmatprep.subr.bf16.mxu0 0
      %6380 = vmatpush1.bf16.msra.mxu0 0
      %6381 = vmatprep.mubr.bf16.mxu0 0
      %6382 = vmatmul.mubr.bf16.gmra.mrb[0].mxu0 %v6347
      %v6383 = vpop.f32.mrb[0].mxu0
      %v6384 = vadd.f32 0.0, %v6383
      %v6385 = vpop.f32.mrb[0].mxu0
      %v6386 = vpop.f32.mrb[0].mxu0
      %v6387 = vadd.f32 0.0, %v6386
      %v6388 = vpop.f32.mrb[0].mxu0
      %6389 = vdwg.mxu0
      %6390 = vrot.lane.b32.xlu0 %v6192, 64
      %v6391 = vpop.permute.xlu0 %6390
      %v6394 = vsel %vm1469, %v6342, 0
      %6396 = vmatprep.subr.bf16.mxu0 0
      %6397 = vmatpush1.bf16.msra.mxu0 %v6391
      %6398 = vmatprep.subr.bf16.mxu0 0
      %6399 = vmatpush1.bf16.msra.mxu0 0
      %6400 = vmatprep.subr.bf16.mxu0 0
      %6401 = vmatpush1.bf16.msra.mxu0 0
      %6402 = vmatprep.subr.bf16.mxu0 0
      %6403 = vmatpush1.bf16.msra.mxu0 0
      %6404 = vmatprep.subr.bf16.mxu0 0
      %6405 = vmatpush1.bf16.msra.mxu0 0
      %6406 = vmatprep.subr.bf16.mxu0 0
      %6407 = vmatpush1.bf16.msra.mxu0 0
      %6408 = vmatprep.subr.bf16.mxu0 0
      %6409 = vmatpush1.bf16.msra.mxu0 0
      %6410 = vmatprep.subr.bf16.mxu0 0
      %6411 = vmatpush1.bf16.msra.mxu0 0
      %6412 = vmatprep.subr.bf16.mxu0 0
      %6413 = vmatpush1.bf16.msra.mxu0 0
      %6414 = vmatprep.subr.bf16.mxu0 0
      %6415 = vmatpush1.bf16.msra.mxu0 0
      %6416 = vmatprep.subr.bf16.mxu0 0
      %6417 = vmatpush1.bf16.msra.mxu0 0
      %6418 = vmatprep.subr.bf16.mxu0 0
      %6419 = vmatpush1.bf16.msra.mxu0 0
      %6420 = vmatprep.subr.bf16.mxu0 0
      %6421 = vmatpush1.bf16.msra.mxu0 0
      %6422 = vmatprep.subr.bf16.mxu0 0
      %6423 = vmatpush1.bf16.msra.mxu0 0
      %6424 = vmatprep.subr.bf16.mxu0 0
      %6425 = vmatpush1.bf16.msra.mxu0 0
      %6426 = vmatprep.subr.bf16.mxu0 0
      %6427 = vmatpush1.bf16.msra.mxu0 0
      %6428 = vmatprep.mubr.bf16.mxu0 0
      %6429 = vmatmul.mubr.bf16.gmra.mrb[0].mxu0 %v6394
      %v6430 = vpop.f32.mrb[0].mxu0
      %v6431 = vadd.f32 0.0, %v6430
      %v6432 = vpop.f32.mrb[0].mxu0
      %v6433 = vpop.f32.mrb[0].mxu0
      %v6434 = vadd.f32 0.0, %v6433
      %v6435 = vpop.f32.mrb[0].mxu0
      %6436 = vdwg.mxu0
      %6437 = vrot.lane.b32.xlu0 %v6191, 120
      %v6438 = vpop.permute.xlu0 %6437
      %6439 = vrot.lane.b32.xlu0 %v6191, 88
      %v6440 = vpop.permute.xlu0 %6439
      %v6442 = vsel %vm1367, %v6438, 0
      %v6445 = vsel %vm1367, %v6440, 0
      %6447 = vmatprep.subr.bf16.mxu0 0
      %6448 = vmatpush1.bf16.xpose.msra.mxu0 %v6445
      %6449 = vmatprep.subr.bf16.mxu0 0
      %6450 = vmatpush1.bf16.xpose.msra.mxu0 0
      %6451 = vmatprep.subr.bf16.mxu0 0
      %6452 = vmatpush1.bf16.xpose.msra.mxu0 0
      %6453 = vmatprep.subr.bf16.mxu0 0
      %6454 = vmatpush1.bf16.xpose.msra.mxu0 0
      %6455 = vmatprep.subr.bf16.mxu0 0
      %6456 = vmatpush1.bf16.xpose.msra.mxu0 0
      %6457 = vmatprep.subr.bf16.mxu0 0
      %6458 = vmatpush1.bf16.xpose.msra.mxu0 0
      %6459 = vmatprep.subr.bf16.mxu0 0
      %6460 = vmatpush1.bf16.xpose.msra.mxu0 0
      %6461 = vmatprep.subr.bf16.mxu0 0
      %6462 = vmatpush1.bf16.xpose.msra.mxu0 0
      %6463 = vmatprep.subr.bf16.mxu0 0
      %6464 = vmatpush1.bf16.xpose.msra.mxu0 0
      %6465 = vmatprep.subr.bf16.mxu0 0
      %6466 = vmatpush1.bf16.xpose.msra.mxu0 0
      %6467 = vmatprep.subr.bf16.mxu0 0
      %6468 = vmatpush1.bf16.xpose.msra.mxu0 0
      %6469 = vmatprep.subr.bf16.mxu0 0
      %6470 = vmatpush1.bf16.xpose.msra.mxu0 0
      %6471 = vmatprep.subr.bf16.mxu0 0
      %6472 = vmatpush1.bf16.xpose.msra.mxu0 0
      %6473 = vmatprep.subr.bf16.mxu0 0
      %6474 = vmatpush1.bf16.xpose.msra.mxu0 0
      %6475 = vmatprep.subr.bf16.mxu0 0
      %6476 = vmatpush1.bf16.xpose.msra.mxu0 0
      %6477 = vmatprep.subr.bf16.mxu0 0
      %6478 = vmatpush1.bf16.xpose.msra.mxu0 0
      %6479 = vmatprep.mubr.bf16.mxu0 0
      %6480 = vmatmul.mubr.bf16.gmra.mrb[0].mxu0 %v6442
      %v6481 = vpop.f32.mrb[0].mxu0
      %v6482 = vadd.f32 0.0, %v6481
      %v6483 = vpop.f32.mrb[0].mxu0
      %v6484 = vpop.f32.mrb[0].mxu0
      %v6485 = vadd.f32 0.0, %v6484
      %v6486 = vpop.f32.mrb[0].mxu0
      %6487 = vdwg.mxu0
      %6488 = vrot.lane.b32.xlu0 %v6192, 120
      %v6489 = vpop.permute.xlu0 %6488
      %6490 = vrot.lane.b32.xlu0 %v6192, 88
      %v6491 = vpop.permute.xlu0 %6490
      %v6493 = vsel %vm1367, %v6489, 0
      %v6496 = vsel %vm1367, %v6491, 0
      %6498 = vmatprep.subr.bf16.mxu0 0
      %6499 = vmatpush1.bf16.xpose.msra.mxu0 %v6496
      %6500 = vmatprep.subr.bf16.mxu0 0
      %6501 = vmatpush1.bf16.xpose.msra.mxu0 0
      %6502 = vmatprep.subr.bf16.mxu0 0
      %6503 = vmatpush1.bf16.xpose.msra.mxu0 0
      %6504 = vmatprep.subr.bf16.mxu0 0
      %6505 = vmatpush1.bf16.xpose.msra.mxu0 0
      %6506 = vmatprep.subr.bf16.mxu0 0
      %6507 = vmatpush1.bf16.xpose.msra.mxu0 0
      %6508 = vmatprep.subr.bf16.mxu0 0
      %6509 = vmatpush1.bf16.xpose.msra.mxu0 0
      %6510 = vmatprep.subr.bf16.mxu0 0
      %6511 = vmatpush1.bf16.xpose.msra.mxu0 0
      %6512 = vmatprep.subr.bf16.mxu0 0
      %6513 = vmatpush1.bf16.xpose.msra.mxu0 0
      %6514 = vmatprep.subr.bf16.mxu0 0
      %6515 = vmatpush1.bf16.xpose.msra.mxu0 0
      %6516 = vmatprep.subr.bf16.mxu0 0
      %6517 = vmatpush1.bf16.xpose.msra.mxu0 0
      %6518 = vmatprep.subr.bf16.mxu0 0
      %6519 = vmatpush1.bf16.xpose.msra.mxu0 0
      %6520 = vmatprep.subr.bf16.mxu0 0
      %6521 = vmatpush1.bf16.xpose.msra.mxu0 0
      %6522 = vmatprep.subr.bf16.mxu0 0
      %6523 = vmatpush1.bf16.xpose.msra.mxu0 0
      %6524 = vmatprep.subr.bf16.mxu0 0
      %6525 = vmatpush1.bf16.xpose.msra.mxu0 0
      %6526 = vmatprep.subr.bf16.mxu0 0
      %6527 = vmatpush1.bf16.xpose.msra.mxu0 0
      %6528 = vmatprep.subr.bf16.mxu0 0
      %6529 = vmatpush1.bf16.xpose.msra.mxu0 0
      %6530 = vmatprep.mubr.bf16.mxu0 0
      %6531 = vmatmul.mubr.bf16.gmra.mrb[0].mxu0 %v6493
      %v6532 = vpop.f32.mrb[0].mxu0
      %v6533 = vadd.f32 0.0, %v6532
      %v6534 = vpop.f32.mrb[0].mxu0
      %v6535 = vpop.f32.mrb[0].mxu0
      %v6536 = vadd.f32 0.0, %v6535
      %v6537 = vpop.f32.mrb[0].mxu0
      %6538 = vdwg.mxu0
      %v6539 = vmul.f32 %v6482, 0.35355338
      %v6540 = vmul.f32 %v6485, 0.35355338
      %v6541 = vmul.f32 %v6533, 0.35355338
      %v6542 = vmul.f32 %v6536, 0.35355338
      %v6543 = vsel %vm1469, %v6539, -inf
      %6544 = vmax.xlane.f32.xlu0 %v6543
      %v6545 = vpop.xlane.xlu0 %6544
      %v6546 = vsel %vm1469, %v6540, -inf
      %6547 = vmax.xlane.f32.xlu0 %v6546
      %v6548 = vpop.xlane.xlu0 %6547
      %v6549 = vsel %vm1469, %v6541, -inf
      %6550 = vmax.xlane.f32.xlu0 %v6549
      %v6551 = vpop.xlane.xlu0 %6550
      %v6552 = vsel %vm1469, %v6542, -inf
      %6553 = vmax.xlane.f32.xlu0 %v6552
      %v6554 = vpop.xlane.xlu0 %6553
      %v6555 = vsub.f32 %v6539, %v6545
      %v6556 = vsub.f32 %v6540, %v6548
      %v6557 = vsub.f32 %v6541, %v6551
      %v6558 = vsub.f32 %v6542, %v6554
      %v6559 = vmul.f32 %v6555, 1.442695
      %v6560 = vpow.pop %v6559
      %v6561 = vmul.f32 %v6556, 1.442695
      %v6562 = vpow.pop %v6561
      %v6563 = vmul.f32 %v6557, 1.442695
      %v6564 = vpow.pop %v6563
      %v6565 = vmul.f32 %v6558, 1.442695
      %v6566 = vpow.pop %v6565
      %v6567 = vsel %vm1469, %v6560, 0.0
      %6568 = vadd.xlane.f32.xlu0 %v6567
      %v6569 = vpop.xlane.xlu0 %6568
      %v6570 = vsel %vm1469, %v6562, 0.0
      %6571 = vadd.xlane.f32.xlu0 %v6570
      %v6572 = vpop.xlane.xlu0 %6571
      %v6573 = vsel %vm1469, %v6564, 0.0
      %6574 = vadd.xlane.f32.xlu0 %v6573
      %v6575 = vpop.xlane.xlu0 %6574
      %v6576 = vsel %vm1469, %v6566, 0.0
      %6577 = vadd.xlane.f32.xlu0 %v6576
      %v6578 = vpop.xlane.xlu0 %6577
      %v6579 = vrcp.pop %v6569
      %v6580 = vrcp.pop %v6572
      %v6581 = vrcp.pop %v6575
      %v6582 = vrcp.pop %v6578
      %v6583 = vmul.f32 %v6560, %v6579
      %v6584 = vmul.f32 %v6562, %v6580
      %v6585 = vmul.f32 %v6564, %v6581
      %v6586 = vmul.f32 %v6566, %v6582
      %v6587 = vpack.c.bf16 %v6584, %v6583
      %v6588 = vpack.c.bf16 %v6586, %v6585
      %6589 = vrot.lane.b32.xlu0 %v6191, 56
      %v6590 = vpop.permute.xlu0 %6589
      %v6593 = vsel %vm1469, %v6587, 0
      %6595 = vmatprep.subr.bf16.mxu0 0
      %6596 = vmatpush1.bf16.msra.mxu0 %v6590
      %6597 = vmatprep.subr.bf16.mxu0 0
      %6598 = vmatpush1.bf16.msra.mxu0 0
      %6599 = vmatprep.subr.bf16.mxu0 0
      %6600 = vmatpush1.bf16.msra.mxu0 0
      %6601 = vmatprep.subr.bf16.mxu0 0
      %6602 = vmatpush1.bf16.msra.mxu0 0
      %6603 = vmatprep.subr.bf16.mxu0 0
      %6604 = vmatpush1.bf16.msra.mxu0 0
      %6605 = vmatprep.subr.bf16.mxu0 0
      %6606 = vmatpush1.bf16.msra.mxu0 0
      %6607 = vmatprep.subr.bf16.mxu0 0
      %6608 = vmatpush1.bf16.msra.mxu0 0
      %6609 = vmatprep.subr.bf16.mxu0 0
      %6610 = vmatpush1.bf16.msra.mxu0 0
      %6611 = vmatprep.subr.bf16.mxu0 0
      %6612 = vmatpush1.bf16.msra.mxu0 0
      %6613 = vmatprep.subr.bf16.mxu0 0
      %6614 = vmatpush1.bf16.msra.mxu0 0
      %6615 = vmatprep.subr.bf16.mxu0 0
      %6616 = vmatpush1.bf16.msra.mxu0 0
      %6617 = vmatprep.subr.bf16.mxu0 0
      %6618 = vmatpush1.bf16.msra.mxu0 0
      %6619 = vmatprep.subr.bf16.mxu0 0
      %6620 = vmatpush1.bf16.msra.mxu0 0
      %6621 = vmatprep.subr.bf16.mxu0 0
      %6622 = vmatpush1.bf16.msra.mxu0 0
      %6623 = vmatprep.subr.bf16.mxu0 0
      %6624 = vmatpush1.bf16.msra.mxu0 0
      %6625 = vmatprep.subr.bf16.mxu0 0
      %6626 = vmatpush1.bf16.msra.mxu0 0
      %6627 = vmatprep.mubr.bf16.mxu0 0
      %6628 = vmatmul.mubr.bf16.gmra.mrb[0].mxu0 %v6593
      %v6629 = vpop.f32.mrb[0].mxu0
      %v6630 = vadd.f32 0.0, %v6629
      %v6631 = vpop.f32.mrb[0].mxu0
      %v6632 = vpop.f32.mrb[0].mxu0
      %v6633 = vadd.f32 0.0, %v6632
      %v6634 = vpop.f32.mrb[0].mxu0
      %6635 = vdwg.mxu0
      %6636 = vrot.lane.b32.xlu0 %v6192, 56
      %v6637 = vpop.permute.xlu0 %6636
      %v6640 = vsel %vm1469, %v6588, 0
      %6642 = vmatprep.subr.bf16.mxu0 0
      %6643 = vmatpush1.bf16.msra.mxu0 %v6637
      %6644 = vmatprep.subr.bf16.mxu0 0
      %6645 = vmatpush1.bf16.msra.mxu0 0
      %6646 = vmatprep.subr.bf16.mxu0 0
      %6647 = vmatpush1.bf16.msra.mxu0 0
      %6648 = vmatprep.subr.bf16.mxu0 0
      %6649 = vmatpush1.bf16.msra.mxu0 0
      %6650 = vmatprep.subr.bf16.mxu0 0
      %6651 = vmatpush1.bf16.msra.mxu0 0
      %6652 = vmatprep.subr.bf16.mxu0 0
      %6653 = vmatpush1.bf16.msra.mxu0 0
      %6654 = vmatprep.subr.bf16.mxu0 0
      %6655 = vmatpush1.bf16.msra.mxu0 0
      %6656 = vmatprep.subr.bf16.mxu0 0
      %6657 = vmatpush1.bf16.msra.mxu0 0
      %6658 = vmatprep.subr.bf16.mxu0 0
      %6659 = vmatpush1.bf16.msra.mxu0 0
      %6660 = vmatprep.subr.bf16.mxu0 0
      %6661 = vmatpush1.bf16.msra.mxu0 0
      %6662 = vmatprep.subr.bf16.mxu0 0
      %6663 = vmatpush1.bf16.msra.mxu0 0
      %6664 = vmatprep.subr.bf16.mxu0 0
      %6665 = vmatpush1.bf16.msra.mxu0 0
      %6666 = vmatprep.subr.bf16.mxu0 0
      %6667 = vmatpush1.bf16.msra.mxu0 0
      %6668 = vmatprep.subr.bf16.mxu0 0
      %6669 = vmatpush1.bf16.msra.mxu0 0
      %6670 = vmatprep.subr.bf16.mxu0 0
      %6671 = vmatpush1.bf16.msra.mxu0 0
      %6672 = vmatprep.subr.bf16.mxu0 0
      %6673 = vmatpush1.bf16.msra.mxu0 0
      %6674 = vmatprep.mubr.bf16.mxu0 0
      %6675 = vmatmul.mubr.bf16.gmra.mrb[0].mxu0 %v6640
      %v6676 = vpop.f32.mrb[0].mxu0
      %v6677 = vadd.f32 0.0, %v6676
      %v6678 = vpop.f32.mrb[0].mxu0
      %v6679 = vpop.f32.mrb[0].mxu0
      %v6680 = vadd.f32 0.0, %v6679
      %v6681 = vpop.f32.mrb[0].mxu0
      %6682 = vdwg.mxu0
      %6683 = vrot.lane.b32.xlu0 %v6191, 112
      %v6684 = vpop.permute.xlu0 %6683
      %6685 = vrot.lane.b32.xlu0 %v6191, 80
      %v6686 = vpop.permute.xlu0 %6685
      %v6688 = vsel %vm1367, %v6684, 0
      %v6691 = vsel %vm1367, %v6686, 0
      %6693 = vmatprep.subr.bf16.mxu0 0
      %6694 = vmatpush1.bf16.xpose.msra.mxu0 %v6691
      %6695 = vmatprep.subr.bf16.mxu0 0
      %6696 = vmatpush1.bf16.xpose.msra.mxu0 0
      %6697 = vmatprep.subr.bf16.mxu0 0
      %6698 = vmatpush1.bf16.xpose.msra.mxu0 0
      %6699 = vmatprep.subr.bf16.mxu0 0
      %6700 = vmatpush1.bf16.xpose.msra.mxu0 0
      %6701 = vmatprep.subr.bf16.mxu0 0
      %6702 = vmatpush1.bf16.xpose.msra.mxu0 0
      %6703 = vmatprep.subr.bf16.mxu0 0
      %6704 = vmatpush1.bf16.xpose.msra.mxu0 0
      %6705 = vmatprep.subr.bf16.mxu0 0
      %6706 = vmatpush1.bf16.xpose.msra.mxu0 0
      %6707 = vmatprep.subr.bf16.mxu0 0
      %6708 = vmatpush1.bf16.xpose.msra.mxu0 0
      %6709 = vmatprep.subr.bf16.mxu0 0
      %6710 = vmatpush1.bf16.xpose.msra.mxu0 0
      %6711 = vmatprep.subr.bf16.mxu0 0
      %6712 = vmatpush1.bf16.xpose.msra.mxu0 0
      %6713 = vmatprep.subr.bf16.mxu0 0
      %6714 = vmatpush1.bf16.xpose.msra.mxu0 0
      %6715 = vmatprep.subr.bf16.mxu0 0
      %6716 = vmatpush1.bf16.xpose.msra.mxu0 0
      %6717 = vmatprep.subr.bf16.mxu0 0
      %6718 = vmatpush1.bf16.xpose.msra.mxu0 0
      %6719 = vmatprep.subr.bf16.mxu0 0
      %6720 = vmatpush1.bf16.xpose.msra.mxu0 0
      %6721 = vmatprep.subr.bf16.mxu0 0
      %6722 = vmatpush1.bf16.xpose.msra.mxu0 0
      %6723 = vmatprep.subr.bf16.mxu0 0
      %6724 = vmatpush1.bf16.xpose.msra.mxu0 0
      %6725 = vmatprep.mubr.bf16.mxu0 0
      %6726 = vmatmul.mubr.bf16.gmra.mrb[0].mxu0 %v6688
      %v6727 = vpop.f32.mrb[0].mxu0
      %v6728 = vadd.f32 0.0, %v6727
      %v6729 = vpop.f32.mrb[0].mxu0
      %v6730 = vpop.f32.mrb[0].mxu0
      %v6731 = vadd.f32 0.0, %v6730
      %v6732 = vpop.f32.mrb[0].mxu0
      %6733 = vdwg.mxu0
      %6734 = vrot.lane.b32.xlu0 %v6192, 112
      %v6735 = vpop.permute.xlu0 %6734
      %6736 = vrot.lane.b32.xlu0 %v6192, 80
      %v6737 = vpop.permute.xlu0 %6736
      %v6739 = vsel %vm1367, %v6735, 0
      %v6742 = vsel %vm1367, %v6737, 0
      %6744 = vmatprep.subr.bf16.mxu0 0
      %6745 = vmatpush1.bf16.xpose.msra.mxu0 %v6742
      %6746 = vmatprep.subr.bf16.mxu0 0
      %6747 = vmatpush1.bf16.xpose.msra.mxu0 0
      %6748 = vmatprep.subr.bf16.mxu0 0
      %6749 = vmatpush1.bf16.xpose.msra.mxu0 0
      %6750 = vmatprep.subr.bf16.mxu0 0
      %6751 = vmatpush1.bf16.xpose.msra.mxu0 0
      %6752 = vmatprep.subr.bf16.mxu0 0
      %6753 = vmatpush1.bf16.xpose.msra.mxu0 0
      %6754 = vmatprep.subr.bf16.mxu0 0
      %6755 = vmatpush1.bf16.xpose.msra.mxu0 0
      %6756 = vmatprep.subr.bf16.mxu0 0
      %6757 = vmatpush1.bf16.xpose.msra.mxu0 0
      %6758 = vmatprep.subr.bf16.mxu0 0
      %6759 = vmatpush1.bf16.xpose.msra.mxu0 0
      %6760 = vmatprep.subr.bf16.mxu0 0
      %6761 = vmatpush1.bf16.xpose.msra.mxu0 0
      %6762 = vmatprep.subr.bf16.mxu0 0
      %6763 = vmatpush1.bf16.xpose.msra.mxu0 0
      %6764 = vmatprep.subr.bf16.mxu0 0
      %6765 = vmatpush1.bf16.xpose.msra.mxu0 0
      %6766 = vmatprep.subr.bf16.mxu0 0
      %6767 = vmatpush1.bf16.xpose.msra.mxu0 0
      %6768 = vmatprep.subr.bf16.mxu0 0
      %6769 = vmatpush1.bf16.xpose.msra.mxu0 0
      %6770 = vmatprep.subr.bf16.mxu0 0
      %6771 = vmatpush1.bf16.xpose.msra.mxu0 0
      %6772 = vmatprep.subr.bf16.mxu0 0
      %6773 = vmatpush1.bf16.xpose.msra.mxu0 0
      %6774 = vmatprep.subr.bf16.mxu0 0
      %6775 = vmatpush1.bf16.xpose.msra.mxu0 0
      %6776 = vmatprep.mubr.bf16.mxu0 0
      %6777 = vmatmul.mubr.bf16.gmra.mrb[0].mxu0 %v6739
      %v6778 = vpop.f32.mrb[0].mxu0
      %v6779 = vadd.f32 0.0, %v6778
      %v6780 = vpop.f32.mrb[0].mxu0
      %v6781 = vpop.f32.mrb[0].mxu0
      %v6782 = vadd.f32 0.0, %v6781
      %v6783 = vpop.f32.mrb[0].mxu0
      %6784 = vdwg.mxu0
      %v6785 = vmul.f32 %v6728, 0.35355338
      %v6786 = vmul.f32 %v6731, 0.35355338
      %v6787 = vmul.f32 %v6779, 0.35355338
      %v6788 = vmul.f32 %v6782, 0.35355338
      %v6789 = vsel %vm1469, %v6785, -inf
      %6790 = vmax.xlane.f32.xlu0 %v6789
      %v6791 = vpop.xlane.xlu0 %6790
      %v6792 = vsel %vm1469, %v6786, -inf
      %6793 = vmax.xlane.f32.xlu0 %v6792
      %v6794 = vpop.xlane.xlu0 %6793
      %v6795 = vsel %vm1469, %v6787, -inf
      %6796 = vmax.xlane.f32.xlu0 %v6795
      %v6797 = vpop.xlane.xlu0 %6796
      %v6798 = vsel %vm1469, %v6788, -inf
      %6799 = vmax.xlane.f32.xlu0 %v6798
      %v6800 = vpop.xlane.xlu0 %6799
      %v6801 = vsub.f32 %v6785, %v6791
      %v6802 = vsub.f32 %v6786, %v6794
      %v6803 = vsub.f32 %v6787, %v6797
      %v6804 = vsub.f32 %v6788, %v6800
      %v6805 = vmul.f32 %v6801, 1.442695
      %v6806 = vpow.pop %v6805
      %v6807 = vmul.f32 %v6802, 1.442695
      %v6808 = vpow.pop %v6807
      %v6809 = vmul.f32 %v6803, 1.442695
      %v6810 = vpow.pop %v6809
      %v6811 = vmul.f32 %v6804, 1.442695
      %v6812 = vpow.pop %v6811
      %v6813 = vsel %vm1469, %v6806, 0.0
      %6814 = vadd.xlane.f32.xlu0 %v6813
      %v6815 = vpop.xlane.xlu0 %6814
      %v6816 = vsel %vm1469, %v6808, 0.0
      %6817 = vadd.xlane.f32.xlu0 %v6816
      %v6818 = vpop.xlane.xlu0 %6817
      %v6819 = vsel %vm1469, %v6810, 0.0
      %6820 = vadd.xlane.f32.xlu0 %v6819
      %v6821 = vpop.xlane.xlu0 %6820
      %v6822 = vsel %vm1469, %v6812, 0.0
      %6823 = vadd.xlane.f32.xlu0 %v6822
      %v6824 = vpop.xlane.xlu0 %6823
      %v6825 = vrcp.pop %v6815
      %v6826 = vrcp.pop %v6818
      %v6827 = vrcp.pop %v6821
      %v6828 = vrcp.pop %v6824
      %v6829 = vmul.f32 %v6806, %v6825
      %v6830 = vmul.f32 %v6808, %v6826
      %v6831 = vmul.f32 %v6810, %v6827
      %v6832 = vmul.f32 %v6812, %v6828
      %v6833 = vpack.c.bf16 %v6830, %v6829
      %v6834 = vpack.c.bf16 %v6832, %v6831
      %6835 = vrot.lane.b32.xlu0 %v6191, 48
      %v6836 = vpop.permute.xlu0 %6835
      %v6839 = vsel %vm1469, %v6833, 0
      %6841 = vmatprep.subr.bf16.mxu0 0
      %6842 = vmatpush1.bf16.msra.mxu0 %v6836
      %6843 = vmatprep.subr.bf16.mxu0 0
      %6844 = vmatpush1.bf16.msra.mxu0 0
      %6845 = vmatprep.subr.bf16.mxu0 0
      %6846 = vmatpush1.bf16.msra.mxu0 0
      %6847 = vmatprep.subr.bf16.mxu0 0
      %6848 = vmatpush1.bf16.msra.mxu0 0
      %6849 = vmatprep.subr.bf16.mxu0 0
      %6850 = vmatpush1.bf16.msra.mxu0 0
      %6851 = vmatprep.subr.bf16.mxu0 0
      %6852 = vmatpush1.bf16.msra.mxu0 0
      %6853 = vmatprep.subr.bf16.mxu0 0
      %6854 = vmatpush1.bf16.msra.mxu0 0
      %6855 = vmatprep.subr.bf16.mxu0 0
      %6856 = vmatpush1.bf16.msra.mxu0 0
      %6857 = vmatprep.subr.bf16.mxu0 0
      %6858 = vmatpush1.bf16.msra.mxu0 0
      %6859 = vmatprep.subr.bf16.mxu0 0
      %6860 = vmatpush1.bf16.msra.mxu0 0
      %6861 = vmatprep.subr.bf16.mxu0 0
      %6862 = vmatpush1.bf16.msra.mxu0 0
      %6863 = vmatprep.subr.bf16.mxu0 0
      %6864 = vmatpush1.bf16.msra.mxu0 0
      %6865 = vmatprep.subr.bf16.mxu0 0
      %6866 = vmatpush1.bf16.msra.mxu0 0
      %6867 = vmatprep.subr.bf16.mxu0 0
      %6868 = vmatpush1.bf16.msra.mxu0 0
      %6869 = vmatprep.subr.bf16.mxu0 0
      %6870 = vmatpush1.bf16.msra.mxu0 0
      %6871 = vmatprep.subr.bf16.mxu0 0
      %6872 = vmatpush1.bf16.msra.mxu0 0
      %6873 = vmatprep.mubr.bf16.mxu0 0
      %6874 = vmatmul.mubr.bf16.gmra.mrb[0].mxu0 %v6839
      %v6875 = vpop.f32.mrb[0].mxu0
      %v6876 = vadd.f32 0.0, %v6875
      %v6877 = vpop.f32.mrb[0].mxu0
      %v6878 = vpop.f32.mrb[0].mxu0
      %v6879 = vadd.f32 0.0, %v6878
      %v6880 = vpop.f32.mrb[0].mxu0
      %6881 = vdwg.mxu0
      %6882 = vrot.lane.b32.xlu0 %v6192, 48
      %v6883 = vpop.permute.xlu0 %6882
      %v6886 = vsel %vm1469, %v6834, 0
      %6888 = vmatprep.subr.bf16.mxu0 0
      %6889 = vmatpush1.bf16.msra.mxu0 %v6883
      %6890 = vmatprep.subr.bf16.mxu0 0
      %6891 = vmatpush1.bf16.msra.mxu0 0
      %6892 = vmatprep.subr.bf16.mxu0 0
      %6893 = vmatpush1.bf16.msra.mxu0 0
      %6894 = vmatprep.subr.bf16.mxu0 0
      %6895 = vmatpush1.bf16.msra.mxu0 0
      %6896 = vmatprep.subr.bf16.mxu0 0
      %6897 = vmatpush1.bf16.msra.mxu0 0
      %6898 = vmatprep.subr.bf16.mxu0 0
      %6899 = vmatpush1.bf16.msra.mxu0 0
      %6900 = vmatprep.subr.bf16.mxu0 0
      %6901 = vmatpush1.bf16.msra.mxu0 0
      %6902 = vmatprep.subr.bf16.mxu0 0
      %6903 = vmatpush1.bf16.msra.mxu0 0
      %6904 = vmatprep.subr.bf16.mxu0 0
      %6905 = vmatpush1.bf16.msra.mxu0 0
      %6906 = vmatprep.subr.bf16.mxu0 0
      %6907 = vmatpush1.bf16.msra.mxu0 0
      %6908 = vmatprep.subr.bf16.mxu0 0
      %6909 = vmatpush1.bf16.msra.mxu0 0
      %6910 = vmatprep.subr.bf16.mxu0 0
      %6911 = vmatpush1.bf16.msra.mxu0 0
      %6912 = vmatprep.subr.bf16.mxu0 0
      %6913 = vmatpush1.bf16.msra.mxu0 0
      %6914 = vmatprep.subr.bf16.mxu0 0
      %6915 = vmatpush1.bf16.msra.mxu0 0
      %6916 = vmatprep.subr.bf16.mxu0 0
      %6917 = vmatpush1.bf16.msra.mxu0 0
      %6918 = vmatprep.subr.bf16.mxu0 0
      %6919 = vmatpush1.bf16.msra.mxu0 0
      %6920 = vmatprep.mubr.bf16.mxu0 0
      %6921 = vmatmul.mubr.bf16.gmra.mrb[0].mxu0 %v6886
      %v6922 = vpop.f32.mrb[0].mxu0
      %v6923 = vadd.f32 0.0, %v6922
      %v6924 = vpop.f32.mrb[0].mxu0
      %v6925 = vpop.f32.mrb[0].mxu0
      %v6926 = vadd.f32 0.0, %v6925
      %v6927 = vpop.f32.mrb[0].mxu0
      %6928 = vdwg.mxu0
      %6929 = vrot.lane.b32.xlu0 %v6191, 104
      %v6930 = vpop.permute.xlu0 %6929
      %6931 = vrot.lane.b32.xlu0 %v6191, 72
      %v6932 = vpop.permute.xlu0 %6931
      %v6934 = vsel %vm1367, %v6930, 0
      %v6937 = vsel %vm1367, %v6932, 0
      %6939 = vmatprep.subr.bf16.mxu0 0
      %6940 = vmatpush1.bf16.xpose.msra.mxu0 %v6937
      %6941 = vmatprep.subr.bf16.mxu0 0
      %6942 = vmatpush1.bf16.xpose.msra.mxu0 0
      %6943 = vmatprep.subr.bf16.mxu0 0
      %6944 = vmatpush1.bf16.xpose.msra.mxu0 0
      %6945 = vmatprep.subr.bf16.mxu0 0
      %6946 = vmatpush1.bf16.xpose.msra.mxu0 0
      %6947 = vmatprep.subr.bf16.mxu0 0
      %6948 = vmatpush1.bf16.xpose.msra.mxu0 0
      %6949 = vmatprep.subr.bf16.mxu0 0
      %6950 = vmatpush1.bf16.xpose.msra.mxu0 0
      %6951 = vmatprep.subr.bf16.mxu0 0
      %6952 = vmatpush1.bf16.xpose.msra.mxu0 0
      %6953 = vmatprep.subr.bf16.mxu0 0
      %6954 = vmatpush1.bf16.xpose.msra.mxu0 0
      %6955 = vmatprep.subr.bf16.mxu0 0
      %6956 = vmatpush1.bf16.xpose.msra.mxu0 0
      %6957 = vmatprep.subr.bf16.mxu0 0
      %6958 = vmatpush1.bf16.xpose.msra.mxu0 0
      %6959 = vmatprep.subr.bf16.mxu0 0
      %6960 = vmatpush1.bf16.xpose.msra.mxu0 0
      %6961 = vmatprep.subr.bf16.mxu0 0
      %6962 = vmatpush1.bf16.xpose.msra.mxu0 0
      %6963 = vmatprep.subr.bf16.mxu0 0
      %6964 = vmatpush1.bf16.xpose.msra.mxu0 0
      %6965 = vmatprep.subr.bf16.mxu0 0
      %6966 = vmatpush1.bf16.xpose.msra.mxu0 0
      %6967 = vmatprep.subr.bf16.mxu0 0
      %6968 = vmatpush1.bf16.xpose.msra.mxu0 0
      %6969 = vmatprep.subr.bf16.mxu0 0
      %6970 = vmatpush1.bf16.xpose.msra.mxu0 0
      %6971 = vmatprep.mubr.bf16.mxu0 0
      %6972 = vmatmul.mubr.bf16.gmra.mrb[0].mxu0 %v6934
      %v6973 = vpop.f32.mrb[0].mxu0
      %v6974 = vadd.f32 0.0, %v6973
      %v6975 = vpop.f32.mrb[0].mxu0
      %v6976 = vpop.f32.mrb[0].mxu0
      %v6977 = vadd.f32 0.0, %v6976
      %v6978 = vpop.f32.mrb[0].mxu0
      %6979 = vdwg.mxu0
      %6980 = vrot.lane.b32.xlu0 %v6192, 104
      %v6981 = vpop.permute.xlu0 %6980
      %6982 = vrot.lane.b32.xlu0 %v6192, 72
      %v6983 = vpop.permute.xlu0 %6982
      %v6985 = vsel %vm1367, %v6981, 0
      %v6988 = vsel %vm1367, %v6983, 0
      %6990 = vmatprep.subr.bf16.mxu0 0
      %6991 = vmatpush1.bf16.xpose.msra.mxu0 %v6988
      %6992 = vmatprep.subr.bf16.mxu0 0
      %6993 = vmatpush1.bf16.xpose.msra.mxu0 0
      %6994 = vmatprep.subr.bf16.mxu0 0
      %6995 = vmatpush1.bf16.xpose.msra.mxu0 0
      %6996 = vmatprep.subr.bf16.mxu0 0
      %6997 = vmatpush1.bf16.xpose.msra.mxu0 0
      %6998 = vmatprep.subr.bf16.mxu0 0
      %6999 = vmatpush1.bf16.xpose.msra.mxu0 0
      %7000 = vmatprep.subr.bf16.mxu0 0
      %7001 = vmatpush1.bf16.xpose.msra.mxu0 0
      %7002 = vmatprep.subr.bf16.mxu0 0
      %7003 = vmatpush1.bf16.xpose.msra.mxu0 0
      %7004 = vmatprep.subr.bf16.mxu0 0
      %7005 = vmatpush1.bf16.xpose.msra.mxu0 0
      %7006 = vmatprep.subr.bf16.mxu0 0
      %7007 = vmatpush1.bf16.xpose.msra.mxu0 0
      %7008 = vmatprep.subr.bf16.mxu0 0
      %7009 = vmatpush1.bf16.xpose.msra.mxu0 0
      %7010 = vmatprep.subr.bf16.mxu0 0
      %7011 = vmatpush1.bf16.xpose.msra.mxu0 0
      %7012 = vmatprep.subr.bf16.mxu0 0
      %7013 = vmatpush1.bf16.xpose.msra.mxu0 0
      %7014 = vmatprep.subr.bf16.mxu0 0
      %7015 = vmatpush1.bf16.xpose.msra.mxu0 0
      %7016 = vmatprep.subr.bf16.mxu0 0
      %7017 = vmatpush1.bf16.xpose.msra.mxu0 0
      %7018 = vmatprep.subr.bf16.mxu0 0
      %7019 = vmatpush1.bf16.xpose.msra.mxu0 0
      %7020 = vmatprep.subr.bf16.mxu0 0
      %7021 = vmatpush1.bf16.xpose.msra.mxu0 0
      %7022 = vmatprep.mubr.bf16.mxu0 0
      %7023 = vmatmul.mubr.bf16.gmra.mrb[0].mxu0 %v6985
      %v7024 = vpop.f32.mrb[0].mxu0
      %v7025 = vadd.f32 0.0, %v7024
      %v7026 = vpop.f32.mrb[0].mxu0
      %v7027 = vpop.f32.mrb[0].mxu0
      %v7028 = vadd.f32 0.0, %v7027
      %v7029 = vpop.f32.mrb[0].mxu0
      %7030 = vdwg.mxu0
      %v7031 = vmul.f32 %v6974, 0.35355338
      %v7032 = vmul.f32 %v6977, 0.35355338
      %v7033 = vmul.f32 %v7025, 0.35355338
      %v7034 = vmul.f32 %v7028, 0.35355338
      %v7035 = vsel %vm1469, %v7031, -inf
      %7036 = vmax.xlane.f32.xlu0 %v7035
      %v7037 = vpop.xlane.xlu0 %7036
      %v7038 = vsel %vm1469, %v7032, -inf
      %7039 = vmax.xlane.f32.xlu0 %v7038
      %v7040 = vpop.xlane.xlu0 %7039
      %v7041 = vsel %vm1469, %v7033, -inf
      %7042 = vmax.xlane.f32.xlu0 %v7041
      %v7043 = vpop.xlane.xlu0 %7042
      %v7044 = vsel %vm1469, %v7034, -inf
      %7045 = vmax.xlane.f32.xlu0 %v7044
      %v7046 = vpop.xlane.xlu0 %7045
      %v7047 = vsub.f32 %v7031, %v7037
      %v7048 = vsub.f32 %v7032, %v7040
      %v7049 = vsub.f32 %v7033, %v7043
      %v7050 = vsub.f32 %v7034, %v7046
      %v7051 = vmul.f32 %v7047, 1.442695
      %v7052 = vpow.pop %v7051
      %v7053 = vmul.f32 %v7048, 1.442695
      %v7054 = vpow.pop %v7053
      %v7055 = vmul.f32 %v7049, 1.442695
      %v7056 = vpow.pop %v7055
      %v7057 = vmul.f32 %v7050, 1.442695
      %v7058 = vpow.pop %v7057
      %v7059 = vsel %vm1469, %v7052, 0.0
      %7060 = vadd.xlane.f32.xlu0 %v7059
      %v7061 = vpop.xlane.xlu0 %7060
      %v7062 = vsel %vm1469, %v7054, 0.0
      %7063 = vadd.xlane.f32.xlu0 %v7062
      %v7064 = vpop.xlane.xlu0 %7063
      %v7065 = vsel %vm1469, %v7056, 0.0
      %7066 = vadd.xlane.f32.xlu0 %v7065
      %v7067 = vpop.xlane.xlu0 %7066
      %v7068 = vsel %vm1469, %v7058, 0.0
      %7069 = vadd.xlane.f32.xlu0 %v7068
      %v7070 = vpop.xlane.xlu0 %7069
      %v7071 = vrcp.pop %v7061
      %v7072 = vrcp.pop %v7064
      %v7073 = vrcp.pop %v7067
      %v7074 = vrcp.pop %v7070
      %v7075 = vmul.f32 %v7052, %v7071
      %v7076 = vmul.f32 %v7054, %v7072
      %v7077 = vmul.f32 %v7056, %v7073
      %v7078 = vmul.f32 %v7058, %v7074
      %v7079 = vpack.c.bf16 %v7076, %v7075
      %v7080 = vpack.c.bf16 %v7078, %v7077
      %7081 = vrot.lane.b32.xlu0 %v6191, 40
      %v7082 = vpop.permute.xlu0 %7081
      %v7085 = vsel %vm1469, %v7079, 0
      %7087 = vmatprep.subr.bf16.mxu0 0
      %7088 = vmatpush1.bf16.msra.mxu0 %v7082
      %7089 = vmatprep.subr.bf16.mxu0 0
      %7090 = vmatpush1.bf16.msra.mxu0 0
      %7091 = vmatprep.subr.bf16.mxu0 0
      %7092 = vmatpush1.bf16.msra.mxu0 0
      %7093 = vmatprep.subr.bf16.mxu0 0
      %7094 = vmatpush1.bf16.msra.mxu0 0
      %7095 = vmatprep.subr.bf16.mxu0 0
      %7096 = vmatpush1.bf16.msra.mxu0 0
      %7097 = vmatprep.subr.bf16.mxu0 0
      %7098 = vmatpush1.bf16.msra.mxu0 0
      %7099 = vmatprep.subr.bf16.mxu0 0
      %7100 = vmatpush1.bf16.msra.mxu0 0
      %7101 = vmatprep.subr.bf16.mxu0 0
      %7102 = vmatpush1.bf16.msra.mxu0 0
      %7103 = vmatprep.subr.bf16.mxu0 0
      %7104 = vmatpush1.bf16.msra.mxu0 0
      %7105 = vmatprep.subr.bf16.mxu0 0
      %7106 = vmatpush1.bf16.msra.mxu0 0
      %7107 = vmatprep.subr.bf16.mxu0 0
      %7108 = vmatpush1.bf16.msra.mxu0 0
      %7109 = vmatprep.subr.bf16.mxu0 0
      %7110 = vmatpush1.bf16.msra.mxu0 0
      %7111 = vmatprep.subr.bf16.mxu0 0
      %7112 = vmatpush1.bf16.msra.mxu0 0
      %7113 = vmatprep.subr.bf16.mxu0 0
      %7114 = vmatpush1.bf16.msra.mxu0 0
      %7115 = vmatprep.subr.bf16.mxu0 0
      %7116 = vmatpush1.bf16.msra.mxu0 0
      %7117 = vmatprep.subr.bf16.mxu0 0
      %7118 = vmatpush1.bf16.msra.mxu0 0
      %7119 = vmatprep.mubr.bf16.mxu0 0
      %7120 = vmatmul.mubr.bf16.gmra.mrb[0].mxu0 %v7085
      %v7121 = vpop.f32.mrb[0].mxu0
      %v7122 = vadd.f32 0.0, %v7121
      %v7123 = vpop.f32.mrb[0].mxu0
      %v7124 = vpop.f32.mrb[0].mxu0
      %v7125 = vadd.f32 0.0, %v7124
      %v7126 = vpop.f32.mrb[0].mxu0
      %7127 = vdwg.mxu0
      %7128 = vrot.lane.b32.xlu0 %v6192, 40
      %v7129 = vpop.permute.xlu0 %7128
      %v7132 = vsel %vm1469, %v7080, 0
      %7134 = vmatprep.subr.bf16.mxu0 0
      %7135 = vmatpush1.bf16.msra.mxu0 %v7129
      %7136 = vmatprep.subr.bf16.mxu0 0
      %7137 = vmatpush1.bf16.msra.mxu0 0
      %7138 = vmatprep.subr.bf16.mxu0 0
      %7139 = vmatpush1.bf16.msra.mxu0 0
      %7140 = vmatprep.subr.bf16.mxu0 0
      %7141 = vmatpush1.bf16.msra.mxu0 0
      %7142 = vmatprep.subr.bf16.mxu0 0
      %7143 = vmatpush1.bf16.msra.mxu0 0
      %7144 = vmatprep.subr.bf16.mxu0 0
      %7145 = vmatpush1.bf16.msra.mxu0 0
      %7146 = vmatprep.subr.bf16.mxu0 0
      %7147 = vmatpush1.bf16.msra.mxu0 0
      %7148 = vmatprep.subr.bf16.mxu0 0
      %7149 = vmatpush1.bf16.msra.mxu0 0
      %7150 = vmatprep.subr.bf16.mxu0 0
      %7151 = vmatpush1.bf16.msra.mxu0 0
      %7152 = vmatprep.subr.bf16.mxu0 0
      %7153 = vmatpush1.bf16.msra.mxu0 0
      %7154 = vmatprep.subr.bf16.mxu0 0
      %7155 = vmatpush1.bf16.msra.mxu0 0
      %7156 = vmatprep.subr.bf16.mxu0 0
      %7157 = vmatpush1.bf16.msra.mxu0 0
      %7158 = vmatprep.subr.bf16.mxu0 0
      %7159 = vmatpush1.bf16.msra.mxu0 0
      %7160 = vmatprep.subr.bf16.mxu0 0
      %7161 = vmatpush1.bf16.msra.mxu0 0
      %7162 = vmatprep.subr.bf16.mxu0 0
      %7163 = vmatpush1.bf16.msra.mxu0 0
      %7164 = vmatprep.subr.bf16.mxu0 0
      %7165 = vmatpush1.bf16.msra.mxu0 0
      %7166 = vmatprep.mubr.bf16.mxu0 0
      %7167 = vmatmul.mubr.bf16.gmra.mrb[0].mxu0 %v7132
      %v7168 = vpop.f32.mrb[0].mxu0
      %v7169 = vadd.f32 0.0, %v7168
      %v7170 = vpop.f32.mrb[0].mxu0
      %v7171 = vpop.f32.mrb[0].mxu0
      %v7172 = vadd.f32 0.0, %v7171
      %v7173 = vpop.f32.mrb[0].mxu0
      %7174 = vdwg.mxu0
      %7179 = vrot.lane.b32.xlu0 %v6630, 8
      %v7180 = vpop.permute.xlu0 %7179
      %7181 = vrot.lane.b32.xlu0 %v6633, 8
      %v7182 = vpop.permute.xlu0 %7181
      %7183 = vrot.lane.b32.xlu0 %v6677, 8
      %v7184 = vpop.permute.xlu0 %7183
      %7185 = vrot.lane.b32.xlu0 %v6680, 8
      %v7186 = vpop.permute.xlu0 %7185
      %7195 = vrot.lane.b32.xlu0 %v6876, 16
      %v7196 = vpop.permute.xlu0 %7195
      %7197 = vrot.lane.b32.xlu0 %v6879, 16
      %v7198 = vpop.permute.xlu0 %7197
      %7199 = vrot.lane.b32.xlu0 %v6923, 16
      %v7200 = vpop.permute.xlu0 %7199
      %7201 = vrot.lane.b32.xlu0 %v6926, 16
      %v7202 = vpop.permute.xlu0 %7201
      %7211 = vrot.lane.b32.xlu0 %v7122, 24
      %v7212 = vpop.permute.xlu0 %7211
      %7213 = vrot.lane.b32.xlu0 %v7125, 24
      %v7214 = vpop.permute.xlu0 %7213
      %7215 = vrot.lane.b32.xlu0 %v7169, 24
      %v7216 = vpop.permute.xlu0 %7215
      %7217 = vrot.lane.b32.xlu0 %v7172, 24
      %v7218 = vpop.permute.xlu0 %7217
      %v7223 = vsel %vm1367, %v6384, %v7180
      %v7224 = vsel %vm1367, %v6387, %v7182
      %v7225 = vsel %vm1367, %v6431, %v7184
      %v7226 = vsel %vm1367, %v6434, %v7186
      %v7227 = vsel %vm1469, %v7223, %v7196
      %v7228 = vsel %vm1469, %v7224, %v7198
      %v7229 = vsel %vm1469, %v7225, %v7200
      %v7230 = vsel %vm1469, %v7226, %v7202
      %v7231 = vsel %vm2404, %v7227, %v7212
      %v7232 = vsel %vm2404, %v7228, %v7214
      %v7233 = vsel %vm2404, %v7229, %v7216
      %v7234 = vsel %vm2404, %v7230, %v7218
      %v7235 = vpack.c.bf16 %v7232, %v7231
      %v7236 = vpack.c.bf16 %v7234, %v7233
      %s7237 = scalar_lea.vmem %s8, 48
      %v7238 = vld [vmem:[%s7237] sm:$0xf]
      %v7239 = vld [vmem:[%s7237 + $0x4] sm:$0xf]
      %v7240 = vld [vmem:[%s7237 + $0x8] sm:$0xf]
      %v7241 = vld [vmem:[%s7237 + $0xc] sm:$0xf]
      %s7242 = scalar_lea.vmem %s9, 3
      %v7243 = vld [vmem:[%s7242] sm:$0x1]
      %v7245 = vlaneseq
      %v7246 = vshrl.u32 %v7245, 7
      %v7247 = vsub.s32 0, %v7246
      %v7248 = vrot.slane %v7243, %v7247
      %v7254 = vunpack.c.l.b16 %v7238
      %v7255 = vunpack.c.l.b16 %v7239
      %v7256 = vunpack.c.l.b16 %v7240
      %v7257 = vunpack.c.l.b16 %v7241
      %v7258 = vpack.c.b16 %v7255, %v7254
      %v7259 = vpack.c.b16 %v7257, %v7256
      %v7263 = vsel %vm1208, %v7235, 0
      %v7266 = vsel %vm1208, %v7236, 0
      %7268 = vmatprep.subr.bf16.mxu0 0
      %7269 = vmatpush1.bf16.msra.mxu0 %v7258
      %7270 = vmatprep.subr.bf16.mxu0 0
      %7271 = vmatpush1.bf16.msra.mxu0 %v7259
      %7272 = vmatprep.subr.bf16.mxu0 0
      %7273 = vmatpush1.bf16.msra.mxu0 0
      %7274 = vmatprep.subr.bf16.mxu0 0
      %7275 = vmatpush1.bf16.msra.mxu0 0
      %7276 = vmatprep.subr.bf16.mxu0 0
      %7277 = vmatpush1.bf16.msra.mxu0 0
      %7278 = vmatprep.subr.bf16.mxu0 0
      %7279 = vmatpush1.bf16.msra.mxu0 0
      %7280 = vmatprep.subr.bf16.mxu0 0
      %7281 = vmatpush1.bf16.msra.mxu0 0
      %7282 = vmatprep.subr.bf16.mxu0 0
      %7283 = vmatpush1.bf16.msra.mxu0 0
      %7284 = vmatprep.subr.bf16.mxu0 0
      %7285 = vmatpush1.bf16.msra.mxu0 0
      %7286 = vmatprep.subr.bf16.mxu0 0
      %7287 = vmatpush1.bf16.msra.mxu0 0
      %7288 = vmatprep.subr.bf16.mxu0 0
      %7289 = vmatpush1.bf16.msra.mxu0 0
      %7290 = vmatprep.subr.bf16.mxu0 0
      %7291 = vmatpush1.bf16.msra.mxu0 0
      %7292 = vmatprep.subr.bf16.mxu0 0
      %7293 = vmatpush1.bf16.msra.mxu0 0
      %7294 = vmatprep.subr.bf16.mxu0 0
      %7295 = vmatpush1.bf16.msra.mxu0 0
      %7296 = vmatprep.subr.bf16.mxu0 0
      %7297 = vmatpush1.bf16.msra.mxu0 0
      %7298 = vmatprep.subr.bf16.mxu0 0
      %7299 = vmatpush1.bf16.msra.mxu0 0
      %7300 = vmatprep.mubr.bf16.mxu0 0
      %7301 = vmatmul.mubr.bf16.gmra.mrb[0].mxu0 %v7263
      %v7302 = vpop.f32.mrb[0].mxu0
      %v7303 = vadd.f32 %v7248, %v7302
      %v7304 = vpop.f32.mrb[0].mxu0
      %v7305 = vpop.f32.mrb[0].mxu0
      %v7306 = vadd.f32 %v7248, %v7305
      %v7307 = vpop.f32.mrb[0].mxu0
      %7308 = vmatprep.mubr.bf16.mxu0 0
      %7309 = vmatmul.mubr.bf16.gmra.mrb[0].mxu0 %v7266
      %v7310 = vpop.f32.mrb[0].mxu0
      %v7311 = vadd.f32 %v7248, %v7310
      %v7312 = vpop.f32.mrb[0].mxu0
      %v7313 = vpop.f32.mrb[0].mxu0
      %v7314 = vadd.f32 %v7248, %v7313
      %v7315 = vpop.f32.mrb[0].mxu0
      %7316 = vdwg.mxu0
      %v7317 = vadd.f32 %v6029, %v7303
      %v7318 = vadd.f32 %v6030, %v7306
      %v7319 = vadd.f32 %v6031, %v7311
      %v7320 = vadd.f32 %v6032, %v7314
      %s7321 = scalar_lea.vmem %s10, 3
      %v7322 = vld [vmem:[%s7321] sm:$0x1]
      %s7323 = scalar_lea.vmem %s11, 3
      %v7324 = vld [vmem:[%s7323] sm:$0x1]
      %v7325 = vsel %vm1208, %v7317, 0.0
      %7326 = vadd.xlane.f32.xlu0 %v7325
      %v7327 = vpop.xlane.xlu0 %7326
      %v7328 = vsel %vm1208, %v7318, 0.0
      %7329 = vadd.xlane.f32.xlu0 %v7328
      %v7330 = vpop.xlane.xlu0 %7329
      %v7331 = vsel %vm1208, %v7319, 0.0
      %7332 = vadd.xlane.f32.xlu0 %v7331
      %v7333 = vpop.xlane.xlu0 %7332
      %v7334 = vsel %vm1208, %v7320, 0.0
      %7335 = vadd.xlane.f32.xlu0 %v7334
      %v7336 = vpop.xlane.xlu0 %7335
      %v7337 = vmul.f32 %v7327, %v1221
      %v7338 = vmul.f32 %v7330, %v1221
      %v7339 = vmul.f32 %v7333, %v1221
      %v7340 = vmul.f32 %v7336, %v1221
      %v7341 = vsub.f32 %v7317, %v7337
      %v7342 = vsub.f32 %v7318, %v7338
      %v7343 = vsub.f32 %v7319, %v7339
      %v7344 = vsub.f32 %v7320, %v7340
      %v7345 = vmul.f32 %v7341, %v7341
      %v7346 = vmul.f32 %v7342, %v7342
      %v7347 = vmul.f32 %v7343, %v7343
      %v7348 = vmul.f32 %v7344, %v7344
      %v7349 = vsel %vm1208, %v7345, 0.0
      %7350 = vadd.xlane.f32.xlu0 %v7349
      %v7351 = vpop.xlane.xlu0 %7350
      %v7352 = vsel %vm1208, %v7346, 0.0
      %7353 = vadd.xlane.f32.xlu0 %v7352
      %v7354 = vpop.xlane.xlu0 %7353
      %v7355 = vsel %vm1208, %v7347, 0.0
      %7356 = vadd.xlane.f32.xlu0 %v7355
      %v7357 = vpop.xlane.xlu0 %7356
      %v7358 = vsel %vm1208, %v7348, 0.0
      %7359 = vadd.xlane.f32.xlu0 %v7358
      %v7360 = vpop.xlane.xlu0 %7359
      %v7361 = vmul.f32 %v7351, %v1221
      %v7362 = vmul.f32 %v7354, %v1221
      %v7363 = vmul.f32 %v7357, %v1221
      %v7364 = vmul.f32 %v7360, %v1221
      %v7365 = vadd.f32 %v7361, 1e-05
      %v7366 = vadd.f32 %v7362, 1e-05
      %v7367 = vadd.f32 %v7363, 1e-05
      %v7368 = vadd.f32 %v7364, 1e-05
      %v7369 = vrsqrt.pop %v7365
      %v7370 = vrsqrt.pop %v7366
      %v7371 = vrsqrt.pop %v7367
      %v7372 = vrsqrt.pop %v7368
      %v7373 = vmul.f32 %v7341, %v7369
      %v7374 = vmul.f32 %v7342, %v7370
      %v7375 = vmul.f32 %v7343, %v7371
      %v7376 = vmul.f32 %v7344, %v7372
      %v7378 = vlaneseq
      %v7379 = vshrl.u32 %v7378, 7
      %v7380 = vsub.s32 0, %v7379
      %v7381 = vrot.slane %v7322, %v7380
      %v7383 = vmul.f32 %v7373, %v7381
      %v7384 = vmul.f32 %v7374, %v7381
      %v7385 = vmul.f32 %v7375, %v7381
      %v7386 = vmul.f32 %v7376, %v7381
      %v7388 = vlaneseq
      %v7389 = vshrl.u32 %v7388, 7
      %v7390 = vsub.s32 0, %v7389
      %v7391 = vrot.slane %v7324, %v7390
      %v7393 = vadd.f32 %v7383, %v7391
      %v7394 = vadd.f32 %v7384, %v7391
      %v7395 = vadd.f32 %v7385, %v7391
      %v7396 = vadd.f32 %v7386, %v7391
      %v7397 = vpack.c.bf16 %v7394, %v7393
      %v7398 = vpack.c.bf16 %v7396, %v7395
      %s7399 = scalar_lea.vmem %s12, 48
      %v7400 = vld [vmem:[%s7399] sm:$0xf]
      %v7401 = vld [vmem:[%s7399 + $0x4] sm:$0xf]
      %v7402 = vld [vmem:[%s7399 + $0x8] sm:$0xf]
      %v7403 = vld [vmem:[%s7399 + $0xc] sm:$0xf]
      %s7404 = scalar_lea.vmem %s13, 3
      %v7405 = vld [vmem:[%s7404] sm:$0x1]
      %v7407 = vlaneseq
      %v7408 = vshrl.u32 %v7407, 7
      %v7409 = vsub.s32 0, %v7408
      %v7410 = vrot.slane %v7405, %v7409
      %v7416 = vunpack.c.l.b16 %v7400
      %v7417 = vunpack.c.l.b16 %v7401
      %v7418 = vunpack.c.l.b16 %v7402
      %v7419 = vunpack.c.l.b16 %v7403
      %v7420 = vpack.c.b16 %v7417, %v7416
      %v7421 = vpack.c.b16 %v7419, %v7418
      %v7425 = vsel %vm1208, %v7397, 0
      %v7428 = vsel %vm1208, %v7398, 0
      %7430 = vmatprep.subr.bf16.mxu0 0
      %7431 = vmatpush1.bf16.msra.mxu0 %v7420
      %7432 = vmatprep.subr.bf16.mxu0 0
      %7433 = vmatpush1.bf16.msra.mxu0 %v7421
      %7434 = vmatprep.subr.bf16.mxu0 0
      %7435 = vmatpush1.bf16.msra.mxu0 0
      %7436 = vmatprep.subr.bf16.mxu0 0
      %7437 = vmatpush1.bf16.msra.mxu0 0
      %7438 = vmatprep.subr.bf16.mxu0 0
      %7439 = vmatpush1.bf16.msra.mxu0 0
      %7440 = vmatprep.subr.bf16.mxu0 0
      %7441 = vmatpush1.bf16.msra.mxu0 0
      %7442 = vmatprep.subr.bf16.mxu0 0
      %7443 = vmatpush1.bf16.msra.mxu0 0
      %7444 = vmatprep.subr.bf16.mxu0 0
      %7445 = vmatpush1.bf16.msra.mxu0 0
      %7446 = vmatprep.subr.bf16.mxu0 0
      %7447 = vmatpush1.bf16.msra.mxu0 0
      %7448 = vmatprep.subr.bf16.mxu0 0
      %7449 = vmatpush1.bf16.msra.mxu0 0
      %7450 = vmatprep.subr.bf16.mxu0 0
      %7451 = vmatpush1.bf16.msra.mxu0 0
      %7452 = vmatprep.subr.bf16.mxu0 0
      %7453 = vmatpush1.bf16.msra.mxu0 0
      %7454 = vmatprep.subr.bf16.mxu0 0
      %7455 = vmatpush1.bf16.msra.mxu0 0
      %7456 = vmatprep.subr.bf16.mxu0 0
      %7457 = vmatpush1.bf16.msra.mxu0 0
      %7458 = vmatprep.subr.bf16.mxu0 0
      %7459 = vmatpush1.bf16.msra.mxu0 0
      %7460 = vmatprep.subr.bf16.mxu0 0
      %7461 = vmatpush1.bf16.msra.mxu0 0
      %7462 = vmatprep.mubr.bf16.mxu0 0
      %7463 = vmatmul.mubr.bf16.gmra.mrb[0].mxu0 %v7425
      %v7464 = vpop.f32.mrb[0].mxu0
      %v7465 = vadd.f32 %v7410, %v7464
      %v7466 = vpop.f32.mrb[0].mxu0
      %v7467 = vpop.f32.mrb[0].mxu0
      %v7468 = vadd.f32 %v7410, %v7467
      %v7469 = vpop.f32.mrb[0].mxu0
      %7470 = vmatprep.mubr.bf16.mxu0 0
      %7471 = vmatmul.mubr.bf16.gmra.mrb[0].mxu0 %v7428
      %v7472 = vpop.f32.mrb[0].mxu0
      %v7473 = vadd.f32 %v7410, %v7472
      %v7474 = vpop.f32.mrb[0].mxu0
      %v7475 = vpop.f32.mrb[0].mxu0
      %v7476 = vadd.f32 %v7410, %v7475
      %v7477 = vpop.f32.mrb[0].mxu0
      %7478 = vdwg.mxu0
      %v7479 = vmul.f32 %v7465, %v7465
      %v7480 = vmul.f32 %v7468, %v7468
      %v7481 = vmul.f32 %v7473, %v7473
      %v7482 = vmul.f32 %v7476, %v7476
      %v7483 = vmul.f32 %v7465, %v7479
      %v7484 = vmul.f32 %v7468, %v7480
      %v7485 = vmul.f32 %v7473, %v7481
      %v7486 = vmul.f32 %v7476, %v7482
      %v7487 = vmul.f32 %v7483, 0.044715
      %v7488 = vmul.f32 %v7484, 0.044715
      %v7489 = vmul.f32 %v7485, 0.044715
      %v7490 = vmul.f32 %v7486, 0.044715
      %v7491 = vadd.f32 %v7465, %v7487
      %v7492 = vadd.f32 %v7468, %v7488
      %v7493 = vadd.f32 %v7473, %v7489
      %v7494 = vadd.f32 %v7476, %v7490
      %v7495 = vmul.f32 %v7491, 0.7978846
      %v7496 = vmul.f32 %v7492, 0.7978846
      %v7497 = vmul.f32 %v7493, 0.7978846
      %v7498 = vmul.f32 %v7494, 0.7978846
      %v7499 = vtanh.pop %v7495
      %v7500 = vtanh.pop %v7496
      %v7501 = vtanh.pop %v7497
      %v7502 = vtanh.pop %v7498
      %v7503 = vadd.f32 %v7499, 1.0
      %v7504 = vadd.f32 %v7500, 1.0
      %v7505 = vadd.f32 %v7501, 1.0
      %v7506 = vadd.f32 %v7502, 1.0
      %v7507 = vmul.f32 %v7503, 0.5
      %v7508 = vmul.f32 %v7504, 0.5
      %v7509 = vmul.f32 %v7505, 0.5
      %v7510 = vmul.f32 %v7506, 0.5
      %v7511 = vmul.f32 %v7465, %v7507
      %v7512 = vmul.f32 %v7468, %v7508
      %v7513 = vmul.f32 %v7473, %v7509
      %v7514 = vmul.f32 %v7476, %v7510
      %v7515 = vpack.c.bf16 %v7512, %v7511
      %v7516 = vpack.c.bf16 %v7514, %v7513
      %s7517 = scalar_lea.vmem %s14, 192
      %v7518 = vld [vmem:[%s7517] sm:$0xf]
      %v7519 = vld [vmem:[%s7517 + $0x4] sm:$0xf]
      %v7520 = vld [vmem:[%s7517 + $0x8] sm:$0xf]
      %v7521 = vld [vmem:[%s7517 + $0xc] sm:$0xf]
      %v7522 = vld [vmem:[%s7517 + $0x10] sm:$0xf]
      %v7523 = vld [vmem:[%s7517 + $0x14] sm:$0xf]
      %v7524 = vld [vmem:[%s7517 + $0x18] sm:$0xf]
      %v7525 = vld [vmem:[%s7517 + $0x1c] sm:$0xf]
      %v7526 = vld [vmem:[%s7517 + $0x20] sm:$0xf]
      %v7527 = vld [vmem:[%s7517 + $0x24] sm:$0xf]
      %v7528 = vld [vmem:[%s7517 + $0x28] sm:$0xf]
      %v7529 = vld [vmem:[%s7517 + $0x2c] sm:$0xf]
      %v7530 = vld [vmem:[%s7517 + $0x30] sm:$0xf]
      %v7531 = vld [vmem:[%s7517 + $0x34] sm:$0xf]
      %v7532 = vld [vmem:[%s7517 + $0x38] sm:$0xf]
      %v7533 = vld [vmem:[%s7517 + $0x3c] sm:$0xf]
      %s7534 = scalar_lea.vmem %s15, 3
      %v7535 = vld [vmem:[%s7534] sm:$0x1]
      %v7537 = vlaneseq
      %v7538 = vshrl.u32 %v7537, 7
      %v7539 = vsub.s32 0, %v7538
      %v7540 = vrot.slane %v7535, %v7539
      %v7558 = vunpack.c.l.b16 %v7518
      %v7559 = vunpack.c.l.b16 %v7519
      %v7560 = vunpack.c.l.b16 %v7520
      %v7561 = vunpack.c.l.b16 %v7521
      %v7562 = vunpack.c.l.b16 %v7522
      %v7563 = vunpack.c.l.b16 %v7523
      %v7564 = vunpack.c.l.b16 %v7524
      %v7565 = vunpack.c.l.b16 %v7525
      %v7566 = vunpack.c.l.b16 %v7526
      %v7567 = vunpack.c.l.b16 %v7527
      %v7568 = vunpack.c.l.b16 %v7528
      %v7569 = vunpack.c.l.b16 %v7529
      %v7570 = vunpack.c.l.b16 %v7530
      %v7571 = vunpack.c.l.b16 %v7531
      %v7572 = vunpack.c.l.b16 %v7532
      %v7573 = vunpack.c.l.b16 %v7533
      %v7574 = vpack.c.b16 %v7559, %v7558
      %v7575 = vpack.c.b16 %v7561, %v7560
      %v7576 = vpack.c.b16 %v7563, %v7562
      %v7577 = vpack.c.b16 %v7565, %v7564
      %v7578 = vpack.c.b16 %v7567, %v7566
      %v7579 = vpack.c.b16 %v7569, %v7568
      %v7580 = vpack.c.b16 %v7571, %v7570
      %v7581 = vpack.c.b16 %v7573, %v7572
      %7590 = vmatprep.subr.bf16.mxu0 0
      %7591 = vmatpush1.bf16.msra.mxu0 %v7574
      %7592 = vmatprep.subr.bf16.mxu0 0
      %7593 = vmatpush1.bf16.msra.mxu0 %v7575
      %7594 = vmatprep.subr.bf16.mxu0 0
      %7595 = vmatpush1.bf16.msra.mxu0 %v7576
      %7596 = vmatprep.subr.bf16.mxu0 0
      %7597 = vmatpush1.bf16.msra.mxu0 %v7577
      %7598 = vmatprep.subr.bf16.mxu0 0
      %7599 = vmatpush1.bf16.msra.mxu0 %v7578
      %7600 = vmatprep.subr.bf16.mxu0 0
      %7601 = vmatpush1.bf16.msra.mxu0 %v7579
      %7602 = vmatprep.subr.bf16.mxu0 0
      %7603 = vmatpush1.bf16.msra.mxu0 %v7580
      %7604 = vmatprep.subr.bf16.mxu0 0
      %7605 = vmatpush1.bf16.msra.mxu0 %v7581
      %7606 = vmatprep.subr.bf16.mxu0 0
      %7607 = vmatpush1.bf16.msra.mxu0 0
      %7608 = vmatprep.subr.bf16.mxu0 0
      %7609 = vmatpush1.bf16.msra.mxu0 0
      %7610 = vmatprep.subr.bf16.mxu0 0
      %7611 = vmatpush1.bf16.msra.mxu0 0
      %7612 = vmatprep.subr.bf16.mxu0 0
      %7613 = vmatpush1.bf16.msra.mxu0 0
      %7614 = vmatprep.subr.bf16.mxu0 0
      %7615 = vmatpush1.bf16.msra.mxu0 0
      %7616 = vmatprep.subr.bf16.mxu0 0
      %7617 = vmatpush1.bf16.msra.mxu0 0
      %7618 = vmatprep.subr.bf16.mxu0 0
      %7619 = vmatpush1.bf16.msra.mxu0 0
      %7620 = vmatprep.subr.bf16.mxu0 0
      %7621 = vmatpush1.bf16.msra.mxu0 0
      %7622 = vmatprep.mubr.bf16.mxu0 0
      %7623 = vmatmul.mubr.bf16.gmra.mrb[0].mxu0 %v7515
      %v7624 = vpop.f32.mrb[0].mxu0
      %v7625 = vadd.f32 %v7540, %v7624
      %v7626 = vpop.f32.mrb[0].mxu0
      %v7627 = vpop.f32.mrb[0].mxu0
      %v7628 = vadd.f32 %v7540, %v7627
      %v7629 = vpop.f32.mrb[0].mxu0
      %7630 = vmatprep.mubr.bf16.mxu0 0
      %7631 = vmatmul.mubr.bf16.gmra.mrb[0].mxu0 %v7516
      %v7632 = vpop.f32.mrb[0].mxu0
      %v7633 = vadd.f32 %v7540, %v7632
      %v7634 = vpop.f32.mrb[0].mxu0
      %v7635 = vpop.f32.mrb[0].mxu0
      %v7636 = vadd.f32 %v7540, %v7635
      %v7637 = vpop.f32.mrb[0].mxu0
      %7638 = vdwg.mxu0
      %v7639 = vadd.f32 %v7317, %v7625
      %v7640 = vadd.f32 %v7318, %v7628
      %v7641 = vadd.f32 %v7319, %v7633
      %v7642 = vadd.f32 %v7320, %v7636
      %v7643 = vpack.c.bf16 %v7640, %v7639
      %v7644 = vpack.c.bf16 %v7642, %v7641
      %v7645 = vld [vmem:[%s16] sm:$0xff]
      %v7646 = vld [vmem:[%s16 + $0x8] sm:$0xff]
      %v7647 = vld [vmem:[%s16 + $0x10] sm:$0xff]
      %v7648 = vld [vmem:[%s16 + $0x18] sm:$0xff]
      %v7649 = vld [vmem:[%s16 + $0x20] sm:$0xff]
      %v7650 = vld [vmem:[%s16 + $0x28] sm:$0xff]
      %v7651 = vld [vmem:[%s16 + $0x30] sm:$0xff]
      %v7652 = vld [vmem:[%s16 + $0x38] sm:$0xff]
      %v7653 = vld [vmem:[%s16 + $0x40] sm:$0xff]
      %v7654 = vld [vmem:[%s16 + $0x48] sm:$0xff]
      %v7655 = vld [vmem:[%s16 + $0x50] sm:$0xff]
      %v7656 = vld [vmem:[%s16 + $0x58] sm:$0xff]
      %v7657 = vld [vmem:[%s17] sm:$0x3f]
      %v7659 = vlaneseq
      %v7660 = vshrl.u32 %v7659, 7
      %v7661 = vsub.s32 0, %v7660
      %v7662 = vrot.slane %v7657, %v7661
      %v7663 = vlaneseq
      %v7664 = vshrl.u32 %v7663, 7
      %v7665 = vsub.s32 1, %v7664
      %v7666 = vrot.slane %v7657, %v7665
      %v7667 = vlaneseq
      %v7668 = vshrl.u32 %v7667, 7
      %v7669 = vsub.s32 2, %v7668
      %v7670 = vrot.slane %v7657, %v7669
      %v7671 = vlaneseq
      %v7672 = vshrl.u32 %v7671, 7
      %v7673 = vsub.s32 3, %v7672
      %v7674 = vrot.slane %v7657, %v7673
      %v7675 = vlaneseq
      %v7676 = vshrl.u32 %v7675, 7
      %v7677 = vsub.s32 4, %v7676
      %v7678 = vrot.slane %v7657, %v7677
      %v7679 = vlaneseq
      %v7680 = vshrl.u32 %v7679, 7
      %v7681 = vsub.s32 5, %v7680
      %v7682 = vrot.slane %v7657, %v7681
      %v7701 = vunpack.c.l.b16 %v7645
      %v7702 = vunpack.c.h.b16 %v7645
      %v7703 = vunpack.c.l.b16 %v7646
      %v7704 = vunpack.c.h.b16 %v7646
      %v7705 = vunpack.c.l.b16 %v7647
      %v7706 = vunpack.c.h.b16 %v7647
      %v7707 = vunpack.c.l.b16 %v7648
      %v7708 = vunpack.c.h.b16 %v7648
      %v7709 = vunpack.c.l.b16 %v7649
      %v7710 = vunpack.c.h.b16 %v7649
      %v7711 = vunpack.c.l.b16 %v7650
      %v7712 = vunpack.c.h.b16 %v7650
      %v7713 = vunpack.c.l.b16 %v7651
      %v7714 = vunpack.c.h.b16 %v7651
      %v7715 = vunpack.c.l.b16 %v7652
      %v7716 = vunpack.c.h.b16 %v7652
      %v7717 = vunpack.c.l.b16 %v7653
      %v7718 = vunpack.c.h.b16 %v7653
      %v7719 = vunpack.c.l.b16 %v7654
      %v7720 = vunpack.c.h.b16 %v7654
      %v7721 = vunpack.c.l.b16 %v7655
      %v7722 = vunpack.c.h.b16 %v7655
      %v7723 = vunpack.c.l.b16 %v7656
      %v7724 = vunpack.c.h.b16 %v7656
      %v7725 = vpack.c.b16 %v7707, %v7701
      %v7726 = vpack.c.b16 %v7708, %v7702
      %v7727 = vpack.c.b16 %v7709, %v7703
      %v7728 = vpack.c.b16 %v7710, %v7704
      %v7729 = vpack.c.b16 %v7711, %v7705
      %v7730 = vpack.c.b16 %v7712, %v7706
      %v7731 = vpack.c.b16 %v7719, %v7713
      %v7732 = vpack.c.b16 %v7720, %v7714
      %v7733 = vpack.c.b16 %v7721, %v7715
      %v7734 = vpack.c.b16 %v7722, %v7716
      %v7735 = vpack.c.b16 %v7723, %v7717
      %v7736 = vpack.c.b16 %v7724, %v7718
      %v7750 = vsel %vm1208, %v7643, 0
      %v7753 = vsel %vm1208, %v7644, 0
      %7755 = vmatprep.subr.bf16.mxu0 %v7726
      %7756 = vmatpush1.bf16.msra.mxu0 %v7725
      %7757 = vmatprep.subr.bf16.mxu0 %v7732
      %7758 = vmatpush1.bf16.msra.mxu0 %v7731
      %7759 = vmatprep.subr.bf16.mxu0 0
      %7760 = vmatpush1.bf16.msra.mxu0 0
      %7761 = vmatprep.subr.bf16.mxu0 0
      %7762 = vmatpush1.bf16.msra.mxu0 0
      %7763 = vmatprep.subr.bf16.mxu0 0
      %7764 = vmatpush1.bf16.msra.mxu0 0
      %7765 = vmatprep.subr.bf16.mxu0 0
      %7766 = vmatpush1.bf16.msra.mxu0 0
      %7767 = vmatprep.subr.bf16.mxu0 0
      %7768 = vmatpush1.bf16.msra.mxu0 0
      %7769 = vmatprep.subr.bf16.mxu0 0
      %7770 = vmatpush1.bf16.msra.mxu0 0
      %7771 = vmatprep.subr.bf16.mxu0 0
      %7772 = vmatpush1.bf16.msra.mxu0 0
      %7773 = vmatprep.subr.bf16.mxu0 0
      %7774 = vmatpush1.bf16.msra.mxu0 0
      %7775 = vmatprep.subr.bf16.mxu0 0
      %7776 = vmatpush1.bf16.msra.mxu0 0
      %7777 = vmatprep.subr.bf16.mxu0 0
      %7778 = vmatpush1.bf16.msra.mxu0 0
      %7779 = vmatprep.subr.bf16.mxu0 0
      %7780 = vmatpush1.bf16.msra.mxu0 0
      %7781 = vmatprep.subr.bf16.mxu0 0
      %7782 = vmatpush1.bf16.msra.mxu0 0
      %7783 = vmatprep.subr.bf16.mxu0 0
      %7784 = vmatpush1.bf16.msra.mxu0 0
      %7785 = vmatprep.subr.bf16.mxu0 0
      %7786 = vmatpush1.bf16.msra.mxu0 0
      %7787 = vmatprep.mubr.bf16.mxu0 0
      %7788 = vmatmul.mubr.bf16.gmra.mrb[0].mxu0 %v7750
      %v7789 = vpop.f32.mrb[0].mxu0
      %v7790 = vadd.f32 %v7662, %v7789
      %v7791 = vpop.f32.mrb[0].mxu0
      %v7792 = vadd.f32 %v7666, %v7791
      %v7793 = vpop.f32.mrb[0].mxu0
      %v7794 = vadd.f32 %v7662, %v7793
      %v7795 = vpop.f32.mrb[0].mxu0
      %v7796 = vadd.f32 %v7666, %v7795
      %7797 = vmatprep.mubr.bf16.mxu0 0
      %7798 = vmatmul.mubr.bf16.gmra.mrb[0].mxu0 %v7753
      %v7799 = vpop.f32.mrb[0].mxu0
      %v7800 = vadd.f32 %v7662, %v7799
      %v7801 = vpop.f32.mrb[0].mxu0
      %v7802 = vadd.f32 %v7666, %v7801
      %v7803 = vpop.f32.mrb[0].mxu0
      %v7804 = vadd.f32 %v7662, %v7803
      %v7805 = vpop.f32.mrb[0].mxu0
      %v7806 = vadd.f32 %v7666, %v7805
      %7807 = vdwg.mxu0
      %7808 = vmatprep.subr.bf16.mxu0 %v7728
      %7809 = vmatpush1.bf16.msra.mxu0 %v7727
      %7810 = vmatprep.subr.bf16.mxu0 %v7734
      %7811 = vmatpush1.bf16.msra.mxu0 %v7733
      %7812 = vmatprep.subr.bf16.mxu0 0
      %7813 = vmatpush1.bf16.msra.mxu0 0
      %7814 = vmatprep.subr.bf16.mxu0 0
      %7815 = vmatpush1.bf16.msra.mxu0 0
      %7816 = vmatprep.subr.bf16.mxu0 0
      %7817 = vmatpush1.bf16.msra.mxu0 0
      %7818 = vmatprep.subr.bf16.mxu0 0
      %7819 = vmatpush1.bf16.msra.mxu0 0
      %7820 = vmatprep.subr.bf16.mxu0 0
      %7821 = vmatpush1.bf16.msra.mxu0 0
      %7822 = vmatprep.subr.bf16.mxu0 0
      %7823 = vmatpush1.bf16.msra.mxu0 0
      %7824 = vmatprep.subr.bf16.mxu0 0
      %7825 = vmatpush1.bf16.msra.mxu0 0
      %7826 = vmatprep.subr.bf16.mxu0 0
      %7827 = vmatpush1.bf16.msra.mxu0 0
      %7828 = vmatprep.subr.bf16.mxu0 0
      %7829 = vmatpush1.bf16.msra.mxu0 0
      %7830 = vmatprep.subr.bf16.mxu0 0
      %7831 = vmatpush1.bf16.msra.mxu0 0
      %7832 = vmatprep.subr.bf16.mxu0 0
      %7833 = vmatpush1.bf16.msra.mxu0 0
      %7834 = vmatprep.subr.bf16.mxu0 0
      %7835 = vmatpush1.bf16.msra.mxu0 0
      %7836 = vmatprep.subr.bf16.mxu0 0
      %7837 = vmatpush1.bf16.msra.mxu0 0
      %7838 = vmatprep.subr.bf16.mxu0 0
      %7839 = vmatpush1.bf16.msra.mxu0 0
      %7840 = vmatprep.mubr.bf16.mxu0 0
      %7841 = vmatmul.mubr.bf16.gmra.mrb[0].mxu0 %v7750
      %v7842 = vpop.f32.mrb[0].mxu0
      %v7843 = vadd.f32 %v7670, %v7842
      %v7844 = vpop.f32.mrb[0].mxu0
      %v7845 = vadd.f32 %v7674, %v7844
      %v7846 = vpop.f32.mrb[0].mxu0
      %v7847 = vadd.f32 %v7670, %v7846
      %v7848 = vpop.f32.mrb[0].mxu0
      %v7849 = vadd.f32 %v7674, %v7848
      %7850 = vmatprep.mubr.bf16.mxu0 0
      %7851 = vmatmul.mubr.bf16.gmra.mrb[0].mxu0 %v7753
      %v7852 = vpop.f32.mrb[0].mxu0
      %v7853 = vadd.f32 %v7670, %v7852
      %v7854 = vpop.f32.mrb[0].mxu0
      %v7855 = vadd.f32 %v7674, %v7854
      %v7856 = vpop.f32.mrb[0].mxu0
      %v7857 = vadd.f32 %v7670, %v7856
      %v7858 = vpop.f32.mrb[0].mxu0
      %v7859 = vadd.f32 %v7674, %v7858
      %7860 = vdwg.mxu0
      %7861 = vmatprep.subr.bf16.mxu0 %v7730
      %7862 = vmatpush1.bf16.msra.mxu0 %v7729
      %7863 = vmatprep.subr.bf16.mxu0 %v7736
      %7864 = vmatpush1.bf16.msra.mxu0 %v7735
      %7865 = vmatprep.subr.bf16.mxu0 0
      %7866 = vmatpush1.bf16.msra.mxu0 0
      %7867 = vmatprep.subr.bf16.mxu0 0
      %7868 = vmatpush1.bf16.msra.mxu0 0
      %7869 = vmatprep.subr.bf16.mxu0 0
      %7870 = vmatpush1.bf16.msra.mxu0 0
      %7871 = vmatprep.subr.bf16.mxu0 0
      %7872 = vmatpush1.bf16.msra.mxu0 0
      %7873 = vmatprep.subr.bf16.mxu0 0
      %7874 = vmatpush1.bf16.msra.mxu0 0
      %7875 = vmatprep.subr.bf16.mxu0 0
      %7876 = vmatpush1.bf16.msra.mxu0 0
      %7877 = vmatprep.subr.bf16.mxu0 0
      %7878 = vmatpush1.bf16.msra.mxu0 0
      %7879 = vmatprep.subr.bf16.mxu0 0
      %7880 = vmatpush1.bf16.msra.mxu0 0
      %7881 = vmatprep.subr.bf16.mxu0 0
      %7882 = vmatpush1.bf16.msra.mxu0 0
      %7883 = vmatprep.subr.bf16.mxu0 0
      %7884 = vmatpush1.bf16.msra.mxu0 0
      %7885 = vmatprep.subr.bf16.mxu0 0
      %7886 = vmatpush1.bf16.msra.mxu0 0
      %7887 = vmatprep.subr.bf16.mxu0 0
      %7888 = vmatpush1.bf16.msra.mxu0 0
      %7889 = vmatprep.subr.bf16.mxu0 0
      %7890 = vmatpush1.bf16.msra.mxu0 0
      %7891 = vmatprep.subr.bf16.mxu0 0
      %7892 = vmatpush1.bf16.msra.mxu0 0
      %7893 = vmatprep.mubr.bf16.mxu0 0
      %7894 = vmatmul.mubr.bf16.gmra.mrb[0].mxu0 %v7750
      %v7895 = vpop.f32.mrb[0].mxu0
      %v7896 = vadd.f32 %v7678, %v7895
      %v7897 = vpop.f32.mrb[0].mxu0
      %v7898 = vadd.f32 %v7682, %v7897
      %v7899 = vpop.f32.mrb[0].mxu0
      %v7900 = vadd.f32 %v7678, %v7899
      %v7901 = vpop.f32.mrb[0].mxu0
      %v7902 = vadd.f32 %v7682, %v7901
      %7903 = vmatprep.mubr.bf16.mxu0 0
      %7904 = vmatmul.mubr.bf16.gmra.mrb[0].mxu0 %v7753
      %v7905 = vpop.f32.mrb[0].mxu0
      %v7906 = vadd.f32 %v7678, %v7905
      %v7907 = vpop.f32.mrb[0].mxu0
      %v7908 = vadd.f32 %v7682, %v7907
      %v7909 = vpop.f32.mrb[0].mxu0
      %v7910 = vadd.f32 %v7678, %v7909
      %v7911 = vpop.f32.mrb[0].mxu0
      %v7912 = vadd.f32 %v7682, %v7911
      %7913 = vdwg.mxu0
      %7914 = vst [vmem:[%s623] sm:$0xff] %v7790
      %7915 = vst [vmem:[%s623 + $0x8] sm:$0xff] %v7792
      %7916 = vst [vmem:[%s623 + $0x10] sm:$0xff] %v7843
      %7917 = vst [vmem:[%s623 + $0x18] sm:$0xff] %v7845
      %7918 = vst [vmem:[%s623 + $0x20] sm:$0xff] %v7896
      %7919 = vst [vmem:[%s623 + $0x28] sm:$0xff] %v7898
      %7920 = vst [vmem:[%s623 + $0x30] sm:$0xff] %v7794
      %7921 = vst [vmem:[%s623 + $0x38] sm:$0xff] %v7796
      %7922 = vst [vmem:[%s623 + $0x40] sm:$0xff] %v7847
      %7923 = vst [vmem:[%s623 + $0x48] sm:$0xff] %v7849
      %7924 = vst [vmem:[%s623 + $0x50] sm:$0xff] %v7900
      %7925 = vst [vmem:[%s623 + $0x58] sm:$0xff] %v7902
      %7926 = vst [vmem:[%s623 + $0x60] sm:$0xff] %v7800
      %7927 = vst [vmem:[%s623 + $0x68] sm:$0xff] %v7802
      %7928 = vst [vmem:[%s623 + $0x70] sm:$0xff] %v7853
      %7929 = vst [vmem:[%s623 + $0x78] sm:$0xff] %v7855
      %7930 = vst [vmem:[%s623 + $0x80] sm:$0xff] %v7906
      %7931 = vst [vmem:[%s623 + $0x88] sm:$0xff] %v7908
      %7932 = vst [vmem:[%s623 + $0x90] sm:$0xff] %v7804
      %7933 = vst [vmem:[%s623 + $0x98] sm:$0xff] %v7806
      %7934 = vst [vmem:[%s623 + $0xa0] sm:$0xff] %v7857
      %7935 = vst [vmem:[%s623 + $0xa8] sm:$0xff] %v7859
      %7936 = vst [vmem:[%s623 + $0xb0] sm:$0xff] %v7910
      %7937 = vst [vmem:[%s623 + $0xb8] sm:$0xff] %v7912
      %s7938 = smul.u32 4, %s31
      %p7939 = scmp.lt.s32.totalorder %s7938, 7
      %s7940 = scalar_select %p7939, %s7938, 7
      %s7941 = smul.addr %s7940, 8
      %s7942 = scalar_lea.vmem %s18, %s7941
      %s7943 = smul.u32 4, %s31
      %p7944 = scmp.lt.s32.totalorder %s7943, 7
      %s7945 = scalar_select %p7944, %s7943, 7
      %s7946 = smul.addr %s7945, 6
      %s7947 = smul.addr %s7946, 8
      %s7948 = scalar_lea.vmem %s19, %s7947
      // Predicated region
      $region93: #{siamese_vit_autoencoder_forward.1} parent=91 // pred_check
        %p7949 = pneg %p432
      $region94: #{siamese_vit_autoencoder_forward.1} parent=91 // pred_check_branch
        %7951 = sbr.rel (%p7949) target = $region96
      $region95: #{siamese_vit_autoencoder_forward.1} parent=91 // pred_region
        %s7952 = smul.u32 4, %s31
      $region96: #{siamese_vit_autoencoder_forward.1} parent=91 // pred_fallthru
        _
      // Predicated region
      $region97: #{siamese_vit_autoencoder_forward.1} parent=91 // pred_check
        %p7953 = pneg %p458
      $region98: #{siamese_vit_autoencoder_forward.1} parent=91 // pred_check_branch
        %7955 = sbr.rel (%p7953) target = $region100
      $region99: #{siamese_vit_autoencoder_forward.1} parent=91 // pred_region
        %s7956 = smul.u32 4, %s31
      $region100: #{siamese_vit_autoencoder_forward.1} parent=91 // pred_fallthru
        _
    $region92: #{siamese_vit_autoencoder_forward.1} parent=5 // pred_fallthru
      _
    %p7957 = scmp.le.s32.totalorder 2, %s26
    // Predicated region
    $region101: #{siamese_vit_autoencoder_forward.1} parent=5 // pred_check
      %p7958 = pneg %p7957
    $region102: #{siamese_vit_autoencoder_forward.1} parent=5 // pred_check_branch
      %7960 = sbr.rel (%p7958) target = $region104
    $region103: #{siamese_vit_autoencoder_forward.1} parent=5 // pred_region
      %s7961 = ssub.s32 %s26, 2
      // Predicated region
      $region105: #{siamese_vit_autoencoder_forward.1} parent=103 // pred_check
        %p7962 = pneg %p438
      $region106: #{siamese_vit_autoencoder_forward.1} parent=103 // pred_check_branch
        %7964 = sbr.rel (%p7962) target = $region108
      $region107: #{siamese_vit_autoencoder_forward.1} parent=103 // pred_region
        %s7965 = smul.u32 4, %s32
        %p7966 = scmp.lt.s32.totalorder %s7965, 7
        %s7967 = scalar_select %p7966, %s7965, 7
        %s7968 = smul.addr %s7967, 8
        %s7969 = scalar_lea.vmem %s18, %s7968
      $region108: #{siamese_vit_autoencoder_forward.1} parent=103 // pred_fallthru
        _
      // Predicated region
      $region109: #{siamese_vit_autoencoder_forward.1} parent=103 // pred_check
        %p7970 = pneg %p464
      $region110: #{siamese_vit_autoencoder_forward.1} parent=103 // pred_check_branch
        %7972 = sbr.rel (%p7970) target = $region112
      $region111: #{siamese_vit_autoencoder_forward.1} parent=103 // pred_region
        %s7973 = smul.u32 4, %s32
        %p7974 = scmp.lt.s32.totalorder %s7973, 7
        %s7975 = scalar_select %p7974, %s7973, 7
        %s7976 = smul.addr %s7975, 6
        %s7977 = smul.addr %s7976, 8
        %s7978 = scalar_lea.vmem %s19, %s7977
      $region112: #{siamese_vit_autoencoder_forward.1} parent=103 // pred_fallthru
        _
    $region104: #{siamese_vit_autoencoder_forward.1} parent=5 // pred_fallthru
      _
  $region6: #{siamese_vit_autoencoder_forward.1} parent=0 // loop_footer
    %s30 = sadd.s32 1, %s26
  $region7: #{siamese_vit_autoencoder_forward.1} parent=0 // loop_footer_branch
    %25 = sbr.rel target = $region3
  $region8: #{siamese_vit_autoencoder_forward.1} parent=0 // loop_exit
    _

</llo_original>
